<compile_context>
chip_gen: v6e
topology: v6e:2x2x1
jax: 0.10.0
libtpu: 0.0.40
codegen_flags: <defaults>
</compile_context>

<pallas_src>
import jax
import jax.numpy as jnp
from jax.experimental import pallas as pl
from jax.experimental.pallas import tpu as pltpu

C = 432
H = W = 28
KH = KW = 3
STRIDE = 2
PAD = 1
OH = OW = (H + 2 * PAD - KH) // STRIDE + 1        # 14
HP = H + 2 * PAD                                  # 30 (rows 0..28 referenced)
WP = W + 2 * PAD                                  # 30


def dw_conv_kernel(x_ref, w_ref, y_ref, xp_ref):
    """Depthwise 3x3, stride 2 in H, stride 1 in W (W subsample done by caller).

    x_ref : (H, W, C)          channels-last activation tile
    w_ref : (KH, KW, C)        per-channel taps
    y_ref : (OH, W, C)         stride-1-in-W partial output; caller keeps y[:, ::2, :]
    xp_ref: (2, HP//2, WP, C)  VMEM scratch: zero-padded, H-parity de-interleaved
            xp_ref[ph, hh, w, c] == x_pad[2*hh + ph, w, c]
    """
    # Build the padded, H-de-interleaved copy of the input in VMEM.
    # (Only static indices / plain offset slices -> cheap masked stores.)
    xp_ref[...] = jnp.zeros_like(xp_ref)
    for h in range(H):                       # static unroll: plain row copies
        r = h + PAD                          # row index in the padded image
        xp_ref[r % 2, r // 2, pl.ds(PAD, W), :] = x_ref[h]

    # 3x3 taps.  Padded row index of tap kh for output row oh is 2*oh + kh,
    # i.e. parity kh % 2 and half-index oh + kh // 2 in the scratch.
    acc = None
    for kh in range(KH):
        for kw in range(KW):
            seg = xp_ref[kh % 2, pl.ds(kh // 2, OH), pl.ds(kw, W), :]   # (OH, W, C)
            term = seg * w_ref[kh, kw, :][None, None, :]
            acc = term if acc is None else acc + term
    y_ref[...] = acc


_COST = pl.CostEstimate(
    flops=2 * KH * KW * OH * W * C,
    transcendentals=0,
    bytes_accessed=4 * (H * W * C + KH * KW * C + OH * W * C),
)


@jax.jit
def depthwise_conv2d_s2(x_nchw, w_oihw):
    """x_nchw: (1, C, H, W) f32; w_oihw: (C, 1, 3, 3) f32 -> (1, C, OH, OW) f32."""
    # Layout in: one transpose copy (no pad / de-interleave passes anymore).
    x_hwc = jnp.transpose(x_nchw[0], (1, 2, 0))          # (H, W, C)
    wgt = jnp.transpose(w_oihw[:, 0], (1, 2, 0))         # (KH, KW, C), ~15 KB

    y = pl.pallas_call(
        dw_conv_kernel,
        out_shape=jax.ShapeDtypeStruct((OH, W, C), jnp.float32),
        grid_spec=pltpu.PrefetchScalarGridSpec(
            num_scalar_prefetch=0,
            grid=(1,),
            in_specs=[
                pl.BlockSpec((H, W, C), lambda i: (0, 0, 0)),
                pl.BlockSpec((KH, KW, C), lambda i: (0, 0, 0)),
            ],
            out_specs=pl.BlockSpec((OH, W, C), lambda i: (0, 0, 0)),
            scratch_shapes=[pltpu.VMEM((2, HP // 2, WP, C), jnp.float32)],
        ),
        compiler_params=pltpu.CompilerParams(dimension_semantics=("arbitrary",)),
        cost_estimate=_COST,
    )(x_hwc, wgt)

    # Stride-2 W subsample + HWC -> CHW, fused into a single output copy.
    return jnp.transpose(y[:, ::STRIDE, :], (2, 0, 1))[None]   # (1, C, OH, OW)


if __name__ == "__main__":
    key = jax.random.PRNGKey(0)
    kx, kw_key = jax.random.split(key)
    # Same shapes as the PyTorch module's input / weight.
    x231 = jax.random.normal(kx, (1, C, H, W), dtype=jnp.float32)
    w74 = jax.random.normal(kw_key, (C, 1, KH, KW), dtype=jnp.float32) * 0.1

    out = depthwise_conv2d_s2(x231, w74)
    out = jax.block_until_ready(out)

    # Plain-JAX reference (torch.nn.Conv2d(432, 432, 3, 2, 1, groups=432, bias=False)).
    ref = jax.lax.conv_general_dilated(
        x231, w74,
        window_strides=(STRIDE, STRIDE),
        padding=((PAD, PAD), (PAD, PAD)),
        dimension_numbers=("NCHW", "OIHW", "NCHW"),
        feature_group_count=C,
    )
    assert out.shape == (1, C, OH, OW), out.shape
    assert jnp.allclose(out, ref, rtol=1e-5, atol=1e-4), float(jnp.max(jnp.abs(out - ref)))
    print("KERNEL_OK")
</pallas_src>

<mosaic_0001>
module attributes {stable_mosaic.version = 11 : i64} {
  func.func @dw_conv_kernel(%arg0: i32, %arg1: memref<28x28x432xf32, #tpu.memory_space<vmem>>, %arg2: memref<3x3x432xf32, #tpu.memory_space<vmem>>, %arg3: memref<14x28x432xf32, #tpu.memory_space<vmem>>, %arg4: memref<2x15x30x432xf32, #tpu.memory_space<vmem>>) attributes {dimension_semantics = [#tpu.dimension_semantics<arbitrary>], iteration_bounds = array<i64: 1>, scalar_prefetch = 0 : i64, scratch_operands = 1 : i64, tpu.core_type = #tpu.core_type<tc>, window_params = [{pipeline_mode = #tpu.pipeline_mode<synchronous>, transform_indices = @transform_0, window_bounds = array<i64: 28, 28, 432>}, {pipeline_mode = #tpu.pipeline_mode<synchronous>, transform_indices = @transform_1, window_bounds = array<i64: 3, 3, 432>}, {pipeline_mode = #tpu.pipeline_mode<synchronous>, transform_indices = @transform_2, window_bounds = array<i64: 14, 28, 432>}]} {
    %cst = arith.constant 0.000000e+00 : f32
    %0 = vector.broadcast %cst : f32 to vector<2x15x30x432xf32>
    %c0 = arith.constant 0 : index
    %c0_0 = arith.constant 0 : index
    %c0_1 = arith.constant 0 : index
    %c0_2 = arith.constant 0 : index
    %1 = vector.load %arg4[%c0, %c0_0, %c0_1, %c0_2] : memref<2x15x30x432xf32, #tpu.memory_space<vmem>>, vector<2x15x30x432xf32>
    tpu.vector_store %arg4[%c0, %c0_0, %c0_1, %c0_2], %0 {strides = array<i32>} : memref<2x15x30x432xf32, #tpu.memory_space<vmem>>, vector<2x15x30x432xf32>,
    %c0_3 = arith.constant 0 : index
    %c0_4 = arith.constant 0 : index
    %c0_5 = arith.constant 0 : index
    %2 = vector.load %arg1[%c0_3, %c0_4, %c0_5] : memref<28x28x432xf32, #tpu.memory_space<vmem>>, vector<1x28x432xf32>
    %3 = vector.shape_cast %2 : vector<1x28x432xf32> to vector<28x432xf32>
    %c1 = arith.constant 1 : index
    %c0_6 = arith.constant 0 : index
    %c1_7 = arith.constant 1 : index
    %c0_8 = arith.constant 0 : index
    %4 = vector.load %arg4[%c1, %c0_6, %c1_7, %c0_8] : memref<2x15x30x432xf32, #tpu.memory_space<vmem>>, vector<1x1x28x432xf32>
    %5 = vector.shape_cast %4 : vector<1x1x28x432xf32> to vector<28x432xf32>
    %6 = vector.shape_cast %3 : vector<28x432xf32> to vector<1x1x28x432xf32>
    tpu.vector_store %arg4[%c1, %c0_6, %c1_7, %c0_8], %6 {strides = array<i32>} : memref<2x15x30x432xf32, #tpu.memory_space<vmem>>, vector<1x1x28x432xf32>,
    %c1_9 = arith.constant 1 : index
    %c0_10 = arith.constant 0 : index
    %c0_11 = arith.constant 0 : index
    %7 = vector.load %arg1[%c1_9, %c0_10, %c0_11] : memref<28x28x432xf32, #tpu.memory_space<vmem>>, vector<1x28x432xf32>
    %8 = vector.shape_cast %7 : vector<1x28x432xf32> to vector<28x432xf32>
    %c0_12 = arith.constant 0 : index
    %c1_13 = arith.constant 1 : index
    %c1_14 = arith.constant 1 : index
    %c0_15 = arith.constant 0 : index
    %9 = vector.load %arg4[%c0_12, %c1_13, %c1_14, %c0_15] : memref<2x15x30x432xf32, #tpu.memory_space<vmem>>, vector<1x1x28x432xf32>
    %10 = vector.shape_cast %9 : vector<1x1x28x432xf32> to vector<28x432xf32>
    %11 = vector.shape_cast %8 : vector<28x432xf32> to vector<1x1x28x432xf32>
    tpu.vector_store %arg4[%c0_12, %c1_13, %c1_14, %c0_15], %11 {strides = array<i32>} : memref<2x15x30x432xf32, #tpu.memory_space<vmem>>, vector<1x1x28x432xf32>,
    %c2 = arith.constant 2 : index
    %c0_16 = arith.constant 0 : index
    %c0_17 = arith.constant 0 : index
    %12 = vector.load %arg1[%c2, %c0_16, %c0_17] : memref<28x28x432xf32, #tpu.memory_space<vmem>>, vector<1x28x432xf32>
    %13 = vector.shape_cast %12 : vector<1x28x432xf32> to vector<28x432xf32>
    %c1_18 = arith.constant 1 : index
    %c1_19 = arith.constant 1 : index
    %c1_20 = arith.constant 1 : index
    %c0_21 = arith.constant 0 : index
    %14 = vector.load %arg4[%c1_18, %c1_19, %c1_20, %c0_21] : memref<2x15x30x432xf32, #tpu.memory_space<vmem>>, vector<1x1x28x432xf32>
    %15 = vector.shape_cast %14 : vector<1x1x28x432xf32> to vector<28x432xf32>
    %16 = vector.shape_cast %13 : vector<28x432xf32> to vector<1x1x28x432xf32>
    tpu.vector_store %arg4[%c1_18, %c1_19, %c1_20, %c0_21], %16 {strides = array<i32>} : memref<2x15x30x432xf32, #tpu.memory_space<vmem>>, vector<1x1x28x432xf32>,
    %c3 = arith.constant 3 : index
    %c0_22 = arith.constant 0 : index
    %c0_23 = arith.constant 0 : index
    %17 = vector.load %arg1[%c3, %c0_22, %c0_23] : memref<28x28x432xf32, #tpu.memory_space<vmem>>, vector<1x28x432xf32>
    %18 = vector.shape_cast %17 : vector<1x28x432xf32> to vector<28x432xf32>
    %c0_24 = arith.constant 0 : index
    %c2_25 = arith.constant 2 : index
    %c1_26 = arith.constant 1 : index
    %c0_27 = arith.constant 0 : index
    %19 = vector.load %arg4[%c0_24, %c2_25, %c1_26, %c0_27] : memref<2x15x30x432xf32, #tpu.memory_space<vmem>>, vector<1x1x28x432xf32>
    %20 = vector.shape_cast %19 : vector<1x1x28x432xf32> to vector<28x432xf32>
    %21 = vector.shape_cast %18 : vector<28x432xf32> to vector<1x1x28x432xf32>
    tpu.vector_store %arg4[%c0_24, %c2_25, %c1_26, %c0_27], %21 {strides = array<i32>} : memref<2x15x30x432xf32, #tpu.memory_space<vmem>>, vector<1x1x28x432xf32>,
    %c4 = arith.constant 4 : index
    %c0_28 = arith.constant 0 : index
    %c0_29 = arith.constant 0 : index
    %22 = vector.load %arg1[%c4, %c0_28, %c0_29] : memref<28x28x432xf32, #tpu.memory_space<vmem>>, vector<1x28x432xf32>
    %23 = vector.shape_cast %22 : vector<1x28x432xf32> to vector<28x432xf32>
    %c1_30 = arith.constant 1 : index
    %c2_31 = arith.constant 2 : index
    %c1_32 = arith.constant 1 : index
    %c0_33 = arith.constant 0 : index
    %24 = vector.load %arg4[%c1_30, %c2_31, %c1_32, %c0_33] : memref<2x15x30x432xf32, #tpu.memory_space<vmem>>, vector<1x1x28x432xf32>
    %25 = vector.shape_cast %24 : vector<1x1x28x432xf32> to vector<28x432xf32>
    %26 = vector.shape_cast %23 : vector<28x432xf32> to vector<1x1x28x432xf32>
    tpu.vector_store %arg4[%c1_30, %c2_31, %c1_32, %c0_33], %26 {strides = array<i32>} : memref<2x15x30x432xf32, #tpu.memory_space<vmem>>, vector<1x1x28x432xf32>,
    %c5 = arith.constant 5 : index
    %c0_34 = arith.constant 0 : index
    %c0_35 = arith.constant 0 : index
    %27 = vector.load %arg1[%c5, %c0_34, %c0_35] : memref<28x28x432xf32, #tpu.memory_space<vmem>>, vector<1x28x432xf32>
    %28 = vector.shape_cast %27 : vector<1x28x432xf32> to vector<28x432xf32>
    %c0_36 = arith.constant 0 : index
    %c3_37 = arith.constant 3 : index
    %c1_38 = arith.constant 1 : index
    %c0_39 = arith.constant 0 : index
    %29 = vector.load %arg4[%c0_36, %c3_37, %c1_38, %c0_39] : memref<2x15x30x432xf32, #tpu.memory_space<vmem>>, vector<1x1x28x432xf32>
    %30 = vector.shape_cast %29 : vector<1x1x28x432xf32> to vector<28x432xf32>
    %31 = vector.shape_cast %28 : vector<28x432xf32> to vector<1x1x28x432xf32>
    tpu.vector_store %arg4[%c0_36, %c3_37, %c1_38, %c0_39], %31 {strides = array<i32>} : memref<2x15x30x432xf32, #tpu.memory_space<vmem>>, vector<1x1x28x432xf32>,
    %c6 = arith.constant 6 : index
    %c0_40 = arith.constant 0 : index
    %c0_41 = arith.constant 0 : index
    %32 = vector.load %arg1[%c6, %c0_40, %c0_41] : memref<28x28x432xf32, #tpu.memory_space<vmem>>, vector<1x28x432xf32>
    %33 = vector.shape_cast %32 : vector<1x28x432xf32> to vector<28x432xf32>
    %c1_42 = arith.constant 1 : index
    %c3_43 = arith.constant 3 : index
    %c1_44 = arith.constant 1 : index
    %c0_45 = arith.constant 0 : index
    %34 = vector.load %arg4[%c1_42, %c3_43, %c1_44, %c0_45] : memref<2x15x30x432xf32, #tpu.memory_space<vmem>>, vector<1x1x28x432xf32>
    %35 = vector.shape_cast %34 : vector<1x1x28x432xf32> to vector<28x432xf32>
    %36 = vector.shape_cast %33 : vector<28x432xf32> to vector<1x1x28x432xf32>
    tpu.vector_store %arg4[%c1_42, %c3_43, %c1_44, %c0_45], %36 {strides = array<i32>} : memref<2x15x30x432xf32, #tpu.memory_space<vmem>>, vector<1x1x28x432xf32>,
    %c7 = arith.constant 7 : index
    %c0_46 = arith.constant 0 : index
    %c0_47 = arith.constant 0 : index
    %37 = vector.load %arg1[%c7, %c0_46, %c0_47] : memref<28x28x432xf32, #tpu.memory_space<vmem>>, vector<1x28x432xf32>
    %38 = vector.shape_cast %37 : vector<1x28x432xf32> to vector<28x432xf32>
    %c0_48 = arith.constant 0 : index
    %c4_49 = arith.constant 4 : index
    %c1_50 = arith.constant 1 : index
    %c0_51 = arith.constant 0 : index
    %39 = vector.load %arg4[%c0_48, %c4_49, %c1_50, %c0_51] : memref<2x15x30x432xf32, #tpu.memory_space<vmem>>, vector<1x1x28x432xf32>
    %40 = vector.shape_cast %39 : vector<1x1x28x432xf32> to vector<28x432xf32>
    %41 = vector.shape_cast %38 : vector<28x432xf32> to vector<1x1x28x432xf32>
    tpu.vector_store %arg4[%c0_48, %c4_49, %c1_50, %c0_51], %41 {strides = array<i32>} : memref<2x15x30x432xf32, #tpu.memory_space<vmem>>, vector<1x1x28x432xf32>,
    %c8 = arith.constant 8 : index
    %c0_52 = arith.constant 0 : index
    %c0_53 = arith.constant 0 : index
    %42 = vector.load %arg1[%c8, %c0_52, %c0_53] : memref<28x28x432xf32, #tpu.memory_space<vmem>>, vector<1x28x432xf32>
    %43 = vector.shape_cast %42 : vector<1x28x432xf32> to vector<28x432xf32>
    %c1_54 = arith.constant 1 : index
    %c4_55 = arith.constant 4 : index
    %c1_56 = arith.constant 1 : index
    %c0_57 = arith.constant 0 : index
    %44 = vector.load %arg4[%c1_54, %c4_55, %c1_56, %c0_57] : memref<2x15x30x432xf32, #tpu.memory_space<vmem>>, vector<1x1x28x432xf32>
    %45 = vector.shape_cast %44 : vector<1x1x28x432xf32> to vector<28x432xf32>
    %46 = vector.shape_cast %43 : vector<28x432xf32> to vector<1x1x28x432xf32>
    tpu.vector_store %arg4[%c1_54, %c4_55, %c1_56, %c0_57], %46 {strides = array<i32>} : memref<2x15x30x432xf32, #tpu.memory_space<vmem>>, vector<1x1x28x432xf32>,
    %c9 = arith.constant 9 : index
    %c0_58 = arith.constant 0 : index
    %c0_59 = arith.constant 0 : index
    %47 = vector.load %arg1[%c9, %c0_58, %c0_59] : memref<28x28x432xf32, #tpu.memory_space<vmem>>, vector<1x28x432xf32>
    %48 = vector.shape_cast %47 : vector<1x28x432xf32> to vector<28x432xf32>
    %c0_60 = arith.constant 0 : index
    %c5_61 = arith.constant 5 : index
    %c1_62 = arith.constant 1 : index
    %c0_63 = arith.constant 0 : index
    %49 = vector.load %arg4[%c0_60, %c5_61, %c1_62, %c0_63] : memref<2x15x30x432xf32, #tpu.memory_space<vmem>>, vector<1x1x28x432xf32>
    %50 = vector.shape_cast %49 : vector<1x1x28x432xf32> to vector<28x432xf32>
    %51 = vector.shape_cast %48 : vector<28x432xf32> to vector<1x1x28x432xf32>
    tpu.vector_store %arg4[%c0_60, %c5_61, %c1_62, %c0_63], %51 {strides = array<i32>} : memref<2x15x30x432xf32, #tpu.memory_space<vmem>>, vector<1x1x28x432xf32>,
    %c10 = arith.constant 10 : index
    %c0_64 = arith.constant 0 : index
    %c0_65 = arith.constant 0 : index
    %52 = vector.load %arg1[%c10, %c0_64, %c0_65] : memref<28x28x432xf32, #tpu.memory_space<vmem>>, vector<1x28x432xf32>
    %53 = vector.shape_cast %52 : vector<1x28x432xf32> to vector<28x432xf32>
    %c1_66 = arith.constant 1 : index
    %c5_67 = arith.constant 5 : index
    %c1_68 = arith.constant 1 : index
    %c0_69 = arith.constant 0 : index
    %54 = vector.load %arg4[%c1_66, %c5_67, %c1_68, %c0_69] : memref<2x15x30x432xf32, #tpu.memory_space<vmem>>, vector<1x1x28x432xf32>
    %55 = vector.shape_cast %54 : vector<1x1x28x432xf32> to vector<28x432xf32>
    %56 = vector.shape_cast %53 : vector<28x432xf32> to vector<1x1x28x432xf32>
    tpu.vector_store %arg4[%c1_66, %c5_67, %c1_68, %c0_69], %56 {strides = array<i32>} : memref<2x15x30x432xf32, #tpu.memory_space<vmem>>, vector<1x1x28x432xf32>,
    %c11 = arith.constant 11 : index
    %c0_70 = arith.constant 0 : index
    %c0_71 = arith.constant 0 : index
    %57 = vector.load %arg1[%c11, %c0_70, %c0_71] : memref<28x28x432xf32, #tpu.memory_space<vmem>>, vector<1x28x432xf32>
    %58 = vector.shape_cast %57 : vector<1x28x432xf32> to vector<28x432xf32>
    %c0_72 = arith.constant 0 : index
    %c6_73 = arith.constant 6 : index
    %c1_74 = arith.constant 1 : index
    %c0_75 = arith.constant 0 : index
    %59 = vector.load %arg4[%c0_72, %c6_73, %c1_74, %c0_75] : memref<2x15x30x432xf32, #tpu.memory_space<vmem>>, vector<1x1x28x432xf32>
    %60 = vector.shape_cast %59 : vector<1x1x28x432xf32> to vector<28x432xf32>
    %61 = vector.shape_cast %58 : vector<28x432xf32> to vector<1x1x28x432xf32>
    tpu.vector_store %arg4[%c0_72, %c6_73, %c1_74, %c0_75], %61 {strides = array<i32>} : memref<2x15x30x432xf32, #tpu.memory_space<vmem>>, vector<1x1x28x432xf32>,
    %c12 = arith.constant 12 : index
    %c0_76 = arith.constant 0 : index
    %c0_77 = arith.constant 0 : index
    %62 = vector.load %arg1[%c12, %c0_76, %c0_77] : memref<28x28x432xf32, #tpu.memory_space<vmem>>, vector<1x28x432xf32>
    %63 = vector.shape_cast %62 : vector<1x28x432xf32> to vector<28x432xf32>
    %c1_78 = arith.constant 1 : index
    %c6_79 = arith.constant 6 : index
    %c1_80 = arith.constant 1 : index
    %c0_81 = arith.constant 0 : index
    %64 = vector.load %arg4[%c1_78, %c6_79, %c1_80, %c0_81] : memref<2x15x30x432xf32, #tpu.memory_space<vmem>>, vector<1x1x28x432xf32>
    %65 = vector.shape_cast %64 : vector<1x1x28x432xf32> to vector<28x432xf32>
    %66 = vector.shape_cast %63 : vector<28x432xf32> to vector<1x1x28x432xf32>
    tpu.vector_store %arg4[%c1_78, %c6_79, %c1_80, %c0_81], %66 {strides = array<i32>} : memref<2x15x30x432xf32, #tpu.memory_space<vmem>>, vector<1x1x28x432xf32>,
    %c13 = arith.constant 13 : index
    %c0_82 = arith.constant 0 : index
    %c0_83 = arith.constant 0 : index
    %67 = vector.load %arg1[%c13, %c0_82, %c0_83] : memref<28x28x432xf32, #tpu.memory_space<vmem>>, vector<1x28x432xf32>
    %68 = vector.shape_cast %67 : vector<1x28x432xf32> to vector<28x432xf32>
    %c0_84 = arith.constant 0 : index
    %c7_85 = arith.constant 7 : index
    %c1_86 = arith.constant 1 : index
    %c0_87 = arith.constant 0 : index
    %69 = vector.load %arg4[%c0_84, %c7_85, %c1_86, %c0_87] : memref<2x15x30x432xf32, #tpu.memory_space<vmem>>, vector<1x1x28x432xf32>
    %70 = vector.shape_cast %69 : vector<1x1x28x432xf32> to vector<28x432xf32>
    %71 = vector.shape_cast %68 : vector<28x432xf32> to vector<1x1x28x432xf32>
    tpu.vector_store %arg4[%c0_84, %c7_85, %c1_86, %c0_87], %71 {strides = array<i32>} : memref<2x15x30x432xf32, #tpu.memory_space<vmem>>, vector<1x1x28x432xf32>,
    %c14 = arith.constant 14 : index
    %c0_88 = arith.constant 0 : index
    %c0_89 = arith.constant 0 : index
    %72 = vector.load %arg1[%c14, %c0_88, %c0_89] : memref<28x28x432xf32, #tpu.memory_space<vmem>>, vector<1x28x432xf32>
    %73 = vector.shape_cast %72 : vector<1x28x432xf32> to vector<28x432xf32>
    %c1_90 = arith.constant 1 : index
    %c7_91 = arith.constant 7 : index
    %c1_92 = arith.constant 1 : index
    %c0_93 = arith.constant 0 : index
    %74 = vector.load %arg4[%c1_90, %c7_91, %c1_92, %c0_93] : memref<2x15x30x432xf32, #tpu.memory_space<vmem>>, vector<1x1x28x432xf32>
    %75 = vector.shape_cast %74 : vector<1x1x28x432xf32> to vector<28x432xf32>
    %76 = vector.shape_cast %73 : vector<28x432xf32> to vector<1x1x28x432xf32>
    tpu.vector_store %arg4[%c1_90, %c7_91, %c1_92, %c0_93], %76 {strides = array<i32>} : memref<2x15x30x432xf32, #tpu.memory_space<vmem>>, vector<1x1x28x432xf32>,
    %c15 = arith.constant 15 : index
    %c0_94 = arith.constant 0 : index
    %c0_95 = arith.constant 0 : index
    %77 = vector.load %arg1[%c15, %c0_94, %c0_95] : memref<28x28x432xf32, #tpu.memory_space<vmem>>, vector<1x28x432xf32>
    %78 = vector.shape_cast %77 : vector<1x28x432xf32> to vector<28x432xf32>
    %c0_96 = arith.constant 0 : index
    %c8_97 = arith.constant 8 : index
    %c1_98 = arith.constant 1 : index
    %c0_99 = arith.constant 0 : index
    %79 = vector.load %arg4[%c0_96, %c8_97, %c1_98, %c0_99] : memref<2x15x30x432xf32, #tpu.memory_space<vmem>>, vector<1x1x28x432xf32>
    %80 = vector.shape_cast %79 : vector<1x1x28x432xf32> to vector<28x432xf32>
    %81 = vector.shape_cast %78 : vector<28x432xf32> to vector<1x1x28x432xf32>
    tpu.vector_store %arg4[%c0_96, %c8_97, %c1_98, %c0_99], %81 {strides = array<i32>} : memref<2x15x30x432xf32, #tpu.memory_space<vmem>>, vector<1x1x28x432xf32>,
    %c16 = arith.constant 16 : index
    %c0_100 = arith.constant 0 : index
    %c0_101 = arith.constant 0 : index
    %82 = vector.load %arg1[%c16, %c0_100, %c0_101] : memref<28x28x432xf32, #tpu.memory_space<vmem>>, vector<1x28x432xf32>
    %83 = vector.shape_cast %82 : vector<1x28x432xf32> to vector<28x432xf32>
    %c1_102 = arith.constant 1 : index
    %c8_103 = arith.constant 8 : index
    %c1_104 = arith.constant 1 : index
    %c0_105 = arith.constant 0 : index
    %84 = vector.load %arg4[%c1_102, %c8_103, %c1_104, %c0_105] : memref<2x15x30x432xf32, #tpu.memory_space<vmem>>, vector<1x1x28x432xf32>
    %85 = vector.shape_cast %84 : vector<1x1x28x432xf32> to vector<28x432xf32>
    %86 = vector.shape_cast %83 : vector<28x432xf32> to vector<1x1x28x432xf32>
    tpu.vector_store %arg4[%c1_102, %c8_103, %c1_104, %c0_105], %86 {strides = array<i32>} : memref<2x15x30x432xf32, #tpu.memory_space<vmem>>, vector<1x1x28x432xf32>,
    %c17 = arith.constant 17 : index
    %c0_106 = arith.constant 0 : index
    %c0_107 = arith.constant 0 : index
    %87 = vector.load %arg1[%c17, %c0_106, %c0_107] : memref<28x28x432xf32, #tpu.memory_space<vmem>>, vector<1x28x432xf32>
    %88 = vector.shape_cast %87 : vector<1x28x432xf32> to vector<28x432xf32>
    %c0_108 = arith.constant 0 : index
    %c9_109 = arith.constant 9 : index
    %c1_110 = arith.constant 1 : index
    %c0_111 = arith.constant 0 : index
    %89 = vector.load %arg4[%c0_108, %c9_109, %c1_110, %c0_111] : memref<2x15x30x432xf32, #tpu.memory_space<vmem>>, vector<1x1x28x432xf32>
    %90 = vector.shape_cast %89 : vector<1x1x28x432xf32> to vector<28x432xf32>
    %91 = vector.shape_cast %88 : vector<28x432xf32> to vector<1x1x28x432xf32>
    tpu.vector_store %arg4[%c0_108, %c9_109, %c1_110, %c0_111], %91 {strides = array<i32>} : memref<2x15x30x432xf32, #tpu.memory_space<vmem>>, vector<1x1x28x432xf32>,
    %c18 = arith.constant 18 : index
    %c0_112 = arith.constant 0 : index
    %c0_113 = arith.constant 0 : index
    %92 = vector.load %arg1[%c18, %c0_112, %c0_113] : memref<28x28x432xf32, #tpu.memory_space<vmem>>, vector<1x28x432xf32>
    %93 = vector.shape_cast %92 : vector<1x28x432xf32> to vector<28x432xf32>
    %c1_114 = arith.constant 1 : index
    %c9_115 = arith.constant 9 : index
    %c1_116 = arith.constant 1 : index
    %c0_117 = arith.constant 0 : index
    %94 = vector.load %arg4[%c1_114, %c9_115, %c1_116, %c0_117] : memref<2x15x30x432xf32, #tpu.memory_space<vmem>>, vector<1x1x28x432xf32>
    %95 = vector.shape_cast %94 : vector<1x1x28x432xf32> to vector<28x432xf32>
    %96 = vector.shape_cast %93 : vector<28x432xf32> to vector<1x1x28x432xf32>
    tpu.vector_store %arg4[%c1_114, %c9_115, %c1_116, %c0_117], %96 {strides = array<i32>} : memref<2x15x30x432xf32, #tpu.memory_space<vmem>>, vector<1x1x28x432xf32>,
    %c19 = arith.constant 19 : index
    %c0_118 = arith.constant 0 : index
    %c0_119 = arith.constant 0 : index
    %97 = vector.load %arg1[%c19, %c0_118, %c0_119] : memref<28x28x432xf32, #tpu.memory_space<vmem>>, vector<1x28x432xf32>
    %98 = vector.shape_cast %97 : vector<1x28x432xf32> to vector<28x432xf32>
    %c0_120 = arith.constant 0 : index
    %c10_121 = arith.constant 10 : index
    %c1_122 = arith.constant 1 : index
    %c0_123 = arith.constant 0 : index
    %99 = vector.load %arg4[%c0_120, %c10_121, %c1_122, %c0_123] : memref<2x15x30x432xf32, #tpu.memory_space<vmem>>, vector<1x1x28x432xf32>
    %100 = vector.shape_cast %99 : vector<1x1x28x432xf32> to vector<28x432xf32>
    %101 = vector.shape_cast %98 : vector<28x432xf32> to vector<1x1x28x432xf32>
    tpu.vector_store %arg4[%c0_120, %c10_121, %c1_122, %c0_123], %101 {strides = array<i32>} : memref<2x15x30x432xf32, #tpu.memory_space<vmem>>, vector<1x1x28x432xf32>,
    %c20 = arith.constant 20 : index
    %c0_124 = arith.constant 0 : index
    %c0_125 = arith.constant 0 : index
    %102 = vector.load %arg1[%c20, %c0_124, %c0_125] : memref<28x28x432xf32, #tpu.memory_space<vmem>>, vector<1x28x432xf32>
    %103 = vector.shape_cast %102 : vector<1x28x432xf32> to vector<28x432xf32>
    %c1_126 = arith.constant 1 : index
    %c10_127 = arith.constant 10 : index
    %c1_128 = arith.constant 1 : index
    %c0_129 = arith.constant 0 : index
    %104 = vector.load %arg4[%c1_126, %c10_127, %c1_128, %c0_129] : memref<2x15x30x432xf32, #tpu.memory_space<vmem>>, vector<1x1x28x432xf32>
    %105 = vector.shape_cast %104 : vector<1x1x28x432xf32> to vector<28x432xf32>
    %106 = vector.shape_cast %103 : vector<28x432xf32> to vector<1x1x28x432xf32>
    tpu.vector_store %arg4[%c1_126, %c10_127, %c1_128, %c0_129], %106 {strides = array<i32>} : memref<2x15x30x432xf32, #tpu.memory_space<vmem>>, vector<1x1x28x432xf32>,
    %c21 = arith.constant 21 : index
    %c0_130 = arith.constant 0 : index
    %c0_131 = arith.constant 0 : index
    %107 = vector.load %arg1[%c21, %c0_130, %c0_131] : memref<28x28x432xf32, #tpu.memory_space<vmem>>, vector<1x28x432xf32>
    %108 = vector.shape_cast %107 : vector<1x28x432xf32> to vector<28x432xf32>
    %c0_132 = arith.constant 0 : index
    %c11_133 = arith.constant 11 : index
    %c1_134 = arith.constant 1 : index
    %c0_135 = arith.constant 0 : index
    %109 = vector.load %arg4[%c0_132, %c11_133, %c1_134, %c0_135] : memref<2x15x30x432xf32, #tpu.memory_space<vmem>>, vector<1x1x28x432xf32>
    %110 = vector.shape_cast %109 : vector<1x1x28x432xf32> to vector<28x432xf32>
    %111 = vector.shape_cast %108 : vector<28x432xf32> to vector<1x1x28x432xf32>
    tpu.vector_store %arg4[%c0_132, %c11_133, %c1_134, %c0_135], %111 {strides = array<i32>} : memref<2x15x30x432xf32, #tpu.memory_space<vmem>>, vector<1x1x28x432xf32>,
    %c22 = arith.constant 22 : index
    %c0_136 = arith.constant 0 : index
    %c0_137 = arith.constant 0 : index
    %112 = vector.load %arg1[%c22, %c0_136, %c0_137] : memref<28x28x432xf32, #tpu.memory_space<vmem>>, vector<1x28x432xf32>
    %113 = vector.shape_cast %112 : vector<1x28x432xf32> to vector<28x432xf32>
    %c1_138 = arith.constant 1 : index
    %c11_139 = arith.constant 11 : index
    %c1_140 = arith.constant 1 : index
    %c0_141 = arith.constant 0 : index
    %114 = vector.load %arg4[%c1_138, %c11_139, %c1_140, %c0_141] : memref<2x15x30x432xf32, #tpu.memory_space<vmem>>, vector<1x1x28x432xf32>
    %115 = vector.shape_cast %114 : vector<1x1x28x432xf32> to vector<28x432xf32>
    %116 = vector.shape_cast %113 : vector<28x432xf32> to vector<1x1x28x432xf32>
    tpu.vector_store %arg4[%c1_138, %c11_139, %c1_140, %c0_141], %116 {strides = array<i32>} : memref<2x15x30x432xf32, #tpu.memory_space<vmem>>, vector<1x1x28x432xf32>,
    %c23 = arith.constant 23 : index
    %c0_142 = arith.constant 0 : index
    %c0_143 = arith.constant 0 : index
    %117 = vector.load %arg1[%c23, %c0_142, %c0_143] : memref<28x28x432xf32, #tpu.memory_space<vmem>>, vector<1x28x432xf32>
    %118 = vector.shape_cast %117 : vector<1x28x432xf32> to vector<28x432xf32>
    %c0_144 = arith.constant 0 : index
    %c12_145 = arith.constant 12 : index
    %c1_146 = arith.constant 1 : index
    %c0_147 = arith.constant 0 : index
    %119 = vector.load %arg4[%c0_144, %c12_145, %c1_146, %c0_147] : memref<2x15x30x432xf32, #tpu.memory_space<vmem>>, vector<1x1x28x432xf32>
    %120 = vector.shape_cast %119 : vector<1x1x28x432xf32> to vector<28x432xf32>
    %121 = vector.shape_cast %118 : vector<28x432xf32> to vector<1x1x28x432xf32>
    tpu.vector_store %arg4[%c0_144, %c12_145, %c1_146, %c0_147], %121 {strides = array<i32>} : memref<2x15x30x432xf32, #tpu.memory_space<vmem>>, vector<1x1x28x432xf32>,
    %c24 = arith.constant 24 : index
    %c0_148 = arith.constant 0 : index
    %c0_149 = arith.constant 0 : index
    %122 = vector.load %arg1[%c24, %c0_148, %c0_149] : memref<28x28x432xf32, #tpu.memory_space<vmem>>, vector<1x28x432xf32>
    %123 = vector.shape_cast %122 : vector<1x28x432xf32> to vector<28x432xf32>
    %c1_150 = arith.constant 1 : index
    %c12_151 = arith.constant 12 : index
    %c1_152 = arith.constant 1 : index
    %c0_153 = arith.constant 0 : index
    %124 = vector.load %arg4[%c1_150, %c12_151, %c1_152, %c0_153] : memref<2x15x30x432xf32, #tpu.memory_space<vmem>>, vector<1x1x28x432xf32>
    %125 = vector.shape_cast %124 : vector<1x1x28x432xf32> to vector<28x432xf32>
    %126 = vector.shape_cast %123 : vector<28x432xf32> to vector<1x1x28x432xf32>
    tpu.vector_store %arg4[%c1_150, %c12_151, %c1_152, %c0_153], %126 {strides = array<i32>} : memref<2x15x30x432xf32, #tpu.memory_space<vmem>>, vector<1x1x28x432xf32>,
    %c25 = arith.constant 25 : index
    %c0_154 = arith.constant 0 : index
    %c0_155 = arith.constant 0 : index
    %127 = vector.load %arg1[%c25, %c0_154, %c0_155] : memref<28x28x432xf32, #tpu.memory_space<vmem>>, vector<1x28x432xf32>
    %128 = vector.shape_cast %127 : vector<1x28x432xf32> to vector<28x432xf32>
    %c0_156 = arith.constant 0 : index
    %c13_157 = arith.constant 13 : index
    %c1_158 = arith.constant 1 : index
    %c0_159 = arith.constant 0 : index
    %129 = vector.load %arg4[%c0_156, %c13_157, %c1_158, %c0_159] : memref<2x15x30x432xf32, #tpu.memory_space<vmem>>, vector<1x1x28x432xf32>
    %130 = vector.shape_cast %129 : vector<1x1x28x432xf32> to vector<28x432xf32>
    %131 = vector.shape_cast %128 : vector<28x432xf32> to vector<1x1x28x432xf32>
    tpu.vector_store %arg4[%c0_156, %c13_157, %c1_158, %c0_159], %131 {strides = array<i32>} : memref<2x15x30x432xf32, #tpu.memory_space<vmem>>, vector<1x1x28x432xf32>,
    %c26 = arith.constant 26 : index
    %c0_160 = arith.constant 0 : index
    %c0_161 = arith.constant 0 : index
    %132 = vector.load %arg1[%c26, %c0_160, %c0_161] : memref<28x28x432xf32, #tpu.memory_space<vmem>>, vector<1x28x432xf32>
    %133 = vector.shape_cast %132 : vector<1x28x432xf32> to vector<28x432xf32>
    %c1_162 = arith.constant 1 : index
    %c13_163 = arith.constant 13 : index
    %c1_164 = arith.constant 1 : index
    %c0_165 = arith.constant 0 : index
    %134 = vector.load %arg4[%c1_162, %c13_163, %c1_164, %c0_165] : memref<2x15x30x432xf32, #tpu.memory_space<vmem>>, vector<1x1x28x432xf32>
    %135 = vector.shape_cast %134 : vector<1x1x28x432xf32> to vector<28x432xf32>
    %136 = vector.shape_cast %133 : vector<28x432xf32> to vector<1x1x28x432xf32>
    tpu.vector_store %arg4[%c1_162, %c13_163, %c1_164, %c0_165], %136 {strides = array<i32>} : memref<2x15x30x432xf32, #tpu.memory_space<vmem>>, vector<1x1x28x432xf32>,
    %c27 = arith.constant 27 : index
    %c0_166 = arith.constant 0 : index
    %c0_167 = arith.constant 0 : index
    %137 = vector.load %arg1[%c27, %c0_166, %c0_167] : memref<28x28x432xf32, #tpu.memory_space<vmem>>, vector<1x28x432xf32>
    %138 = vector.shape_cast %137 : vector<1x28x432xf32> to vector<28x432xf32>
    %c0_168 = arith.constant 0 : index
    %c14_169 = arith.constant 14 : index
    %c1_170 = arith.constant 1 : index
    %c0_171 = arith.constant 0 : index
    %139 = vector.load %arg4[%c0_168, %c14_169, %c1_170, %c0_171] : memref<2x15x30x432xf32, #tpu.memory_space<vmem>>, vector<1x1x28x432xf32>
    %140 = vector.shape_cast %139 : vector<1x1x28x432xf32> to vector<28x432xf32>
    %141 = vector.shape_cast %138 : vector<28x432xf32> to vector<1x1x28x432xf32>
    tpu.vector_store %arg4[%c0_168, %c14_169, %c1_170, %c0_171], %141 {strides = array<i32>} : memref<2x15x30x432xf32, #tpu.memory_space<vmem>>, vector<1x1x28x432xf32>,
    %c0_172 = arith.constant 0 : index
    %c0_173 = arith.constant 0 : index
    %c0_174 = arith.constant 0 : index
    %c0_175 = arith.constant 0 : index
    %142 = vector.load %arg4[%c0_172, %c0_173, %c0_174, %c0_175] : memref<2x15x30x432xf32, #tpu.memory_space<vmem>>, vector<1x14x28x432xf32>
    %143 = vector.shape_cast %142 : vector<1x14x28x432xf32> to vector<14x28x432xf32>
    %c0_176 = arith.constant 0 : index
    %c0_177 = arith.constant 0 : index
    %c0_178 = arith.constant 0 : index
    %144 = vector.load %arg2[%c0_176, %c0_177, %c0_178] : memref<3x3x432xf32, #tpu.memory_space<vmem>>, vector<1x1x432xf32>
    %145 = vector.shape_cast %144 : vector<1x1x432xf32> to vector<432xf32>
    %146 = vector.shape_cast %145 : vector<432xf32> to vector<1x1x432xf32>
    %147 = vector.broadcast %146 : vector<1x1x432xf32> to vector<14x28x432xf32>
    %148 = arith.mulf %143, %147 : vector<14x28x432xf32>
    %c0_179 = arith.constant 0 : index
    %c0_180 = arith.constant 0 : index
    %c1_181 = arith.constant 1 : index
    %c0_182 = arith.constant 0 : index
    %149 = vector.load %arg4[%c0_179, %c0_180, %c1_181, %c0_182] : memref<2x15x30x432xf32, #tpu.memory_space<vmem>>, vector<1x14x28x432xf32>
    %150 = vector.shape_cast %149 : vector<1x14x28x432xf32> to vector<14x28x432xf32>
    %c0_183 = arith.constant 0 : index
    %c1_184 = arith.constant 1 : index
    %c0_185 = arith.constant 0 : index
    %151 = vector.load %arg2[%c0_183, %c1_184, %c0_185] : memref<3x3x432xf32, #tpu.memory_space<vmem>>, vector<1x1x432xf32>
    %152 = vector.shape_cast %151 : vector<1x1x432xf32> to vector<432xf32>
    %153 = vector.shape_cast %152 : vector<432xf32> to vector<1x1x432xf32>
    %154 = vector.broadcast %153 : vector<1x1x432xf32> to vector<14x28x432xf32>
    %155 = arith.mulf %150, %154 : vector<14x28x432xf32>
    %156 = arith.addf %148, %155 : vector<14x28x432xf32>
    %c0_186 = arith.constant 0 : index
    %c0_187 = arith.constant 0 : index
    %c2_188 = arith.constant 2 : index
    %c0_189 = arith.constant 0 : index
    %157 = vector.load %arg4[%c0_186, %c0_187, %c2_188, %c0_189] : memref<2x15x30x432xf32, #tpu.memory_space<vmem>>, vector<1x14x28x432xf32>
    %158 = vector.shape_cast %157 : vector<1x14x28x432xf32> to vector<14x28x432xf32>
    %c0_190 = arith.constant 0 : index
    %c2_191 = arith.constant 2 : index
    %c0_192 = arith.constant 0 : index
    %159 = vector.load %arg2[%c0_190, %c2_191, %c0_192] : memref<3x3x432xf32, #tpu.memory_space<vmem>>, vector<1x1x432xf32>
    %160 = vector.shape_cast %159 : vector<1x1x432xf32> to vector<432xf32>
    %161 = vector.shape_cast %160 : vector<432xf32> to vector<1x1x432xf32>
    %162 = vector.broadcast %161 : vector<1x1x432xf32> to vector<14x28x432xf32>
    %163 = arith.mulf %158, %162 : vector<14x28x432xf32>
    %164 = arith.addf %156, %163 : vector<14x28x432xf32>
    %c1_193 = arith.constant 1 : index
    %c0_194 = arith.constant 0 : index
    %c0_195 = arith.constant 0 : index
    %c0_196 = arith.constant 0 : index
    %165 = vector.load %arg4[%c1_193, %c0_194, %c0_195, %c0_196] : memref<2x15x30x432xf32, #tpu.memory_space<vmem>>, vector<1x14x28x432xf32>
    %166 = vector.shape_cast %165 : vector<1x14x28x432xf32> to vector<14x28x432xf32>
    %c1_197 = arith.constant 1 : index
    %c0_198 = arith.constant 0 : index
    %c0_199 = arith.constant 0 : index
    %167 = vector.load %arg2[%c1_197, %c0_198, %c0_199] : memref<3x3x432xf32, #tpu.memory_space<vmem>>, vector<1x1x432xf32>
    %168 = vector.shape_cast %167 : vector<1x1x432xf32> to vector<432xf32>
    %169 = vector.shape_cast %168 : vector<432xf32> to vector<1x1x432xf32>
    %170 = vector.broadcast %169 : vector<1x1x432xf32> to vector<14x28x432xf32>
    %171 = arith.mulf %166, %170 : vector<14x28x432xf32>
    %172 = arith.addf %164, %171 : vector<14x28x432xf32>
    %c1_200 = arith.constant 1 : index
    %c0_201 = arith.constant 0 : index
    %c1_202 = arith.constant 1 : index
    %c0_203 = arith.constant 0 : index
    %173 = vector.load %arg4[%c1_200, %c0_201, %c1_202, %c0_203] : memref<2x15x30x432xf32, #tpu.memory_space<vmem>>, vector<1x14x28x432xf32>
    %174 = vector.shape_cast %173 : vector<1x14x28x432xf32> to vector<14x28x432xf32>
    %c1_204 = arith.constant 1 : index
    %c1_205 = arith.constant 1 : index
    %c0_206 = arith.constant 0 : index
    %175 = vector.load %arg2[%c1_204, %c1_205, %c0_206] : memref<3x3x432xf32, #tpu.memory_space<vmem>>, vector<1x1x432xf32>
    %176 = vector.shape_cast %175 : vector<1x1x432xf32> to vector<432xf32>
    %177 = vector.shape_cast %176 : vector<432xf32> to vector<1x1x432xf32>
    %178 = vector.broadcast %177 : vector<1x1x432xf32> to vector<14x28x432xf32>
    %179 = arith.mulf %174, %178 : vector<14x28x432xf32>
    %180 = arith.addf %172, %179 : vector<14x28x432xf32>
    %c1_207 = arith.constant 1 : index
    %c0_208 = arith.constant 0 : index
    %c2_209 = arith.constant 2 : index
    %c0_210 = arith.constant 0 : index
    %181 = vector.load %arg4[%c1_207, %c0_208, %c2_209, %c0_210] : memref<2x15x30x432xf32, #tpu.memory_space<vmem>>, vector<1x14x28x432xf32>
    %182 = vector.shape_cast %181 : vector<1x14x28x432xf32> to vector<14x28x432xf32>
    %c1_211 = arith.constant 1 : index
    %c2_212 = arith.constant 2 : index
    %c0_213 = arith.constant 0 : index
    %183 = vector.load %arg2[%c1_211, %c2_212, %c0_213] : memref<3x3x432xf32, #tpu.memory_space<vmem>>, vector<1x1x432xf32>
    %184 = vector.shape_cast %183 : vector<1x1x432xf32> to vector<432xf32>
    %185 = vector.shape_cast %184 : vector<432xf32> to vector<1x1x432xf32>
    %186 = vector.broadcast %185 : vector<1x1x432xf32> to vector<14x28x432xf32>
    %187 = arith.mulf %182, %186 : vector<14x28x432xf32>
    %188 = arith.addf %180, %187 : vector<14x28x432xf32>
    %c0_214 = arith.constant 0 : index
    %c1_215 = arith.constant 1 : index
    %c0_216 = arith.constant 0 : index
    %c0_217 = arith.constant 0 : index
    %189 = vector.load %arg4[%c0_214, %c1_215, %c0_216, %c0_217] : memref<2x15x30x432xf32, #tpu.memory_space<vmem>>, vector<1x14x28x432xf32>
    %190 = vector.shape_cast %189 : vector<1x14x28x432xf32> to vector<14x28x432xf32>
    %c2_218 = arith.constant 2 : index
    %c0_219 = arith.constant 0 : index
    %c0_220 = arith.constant 0 : index
    %191 = vector.load %arg2[%c2_218, %c0_219, %c0_220] : memref<3x3x432xf32, #tpu.memory_space<vmem>>, vector<1x1x432xf32>
    %192 = vector.shape_cast %191 : vector<1x1x432xf32> to vector<432xf32>
    %193 = vector.shape_cast %192 : vector<432xf32> to vector<1x1x432xf32>
    %194 = vector.broadcast %193 : vector<1x1x432xf32> to vector<14x28x432xf32>
    %195 = arith.mulf %190, %194 : vector<14x28x432xf32>
    %196 = arith.addf %188, %195 : vector<14x28x432xf32>
    %c0_221 = arith.constant 0 : index
    %c1_222 = arith.constant 1 : index
    %c1_223 = arith.constant 1 : index
    %c0_224 = arith.constant 0 : index
    %197 = vector.load %arg4[%c0_221, %c1_222, %c1_223, %c0_224] : memref<2x15x30x432xf32, #tpu.memory_space<vmem>>, vector<1x14x28x432xf32>
    %198 = vector.shape_cast %197 : vector<1x14x28x432xf32> to vector<14x28x432xf32>
    %c2_225 = arith.constant 2 : index
    %c1_226 = arith.constant 1 : index
    %c0_227 = arith.constant 0 : index
    %199 = vector.load %arg2[%c2_225, %c1_226, %c0_227] : memref<3x3x432xf32, #tpu.memory_space<vmem>>, vector<1x1x432xf32>
    %200 = vector.shape_cast %199 : vector<1x1x432xf32> to vector<432xf32>
    %201 = vector.shape_cast %200 : vector<432xf32> to vector<1x1x432xf32>
    %202 = vector.broadcast %201 : vector<1x1x432xf32> to vector<14x28x432xf32>
    %203 = arith.mulf %198, %202 : vector<14x28x432xf32>
    %204 = arith.addf %196, %203 : vector<14x28x432xf32>
    %c0_228 = arith.constant 0 : index
    %c1_229 = arith.constant 1 : index
    %c2_230 = arith.constant 2 : index
    %c0_231 = arith.constant 0 : index
    %205 = vector.load %arg4[%c0_228, %c1_229, %c2_230, %c0_231] : memref<2x15x30x432xf32, #tpu.memory_space<vmem>>, vector<1x14x28x432xf32>
    %206 = vector.shape_cast %205 : vector<1x14x28x432xf32> to vector<14x28x432xf32>
    %c2_232 = arith.constant 2 : index
    %c2_233 = arith.constant 2 : index
    %c0_234 = arith.constant 0 : index
    %207 = vector.load %arg2[%c2_232, %c2_233, %c0_234] : memref<3x3x432xf32, #tpu.memory_space<vmem>>, vector<1x1x432xf32>
    %208 = vector.shape_cast %207 : vector<1x1x432xf32> to vector<432xf32>
    %209 = vector.shape_cast %208 : vector<432xf32> to vector<1x1x432xf32>
    %210 = vector.broadcast %209 : vector<1x1x432xf32> to vector<14x28x432xf32>
    %211 = arith.mulf %206, %210 : vector<14x28x432xf32>
    %212 = arith.addf %204, %211 : vector<14x28x432xf32>
    %c0_235 = arith.constant 0 : index
    %c0_236 = arith.constant 0 : index
    %c0_237 = arith.constant 0 : index
    %213 = vector.load %arg3[%c0_235, %c0_236, %c0_237] : memref<14x28x432xf32, #tpu.memory_space<vmem>>, vector<14x28x432xf32>
    tpu.vector_store %arg3[%c0_235, %c0_236, %c0_237], %212 {strides = array<i32>} : memref<14x28x432xf32, #tpu.memory_space<vmem>>, vector<14x28x432xf32>,
    return
  }
  func.func @transform_0(%arg0: i32) -> (i32, i32, i32) {
    %c0_i32 = arith.constant 0 : i32
    %c0_i32_0 = arith.constant 0 : i32
    %c0_i32_1 = arith.constant 0 : i32
    %c0_i32_2 = arith.constant 0 : i32
    return %c0_i32, %c0_i32_0, %c0_i32_1 : i32, i32, i32
  }
  func.func @transform_1(%arg0: i32) -> (i32, i32, i32) {
    %c0_i32 = arith.constant 0 : i32
    %c0_i32_0 = arith.constant 0 : i32
    %c0_i32_1 = arith.constant 0 : i32
    %c0_i32_2 = arith.constant 0 : i32
    return %c0_i32, %c0_i32_0, %c0_i32_1 : i32, i32, i32
  }
  func.func @transform_2(%arg0: i32) -> (i32, i32, i32) {
    %c0_i32 = arith.constant 0 : i32
    %c0_i32_0 = arith.constant 0 : i32
    %c0_i32_1 = arith.constant 0 : i32
    %c0_i32_2 = arith.constant 0 : i32
    return %c0_i32, %c0_i32_0, %c0_i32_1 : i32, i32, i32
  }
}

</mosaic_0001>

<llo_original>
// kernel: depthwise_conv2d_s2.1
$region0: #{depthwise_conv2d_s2.1}
  #allocation0 [shape = 'u32[]', space=smem, size = 0x4, offset = 0x4, fixed_abs, tag = 'smem constant byte address 0x4 - core index']
  #allocation1 [shape = 'u32[144,128]{1,0:T(1,128)}', space=vmem, size = 0x12000, scoped, tag = 'internal scratch']
  #allocation2 [shape = 'f32[2,15,30,432]{3,2,1,0:T(8,128)}', space=vmem, size = 0x1e0000, scoped, tag = 'scratch operand']
  %s0 = inlined_call_operand.vmem [shape: f32[28,28,432], index: 0, kind: input, shape index: {}]
  %s1 = inlined_call_operand.vmem [shape: f32[3,3,432], index: 1, kind: input, shape index: {}]
  %s2 = inlined_call_operand.vmem [shape: f32[14,28,432], index: 2, kind: output, shape index: {}]
  %s3 = sld [smem:[#allocation0]]
  $region18: #{depthwise_conv2d_s2.1} parent=0
    _
  %s5 = ssub.s32 1, %s3
  %s6 = scalar_select 0, %s5, %s3
  // Predicated region
  $region2: #{depthwise_conv2d_s2.1} parent=0 // pred_check
    _
  $region3: #{depthwise_conv2d_s2.1} parent=0 // pred_check_branch
    %8 = sbr.rel (0) target = $region5
  $region4: #{depthwise_conv2d_s2.1} parent=0 // pred_region
    _
  $region5: #{depthwise_conv2d_s2.1} parent=0 // pred_fallthru
    _
  // Predicated region
  $region6: #{depthwise_conv2d_s2.1} parent=0 // pred_check
    _
  $region7: #{depthwise_conv2d_s2.1} parent=0 // pred_check_branch
    %10 = sbr.rel (0) target = $region9
  $region8: #{depthwise_conv2d_s2.1} parent=0 // pred_region
    _
  $region9: #{depthwise_conv2d_s2.1} parent=0 // pred_fallthru
    _
  %11 = vst [vmem:[#allocation2] sm:$0xff] 0.0
  %12 = vst [vmem:[#allocation2 + $0x8] sm:$0xff] 0.0
  %13 = vst [vmem:[#allocation2 + $0x10] sm:$0xff] 0.0
  %vm14 = vcmask 392192
  %15 = vst.msk [vmem:[#allocation2 + $0x18] sm:$0xff] %vm14, 0.0
  %16 = vst [vmem:[#allocation2 + $0x20] sm:$0xff] 0.0
  %17 = vst [vmem:[#allocation2 + $0x28] sm:$0xff] 0.0
  %18 = vst [vmem:[#allocation2 + $0x30] sm:$0xff] 0.0
  %19 = vst.msk [vmem:[#allocation2 + $0x38] sm:$0xff] %vm14, 0.0
  %20 = vst [vmem:[#allocation2 + $0x40] sm:$0xff] 0.0
  %21 = vst [vmem:[#allocation2 + $0x48] sm:$0xff] 0.0
  %22 = vst [vmem:[#allocation2 + $0x50] sm:$0xff] 0.0
  %23 = vst.msk [vmem:[#allocation2 + $0x58] sm:$0xff] %vm14, 0.0
  %24 = vst [vmem:[#allocation2 + $0x60] sm:$0x3f] 0.0
  %25 = vst [vmem:[#allocation2 + $0x68] sm:$0x3f] 0.0
  %26 = vst [vmem:[#allocation2 + $0x70] sm:$0x3f] 0.0
  %vm27 = vcmask 390144
  %28 = vst.msk [vmem:[#allocation2 + $0x78] sm:$0x3f] %vm27, 0.0
  %29 = vst [vmem:[#allocation2 + $0x80] sm:$0xff] 0.0
  %30 = vst [vmem:[#allocation2 + $0x88] sm:$0xff] 0.0
  %31 = vst [vmem:[#allocation2 + $0x90] sm:$0xff] 0.0
  %32 = vst.msk [vmem:[#allocation2 + $0x98] sm:$0xff] %vm14, 0.0
  %33 = vst [vmem:[#allocation2 + $0xa0] sm:$0xff] 0.0
  %34 = vst [vmem:[#allocation2 + $0xa8] sm:$0xff] 0.0
  %35 = vst [vmem:[#allocation2 + $0xb0] sm:$0xff] 0.0
  %36 = vst.msk [vmem:[#allocation2 + $0xb8] sm:$0xff] %vm14, 0.0
  %37 = vst [vmem:[#allocation2 + $0xc0] sm:$0xff] 0.0
  %38 = vst [vmem:[#allocation2 + $0xc8] sm:$0xff] 0.0
  %39 = vst [vmem:[#allocation2 + $0xd0] sm:$0xff] 0.0
  %40 = vst.msk [vmem:[#allocation2 + $0xd8] sm:$0xff] %vm14, 0.0
  %41 = vst [vmem:[#allocation2 + $0xe0] sm:$0x3f] 0.0
  %42 = vst [vmem:[#allocation2 + $0xe8] sm:$0x3f] 0.0
  %43 = vst [vmem:[#allocation2 + $0xf0] sm:$0x3f] 0.0
  %44 = vst.msk [vmem:[#allocation2 + $0xf8] sm:$0x3f] %vm27, 0.0
  %45 = vst [vmem:[#allocation2 + $0x100] sm:$0xff] 0.0
  %46 = vst [vmem:[#allocation2 + $0x108] sm:$0xff] 0.0
  %47 = vst [vmem:[#allocation2 + $0x110] sm:$0xff] 0.0
  %48 = vst.msk [vmem:[#allocation2 + $0x118] sm:$0xff] %vm14, 0.0
  %49 = vst [vmem:[#allocation2 + $0x120] sm:$0xff] 0.0
  %50 = vst [vmem:[#allocation2 + $0x128] sm:$0xff] 0.0
  %51 = vst [vmem:[#allocation2 + $0x130] sm:$0xff] 0.0
  %52 = vst.msk [vmem:[#allocation2 + $0x138] sm:$0xff] %vm14, 0.0
  %53 = vst [vmem:[#allocation2 + $0x140] sm:$0xff] 0.0
  %54 = vst [vmem:[#allocation2 + $0x148] sm:$0xff] 0.0
  %55 = vst [vmem:[#allocation2 + $0x150] sm:$0xff] 0.0
  %56 = vst.msk [vmem:[#allocation2 + $0x158] sm:$0xff] %vm14, 0.0
  %57 = vst [vmem:[#allocation2 + $0x160] sm:$0x3f] 0.0
  %58 = vst [vmem:[#allocation2 + $0x168] sm:$0x3f] 0.0
  %59 = vst [vmem:[#allocation2 + $0x170] sm:$0x3f] 0.0
  %60 = vst.msk [vmem:[#allocation2 + $0x178] sm:$0x3f] %vm27, 0.0
  %61 = vst [vmem:[#allocation2 + $0x180] sm:$0xff] 0.0
  %62 = vst [vmem:[#allocation2 + $0x188] sm:$0xff] 0.0
  %63 = vst [vmem:[#allocation2 + $0x190] sm:$0xff] 0.0
  %64 = vst.msk [vmem:[#allocation2 + $0x198] sm:$0xff] %vm14, 0.0
  %65 = vst [vmem:[#allocation2 + $0x1a0] sm:$0xff] 0.0
  %66 = vst [vmem:[#allocation2 + $0x1a8] sm:$0xff] 0.0
  %67 = vst [vmem:[#allocation2 + $0x1b0] sm:$0xff] 0.0
  %68 = vst.msk [vmem:[#allocation2 + $0x1b8] sm:$0xff] %vm14, 0.0
  %69 = vst [vmem:[#allocation2 + $0x1c0] sm:$0xff] 0.0
  %70 = vst [vmem:[#allocation2 + $0x1c8] sm:$0xff] 0.0
  %71 = vst [vmem:[#allocation2 + $0x1d0] sm:$0xff] 0.0
  %72 = vst.msk [vmem:[#allocation2 + $0x1d8] sm:$0xff] %vm14, 0.0
  %73 = vst [vmem:[#allocation2 + $0x1e0] sm:$0x3f] 0.0
  %74 = vst [vmem:[#allocation2 + $0x1e8] sm:$0x3f] 0.0
  %75 = vst [vmem:[#allocation2 + $0x1f0] sm:$0x3f] 0.0
  %76 = vst.msk [vmem:[#allocation2 + $0x1f8] sm:$0x3f] %vm27, 0.0
  %77 = vst [vmem:[#allocation2 + $0x200] sm:$0xff] 0.0
  %78 = vst [vmem:[#allocation2 + $0x208] sm:$0xff] 0.0
  %79 = vst [vmem:[#allocation2 + $0x210] sm:$0xff] 0.0
  %80 = vst.msk [vmem:[#allocation2 + $0x218] sm:$0xff] %vm14, 0.0
  %81 = vst [vmem:[#allocation2 + $0x220] sm:$0xff] 0.0
  %82 = vst [vmem:[#allocation2 + $0x228] sm:$0xff] 0.0
  %83 = vst [vmem:[#allocation2 + $0x230] sm:$0xff] 0.0
  %84 = vst.msk [vmem:[#allocation2 + $0x238] sm:$0xff] %vm14, 0.0
  %85 = vst [vmem:[#allocation2 + $0x240] sm:$0xff] 0.0
  %86 = vst [vmem:[#allocation2 + $0x248] sm:$0xff] 0.0
  %87 = vst [vmem:[#allocation2 + $0x250] sm:$0xff] 0.0
  %88 = vst.msk [vmem:[#allocation2 + $0x258] sm:$0xff] %vm14, 0.0
  %89 = vst [vmem:[#allocation2 + $0x260] sm:$0x3f] 0.0
  %90 = vst [vmem:[#allocation2 + $0x268] sm:$0x3f] 0.0
  %91 = vst [vmem:[#allocation2 + $0x270] sm:$0x3f] 0.0
  %92 = vst.msk [vmem:[#allocation2 + $0x278] sm:$0x3f] %vm27, 0.0
  %93 = vst [vmem:[#allocation2 + $0x280] sm:$0xff] 0.0
  %94 = vst [vmem:[#allocation2 + $0x288] sm:$0xff] 0.0
  %95 = vst [vmem:[#allocation2 + $0x290] sm:$0xff] 0.0
  %96 = vst.msk [vmem:[#allocation2 + $0x298] sm:$0xff] %vm14, 0.0
  %97 = vst [vmem:[#allocation2 + $0x2a0] sm:$0xff] 0.0
  %98 = vst [vmem:[#allocation2 + $0x2a8] sm:$0xff] 0.0
  %99 = vst [vmem:[#allocation2 + $0x2b0] sm:$0xff] 0.0
  %100 = vst.msk [vmem:[#allocation2 + $0x2b8] sm:$0xff] %vm14, 0.0
  %101 = vst [vmem:[#allocation2 + $0x2c0] sm:$0xff] 0.0
  %102 = vst [vmem:[#allocation2 + $0x2c8] sm:$0xff] 0.0
  %103 = vst [vmem:[#allocation2 + $0x2d0] sm:$0xff] 0.0
  %104 = vst.msk [vmem:[#allocation2 + $0x2d8] sm:$0xff] %vm14, 0.0
  %105 = vst [vmem:[#allocation2 + $0x2e0] sm:$0x3f] 0.0
  %106 = vst [vmem:[#allocation2 + $0x2e8] sm:$0x3f] 0.0
  %107 = vst [vmem:[#allocation2 + $0x2f0] sm:$0x3f] 0.0
  %108 = vst.msk [vmem:[#allocation2 + $0x2f8] sm:$0x3f] %vm27, 0.0
  %109 = vst [vmem:[#allocation2 + $0x300] sm:$0xff] 0.0
  %110 = vst [vmem:[#allocation2 + $0x308] sm:$0xff] 0.0
  %111 = vst [vmem:[#allocation2 + $0x310] sm:$0xff] 0.0
  %112 = vst.msk [vmem:[#allocation2 + $0x318] sm:$0xff] %vm14, 0.0
  %113 = vst [vmem:[#allocation2 + $0x320] sm:$0xff] 0.0
  %114 = vst [vmem:[#allocation2 + $0x328] sm:$0xff] 0.0
  %115 = vst [vmem:[#allocation2 + $0x330] sm:$0xff] 0.0
  %116 = vst.msk [vmem:[#allocation2 + $0x338] sm:$0xff] %vm14, 0.0
  %117 = vst [vmem:[#allocation2 + $0x340] sm:$0xff] 0.0
  %118 = vst [vmem:[#allocation2 + $0x348] sm:$0xff] 0.0
  %119 = vst [vmem:[#allocation2 + $0x350] sm:$0xff] 0.0
  %120 = vst.msk [vmem:[#allocation2 + $0x358] sm:$0xff] %vm14, 0.0
  %121 = vst [vmem:[#allocation2 + $0x360] sm:$0x3f] 0.0
  %122 = vst [vmem:[#allocation2 + $0x368] sm:$0x3f] 0.0
  %123 = vst [vmem:[#allocation2 + $0x370] sm:$0x3f] 0.0
  %124 = vst.msk [vmem:[#allocation2 + $0x378] sm:$0x3f] %vm27, 0.0
  %125 = vst [vmem:[#allocation2 + $0x380] sm:$0xff] 0.0
  %126 = vst [vmem:[#allocation2 + $0x388] sm:$0xff] 0.0
  %127 = vst [vmem:[#allocation2 + $0x390] sm:$0xff] 0.0
  %128 = vst.msk [vmem:[#allocation2 + $0x398] sm:$0xff] %vm14, 0.0
  %129 = vst [vmem:[#allocation2 + $0x3a0] sm:$0xff] 0.0
  %130 = vst [vmem:[#allocation2 + $0x3a8] sm:$0xff] 0.0
  %131 = vst [vmem:[#allocation2 + $0x3b0] sm:$0xff] 0.0
  %132 = vst.msk [vmem:[#allocation2 + $0x3b8] sm:$0xff] %vm14, 0.0
  %133 = vst [vmem:[#allocation2 + $0x3c0] sm:$0xff] 0.0
  %134 = vst [vmem:[#allocation2 + $0x3c8] sm:$0xff] 0.0
  %135 = vst [vmem:[#allocation2 + $0x3d0] sm:$0xff] 0.0
  %136 = vst.msk [vmem:[#allocation2 + $0x3d8] sm:$0xff] %vm14, 0.0
  %137 = vst [vmem:[#allocation2 + $0x3e0] sm:$0x3f] 0.0
  %138 = vst [vmem:[#allocation2 + $0x3e8] sm:$0x3f] 0.0
  %139 = vst [vmem:[#allocation2 + $0x3f0] sm:$0x3f] 0.0
  %140 = vst.msk [vmem:[#allocation2 + $0x3f8] sm:$0x3f] %vm27, 0.0
  %141 = vst [vmem:[#allocation2 + $0x400] sm:$0xff] 0.0
  %142 = vst [vmem:[#allocation2 + $0x408] sm:$0xff] 0.0
  %143 = vst [vmem:[#allocation2 + $0x410] sm:$0xff] 0.0
  %144 = vst.msk [vmem:[#allocation2 + $0x418] sm:$0xff] %vm14, 0.0
  %145 = vst [vmem:[#allocation2 + $0x420] sm:$0xff] 0.0
  %146 = vst [vmem:[#allocation2 + $0x428] sm:$0xff] 0.0
  %147 = vst [vmem:[#allocation2 + $0x430] sm:$0xff] 0.0
  %148 = vst.msk [vmem:[#allocation2 + $0x438] sm:$0xff] %vm14, 0.0
  %149 = vst [vmem:[#allocation2 + $0x440] sm:$0xff] 0.0
  %150 = vst [vmem:[#allocation2 + $0x448] sm:$0xff] 0.0
  %151 = vst [vmem:[#allocation2 + $0x450] sm:$0xff] 0.0
  %152 = vst.msk [vmem:[#allocation2 + $0x458] sm:$0xff] %vm14, 0.0
  %153 = vst [vmem:[#allocation2 + $0x460] sm:$0x3f] 0.0
  %154 = vst [vmem:[#allocation2 + $0x468] sm:$0x3f] 0.0
  %155 = vst [vmem:[#allocation2 + $0x470] sm:$0x3f] 0.0
  %156 = vst.msk [vmem:[#allocation2 + $0x478] sm:$0x3f] %vm27, 0.0
  %157 = vst [vmem:[#allocation2 + $0x480] sm:$0xff] 0.0
  %158 = vst [vmem:[#allocation2 + $0x488] sm:$0xff] 0.0
  %159 = vst [vmem:[#allocation2 + $0x490] sm:$0xff] 0.0
  %160 = vst.msk [vmem:[#allocation2 + $0x498] sm:$0xff] %vm14, 0.0
  %161 = vst [vmem:[#allocation2 + $0x4a0] sm:$0xff] 0.0
  %162 = vst [vmem:[#allocation2 + $0x4a8] sm:$0xff] 0.0
  %163 = vst [vmem:[#allocation2 + $0x4b0] sm:$0xff] 0.0
  %164 = vst.msk [vmem:[#allocation2 + $0x4b8] sm:$0xff] %vm14, 0.0
  %165 = vst [vmem:[#allocation2 + $0x4c0] sm:$0xff] 0.0
  %166 = vst [vmem:[#allocation2 + $0x4c8] sm:$0xff] 0.0
  %167 = vst [vmem:[#allocation2 + $0x4d0] sm:$0xff] 0.0
  %168 = vst.msk [vmem:[#allocation2 + $0x4d8] sm:$0xff] %vm14, 0.0
  %169 = vst [vmem:[#allocation2 + $0x4e0] sm:$0x3f] 0.0
  %170 = vst [vmem:[#allocation2 + $0x4e8] sm:$0x3f] 0.0
  %171 = vst [vmem:[#allocation2 + $0x4f0] sm:$0x3f] 0.0
  %172 = vst.msk [vmem:[#allocation2 + $0x4f8] sm:$0x3f] %vm27, 0.0
  %173 = vst [vmem:[#allocation2 + $0x500] sm:$0xff] 0.0
  %174 = vst [vmem:[#allocation2 + $0x508] sm:$0xff] 0.0
  %175 = vst [vmem:[#allocation2 + $0x510] sm:$0xff] 0.0
  %176 = vst.msk [vmem:[#allocation2 + $0x518] sm:$0xff] %vm14, 0.0
  %177 = vst [vmem:[#allocation2 + $0x520] sm:$0xff] 0.0
  %178 = vst [vmem:[#allocation2 + $0x528] sm:$0xff] 0.0
  %179 = vst [vmem:[#allocation2 + $0x530] sm:$0xff] 0.0
  %180 = vst.msk [vmem:[#allocation2 + $0x538] sm:$0xff] %vm14, 0.0
  %181 = vst [vmem:[#allocation2 + $0x540] sm:$0xff] 0.0
  %182 = vst [vmem:[#allocation2 + $0x548] sm:$0xff] 0.0
  %183 = vst [vmem:[#allocation2 + $0x550] sm:$0xff] 0.0
  %184 = vst.msk [vmem:[#allocation2 + $0x558] sm:$0xff] %vm14, 0.0
  %185 = vst [vmem:[#allocation2 + $0x560] sm:$0x3f] 0.0
  %186 = vst [vmem:[#allocation2 + $0x568] sm:$0x3f] 0.0
  %187 = vst [vmem:[#allocation2 + $0x570] sm:$0x3f] 0.0
  %188 = vst.msk [vmem:[#allocation2 + $0x578] sm:$0x3f] %vm27, 0.0
  %189 = vst [vmem:[#allocation2 + $0x580] sm:$0xff] 0.0
  %190 = vst [vmem:[#allocation2 + $0x588] sm:$0xff] 0.0
  %191 = vst [vmem:[#allocation2 + $0x590] sm:$0xff] 0.0
  %192 = vst.msk [vmem:[#allocation2 + $0x598] sm:$0xff] %vm14, 0.0
  %193 = vst [vmem:[#allocation2 + $0x5a0] sm:$0xff] 0.0
  %194 = vst [vmem:[#allocation2 + $0x5a8] sm:$0xff] 0.0
  %195 = vst [vmem:[#allocation2 + $0x5b0] sm:$0xff] 0.0
  %196 = vst.msk [vmem:[#allocation2 + $0x5b8] sm:$0xff] %vm14, 0.0
  %197 = vst [vmem:[#allocation2 + $0x5c0] sm:$0xff] 0.0
  %198 = vst [vmem:[#allocation2 + $0x5c8] sm:$0xff] 0.0
  %199 = vst [vmem:[#allocation2 + $0x5d0] sm:$0xff] 0.0
  %200 = vst.msk [vmem:[#allocation2 + $0x5d8] sm:$0xff] %vm14, 0.0
  %201 = vst [vmem:[#allocation2 + $0x5e0] sm:$0x3f] 0.0
  %202 = vst [vmem:[#allocation2 + $0x5e8] sm:$0x3f] 0.0
  %203 = vst [vmem:[#allocation2 + $0x5f0] sm:$0x3f] 0.0
  %204 = vst.msk [vmem:[#allocation2 + $0x5f8] sm:$0x3f] %vm27, 0.0
  %205 = vst [vmem:[#allocation2 + $0x600] sm:$0xff] 0.0
  %206 = vst [vmem:[#allocation2 + $0x608] sm:$0xff] 0.0
  %207 = vst [vmem:[#allocation2 + $0x610] sm:$0xff] 0.0
  %208 = vst.msk [vmem:[#allocation2 + $0x618] sm:$0xff] %vm14, 0.0
  %209 = vst [vmem:[#allocation2 + $0x620] sm:$0xff] 0.0
  %210 = vst [vmem:[#allocation2 + $0x628] sm:$0xff] 0.0
  %211 = vst [vmem:[#allocation2 + $0x630] sm:$0xff] 0.0
  %212 = vst.msk [vmem:[#allocation2 + $0x638] sm:$0xff] %vm14, 0.0
  %213 = vst [vmem:[#allocation2 + $0x640] sm:$0xff] 0.0
  %214 = vst [vmem:[#allocation2 + $0x648] sm:$0xff] 0.0
  %215 = vst [vmem:[#allocation2 + $0x650] sm:$0xff] 0.0
  %216 = vst.msk [vmem:[#allocation2 + $0x658] sm:$0xff] %vm14, 0.0
  %217 = vst [vmem:[#allocation2 + $0x660] sm:$0x3f] 0.0
  %218 = vst [vmem:[#allocation2 + $0x668] sm:$0x3f] 0.0
  %219 = vst [vmem:[#allocation2 + $0x670] sm:$0x3f] 0.0
  %220 = vst.msk [vmem:[#allocation2 + $0x678] sm:$0x3f] %vm27, 0.0
  %221 = vst [vmem:[#allocation2 + $0x680] sm:$0xff] 0.0
  %222 = vst [vmem:[#allocation2 + $0x688] sm:$0xff] 0.0
  %223 = vst [vmem:[#allocation2 + $0x690] sm:$0xff] 0.0
  %224 = vst.msk [vmem:[#allocation2 + $0x698] sm:$0xff] %vm14, 0.0
  %225 = vst [vmem:[#allocation2 + $0x6a0] sm:$0xff] 0.0
  %226 = vst [vmem:[#allocation2 + $0x6a8] sm:$0xff] 0.0
  %227 = vst [vmem:[#allocation2 + $0x6b0] sm:$0xff] 0.0
  %228 = vst.msk [vmem:[#allocation2 + $0x6b8] sm:$0xff] %vm14, 0.0
  %229 = vst [vmem:[#allocation2 + $0x6c0] sm:$0xff] 0.0
  %230 = vst [vmem:[#allocation2 + $0x6c8] sm:$0xff] 0.0
  %231 = vst [vmem:[#allocation2 + $0x6d0] sm:$0xff] 0.0
  %232 = vst.msk [vmem:[#allocation2 + $0x6d8] sm:$0xff] %vm14, 0.0
  %233 = vst [vmem:[#allocation2 + $0x6e0] sm:$0x3f] 0.0
  %234 = vst [vmem:[#allocation2 + $0x6e8] sm:$0x3f] 0.0
  %235 = vst [vmem:[#allocation2 + $0x6f0] sm:$0x3f] 0.0
  %236 = vst.msk [vmem:[#allocation2 + $0x6f8] sm:$0x3f] %vm27, 0.0
  %237 = vst [vmem:[#allocation2 + $0x700] sm:$0xff] 0.0
  %238 = vst [vmem:[#allocation2 + $0x708] sm:$0xff] 0.0
  %239 = vst [vmem:[#allocation2 + $0x710] sm:$0xff] 0.0
  %240 = vst.msk [vmem:[#allocation2 + $0x718] sm:$0xff] %vm14, 0.0
  %241 = vst [vmem:[#allocation2 + $0x720] sm:$0xff] 0.0
  %242 = vst [vmem:[#allocation2 + $0x728] sm:$0xff] 0.0
  %243 = vst [vmem:[#allocation2 + $0x730] sm:$0xff] 0.0
  %244 = vst.msk [vmem:[#allocation2 + $0x738] sm:$0xff] %vm14, 0.0
  %245 = vst [vmem:[#allocation2 + $0x740] sm:$0xff] 0.0
  %246 = vst [vmem:[#allocation2 + $0x748] sm:$0xff] 0.0
  %247 = vst [vmem:[#allocation2 + $0x750] sm:$0xff] 0.0
  %248 = vst.msk [vmem:[#allocation2 + $0x758] sm:$0xff] %vm14, 0.0
  %249 = vst [vmem:[#allocation2 + $0x760] sm:$0x3f] 0.0
  %250 = vst [vmem:[#allocation2 + $0x768] sm:$0x3f] 0.0
  %251 = vst [vmem:[#allocation2 + $0x770] sm:$0x3f] 0.0
  %252 = vst.msk [vmem:[#allocation2 + $0x778] sm:$0x3f] %vm27, 0.0
  %253 = vst [vmem:[#allocation2 + $0x780] sm:$0xff] 0.0
  %254 = vst [vmem:[#allocation2 + $0x788] sm:$0xff] 0.0
  %255 = vst [vmem:[#allocation2 + $0x790] sm:$0xff] 0.0
  %256 = vst.msk [vmem:[#allocation2 + $0x798] sm:$0xff] %vm14, 0.0
  %257 = vst [vmem:[#allocation2 + $0x7a0] sm:$0xff] 0.0
  %258 = vst [vmem:[#allocation2 + $0x7a8] sm:$0xff] 0.0
  %259 = vst [vmem:[#allocation2 + $0x7b0] sm:$0xff] 0.0
  %260 = vst.msk [vmem:[#allocation2 + $0x7b8] sm:$0xff] %vm14, 0.0
  %261 = vst [vmem:[#allocation2 + $0x7c0] sm:$0xff] 0.0
  %262 = vst [vmem:[#allocation2 + $0x7c8] sm:$0xff] 0.0
  %263 = vst [vmem:[#allocation2 + $0x7d0] sm:$0xff] 0.0
  %264 = vst.msk [vmem:[#allocation2 + $0x7d8] sm:$0xff] %vm14, 0.0
  %265 = vst [vmem:[#allocation2 + $0x7e0] sm:$0x3f] 0.0
  %266 = vst [vmem:[#allocation2 + $0x7e8] sm:$0x3f] 0.0
  %267 = vst [vmem:[#allocation2 + $0x7f0] sm:$0x3f] 0.0
  %268 = vst.msk [vmem:[#allocation2 + $0x7f8] sm:$0x3f] %vm27, 0.0
  %269 = vst [vmem:[#allocation2 + $0x800] sm:$0xff] 0.0
  %270 = vst [vmem:[#allocation2 + $0x808] sm:$0xff] 0.0
  %271 = vst [vmem:[#allocation2 + $0x810] sm:$0xff] 0.0
  %272 = vst.msk [vmem:[#allocation2 + $0x818] sm:$0xff] %vm14, 0.0
  %273 = vst [vmem:[#allocation2 + $0x820] sm:$0xff] 0.0
  %274 = vst [vmem:[#allocation2 + $0x828] sm:$0xff] 0.0
  %275 = vst [vmem:[#allocation2 + $0x830] sm:$0xff] 0.0
  %276 = vst.msk [vmem:[#allocation2 + $0x838] sm:$0xff] %vm14, 0.0
  %277 = vst [vmem:[#allocation2 + $0x840] sm:$0xff] 0.0
  %278 = vst [vmem:[#allocation2 + $0x848] sm:$0xff] 0.0
  %279 = vst [vmem:[#allocation2 + $0x850] sm:$0xff] 0.0
  %280 = vst.msk [vmem:[#allocation2 + $0x858] sm:$0xff] %vm14, 0.0
  %281 = vst [vmem:[#allocation2 + $0x860] sm:$0x3f] 0.0
  %282 = vst [vmem:[#allocation2 + $0x868] sm:$0x3f] 0.0
  %283 = vst [vmem:[#allocation2 + $0x870] sm:$0x3f] 0.0
  %284 = vst.msk [vmem:[#allocation2 + $0x878] sm:$0x3f] %vm27, 0.0
  %285 = vst [vmem:[#allocation2 + $0x880] sm:$0xff] 0.0
  %286 = vst [vmem:[#allocation2 + $0x888] sm:$0xff] 0.0
  %287 = vst [vmem:[#allocation2 + $0x890] sm:$0xff] 0.0
  %288 = vst.msk [vmem:[#allocation2 + $0x898] sm:$0xff] %vm14, 0.0
  %289 = vst [vmem:[#allocation2 + $0x8a0] sm:$0xff] 0.0
  %290 = vst [vmem:[#allocation2 + $0x8a8] sm:$0xff] 0.0
  %291 = vst [vmem:[#allocation2 + $0x8b0] sm:$0xff] 0.0
  %292 = vst.msk [vmem:[#allocation2 + $0x8b8] sm:$0xff] %vm14, 0.0
  %293 = vst [vmem:[#allocation2 + $0x8c0] sm:$0xff] 0.0
  %294 = vst [vmem:[#allocation2 + $0x8c8] sm:$0xff] 0.0
  %295 = vst [vmem:[#allocation2 + $0x8d0] sm:$0xff] 0.0
  %296 = vst.msk [vmem:[#allocation2 + $0x8d8] sm:$0xff] %vm14, 0.0
  %297 = vst [vmem:[#allocation2 + $0x8e0] sm:$0x3f] 0.0
  %298 = vst [vmem:[#allocation2 + $0x8e8] sm:$0x3f] 0.0
  %299 = vst [vmem:[#allocation2 + $0x8f0] sm:$0x3f] 0.0
  %300 = vst.msk [vmem:[#allocation2 + $0x8f8] sm:$0x3f] %vm27, 0.0
  %301 = vst [vmem:[#allocation2 + $0x900] sm:$0xff] 0.0
  %302 = vst [vmem:[#allocation2 + $0x908] sm:$0xff] 0.0
  %303 = vst [vmem:[#allocation2 + $0x910] sm:$0xff] 0.0
  %304 = vst.msk [vmem:[#allocation2 + $0x918] sm:$0xff] %vm14, 0.0
  %305 = vst [vmem:[#allocation2 + $0x920] sm:$0xff] 0.0
  %306 = vst [vmem:[#allocation2 + $0x928] sm:$0xff] 0.0
  %307 = vst [vmem:[#allocation2 + $0x930] sm:$0xff] 0.0
  %308 = vst.msk [vmem:[#allocation2 + $0x938] sm:$0xff] %vm14, 0.0
  %309 = vst [vmem:[#allocation2 + $0x940] sm:$0xff] 0.0
  %310 = vst [vmem:[#allocation2 + $0x948] sm:$0xff] 0.0
  %311 = vst [vmem:[#allocation2 + $0x950] sm:$0xff] 0.0
  %312 = vst.msk [vmem:[#allocation2 + $0x958] sm:$0xff] %vm14, 0.0
  %313 = vst [vmem:[#allocation2 + $0x960] sm:$0x3f] 0.0
  %314 = vst [vmem:[#allocation2 + $0x968] sm:$0x3f] 0.0
  %315 = vst [vmem:[#allocation2 + $0x970] sm:$0x3f] 0.0
  %316 = vst.msk [vmem:[#allocation2 + $0x978] sm:$0x3f] %vm27, 0.0
  %317 = vst [vmem:[#allocation2 + $0x980] sm:$0xff] 0.0
  %318 = vst [vmem:[#allocation2 + $0x988] sm:$0xff] 0.0
  %319 = vst [vmem:[#allocation2 + $0x990] sm:$0xff] 0.0
  %320 = vst.msk [vmem:[#allocation2 + $0x998] sm:$0xff] %vm14, 0.0
  %321 = vst [vmem:[#allocation2 + $0x9a0] sm:$0xff] 0.0
  %322 = vst [vmem:[#allocation2 + $0x9a8] sm:$0xff] 0.0
  %323 = vst [vmem:[#allocation2 + $0x9b0] sm:$0xff] 0.0
  %324 = vst.msk [vmem:[#allocation2 + $0x9b8] sm:$0xff] %vm14, 0.0
  %325 = vst [vmem:[#allocation2 + $0x9c0] sm:$0xff] 0.0
  %326 = vst [vmem:[#allocation2 + $0x9c8] sm:$0xff] 0.0
  %327 = vst [vmem:[#allocation2 + $0x9d0] sm:$0xff] 0.0
  %328 = vst.msk [vmem:[#allocation2 + $0x9d8] sm:$0xff] %vm14, 0.0
  %329 = vst [vmem:[#allocation2 + $0x9e0] sm:$0x3f] 0.0
  %330 = vst [vmem:[#allocation2 + $0x9e8] sm:$0x3f] 0.0
  %331 = vst [vmem:[#allocation2 + $0x9f0] sm:$0x3f] 0.0
  %332 = vst.msk [vmem:[#allocation2 + $0x9f8] sm:$0x3f] %vm27, 0.0
  %333 = vst [vmem:[#allocation2 + $0xa00] sm:$0xff] 0.0
  %334 = vst [vmem:[#allocation2 + $0xa08] sm:$0xff] 0.0
  %335 = vst [vmem:[#allocation2 + $0xa10] sm:$0xff] 0.0
  %336 = vst.msk [vmem:[#allocation2 + $0xa18] sm:$0xff] %vm14, 0.0
  %337 = vst [vmem:[#allocation2 + $0xa20] sm:$0xff] 0.0
  %338 = vst [vmem:[#allocation2 + $0xa28] sm:$0xff] 0.0
  %339 = vst [vmem:[#allocation2 + $0xa30] sm:$0xff] 0.0
  %340 = vst.msk [vmem:[#allocation2 + $0xa38] sm:$0xff] %vm14, 0.0
  %341 = vst [vmem:[#allocation2 + $0xa40] sm:$0xff] 0.0
  %342 = vst [vmem:[#allocation2 + $0xa48] sm:$0xff] 0.0
  %343 = vst [vmem:[#allocation2 + $0xa50] sm:$0xff] 0.0
  %344 = vst.msk [vmem:[#allocation2 + $0xa58] sm:$0xff] %vm14, 0.0
  %345 = vst [vmem:[#allocation2 + $0xa60] sm:$0x3f] 0.0
  %346 = vst [vmem:[#allocation2 + $0xa68] sm:$0x3f] 0.0
  %347 = vst [vmem:[#allocation2 + $0xa70] sm:$0x3f] 0.0
  %348 = vst.msk [vmem:[#allocation2 + $0xa78] sm:$0x3f] %vm27, 0.0
  %349 = vst [vmem:[#allocation2 + $0xa80] sm:$0xff] 0.0
  %350 = vst [vmem:[#allocation2 + $0xa88] sm:$0xff] 0.0
  %351 = vst [vmem:[#allocation2 + $0xa90] sm:$0xff] 0.0
  %352 = vst.msk [vmem:[#allocation2 + $0xa98] sm:$0xff] %vm14, 0.0
  %353 = vst [vmem:[#allocation2 + $0xaa0] sm:$0xff] 0.0
  %354 = vst [vmem:[#allocation2 + $0xaa8] sm:$0xff] 0.0
  %355 = vst [vmem:[#allocation2 + $0xab0] sm:$0xff] 0.0
  %356 = vst.msk [vmem:[#allocation2 + $0xab8] sm:$0xff] %vm14, 0.0
  %357 = vst [vmem:[#allocation2 + $0xac0] sm:$0xff] 0.0
  %358 = vst [vmem:[#allocation2 + $0xac8] sm:$0xff] 0.0
  %359 = vst [vmem:[#allocation2 + $0xad0] sm:$0xff] 0.0
  %360 = vst.msk [vmem:[#allocation2 + $0xad8] sm:$0xff] %vm14, 0.0
  %361 = vst [vmem:[#allocation2 + $0xae0] sm:$0x3f] 0.0
  %362 = vst [vmem:[#allocation2 + $0xae8] sm:$0x3f] 0.0
  %363 = vst [vmem:[#allocation2 + $0xaf0] sm:$0x3f] 0.0
  %364 = vst.msk [vmem:[#allocation2 + $0xaf8] sm:$0x3f] %vm27, 0.0
  %365 = vst [vmem:[#allocation2 + $0xb00] sm:$0xff] 0.0
  %366 = vst [vmem:[#allocation2 + $0xb08] sm:$0xff] 0.0
  %367 = vst [vmem:[#allocation2 + $0xb10] sm:$0xff] 0.0
  %368 = vst.msk [vmem:[#allocation2 + $0xb18] sm:$0xff] %vm14, 0.0
  %369 = vst [vmem:[#allocation2 + $0xb20] sm:$0xff] 0.0
  %370 = vst [vmem:[#allocation2 + $0xb28] sm:$0xff] 0.0
  %371 = vst [vmem:[#allocation2 + $0xb30] sm:$0xff] 0.0
  %372 = vst.msk [vmem:[#allocation2 + $0xb38] sm:$0xff] %vm14, 0.0
  %373 = vst [vmem:[#allocation2 + $0xb40] sm:$0xff] 0.0
  %374 = vst [vmem:[#allocation2 + $0xb48] sm:$0xff] 0.0
  %375 = vst [vmem:[#allocation2 + $0xb50] sm:$0xff] 0.0
  %376 = vst.msk [vmem:[#allocation2 + $0xb58] sm:$0xff] %vm14, 0.0
  %377 = vst [vmem:[#allocation2 + $0xb60] sm:$0x3f] 0.0
  %378 = vst [vmem:[#allocation2 + $0xb68] sm:$0x3f] 0.0
  %379 = vst [vmem:[#allocation2 + $0xb70] sm:$0x3f] 0.0
  %380 = vst.msk [vmem:[#allocation2 + $0xb78] sm:$0x3f] %vm27, 0.0
  %381 = vst [vmem:[#allocation2 + $0xb80] sm:$0xff] 0.0
  %382 = vst [vmem:[#allocation2 + $0xb88] sm:$0xff] 0.0
  %383 = vst [vmem:[#allocation2 + $0xb90] sm:$0xff] 0.0
  %384 = vst.msk [vmem:[#allocation2 + $0xb98] sm:$0xff] %vm14, 0.0
  %385 = vst [vmem:[#allocation2 + $0xba0] sm:$0xff] 0.0
  %386 = vst [vmem:[#allocation2 + $0xba8] sm:$0xff] 0.0
  %387 = vst [vmem:[#allocation2 + $0xbb0] sm:$0xff] 0.0
  %388 = vst.msk [vmem:[#allocation2 + $0xbb8] sm:$0xff] %vm14, 0.0
  %389 = vst [vmem:[#allocation2 + $0xbc0] sm:$0xff] 0.0
  %390 = vst [vmem:[#allocation2 + $0xbc8] sm:$0xff] 0.0
  %391 = vst [vmem:[#allocation2 + $0xbd0] sm:$0xff] 0.0
  %392 = vst.msk [vmem:[#allocation2 + $0xbd8] sm:$0xff] %vm14, 0.0
  %393 = vst [vmem:[#allocation2 + $0xbe0] sm:$0x3f] 0.0
  %394 = vst [vmem:[#allocation2 + $0xbe8] sm:$0x3f] 0.0
  %395 = vst [vmem:[#allocation2 + $0xbf0] sm:$0x3f] 0.0
  %396 = vst.msk [vmem:[#allocation2 + $0xbf8] sm:$0x3f] %vm27, 0.0
  %397 = vst [vmem:[#allocation2 + $0xc00] sm:$0xff] 0.0
  %398 = vst [vmem:[#allocation2 + $0xc08] sm:$0xff] 0.0
  %399 = vst [vmem:[#allocation2 + $0xc10] sm:$0xff] 0.0
  %400 = vst.msk [vmem:[#allocation2 + $0xc18] sm:$0xff] %vm14, 0.0
  %401 = vst [vmem:[#allocation2 + $0xc20] sm:$0xff] 0.0
  %402 = vst [vmem:[#allocation2 + $0xc28] sm:$0xff] 0.0
  %403 = vst [vmem:[#allocation2 + $0xc30] sm:$0xff] 0.0
  %404 = vst.msk [vmem:[#allocation2 + $0xc38] sm:$0xff] %vm14, 0.0
  %405 = vst [vmem:[#allocation2 + $0xc40] sm:$0xff] 0.0
  %406 = vst [vmem:[#allocation2 + $0xc48] sm:$0xff] 0.0
  %407 = vst [vmem:[#allocation2 + $0xc50] sm:$0xff] 0.0
  %408 = vst.msk [vmem:[#allocation2 + $0xc58] sm:$0xff] %vm14, 0.0
  %409 = vst [vmem:[#allocation2 + $0xc60] sm:$0x3f] 0.0
  %410 = vst [vmem:[#allocation2 + $0xc68] sm:$0x3f] 0.0
  %411 = vst [vmem:[#allocation2 + $0xc70] sm:$0x3f] 0.0
  %412 = vst.msk [vmem:[#allocation2 + $0xc78] sm:$0x3f] %vm27, 0.0
  %413 = vst [vmem:[#allocation2 + $0xc80] sm:$0xff] 0.0
  %414 = vst [vmem:[#allocation2 + $0xc88] sm:$0xff] 0.0
  %415 = vst [vmem:[#allocation2 + $0xc90] sm:$0xff] 0.0
  %416 = vst.msk [vmem:[#allocation2 + $0xc98] sm:$0xff] %vm14, 0.0
  %417 = vst [vmem:[#allocation2 + $0xca0] sm:$0xff] 0.0
  %418 = vst [vmem:[#allocation2 + $0xca8] sm:$0xff] 0.0
  %419 = vst [vmem:[#allocation2 + $0xcb0] sm:$0xff] 0.0
  %420 = vst.msk [vmem:[#allocation2 + $0xcb8] sm:$0xff] %vm14, 0.0
  %421 = vst [vmem:[#allocation2 + $0xcc0] sm:$0xff] 0.0
  %422 = vst [vmem:[#allocation2 + $0xcc8] sm:$0xff] 0.0
  %423 = vst [vmem:[#allocation2 + $0xcd0] sm:$0xff] 0.0
  %424 = vst.msk [vmem:[#allocation2 + $0xcd8] sm:$0xff] %vm14, 0.0
  %425 = vst [vmem:[#allocation2 + $0xce0] sm:$0x3f] 0.0
  %426 = vst [vmem:[#allocation2 + $0xce8] sm:$0x3f] 0.0
  %427 = vst [vmem:[#allocation2 + $0xcf0] sm:$0x3f] 0.0
  %428 = vst.msk [vmem:[#allocation2 + $0xcf8] sm:$0x3f] %vm27, 0.0
  %429 = vst [vmem:[#allocation2 + $0xd00] sm:$0xff] 0.0
  %430 = vst [vmem:[#allocation2 + $0xd08] sm:$0xff] 0.0
  %431 = vst [vmem:[#allocation2 + $0xd10] sm:$0xff] 0.0
  %432 = vst.msk [vmem:[#allocation2 + $0xd18] sm:$0xff] %vm14, 0.0
  %433 = vst [vmem:[#allocation2 + $0xd20] sm:$0xff] 0.0
  %434 = vst [vmem:[#allocation2 + $0xd28] sm:$0xff] 0.0
  %435 = vst [vmem:[#allocation2 + $0xd30] sm:$0xff] 0.0
  %436 = vst.msk [vmem:[#allocation2 + $0xd38] sm:$0xff] %vm14, 0.0
  %437 = vst [vmem:[#allocation2 + $0xd40] sm:$0xff] 0.0
  %438 = vst [vmem:[#allocation2 + $0xd48] sm:$0xff] 0.0
  %439 = vst [vmem:[#allocation2 + $0xd50] sm:$0xff] 0.0
  %440 = vst.msk [vmem:[#allocation2 + $0xd58] sm:$0xff] %vm14, 0.0
  %441 = vst [vmem:[#allocation2 + $0xd60] sm:$0x3f] 0.0
  %442 = vst [vmem:[#allocation2 + $0xd68] sm:$0x3f] 0.0
  %443 = vst [vmem:[#allocation2 + $0xd70] sm:$0x3f] 0.0
  %444 = vst.msk [vmem:[#allocation2 + $0xd78] sm:$0x3f] %vm27, 0.0
  %445 = vst [vmem:[#allocation2 + $0xd80] sm:$0xff] 0.0
  %446 = vst [vmem:[#allocation2 + $0xd88] sm:$0xff] 0.0
  %447 = vst [vmem:[#allocation2 + $0xd90] sm:$0xff] 0.0
  %448 = vst.msk [vmem:[#allocation2 + $0xd98] sm:$0xff] %vm14, 0.0
  %449 = vst [vmem:[#allocation2 + $0xda0] sm:$0xff] 0.0
  %450 = vst [vmem:[#allocation2 + $0xda8] sm:$0xff] 0.0
  %451 = vst [vmem:[#allocation2 + $0xdb0] sm:$0xff] 0.0
  %452 = vst.msk [vmem:[#allocation2 + $0xdb8] sm:$0xff] %vm14, 0.0
  %453 = vst [vmem:[#allocation2 + $0xdc0] sm:$0xff] 0.0
  %454 = vst [vmem:[#allocation2 + $0xdc8] sm:$0xff] 0.0
  %455 = vst [vmem:[#allocation2 + $0xdd0] sm:$0xff] 0.0
  %456 = vst.msk [vmem:[#allocation2 + $0xdd8] sm:$0xff] %vm14, 0.0
  %457 = vst [vmem:[#allocation2 + $0xde0] sm:$0x3f] 0.0
  %458 = vst [vmem:[#allocation2 + $0xde8] sm:$0x3f] 0.0
  %459 = vst [vmem:[#allocation2 + $0xdf0] sm:$0x3f] 0.0
  %460 = vst.msk [vmem:[#allocation2 + $0xdf8] sm:$0x3f] %vm27, 0.0
  %461 = vst [vmem:[#allocation2 + $0xe00] sm:$0xff] 0.0
  %462 = vst [vmem:[#allocation2 + $0xe08] sm:$0xff] 0.0
  %463 = vst [vmem:[#allocation2 + $0xe10] sm:$0xff] 0.0
  %464 = vst.msk [vmem:[#allocation2 + $0xe18] sm:$0xff] %vm14, 0.0
  %465 = vst [vmem:[#allocation2 + $0xe20] sm:$0xff] 0.0
  %466 = vst [vmem:[#allocation2 + $0xe28] sm:$0xff] 0.0
  %467 = vst [vmem:[#allocation2 + $0xe30] sm:$0xff] 0.0
  %468 = vst.msk [vmem:[#allocation2 + $0xe38] sm:$0xff] %vm14, 0.0
  %469 = vst [vmem:[#allocation2 + $0xe40] sm:$0xff] 0.0
  %470 = vst [vmem:[#allocation2 + $0xe48] sm:$0xff] 0.0
  %471 = vst [vmem:[#allocation2 + $0xe50] sm:$0xff] 0.0
  %472 = vst.msk [vmem:[#allocation2 + $0xe58] sm:$0xff] %vm14, 0.0
  %473 = vst [vmem:[#allocation2 + $0xe60] sm:$0x3f] 0.0
  %474 = vst [vmem:[#allocation2 + $0xe68] sm:$0x3f] 0.0
  %475 = vst [vmem:[#allocation2 + $0xe70] sm:$0x3f] 0.0
  %476 = vst.msk [vmem:[#allocation2 + $0xe78] sm:$0x3f] %vm27, 0.0
  %477 = vst [vmem:[#allocation2 + $0xe80] sm:$0xff] 0.0
  %478 = vst [vmem:[#allocation2 + $0xe88] sm:$0xff] 0.0
  %479 = vst [vmem:[#allocation2 + $0xe90] sm:$0xff] 0.0
  %480 = vst.msk [vmem:[#allocation2 + $0xe98] sm:$0xff] %vm14, 0.0
  %481 = vst [vmem:[#allocation2 + $0xea0] sm:$0xff] 0.0
  %482 = vst [vmem:[#allocation2 + $0xea8] sm:$0xff] 0.0
  %483 = vst [vmem:[#allocation2 + $0xeb0] sm:$0xff] 0.0
  %484 = vst.msk [vmem:[#allocation2 + $0xeb8] sm:$0xff] %vm14, 0.0
  %485 = vst [vmem:[#allocation2 + $0xec0] sm:$0xff] 0.0
  %486 = vst [vmem:[#allocation2 + $0xec8] sm:$0xff] 0.0
  %487 = vst [vmem:[#allocation2 + $0xed0] sm:$0xff] 0.0
  %488 = vst.msk [vmem:[#allocation2 + $0xed8] sm:$0xff] %vm14, 0.0
  %489 = vst [vmem:[#allocation2 + $0xee0] sm:$0x3f] 0.0
  %490 = vst [vmem:[#allocation2 + $0xee8] sm:$0x3f] 0.0
  %491 = vst [vmem:[#allocation2 + $0xef0] sm:$0x3f] 0.0
  %492 = vst.msk [vmem:[#allocation2 + $0xef8] sm:$0x3f] %vm27, 0.0
  %v493 = vld [vmem:[%s0] sm:$0xff]
  %v494 = vld [vmem:[%s0 + $0x8] sm:$0xff]
  %v495 = vld [vmem:[%s0 + $0x10] sm:$0xff]
  %v496 = vld [vmem:[%s0 + $0x18] sm:$0xff]
  %v497 = vld [vmem:[%s0 + $0x20] sm:$0xff]
  %v498 = vld [vmem:[%s0 + $0x28] sm:$0xff]
  %v499 = vld [vmem:[%s0 + $0x30] sm:$0xff]
  %v500 = vld [vmem:[%s0 + $0x38] sm:$0xff]
  %v501 = vld [vmem:[%s0 + $0x40] sm:$0xff]
  %v502 = vld [vmem:[%s0 + $0x48] sm:$0xff]
  %v503 = vld [vmem:[%s0 + $0x50] sm:$0xff]
  %v504 = vld [vmem:[%s0 + $0x58] sm:$0xff]
  %v505 = vld [vmem:[%s0 + $0x60] sm:$0xf]
  %v506 = vld [vmem:[%s0 + $0x68] sm:$0xf]
  %v507 = vld [vmem:[%s0 + $0x70] sm:$0xf]
  %v508 = vld [vmem:[%s0 + $0x78] sm:$0xf]
  %vm525 = vcmask 1040384
  %v526 = vrot.slane %v493, 7
  %v527 = vrot.slane %v494, 7
  %v528 = vrot.slane %v495, 7
  %v529 = vrot.slane %v496, 7
  %v530 = vrot.slane %v497, 7
  %v531 = vsel %vm525, %v526, %v530
  %v532 = vrot.slane %v498, 7
  %v533 = vsel %vm525, %v527, %v532
  %v534 = vrot.slane %v499, 7
  %v535 = vsel %vm525, %v528, %v534
  %v536 = vrot.slane %v500, 7
  %v537 = vsel %vm525, %v529, %v536
  %v538 = vrot.slane %v501, 7
  %v539 = vsel %vm525, %v530, %v538
  %v540 = vrot.slane %v502, 7
  %v541 = vsel %vm525, %v532, %v540
  %v542 = vrot.slane %v503, 7
  %v543 = vsel %vm525, %v534, %v542
  %v544 = vrot.slane %v504, 7
  %v545 = vsel %vm525, %v536, %v544
  %v546 = vrot.slane %v505, 7
  %v547 = vsel %vm525, %v538, %v546
  %v548 = vrot.slane %v506, 7
  %v549 = vsel %vm525, %v540, %v548
  %v550 = vrot.slane %v507, 7
  %v551 = vsel %vm525, %v542, %v550
  %v552 = vrot.slane %v508, 7
  %v553 = vsel %vm525, %v544, %v552
  %s570 = scalar_lea.vmem [#allocation2], 1920
  %571 = vst [vmem:[%s570] sm:$0xfe] %v526
  %572 = vst [vmem:[%s570 + $0x8] sm:$0xfe] %v527
  %573 = vst [vmem:[%s570 + $0x10] sm:$0xfe] %v528
  %vm574 = vcmask 392193
  %575 = vst.msk [vmem:[%s570 + $0x18] sm:$0xfe] %vm574, %v529
  %576 = vst [vmem:[%s570 + $0x20] sm:$0xff] %v531
  %577 = vst [vmem:[%s570 + $0x28] sm:$0xff] %v533
  %578 = vst [vmem:[%s570 + $0x30] sm:$0xff] %v535
  %579 = vst.msk [vmem:[%s570 + $0x38] sm:$0xff] %vm14, %v537
  %580 = vst [vmem:[%s570 + $0x40] sm:$0xff] %v539
  %581 = vst [vmem:[%s570 + $0x48] sm:$0xff] %v541
  %582 = vst [vmem:[%s570 + $0x50] sm:$0xff] %v543
  %583 = vst.msk [vmem:[%s570 + $0x58] sm:$0xff] %vm14, %v545
  %584 = vst [vmem:[%s570 + $0x60] sm:$0x1f] %v547
  %585 = vst [vmem:[%s570 + $0x68] sm:$0x1f] %v549
  %586 = vst [vmem:[%s570 + $0x70] sm:$0x1f] %v551
  %vm587 = vcmask 389120
  %588 = vst.msk [vmem:[%s570 + $0x78] sm:$0x1f] %vm587, %v553
  %s589 = scalar_lea.vmem %s0, 128
  %v590 = vld [vmem:[%s589] sm:$0xff]
  %v591 = vld [vmem:[%s589 + $0x8] sm:$0xff]
  %v592 = vld [vmem:[%s589 + $0x10] sm:$0xff]
  %v593 = vld [vmem:[%s589 + $0x18] sm:$0xff]
  %v594 = vld [vmem:[%s589 + $0x20] sm:$0xff]
  %v595 = vld [vmem:[%s589 + $0x28] sm:$0xff]
  %v596 = vld [vmem:[%s589 + $0x30] sm:$0xff]
  %v597 = vld [vmem:[%s589 + $0x38] sm:$0xff]
  %v598 = vld [vmem:[%s589 + $0x40] sm:$0xff]
  %v599 = vld [vmem:[%s589 + $0x48] sm:$0xff]
  %v600 = vld [vmem:[%s589 + $0x50] sm:$0xff]
  %v601 = vld [vmem:[%s589 + $0x58] sm:$0xff]
  %v602 = vld [vmem:[%s589 + $0x60] sm:$0xf]
  %v603 = vld [vmem:[%s589 + $0x68] sm:$0xf]
  %v604 = vld [vmem:[%s589 + $0x70] sm:$0xf]
  %v605 = vld [vmem:[%s589 + $0x78] sm:$0xf]
  %v622 = vrot.slane %v590, 7
  %v623 = vrot.slane %v591, 7
  %v624 = vrot.slane %v592, 7
  %v625 = vrot.slane %v593, 7
  %v626 = vrot.slane %v594, 7
  %v627 = vsel %vm525, %v622, %v626
  %v628 = vrot.slane %v595, 7
  %v629 = vsel %vm525, %v623, %v628
  %v630 = vrot.slane %v596, 7
  %v631 = vsel %vm525, %v624, %v630
  %v632 = vrot.slane %v597, 7
  %v633 = vsel %vm525, %v625, %v632
  %v634 = vrot.slane %v598, 7
  %v635 = vsel %vm525, %v626, %v634
  %v636 = vrot.slane %v599, 7
  %v637 = vsel %vm525, %v628, %v636
  %v638 = vrot.slane %v600, 7
  %v639 = vsel %vm525, %v630, %v638
  %v640 = vrot.slane %v601, 7
  %v641 = vsel %vm525, %v632, %v640
  %v642 = vrot.slane %v602, 7
  %v643 = vsel %vm525, %v634, %v642
  %v644 = vrot.slane %v603, 7
  %v645 = vsel %vm525, %v636, %v644
  %v646 = vrot.slane %v604, 7
  %v647 = vsel %vm525, %v638, %v646
  %v648 = vrot.slane %v605, 7
  %v649 = vsel %vm525, %v640, %v648
  %s666 = scalar_lea.vmem [#allocation2], 128
  %667 = vst [vmem:[%s666] sm:$0xfe] %v622
  %668 = vst [vmem:[%s666 + $0x8] sm:$0xfe] %v623
  %669 = vst [vmem:[%s666 + $0x10] sm:$0xfe] %v624
  %670 = vst.msk [vmem:[%s666 + $0x18] sm:$0xfe] %vm574, %v625
  %671 = vst [vmem:[%s666 + $0x20] sm:$0xff] %v627
  %672 = vst [vmem:[%s666 + $0x28] sm:$0xff] %v629
  %673 = vst [vmem:[%s666 + $0x30] sm:$0xff] %v631
  %674 = vst.msk [vmem:[%s666 + $0x38] sm:$0xff] %vm14, %v633
  %675 = vst [vmem:[%s666 + $0x40] sm:$0xff] %v635
  %676 = vst [vmem:[%s666 + $0x48] sm:$0xff] %v637
  %677 = vst [vmem:[%s666 + $0x50] sm:$0xff] %v639
  %678 = vst.msk [vmem:[%s666 + $0x58] sm:$0xff] %vm14, %v641
  %679 = vst [vmem:[%s666 + $0x60] sm:$0x1f] %v643
  %680 = vst [vmem:[%s666 + $0x68] sm:$0x1f] %v645
  %681 = vst [vmem:[%s666 + $0x70] sm:$0x1f] %v647
  %682 = vst.msk [vmem:[%s666 + $0x78] sm:$0x1f] %vm587, %v649
  %s683 = scalar_lea.vmem %s0, 256
  %v684 = vld [vmem:[%s683] sm:$0xff]
  %v685 = vld [vmem:[%s683 + $0x8] sm:$0xff]
  %v686 = vld [vmem:[%s683 + $0x10] sm:$0xff]
  %v687 = vld [vmem:[%s683 + $0x18] sm:$0xff]
  %v688 = vld [vmem:[%s683 + $0x20] sm:$0xff]
  %v689 = vld [vmem:[%s683 + $0x28] sm:$0xff]
  %v690 = vld [vmem:[%s683 + $0x30] sm:$0xff]
  %v691 = vld [vmem:[%s683 + $0x38] sm:$0xff]
  %v692 = vld [vmem:[%s683 + $0x40] sm:$0xff]
  %v693 = vld [vmem:[%s683 + $0x48] sm:$0xff]
  %v694 = vld [vmem:[%s683 + $0x50] sm:$0xff]
  %v695 = vld [vmem:[%s683 + $0x58] sm:$0xff]
  %v696 = vld [vmem:[%s683 + $0x60] sm:$0xf]
  %v697 = vld [vmem:[%s683 + $0x68] sm:$0xf]
  %v698 = vld [vmem:[%s683 + $0x70] sm:$0xf]
  %v699 = vld [vmem:[%s683 + $0x78] sm:$0xf]
  %v716 = vrot.slane %v684, 7
  %v717 = vrot.slane %v685, 7
  %v718 = vrot.slane %v686, 7
  %v719 = vrot.slane %v687, 7
  %v720 = vrot.slane %v688, 7
  %v721 = vsel %vm525, %v716, %v720
  %v722 = vrot.slane %v689, 7
  %v723 = vsel %vm525, %v717, %v722
  %v724 = vrot.slane %v690, 7
  %v725 = vsel %vm525, %v718, %v724
  %v726 = vrot.slane %v691, 7
  %v727 = vsel %vm525, %v719, %v726
  %v728 = vrot.slane %v692, 7
  %v729 = vsel %vm525, %v720, %v728
  %v730 = vrot.slane %v693, 7
  %v731 = vsel %vm525, %v722, %v730
  %v732 = vrot.slane %v694, 7
  %v733 = vsel %vm525, %v724, %v732
  %v734 = vrot.slane %v695, 7
  %v735 = vsel %vm525, %v726, %v734
  %v736 = vrot.slane %v696, 7
  %v737 = vsel %vm525, %v728, %v736
  %v738 = vrot.slane %v697, 7
  %v739 = vsel %vm525, %v730, %v738
  %v740 = vrot.slane %v698, 7
  %v741 = vsel %vm525, %v732, %v740
  %v742 = vrot.slane %v699, 7
  %v743 = vsel %vm525, %v734, %v742
  %s760 = scalar_lea.vmem [#allocation2], 2048
  %761 = vst [vmem:[%s760] sm:$0xfe] %v716
  %762 = vst [vmem:[%s760 + $0x8] sm:$0xfe] %v717
  %763 = vst [vmem:[%s760 + $0x10] sm:$0xfe] %v718
  %764 = vst.msk [vmem:[%s760 + $0x18] sm:$0xfe] %vm574, %v719
  %765 = vst [vmem:[%s760 + $0x20] sm:$0xff] %v721
  %766 = vst [vmem:[%s760 + $0x28] sm:$0xff] %v723
  %767 = vst [vmem:[%s760 + $0x30] sm:$0xff] %v725
  %768 = vst.msk [vmem:[%s760 + $0x38] sm:$0xff] %vm14, %v727
  %769 = vst [vmem:[%s760 + $0x40] sm:$0xff] %v729
  %770 = vst [vmem:[%s760 + $0x48] sm:$0xff] %v731
  %771 = vst [vmem:[%s760 + $0x50] sm:$0xff] %v733
  %772 = vst.msk [vmem:[%s760 + $0x58] sm:$0xff] %vm14, %v735
  %773 = vst [vmem:[%s760 + $0x60] sm:$0x1f] %v737
  %774 = vst [vmem:[%s760 + $0x68] sm:$0x1f] %v739
  %775 = vst [vmem:[%s760 + $0x70] sm:$0x1f] %v741
  %776 = vst.msk [vmem:[%s760 + $0x78] sm:$0x1f] %vm587, %v743
  %s777 = scalar_lea.vmem %s0, 384
  %v778 = vld [vmem:[%s777] sm:$0xff]
  %v779 = vld [vmem:[%s777 + $0x8] sm:$0xff]
  %v780 = vld [vmem:[%s777 + $0x10] sm:$0xff]
  %v781 = vld [vmem:[%s777 + $0x18] sm:$0xff]
  %v782 = vld [vmem:[%s777 + $0x20] sm:$0xff]
  %v783 = vld [vmem:[%s777 + $0x28] sm:$0xff]
  %v784 = vld [vmem:[%s777 + $0x30] sm:$0xff]
  %v785 = vld [vmem:[%s777 + $0x38] sm:$0xff]
  %v786 = vld [vmem:[%s777 + $0x40] sm:$0xff]
  %v787 = vld [vmem:[%s777 + $0x48] sm:$0xff]
  %v788 = vld [vmem:[%s777 + $0x50] sm:$0xff]
  %v789 = vld [vmem:[%s777 + $0x58] sm:$0xff]
  %v790 = vld [vmem:[%s777 + $0x60] sm:$0xf]
  %v791 = vld [vmem:[%s777 + $0x68] sm:$0xf]
  %v792 = vld [vmem:[%s777 + $0x70] sm:$0xf]
  %v793 = vld [vmem:[%s777 + $0x78] sm:$0xf]
  %v810 = vrot.slane %v778, 7
  %v811 = vrot.slane %v779, 7
  %v812 = vrot.slane %v780, 7
  %v813 = vrot.slane %v781, 7
  %v814 = vrot.slane %v782, 7
  %v815 = vsel %vm525, %v810, %v814
  %v816 = vrot.slane %v783, 7
  %v817 = vsel %vm525, %v811, %v816
  %v818 = vrot.slane %v784, 7
  %v819 = vsel %vm525, %v812, %v818
  %v820 = vrot.slane %v785, 7
  %v821 = vsel %vm525, %v813, %v820
  %v822 = vrot.slane %v786, 7
  %v823 = vsel %vm525, %v814, %v822
  %v824 = vrot.slane %v787, 7
  %v825 = vsel %vm525, %v816, %v824
  %v826 = vrot.slane %v788, 7
  %v827 = vsel %vm525, %v818, %v826
  %v828 = vrot.slane %v789, 7
  %v829 = vsel %vm525, %v820, %v828
  %v830 = vrot.slane %v790, 7
  %v831 = vsel %vm525, %v822, %v830
  %v832 = vrot.slane %v791, 7
  %v833 = vsel %vm525, %v824, %v832
  %v834 = vrot.slane %v792, 7
  %v835 = vsel %vm525, %v826, %v834
  %v836 = vrot.slane %v793, 7
  %v837 = vsel %vm525, %v828, %v836
  %s854 = scalar_lea.vmem [#allocation2], 256
  %855 = vst [vmem:[%s854] sm:$0xfe] %v810
  %856 = vst [vmem:[%s854 + $0x8] sm:$0xfe] %v811
  %857 = vst [vmem:[%s854 + $0x10] sm:$0xfe] %v812
  %858 = vst.msk [vmem:[%s854 + $0x18] sm:$0xfe] %vm574, %v813
  %859 = vst [vmem:[%s854 + $0x20] sm:$0xff] %v815
  %860 = vst [vmem:[%s854 + $0x28] sm:$0xff] %v817
  %861 = vst [vmem:[%s854 + $0x30] sm:$0xff] %v819
  %862 = vst.msk [vmem:[%s854 + $0x38] sm:$0xff] %vm14, %v821
  %863 = vst [vmem:[%s854 + $0x40] sm:$0xff] %v823
  %864 = vst [vmem:[%s854 + $0x48] sm:$0xff] %v825
  %865 = vst [vmem:[%s854 + $0x50] sm:$0xff] %v827
  %866 = vst.msk [vmem:[%s854 + $0x58] sm:$0xff] %vm14, %v829
  %867 = vst [vmem:[%s854 + $0x60] sm:$0x1f] %v831
  %868 = vst [vmem:[%s854 + $0x68] sm:$0x1f] %v833
  %869 = vst [vmem:[%s854 + $0x70] sm:$0x1f] %v835
  %870 = vst.msk [vmem:[%s854 + $0x78] sm:$0x1f] %vm587, %v837
  %s871 = scalar_lea.vmem %s0, 512
  %v872 = vld [vmem:[%s871] sm:$0xff]
  %v873 = vld [vmem:[%s871 + $0x8] sm:$0xff]
  %v874 = vld [vmem:[%s871 + $0x10] sm:$0xff]
  %v875 = vld [vmem:[%s871 + $0x18] sm:$0xff]
  %v876 = vld [vmem:[%s871 + $0x20] sm:$0xff]
  %v877 = vld [vmem:[%s871 + $0x28] sm:$0xff]
  %v878 = vld [vmem:[%s871 + $0x30] sm:$0xff]
  %v879 = vld [vmem:[%s871 + $0x38] sm:$0xff]
  %v880 = vld [vmem:[%s871 + $0x40] sm:$0xff]
  %v881 = vld [vmem:[%s871 + $0x48] sm:$0xff]
  %v882 = vld [vmem:[%s871 + $0x50] sm:$0xff]
  %v883 = vld [vmem:[%s871 + $0x58] sm:$0xff]
  %v884 = vld [vmem:[%s871 + $0x60] sm:$0xf]
  %v885 = vld [vmem:[%s871 + $0x68] sm:$0xf]
  %v886 = vld [vmem:[%s871 + $0x70] sm:$0xf]
  %v887 = vld [vmem:[%s871 + $0x78] sm:$0xf]
  %v904 = vrot.slane %v872, 7
  %v905 = vrot.slane %v873, 7
  %v906 = vrot.slane %v874, 7
  %v907 = vrot.slane %v875, 7
  %v908 = vrot.slane %v876, 7
  %v909 = vsel %vm525, %v904, %v908
  %v910 = vrot.slane %v877, 7
  %v911 = vsel %vm525, %v905, %v910
  %v912 = vrot.slane %v878, 7
  %v913 = vsel %vm525, %v906, %v912
  %v914 = vrot.slane %v879, 7
  %v915 = vsel %vm525, %v907, %v914
  %v916 = vrot.slane %v880, 7
  %v917 = vsel %vm525, %v908, %v916
  %v918 = vrot.slane %v881, 7
  %v919 = vsel %vm525, %v910, %v918
  %v920 = vrot.slane %v882, 7
  %v921 = vsel %vm525, %v912, %v920
  %v922 = vrot.slane %v883, 7
  %v923 = vsel %vm525, %v914, %v922
  %v924 = vrot.slane %v884, 7
  %v925 = vsel %vm525, %v916, %v924
  %v926 = vrot.slane %v885, 7
  %v927 = vsel %vm525, %v918, %v926
  %v928 = vrot.slane %v886, 7
  %v929 = vsel %vm525, %v920, %v928
  %v930 = vrot.slane %v887, 7
  %v931 = vsel %vm525, %v922, %v930
  %s948 = scalar_lea.vmem [#allocation2], 2176
  %949 = vst [vmem:[%s948] sm:$0xfe] %v904
  %950 = vst [vmem:[%s948 + $0x8] sm:$0xfe] %v905
  %951 = vst [vmem:[%s948 + $0x10] sm:$0xfe] %v906
  %952 = vst.msk [vmem:[%s948 + $0x18] sm:$0xfe] %vm574, %v907
  %953 = vst [vmem:[%s948 + $0x20] sm:$0xff] %v909
  %954 = vst [vmem:[%s948 + $0x28] sm:$0xff] %v911
  %955 = vst [vmem:[%s948 + $0x30] sm:$0xff] %v913
  %956 = vst.msk [vmem:[%s948 + $0x38] sm:$0xff] %vm14, %v915
  %957 = vst [vmem:[%s948 + $0x40] sm:$0xff] %v917
  %958 = vst [vmem:[%s948 + $0x48] sm:$0xff] %v919
  %959 = vst [vmem:[%s948 + $0x50] sm:$0xff] %v921
  %960 = vst.msk [vmem:[%s948 + $0x58] sm:$0xff] %vm14, %v923
  %961 = vst [vmem:[%s948 + $0x60] sm:$0x1f] %v925
  %962 = vst [vmem:[%s948 + $0x68] sm:$0x1f] %v927
  %963 = vst [vmem:[%s948 + $0x70] sm:$0x1f] %v929
  %964 = vst.msk [vmem:[%s948 + $0x78] sm:$0x1f] %vm587, %v931
  %s965 = scalar_lea.vmem %s0, 640
  %v966 = vld [vmem:[%s965] sm:$0xff]
  %v967 = vld [vmem:[%s965 + $0x8] sm:$0xff]
  %v968 = vld [vmem:[%s965 + $0x10] sm:$0xff]
  %v969 = vld [vmem:[%s965 + $0x18] sm:$0xff]
  %v970 = vld [vmem:[%s965 + $0x20] sm:$0xff]
  %v971 = vld [vmem:[%s965 + $0x28] sm:$0xff]
  %v972 = vld [vmem:[%s965 + $0x30] sm:$0xff]
  %v973 = vld [vmem:[%s965 + $0x38] sm:$0xff]
  %v974 = vld [vmem:[%s965 + $0x40] sm:$0xff]
  %v975 = vld [vmem:[%s965 + $0x48] sm:$0xff]
  %v976 = vld [vmem:[%s965 + $0x50] sm:$0xff]
  %v977 = vld [vmem:[%s965 + $0x58] sm:$0xff]
  %v978 = vld [vmem:[%s965 + $0x60] sm:$0xf]
  %v979 = vld [vmem:[%s965 + $0x68] sm:$0xf]
  %v980 = vld [vmem:[%s965 + $0x70] sm:$0xf]
  %v981 = vld [vmem:[%s965 + $0x78] sm:$0xf]
  %v998 = vrot.slane %v966, 7
  %v999 = vrot.slane %v967, 7
  %v1000 = vrot.slane %v968, 7
  %v1001 = vrot.slane %v969, 7
  %v1002 = vrot.slane %v970, 7
  %v1003 = vsel %vm525, %v998, %v1002
  %v1004 = vrot.slane %v971, 7
  %v1005 = vsel %vm525, %v999, %v1004
  %v1006 = vrot.slane %v972, 7
  %v1007 = vsel %vm525, %v1000, %v1006
  %v1008 = vrot.slane %v973, 7
  %v1009 = vsel %vm525, %v1001, %v1008
  %v1010 = vrot.slane %v974, 7
  %v1011 = vsel %vm525, %v1002, %v1010
  %v1012 = vrot.slane %v975, 7
  %v1013 = vsel %vm525, %v1004, %v1012
  %v1014 = vrot.slane %v976, 7
  %v1015 = vsel %vm525, %v1006, %v1014
  %v1016 = vrot.slane %v977, 7
  %v1017 = vsel %vm525, %v1008, %v1016
  %v1018 = vrot.slane %v978, 7
  %v1019 = vsel %vm525, %v1010, %v1018
  %v1020 = vrot.slane %v979, 7
  %v1021 = vsel %vm525, %v1012, %v1020
  %v1022 = vrot.slane %v980, 7
  %v1023 = vsel %vm525, %v1014, %v1022
  %v1024 = vrot.slane %v981, 7
  %v1025 = vsel %vm525, %v1016, %v1024
  %s1042 = scalar_lea.vmem [#allocation2], 384
  %1043 = vst [vmem:[%s1042] sm:$0xfe] %v998
  %1044 = vst [vmem:[%s1042 + $0x8] sm:$0xfe] %v999
  %1045 = vst [vmem:[%s1042 + $0x10] sm:$0xfe] %v1000
  %1046 = vst.msk [vmem:[%s1042 + $0x18] sm:$0xfe] %vm574, %v1001
  %1047 = vst [vmem:[%s1042 + $0x20] sm:$0xff] %v1003
  %1048 = vst [vmem:[%s1042 + $0x28] sm:$0xff] %v1005
  %1049 = vst [vmem:[%s1042 + $0x30] sm:$0xff] %v1007
  %1050 = vst.msk [vmem:[%s1042 + $0x38] sm:$0xff] %vm14, %v1009
  %1051 = vst [vmem:[%s1042 + $0x40] sm:$0xff] %v1011
  %1052 = vst [vmem:[%s1042 + $0x48] sm:$0xff] %v1013
  %1053 = vst [vmem:[%s1042 + $0x50] sm:$0xff] %v1015
  %1054 = vst.msk [vmem:[%s1042 + $0x58] sm:$0xff] %vm14, %v1017
  %1055 = vst [vmem:[%s1042 + $0x60] sm:$0x1f] %v1019
  %1056 = vst [vmem:[%s1042 + $0x68] sm:$0x1f] %v1021
  %1057 = vst [vmem:[%s1042 + $0x70] sm:$0x1f] %v1023
  %1058 = vst.msk [vmem:[%s1042 + $0x78] sm:$0x1f] %vm587, %v1025
  %s1059 = scalar_lea.vmem %s0, 768
  %v1060 = vld [vmem:[%s1059] sm:$0xff]
  %v1061 = vld [vmem:[%s1059 + $0x8] sm:$0xff]
  %v1062 = vld [vmem:[%s1059 + $0x10] sm:$0xff]
  %v1063 = vld [vmem:[%s1059 + $0x18] sm:$0xff]
  %v1064 = vld [vmem:[%s1059 + $0x20] sm:$0xff]
  %v1065 = vld [vmem:[%s1059 + $0x28] sm:$0xff]
  %v1066 = vld [vmem:[%s1059 + $0x30] sm:$0xff]
  %v1067 = vld [vmem:[%s1059 + $0x38] sm:$0xff]
  %v1068 = vld [vmem:[%s1059 + $0x40] sm:$0xff]
  %v1069 = vld [vmem:[%s1059 + $0x48] sm:$0xff]
  %v1070 = vld [vmem:[%s1059 + $0x50] sm:$0xff]
  %v1071 = vld [vmem:[%s1059 + $0x58] sm:$0xff]
  %v1072 = vld [vmem:[%s1059 + $0x60] sm:$0xf]
  %v1073 = vld [vmem:[%s1059 + $0x68] sm:$0xf]
  %v1074 = vld [vmem:[%s1059 + $0x70] sm:$0xf]
  %v1075 = vld [vmem:[%s1059 + $0x78] sm:$0xf]
  %v1092 = vrot.slane %v1060, 7
  %v1093 = vrot.slane %v1061, 7
  %v1094 = vrot.slane %v1062, 7
  %v1095 = vrot.slane %v1063, 7
  %v1096 = vrot.slane %v1064, 7
  %v1097 = vsel %vm525, %v1092, %v1096
  %v1098 = vrot.slane %v1065, 7
  %v1099 = vsel %vm525, %v1093, %v1098
  %v1100 = vrot.slane %v1066, 7
  %v1101 = vsel %vm525, %v1094, %v1100
  %v1102 = vrot.slane %v1067, 7
  %v1103 = vsel %vm525, %v1095, %v1102
  %v1104 = vrot.slane %v1068, 7
  %v1105 = vsel %vm525, %v1096, %v1104
  %v1106 = vrot.slane %v1069, 7
  %v1107 = vsel %vm525, %v1098, %v1106
  %v1108 = vrot.slane %v1070, 7
  %v1109 = vsel %vm525, %v1100, %v1108
  %v1110 = vrot.slane %v1071, 7
  %v1111 = vsel %vm525, %v1102, %v1110
  %v1112 = vrot.slane %v1072, 7
  %v1113 = vsel %vm525, %v1104, %v1112
  %v1114 = vrot.slane %v1073, 7
  %v1115 = vsel %vm525, %v1106, %v1114
  %v1116 = vrot.slane %v1074, 7
  %v1117 = vsel %vm525, %v1108, %v1116
  %v1118 = vrot.slane %v1075, 7
  %v1119 = vsel %vm525, %v1110, %v1118
  %s1136 = scalar_lea.vmem [#allocation2], 2304
  %1137 = vst [vmem:[%s1136] sm:$0xfe] %v1092
  %1138 = vst [vmem:[%s1136 + $0x8] sm:$0xfe] %v1093
  %1139 = vst [vmem:[%s1136 + $0x10] sm:$0xfe] %v1094
  %1140 = vst.msk [vmem:[%s1136 + $0x18] sm:$0xfe] %vm574, %v1095
  %1141 = vst [vmem:[%s1136 + $0x20] sm:$0xff] %v1097
  %1142 = vst [vmem:[%s1136 + $0x28] sm:$0xff] %v1099
  %1143 = vst [vmem:[%s1136 + $0x30] sm:$0xff] %v1101
  %1144 = vst.msk [vmem:[%s1136 + $0x38] sm:$0xff] %vm14, %v1103
  %1145 = vst [vmem:[%s1136 + $0x40] sm:$0xff] %v1105
  %1146 = vst [vmem:[%s1136 + $0x48] sm:$0xff] %v1107
  %1147 = vst [vmem:[%s1136 + $0x50] sm:$0xff] %v1109
  %1148 = vst.msk [vmem:[%s1136 + $0x58] sm:$0xff] %vm14, %v1111
  %1149 = vst [vmem:[%s1136 + $0x60] sm:$0x1f] %v1113
  %1150 = vst [vmem:[%s1136 + $0x68] sm:$0x1f] %v1115
  %1151 = vst [vmem:[%s1136 + $0x70] sm:$0x1f] %v1117
  %1152 = vst.msk [vmem:[%s1136 + $0x78] sm:$0x1f] %vm587, %v1119
  %s1153 = scalar_lea.vmem %s0, 896
  %v1154 = vld [vmem:[%s1153] sm:$0xff]
  %v1155 = vld [vmem:[%s1153 + $0x8] sm:$0xff]
  %v1156 = vld [vmem:[%s1153 + $0x10] sm:$0xff]
  %v1157 = vld [vmem:[%s1153 + $0x18] sm:$0xff]
  %v1158 = vld [vmem:[%s1153 + $0x20] sm:$0xff]
  %v1159 = vld [vmem:[%s1153 + $0x28] sm:$0xff]
  %v1160 = vld [vmem:[%s1153 + $0x30] sm:$0xff]
  %v1161 = vld [vmem:[%s1153 + $0x38] sm:$0xff]
  %v1162 = vld [vmem:[%s1153 + $0x40] sm:$0xff]
  %v1163 = vld [vmem:[%s1153 + $0x48] sm:$0xff]
  %v1164 = vld [vmem:[%s1153 + $0x50] sm:$0xff]
  %v1165 = vld [vmem:[%s1153 + $0x58] sm:$0xff]
  %v1166 = vld [vmem:[%s1153 + $0x60] sm:$0xf]
  %v1167 = vld [vmem:[%s1153 + $0x68] sm:$0xf]
  %v1168 = vld [vmem:[%s1153 + $0x70] sm:$0xf]
  %v1169 = vld [vmem:[%s1153 + $0x78] sm:$0xf]
  %v1186 = vrot.slane %v1154, 7
  %v1187 = vrot.slane %v1155, 7
  %v1188 = vrot.slane %v1156, 7
  %v1189 = vrot.slane %v1157, 7
  %v1190 = vrot.slane %v1158, 7
  %v1191 = vsel %vm525, %v1186, %v1190
  %v1192 = vrot.slane %v1159, 7
  %v1193 = vsel %vm525, %v1187, %v1192
  %v1194 = vrot.slane %v1160, 7
  %v1195 = vsel %vm525, %v1188, %v1194
  %v1196 = vrot.slane %v1161, 7
  %v1197 = vsel %vm525, %v1189, %v1196
  %v1198 = vrot.slane %v1162, 7
  %v1199 = vsel %vm525, %v1190, %v1198
  %v1200 = vrot.slane %v1163, 7
  %v1201 = vsel %vm525, %v1192, %v1200
  %v1202 = vrot.slane %v1164, 7
  %v1203 = vsel %vm525, %v1194, %v1202
  %v1204 = vrot.slane %v1165, 7
  %v1205 = vsel %vm525, %v1196, %v1204
  %v1206 = vrot.slane %v1166, 7
  %v1207 = vsel %vm525, %v1198, %v1206
  %v1208 = vrot.slane %v1167, 7
  %v1209 = vsel %vm525, %v1200, %v1208
  %v1210 = vrot.slane %v1168, 7
  %v1211 = vsel %vm525, %v1202, %v1210
  %v1212 = vrot.slane %v1169, 7
  %v1213 = vsel %vm525, %v1204, %v1212
  %s1230 = scalar_lea.vmem [#allocation2], 512
  %1231 = vst [vmem:[%s1230] sm:$0xfe] %v1186
  %1232 = vst [vmem:[%s1230 + $0x8] sm:$0xfe] %v1187
  %1233 = vst [vmem:[%s1230 + $0x10] sm:$0xfe] %v1188
  %1234 = vst.msk [vmem:[%s1230 + $0x18] sm:$0xfe] %vm574, %v1189
  %1235 = vst [vmem:[%s1230 + $0x20] sm:$0xff] %v1191
  %1236 = vst [vmem:[%s1230 + $0x28] sm:$0xff] %v1193
  %1237 = vst [vmem:[%s1230 + $0x30] sm:$0xff] %v1195
  %1238 = vst.msk [vmem:[%s1230 + $0x38] sm:$0xff] %vm14, %v1197
  %1239 = vst [vmem:[%s1230 + $0x40] sm:$0xff] %v1199
  %1240 = vst [vmem:[%s1230 + $0x48] sm:$0xff] %v1201
  %1241 = vst [vmem:[%s1230 + $0x50] sm:$0xff] %v1203
  %1242 = vst.msk [vmem:[%s1230 + $0x58] sm:$0xff] %vm14, %v1205
  %1243 = vst [vmem:[%s1230 + $0x60] sm:$0x1f] %v1207
  %1244 = vst [vmem:[%s1230 + $0x68] sm:$0x1f] %v1209
  %1245 = vst [vmem:[%s1230 + $0x70] sm:$0x1f] %v1211
  %1246 = vst.msk [vmem:[%s1230 + $0x78] sm:$0x1f] %vm587, %v1213
  %s1247 = scalar_lea.vmem %s0, 1024
  %v1248 = vld [vmem:[%s1247] sm:$0xff]
  %v1249 = vld [vmem:[%s1247 + $0x8] sm:$0xff]
  %v1250 = vld [vmem:[%s1247 + $0x10] sm:$0xff]
  %v1251 = vld [vmem:[%s1247 + $0x18] sm:$0xff]
  %v1252 = vld [vmem:[%s1247 + $0x20] sm:$0xff]
  %v1253 = vld [vmem:[%s1247 + $0x28] sm:$0xff]
  %v1254 = vld [vmem:[%s1247 + $0x30] sm:$0xff]
  %v1255 = vld [vmem:[%s1247 + $0x38] sm:$0xff]
  %v1256 = vld [vmem:[%s1247 + $0x40] sm:$0xff]
  %v1257 = vld [vmem:[%s1247 + $0x48] sm:$0xff]
  %v1258 = vld [vmem:[%s1247 + $0x50] sm:$0xff]
  %v1259 = vld [vmem:[%s1247 + $0x58] sm:$0xff]
  %v1260 = vld [vmem:[%s1247 + $0x60] sm:$0xf]
  %v1261 = vld [vmem:[%s1247 + $0x68] sm:$0xf]
  %v1262 = vld [vmem:[%s1247 + $0x70] sm:$0xf]
  %v1263 = vld [vmem:[%s1247 + $0x78] sm:$0xf]
  %v1280 = vrot.slane %v1248, 7
  %v1281 = vrot.slane %v1249, 7
  %v1282 = vrot.slane %v1250, 7
  %v1283 = vrot.slane %v1251, 7
  %v1284 = vrot.slane %v1252, 7
  %v1285 = vsel %vm525, %v1280, %v1284
  %v1286 = vrot.slane %v1253, 7
  %v1287 = vsel %vm525, %v1281, %v1286
  %v1288 = vrot.slane %v1254, 7
  %v1289 = vsel %vm525, %v1282, %v1288
  %v1290 = vrot.slane %v1255, 7
  %v1291 = vsel %vm525, %v1283, %v1290
  %v1292 = vrot.slane %v1256, 7
  %v1293 = vsel %vm525, %v1284, %v1292
  %v1294 = vrot.slane %v1257, 7
  %v1295 = vsel %vm525, %v1286, %v1294
  %v1296 = vrot.slane %v1258, 7
  %v1297 = vsel %vm525, %v1288, %v1296
  %v1298 = vrot.slane %v1259, 7
  %v1299 = vsel %vm525, %v1290, %v1298
  %v1300 = vrot.slane %v1260, 7
  %v1301 = vsel %vm525, %v1292, %v1300
  %v1302 = vrot.slane %v1261, 7
  %v1303 = vsel %vm525, %v1294, %v1302
  %v1304 = vrot.slane %v1262, 7
  %v1305 = vsel %vm525, %v1296, %v1304
  %v1306 = vrot.slane %v1263, 7
  %v1307 = vsel %vm525, %v1298, %v1306
  %s1324 = scalar_lea.vmem [#allocation2], 2432
  %1325 = vst [vmem:[%s1324] sm:$0xfe] %v1280
  %1326 = vst [vmem:[%s1324 + $0x8] sm:$0xfe] %v1281
  %1327 = vst [vmem:[%s1324 + $0x10] sm:$0xfe] %v1282
  %1328 = vst.msk [vmem:[%s1324 + $0x18] sm:$0xfe] %vm574, %v1283
  %1329 = vst [vmem:[%s1324 + $0x20] sm:$0xff] %v1285
  %1330 = vst [vmem:[%s1324 + $0x28] sm:$0xff] %v1287
  %1331 = vst [vmem:[%s1324 + $0x30] sm:$0xff] %v1289
  %1332 = vst.msk [vmem:[%s1324 + $0x38] sm:$0xff] %vm14, %v1291
  %1333 = vst [vmem:[%s1324 + $0x40] sm:$0xff] %v1293
  %1334 = vst [vmem:[%s1324 + $0x48] sm:$0xff] %v1295
  %1335 = vst [vmem:[%s1324 + $0x50] sm:$0xff] %v1297
  %1336 = vst.msk [vmem:[%s1324 + $0x58] sm:$0xff] %vm14, %v1299
  %1337 = vst [vmem:[%s1324 + $0x60] sm:$0x1f] %v1301
  %1338 = vst [vmem:[%s1324 + $0x68] sm:$0x1f] %v1303
  %1339 = vst [vmem:[%s1324 + $0x70] sm:$0x1f] %v1305
  %1340 = vst.msk [vmem:[%s1324 + $0x78] sm:$0x1f] %vm587, %v1307
  %s1341 = scalar_lea.vmem %s0, 1152
  %v1342 = vld [vmem:[%s1341] sm:$0xff]
  %v1343 = vld [vmem:[%s1341 + $0x8] sm:$0xff]
  %v1344 = vld [vmem:[%s1341 + $0x10] sm:$0xff]
  %v1345 = vld [vmem:[%s1341 + $0x18] sm:$0xff]
  %v1346 = vld [vmem:[%s1341 + $0x20] sm:$0xff]
  %v1347 = vld [vmem:[%s1341 + $0x28] sm:$0xff]
  %v1348 = vld [vmem:[%s1341 + $0x30] sm:$0xff]
  %v1349 = vld [vmem:[%s1341 + $0x38] sm:$0xff]
  %v1350 = vld [vmem:[%s1341 + $0x40] sm:$0xff]
  %v1351 = vld [vmem:[%s1341 + $0x48] sm:$0xff]
  %v1352 = vld [vmem:[%s1341 + $0x50] sm:$0xff]
  %v1353 = vld [vmem:[%s1341 + $0x58] sm:$0xff]
  %v1354 = vld [vmem:[%s1341 + $0x60] sm:$0xf]
  %v1355 = vld [vmem:[%s1341 + $0x68] sm:$0xf]
  %v1356 = vld [vmem:[%s1341 + $0x70] sm:$0xf]
  %v1357 = vld [vmem:[%s1341 + $0x78] sm:$0xf]
  %v1374 = vrot.slane %v1342, 7
  %v1375 = vrot.slane %v1343, 7
  %v1376 = vrot.slane %v1344, 7
  %v1377 = vrot.slane %v1345, 7
  %v1378 = vrot.slane %v1346, 7
  %v1379 = vsel %vm525, %v1374, %v1378
  %v1380 = vrot.slane %v1347, 7
  %v1381 = vsel %vm525, %v1375, %v1380
  %v1382 = vrot.slane %v1348, 7
  %v1383 = vsel %vm525, %v1376, %v1382
  %v1384 = vrot.slane %v1349, 7
  %v1385 = vsel %vm525, %v1377, %v1384
  %v1386 = vrot.slane %v1350, 7
  %v1387 = vsel %vm525, %v1378, %v1386
  %v1388 = vrot.slane %v1351, 7
  %v1389 = vsel %vm525, %v1380, %v1388
  %v1390 = vrot.slane %v1352, 7
  %v1391 = vsel %vm525, %v1382, %v1390
  %v1392 = vrot.slane %v1353, 7
  %v1393 = vsel %vm525, %v1384, %v1392
  %v1394 = vrot.slane %v1354, 7
  %v1395 = vsel %vm525, %v1386, %v1394
  %v1396 = vrot.slane %v1355, 7
  %v1397 = vsel %vm525, %v1388, %v1396
  %v1398 = vrot.slane %v1356, 7
  %v1399 = vsel %vm525, %v1390, %v1398
  %v1400 = vrot.slane %v1357, 7
  %v1401 = vsel %vm525, %v1392, %v1400
  %s1418 = scalar_lea.vmem [#allocation2], 640
  %1419 = vst [vmem:[%s1418] sm:$0xfe] %v1374
  %1420 = vst [vmem:[%s1418 + $0x8] sm:$0xfe] %v1375
  %1421 = vst [vmem:[%s1418 + $0x10] sm:$0xfe] %v1376
  %1422 = vst.msk [vmem:[%s1418 + $0x18] sm:$0xfe] %vm574, %v1377
  %1423 = vst [vmem:[%s1418 + $0x20] sm:$0xff] %v1379
  %1424 = vst [vmem:[%s1418 + $0x28] sm:$0xff] %v1381
  %1425 = vst [vmem:[%s1418 + $0x30] sm:$0xff] %v1383
  %1426 = vst.msk [vmem:[%s1418 + $0x38] sm:$0xff] %vm14, %v1385
  %1427 = vst [vmem:[%s1418 + $0x40] sm:$0xff] %v1387
  %1428 = vst [vmem:[%s1418 + $0x48] sm:$0xff] %v1389
  %1429 = vst [vmem:[%s1418 + $0x50] sm:$0xff] %v1391
  %1430 = vst.msk [vmem:[%s1418 + $0x58] sm:$0xff] %vm14, %v1393
  %1431 = vst [vmem:[%s1418 + $0x60] sm:$0x1f] %v1395
  %1432 = vst [vmem:[%s1418 + $0x68] sm:$0x1f] %v1397
  %1433 = vst [vmem:[%s1418 + $0x70] sm:$0x1f] %v1399
  %1434 = vst.msk [vmem:[%s1418 + $0x78] sm:$0x1f] %vm587, %v1401
  %s1435 = scalar_lea.vmem %s0, 1280
  %v1436 = vld [vmem:[%s1435] sm:$0xff]
  %v1437 = vld [vmem:[%s1435 + $0x8] sm:$0xff]
  %v1438 = vld [vmem:[%s1435 + $0x10] sm:$0xff]
  %v1439 = vld [vmem:[%s1435 + $0x18] sm:$0xff]
  %v1440 = vld [vmem:[%s1435 + $0x20] sm:$0xff]
  %v1441 = vld [vmem:[%s1435 + $0x28] sm:$0xff]
  %v1442 = vld [vmem:[%s1435 + $0x30] sm:$0xff]
  %v1443 = vld [vmem:[%s1435 + $0x38] sm:$0xff]
  %v1444 = vld [vmem:[%s1435 + $0x40] sm:$0xff]
  %v1445 = vld [vmem:[%s1435 + $0x48] sm:$0xff]
  %v1446 = vld [vmem:[%s1435 + $0x50] sm:$0xff]
  %v1447 = vld [vmem:[%s1435 + $0x58] sm:$0xff]
  %v1448 = vld [vmem:[%s1435 + $0x60] sm:$0xf]
  %v1449 = vld [vmem:[%s1435 + $0x68] sm:$0xf]
  %v1450 = vld [vmem:[%s1435 + $0x70] sm:$0xf]
  %v1451 = vld [vmem:[%s1435 + $0x78] sm:$0xf]
  %v1468 = vrot.slane %v1436, 7
  %v1469 = vrot.slane %v1437, 7
  %v1470 = vrot.slane %v1438, 7
  %v1471 = vrot.slane %v1439, 7
  %v1472 = vrot.slane %v1440, 7
  %v1473 = vsel %vm525, %v1468, %v1472
  %v1474 = vrot.slane %v1441, 7
  %v1475 = vsel %vm525, %v1469, %v1474
  %v1476 = vrot.slane %v1442, 7
  %v1477 = vsel %vm525, %v1470, %v1476
  %v1478 = vrot.slane %v1443, 7
  %v1479 = vsel %vm525, %v1471, %v1478
  %v1480 = vrot.slane %v1444, 7
  %v1481 = vsel %vm525, %v1472, %v1480
  %v1482 = vrot.slane %v1445, 7
  %v1483 = vsel %vm525, %v1474, %v1482
  %v1484 = vrot.slane %v1446, 7
  %v1485 = vsel %vm525, %v1476, %v1484
  %v1486 = vrot.slane %v1447, 7
  %v1487 = vsel %vm525, %v1478, %v1486
  %v1488 = vrot.slane %v1448, 7
  %v1489 = vsel %vm525, %v1480, %v1488
  %v1490 = vrot.slane %v1449, 7
  %v1491 = vsel %vm525, %v1482, %v1490
  %v1492 = vrot.slane %v1450, 7
  %v1493 = vsel %vm525, %v1484, %v1492
  %v1494 = vrot.slane %v1451, 7
  %v1495 = vsel %vm525, %v1486, %v1494
  %s1512 = scalar_lea.vmem [#allocation2], 2560
  %1513 = vst [vmem:[%s1512] sm:$0xfe] %v1468
  %1514 = vst [vmem:[%s1512 + $0x8] sm:$0xfe] %v1469
  %1515 = vst [vmem:[%s1512 + $0x10] sm:$0xfe] %v1470
  %1516 = vst.msk [vmem:[%s1512 + $0x18] sm:$0xfe] %vm574, %v1471
  %1517 = vst [vmem:[%s1512 + $0x20] sm:$0xff] %v1473
  %1518 = vst [vmem:[%s1512 + $0x28] sm:$0xff] %v1475
  %1519 = vst [vmem:[%s1512 + $0x30] sm:$0xff] %v1477
  %1520 = vst.msk [vmem:[%s1512 + $0x38] sm:$0xff] %vm14, %v1479
  %1521 = vst [vmem:[%s1512 + $0x40] sm:$0xff] %v1481
  %1522 = vst [vmem:[%s1512 + $0x48] sm:$0xff] %v1483
  %1523 = vst [vmem:[%s1512 + $0x50] sm:$0xff] %v1485
  %1524 = vst.msk [vmem:[%s1512 + $0x58] sm:$0xff] %vm14, %v1487
  %1525 = vst [vmem:[%s1512 + $0x60] sm:$0x1f] %v1489
  %1526 = vst [vmem:[%s1512 + $0x68] sm:$0x1f] %v1491
  %1527 = vst [vmem:[%s1512 + $0x70] sm:$0x1f] %v1493
  %1528 = vst.msk [vmem:[%s1512 + $0x78] sm:$0x1f] %vm587, %v1495
  %s1529 = scalar_lea.vmem %s0, 1408
  %v1530 = vld [vmem:[%s1529] sm:$0xff]
  %v1531 = vld [vmem:[%s1529 + $0x8] sm:$0xff]
  %v1532 = vld [vmem:[%s1529 + $0x10] sm:$0xff]
  %v1533 = vld [vmem:[%s1529 + $0x18] sm:$0xff]
  %v1534 = vld [vmem:[%s1529 + $0x20] sm:$0xff]
  %v1535 = vld [vmem:[%s1529 + $0x28] sm:$0xff]
  %v1536 = vld [vmem:[%s1529 + $0x30] sm:$0xff]
  %v1537 = vld [vmem:[%s1529 + $0x38] sm:$0xff]
  %v1538 = vld [vmem:[%s1529 + $0x40] sm:$0xff]
  %v1539 = vld [vmem:[%s1529 + $0x48] sm:$0xff]
  %v1540 = vld [vmem:[%s1529 + $0x50] sm:$0xff]
  %v1541 = vld [vmem:[%s1529 + $0x58] sm:$0xff]
  %v1542 = vld [vmem:[%s1529 + $0x60] sm:$0xf]
  %v1543 = vld [vmem:[%s1529 + $0x68] sm:$0xf]
  %v1544 = vld [vmem:[%s1529 + $0x70] sm:$0xf]
  %v1545 = vld [vmem:[%s1529 + $0x78] sm:$0xf]
  %v1562 = vrot.slane %v1530, 7
  %v1563 = vrot.slane %v1531, 7
  %v1564 = vrot.slane %v1532, 7
  %v1565 = vrot.slane %v1533, 7
  %v1566 = vrot.slane %v1534, 7
  %v1567 = vsel %vm525, %v1562, %v1566
  %v1568 = vrot.slane %v1535, 7
  %v1569 = vsel %vm525, %v1563, %v1568
  %v1570 = vrot.slane %v1536, 7
  %v1571 = vsel %vm525, %v1564, %v1570
  %v1572 = vrot.slane %v1537, 7
  %v1573 = vsel %vm525, %v1565, %v1572
  %v1574 = vrot.slane %v1538, 7
  %v1575 = vsel %vm525, %v1566, %v1574
  %v1576 = vrot.slane %v1539, 7
  %v1577 = vsel %vm525, %v1568, %v1576
  %v1578 = vrot.slane %v1540, 7
  %v1579 = vsel %vm525, %v1570, %v1578
  %v1580 = vrot.slane %v1541, 7
  %v1581 = vsel %vm525, %v1572, %v1580
  %v1582 = vrot.slane %v1542, 7
  %v1583 = vsel %vm525, %v1574, %v1582
  %v1584 = vrot.slane %v1543, 7
  %v1585 = vsel %vm525, %v1576, %v1584
  %v1586 = vrot.slane %v1544, 7
  %v1587 = vsel %vm525, %v1578, %v1586
  %v1588 = vrot.slane %v1545, 7
  %v1589 = vsel %vm525, %v1580, %v1588
  %s1606 = scalar_lea.vmem [#allocation2], 768
  %1607 = vst [vmem:[%s1606] sm:$0xfe] %v1562
  %1608 = vst [vmem:[%s1606 + $0x8] sm:$0xfe] %v1563
  %1609 = vst [vmem:[%s1606 + $0x10] sm:$0xfe] %v1564
  %1610 = vst.msk [vmem:[%s1606 + $0x18] sm:$0xfe] %vm574, %v1565
  %1611 = vst [vmem:[%s1606 + $0x20] sm:$0xff] %v1567
  %1612 = vst [vmem:[%s1606 + $0x28] sm:$0xff] %v1569
  %1613 = vst [vmem:[%s1606 + $0x30] sm:$0xff] %v1571
  %1614 = vst.msk [vmem:[%s1606 + $0x38] sm:$0xff] %vm14, %v1573
  %1615 = vst [vmem:[%s1606 + $0x40] sm:$0xff] %v1575
  %1616 = vst [vmem:[%s1606 + $0x48] sm:$0xff] %v1577
  %1617 = vst [vmem:[%s1606 + $0x50] sm:$0xff] %v1579
  %1618 = vst.msk [vmem:[%s1606 + $0x58] sm:$0xff] %vm14, %v1581
  %1619 = vst [vmem:[%s1606 + $0x60] sm:$0x1f] %v1583
  %1620 = vst [vmem:[%s1606 + $0x68] sm:$0x1f] %v1585
  %1621 = vst [vmem:[%s1606 + $0x70] sm:$0x1f] %v1587
  %1622 = vst.msk [vmem:[%s1606 + $0x78] sm:$0x1f] %vm587, %v1589
  %s1623 = scalar_lea.vmem %s0, 1536
  %v1624 = vld [vmem:[%s1623] sm:$0xff]
  %v1625 = vld [vmem:[%s1623 + $0x8] sm:$0xff]
  %v1626 = vld [vmem:[%s1623 + $0x10] sm:$0xff]
  %v1627 = vld [vmem:[%s1623 + $0x18] sm:$0xff]
  %v1628 = vld [vmem:[%s1623 + $0x20] sm:$0xff]
  %v1629 = vld [vmem:[%s1623 + $0x28] sm:$0xff]
  %v1630 = vld [vmem:[%s1623 + $0x30] sm:$0xff]
  %v1631 = vld [vmem:[%s1623 + $0x38] sm:$0xff]
  %v1632 = vld [vmem:[%s1623 + $0x40] sm:$0xff]
  %v1633 = vld [vmem:[%s1623 + $0x48] sm:$0xff]
  %v1634 = vld [vmem:[%s1623 + $0x50] sm:$0xff]
  %v1635 = vld [vmem:[%s1623 + $0x58] sm:$0xff]
  %v1636 = vld [vmem:[%s1623 + $0x60] sm:$0xf]
  %v1637 = vld [vmem:[%s1623 + $0x68] sm:$0xf]
  %v1638 = vld [vmem:[%s1623 + $0x70] sm:$0xf]
  %v1639 = vld [vmem:[%s1623 + $0x78] sm:$0xf]
  %v1656 = vrot.slane %v1624, 7
  %v1657 = vrot.slane %v1625, 7
  %v1658 = vrot.slane %v1626, 7
  %v1659 = vrot.slane %v1627, 7
  %v1660 = vrot.slane %v1628, 7
  %v1661 = vsel %vm525, %v1656, %v1660
  %v1662 = vrot.slane %v1629, 7
  %v1663 = vsel %vm525, %v1657, %v1662
  %v1664 = vrot.slane %v1630, 7
  %v1665 = vsel %vm525, %v1658, %v1664
  %v1666 = vrot.slane %v1631, 7
  %v1667 = vsel %vm525, %v1659, %v1666
  %v1668 = vrot.slane %v1632, 7
  %v1669 = vsel %vm525, %v1660, %v1668
  %v1670 = vrot.slane %v1633, 7
  %v1671 = vsel %vm525, %v1662, %v1670
  %v1672 = vrot.slane %v1634, 7
  %v1673 = vsel %vm525, %v1664, %v1672
  %v1674 = vrot.slane %v1635, 7
  %v1675 = vsel %vm525, %v1666, %v1674
  %v1676 = vrot.slane %v1636, 7
  %v1677 = vsel %vm525, %v1668, %v1676
  %v1678 = vrot.slane %v1637, 7
  %v1679 = vsel %vm525, %v1670, %v1678
  %v1680 = vrot.slane %v1638, 7
  %v1681 = vsel %vm525, %v1672, %v1680
  %v1682 = vrot.slane %v1639, 7
  %v1683 = vsel %vm525, %v1674, %v1682
  %s1700 = scalar_lea.vmem [#allocation2], 2688
  %1701 = vst [vmem:[%s1700] sm:$0xfe] %v1656
  %1702 = vst [vmem:[%s1700 + $0x8] sm:$0xfe] %v1657
  %1703 = vst [vmem:[%s1700 + $0x10] sm:$0xfe] %v1658
  %1704 = vst.msk [vmem:[%s1700 + $0x18] sm:$0xfe] %vm574, %v1659
  %1705 = vst [vmem:[%s1700 + $0x20] sm:$0xff] %v1661
  %1706 = vst [vmem:[%s1700 + $0x28] sm:$0xff] %v1663
  %1707 = vst [vmem:[%s1700 + $0x30] sm:$0xff] %v1665
  %1708 = vst.msk [vmem:[%s1700 + $0x38] sm:$0xff] %vm14, %v1667
  %1709 = vst [vmem:[%s1700 + $0x40] sm:$0xff] %v1669
  %1710 = vst [vmem:[%s1700 + $0x48] sm:$0xff] %v1671
  %1711 = vst [vmem:[%s1700 + $0x50] sm:$0xff] %v1673
  %1712 = vst.msk [vmem:[%s1700 + $0x58] sm:$0xff] %vm14, %v1675
  %1713 = vst [vmem:[%s1700 + $0x60] sm:$0x1f] %v1677
  %1714 = vst [vmem:[%s1700 + $0x68] sm:$0x1f] %v1679
  %1715 = vst [vmem:[%s1700 + $0x70] sm:$0x1f] %v1681
  %1716 = vst.msk [vmem:[%s1700 + $0x78] sm:$0x1f] %vm587, %v1683
  %s1717 = scalar_lea.vmem %s0, 1664
  %v1718 = vld [vmem:[%s1717] sm:$0xff]
  %v1719 = vld [vmem:[%s1717 + $0x8] sm:$0xff]
  %v1720 = vld [vmem:[%s1717 + $0x10] sm:$0xff]
  %v1721 = vld [vmem:[%s1717 + $0x18] sm:$0xff]
  %v1722 = vld [vmem:[%s1717 + $0x20] sm:$0xff]
  %v1723 = vld [vmem:[%s1717 + $0x28] sm:$0xff]
  %v1724 = vld [vmem:[%s1717 + $0x30] sm:$0xff]
  %v1725 = vld [vmem:[%s1717 + $0x38] sm:$0xff]
  %v1726 = vld [vmem:[%s1717 + $0x40] sm:$0xff]
  %v1727 = vld [vmem:[%s1717 + $0x48] sm:$0xff]
  %v1728 = vld [vmem:[%s1717 + $0x50] sm:$0xff]
  %v1729 = vld [vmem:[%s1717 + $0x58] sm:$0xff]
  %v1730 = vld [vmem:[%s1717 + $0x60] sm:$0xf]
  %v1731 = vld [vmem:[%s1717 + $0x68] sm:$0xf]
  %v1732 = vld [vmem:[%s1717 + $0x70] sm:$0xf]
  %v1733 = vld [vmem:[%s1717 + $0x78] sm:$0xf]
  %v1750 = vrot.slane %v1718, 7
  %v1751 = vrot.slane %v1719, 7
  %v1752 = vrot.slane %v1720, 7
  %v1753 = vrot.slane %v1721, 7
  %v1754 = vrot.slane %v1722, 7
  %v1755 = vsel %vm525, %v1750, %v1754
  %v1756 = vrot.slane %v1723, 7
  %v1757 = vsel %vm525, %v1751, %v1756
  %v1758 = vrot.slane %v1724, 7
  %v1759 = vsel %vm525, %v1752, %v1758
  %v1760 = vrot.slane %v1725, 7
  %v1761 = vsel %vm525, %v1753, %v1760
  %v1762 = vrot.slane %v1726, 7
  %v1763 = vsel %vm525, %v1754, %v1762
  %v1764 = vrot.slane %v1727, 7
  %v1765 = vsel %vm525, %v1756, %v1764
  %v1766 = vrot.slane %v1728, 7
  %v1767 = vsel %vm525, %v1758, %v1766
  %v1768 = vrot.slane %v1729, 7
  %v1769 = vsel %vm525, %v1760, %v1768
  %v1770 = vrot.slane %v1730, 7
  %v1771 = vsel %vm525, %v1762, %v1770
  %v1772 = vrot.slane %v1731, 7
  %v1773 = vsel %vm525, %v1764, %v1772
  %v1774 = vrot.slane %v1732, 7
  %v1775 = vsel %vm525, %v1766, %v1774
  %v1776 = vrot.slane %v1733, 7
  %v1777 = vsel %vm525, %v1768, %v1776
  %s1794 = scalar_lea.vmem [#allocation2], 896
  %1795 = vst [vmem:[%s1794] sm:$0xfe] %v1750
  %1796 = vst [vmem:[%s1794 + $0x8] sm:$0xfe] %v1751
  %1797 = vst [vmem:[%s1794 + $0x10] sm:$0xfe] %v1752
  %1798 = vst.msk [vmem:[%s1794 + $0x18] sm:$0xfe] %vm574, %v1753
  %1799 = vst [vmem:[%s1794 + $0x20] sm:$0xff] %v1755
  %1800 = vst [vmem:[%s1794 + $0x28] sm:$0xff] %v1757
  %1801 = vst [vmem:[%s1794 + $0x30] sm:$0xff] %v1759
  %1802 = vst.msk [vmem:[%s1794 + $0x38] sm:$0xff] %vm14, %v1761
  %1803 = vst [vmem:[%s1794 + $0x40] sm:$0xff] %v1763
  %1804 = vst [vmem:[%s1794 + $0x48] sm:$0xff] %v1765
  %1805 = vst [vmem:[%s1794 + $0x50] sm:$0xff] %v1767
  %1806 = vst.msk [vmem:[%s1794 + $0x58] sm:$0xff] %vm14, %v1769
  %1807 = vst [vmem:[%s1794 + $0x60] sm:$0x1f] %v1771
  %1808 = vst [vmem:[%s1794 + $0x68] sm:$0x1f] %v1773
  %1809 = vst [vmem:[%s1794 + $0x70] sm:$0x1f] %v1775
  %1810 = vst.msk [vmem:[%s1794 + $0x78] sm:$0x1f] %vm587, %v1777
  %s1811 = scalar_lea.vmem %s0, 1792
  %v1812 = vld [vmem:[%s1811] sm:$0xff]
  %v1813 = vld [vmem:[%s1811 + $0x8] sm:$0xff]
  %v1814 = vld [vmem:[%s1811 + $0x10] sm:$0xff]
  %v1815 = vld [vmem:[%s1811 + $0x18] sm:$0xff]
  %v1816 = vld [vmem:[%s1811 + $0x20] sm:$0xff]
  %v1817 = vld [vmem:[%s1811 + $0x28] sm:$0xff]
  %v1818 = vld [vmem:[%s1811 + $0x30] sm:$0xff]
  %v1819 = vld [vmem:[%s1811 + $0x38] sm:$0xff]
  %v1820 = vld [vmem:[%s1811 + $0x40] sm:$0xff]
  %v1821 = vld [vmem:[%s1811 + $0x48] sm:$0xff]
  %v1822 = vld [vmem:[%s1811 + $0x50] sm:$0xff]
  %v1823 = vld [vmem:[%s1811 + $0x58] sm:$0xff]
  %v1824 = vld [vmem:[%s1811 + $0x60] sm:$0xf]
  %v1825 = vld [vmem:[%s1811 + $0x68] sm:$0xf]
  %v1826 = vld [vmem:[%s1811 + $0x70] sm:$0xf]
  %v1827 = vld [vmem:[%s1811 + $0x78] sm:$0xf]
  %v1844 = vrot.slane %v1812, 7
  %v1845 = vrot.slane %v1813, 7
  %v1846 = vrot.slane %v1814, 7
  %v1847 = vrot.slane %v1815, 7
  %v1848 = vrot.slane %v1816, 7
  %v1849 = vsel %vm525, %v1844, %v1848
  %v1850 = vrot.slane %v1817, 7
  %v1851 = vsel %vm525, %v1845, %v1850
  %v1852 = vrot.slane %v1818, 7
  %v1853 = vsel %vm525, %v1846, %v1852
  %v1854 = vrot.slane %v1819, 7
  %v1855 = vsel %vm525, %v1847, %v1854
  %v1856 = vrot.slane %v1820, 7
  %v1857 = vsel %vm525, %v1848, %v1856
  %v1858 = vrot.slane %v1821, 7
  %v1859 = vsel %vm525, %v1850, %v1858
  %v1860 = vrot.slane %v1822, 7
  %v1861 = vsel %vm525, %v1852, %v1860
  %v1862 = vrot.slane %v1823, 7
  %v1863 = vsel %vm525, %v1854, %v1862
  %v1864 = vrot.slane %v1824, 7
  %v1865 = vsel %vm525, %v1856, %v1864
  %v1866 = vrot.slane %v1825, 7
  %v1867 = vsel %vm525, %v1858, %v1866
  %v1868 = vrot.slane %v1826, 7
  %v1869 = vsel %vm525, %v1860, %v1868
  %v1870 = vrot.slane %v1827, 7
  %v1871 = vsel %vm525, %v1862, %v1870
  %s1888 = scalar_lea.vmem [#allocation2], 2816
  %1889 = vst [vmem:[%s1888] sm:$0xfe] %v1844
  %1890 = vst [vmem:[%s1888 + $0x8] sm:$0xfe] %v1845
  %1891 = vst [vmem:[%s1888 + $0x10] sm:$0xfe] %v1846
  %1892 = vst.msk [vmem:[%s1888 + $0x18] sm:$0xfe] %vm574, %v1847
  %1893 = vst [vmem:[%s1888 + $0x20] sm:$0xff] %v1849
  %1894 = vst [vmem:[%s1888 + $0x28] sm:$0xff] %v1851
  %1895 = vst [vmem:[%s1888 + $0x30] sm:$0xff] %v1853
  %1896 = vst.msk [vmem:[%s1888 + $0x38] sm:$0xff] %vm14, %v1855
  %1897 = vst [vmem:[%s1888 + $0x40] sm:$0xff] %v1857
  %1898 = vst [vmem:[%s1888 + $0x48] sm:$0xff] %v1859
  %1899 = vst [vmem:[%s1888 + $0x50] sm:$0xff] %v1861
  %1900 = vst.msk [vmem:[%s1888 + $0x58] sm:$0xff] %vm14, %v1863
  %1901 = vst [vmem:[%s1888 + $0x60] sm:$0x1f] %v1865
  %1902 = vst [vmem:[%s1888 + $0x68] sm:$0x1f] %v1867
  %1903 = vst [vmem:[%s1888 + $0x70] sm:$0x1f] %v1869
  %1904 = vst.msk [vmem:[%s1888 + $0x78] sm:$0x1f] %vm587, %v1871
  %s1905 = scalar_lea.vmem %s0, 1920
  %v1906 = vld [vmem:[%s1905] sm:$0xff]
  %v1907 = vld [vmem:[%s1905 + $0x8] sm:$0xff]
  %v1908 = vld [vmem:[%s1905 + $0x10] sm:$0xff]
  %v1909 = vld [vmem:[%s1905 + $0x18] sm:$0xff]
  %v1910 = vld [vmem:[%s1905 + $0x20] sm:$0xff]
  %v1911 = vld [vmem:[%s1905 + $0x28] sm:$0xff]
  %v1912 = vld [vmem:[%s1905 + $0x30] sm:$0xff]
  %v1913 = vld [vmem:[%s1905 + $0x38] sm:$0xff]
  %v1914 = vld [vmem:[%s1905 + $0x40] sm:$0xff]
  %v1915 = vld [vmem:[%s1905 + $0x48] sm:$0xff]
  %v1916 = vld [vmem:[%s1905 + $0x50] sm:$0xff]
  %v1917 = vld [vmem:[%s1905 + $0x58] sm:$0xff]
  %v1918 = vld [vmem:[%s1905 + $0x60] sm:$0xf]
  %v1919 = vld [vmem:[%s1905 + $0x68] sm:$0xf]
  %v1920 = vld [vmem:[%s1905 + $0x70] sm:$0xf]
  %v1921 = vld [vmem:[%s1905 + $0x78] sm:$0xf]
  %v1938 = vrot.slane %v1906, 7
  %v1939 = vrot.slane %v1907, 7
  %v1940 = vrot.slane %v1908, 7
  %v1941 = vrot.slane %v1909, 7
  %v1942 = vrot.slane %v1910, 7
  %v1943 = vsel %vm525, %v1938, %v1942
  %v1944 = vrot.slane %v1911, 7
  %v1945 = vsel %vm525, %v1939, %v1944
  %v1946 = vrot.slane %v1912, 7
  %v1947 = vsel %vm525, %v1940, %v1946
  %v1948 = vrot.slane %v1913, 7
  %v1949 = vsel %vm525, %v1941, %v1948
  %v1950 = vrot.slane %v1914, 7
  %v1951 = vsel %vm525, %v1942, %v1950
  %v1952 = vrot.slane %v1915, 7
  %v1953 = vsel %vm525, %v1944, %v1952
  %v1954 = vrot.slane %v1916, 7
  %v1955 = vsel %vm525, %v1946, %v1954
  %v1956 = vrot.slane %v1917, 7
  %v1957 = vsel %vm525, %v1948, %v1956
  %v1958 = vrot.slane %v1918, 7
  %v1959 = vsel %vm525, %v1950, %v1958
  %v1960 = vrot.slane %v1919, 7
  %v1961 = vsel %vm525, %v1952, %v1960
  %v1962 = vrot.slane %v1920, 7
  %v1963 = vsel %vm525, %v1954, %v1962
  %v1964 = vrot.slane %v1921, 7
  %v1965 = vsel %vm525, %v1956, %v1964
  %s1982 = scalar_lea.vmem [#allocation2], 1024
  %1983 = vst [vmem:[%s1982] sm:$0xfe] %v1938
  %1984 = vst [vmem:[%s1982 + $0x8] sm:$0xfe] %v1939
  %1985 = vst [vmem:[%s1982 + $0x10] sm:$0xfe] %v1940
  %1986 = vst.msk [vmem:[%s1982 + $0x18] sm:$0xfe] %vm574, %v1941
  %1987 = vst [vmem:[%s1982 + $0x20] sm:$0xff] %v1943
  %1988 = vst [vmem:[%s1982 + $0x28] sm:$0xff] %v1945
  %1989 = vst [vmem:[%s1982 + $0x30] sm:$0xff] %v1947
  %1990 = vst.msk [vmem:[%s1982 + $0x38] sm:$0xff] %vm14, %v1949
  %1991 = vst [vmem:[%s1982 + $0x40] sm:$0xff] %v1951
  %1992 = vst [vmem:[%s1982 + $0x48] sm:$0xff] %v1953
  %1993 = vst [vmem:[%s1982 + $0x50] sm:$0xff] %v1955
  %1994 = vst.msk [vmem:[%s1982 + $0x58] sm:$0xff] %vm14, %v1957
  %1995 = vst [vmem:[%s1982 + $0x60] sm:$0x1f] %v1959
  %1996 = vst [vmem:[%s1982 + $0x68] sm:$0x1f] %v1961
  %1997 = vst [vmem:[%s1982 + $0x70] sm:$0x1f] %v1963
  %1998 = vst.msk [vmem:[%s1982 + $0x78] sm:$0x1f] %vm587, %v1965
  %s1999 = scalar_lea.vmem %s0, 2048
  %v2000 = vld [vmem:[%s1999] sm:$0xff]
  %v2001 = vld [vmem:[%s1999 + $0x8] sm:$0xff]
  %v2002 = vld [vmem:[%s1999 + $0x10] sm:$0xff]
  %v2003 = vld [vmem:[%s1999 + $0x18] sm:$0xff]
  %v2004 = vld [vmem:[%s1999 + $0x20] sm:$0xff]
  %v2005 = vld [vmem:[%s1999 + $0x28] sm:$0xff]
  %v2006 = vld [vmem:[%s1999 + $0x30] sm:$0xff]
  %v2007 = vld [vmem:[%s1999 + $0x38] sm:$0xff]
  %v2008 = vld [vmem:[%s1999 + $0x40] sm:$0xff]
  %v2009 = vld [vmem:[%s1999 + $0x48] sm:$0xff]
  %v2010 = vld [vmem:[%s1999 + $0x50] sm:$0xff]
  %v2011 = vld [vmem:[%s1999 + $0x58] sm:$0xff]
  %v2012 = vld [vmem:[%s1999 + $0x60] sm:$0xf]
  %v2013 = vld [vmem:[%s1999 + $0x68] sm:$0xf]
  %v2014 = vld [vmem:[%s1999 + $0x70] sm:$0xf]
  %v2015 = vld [vmem:[%s1999 + $0x78] sm:$0xf]
  %v2032 = vrot.slane %v2000, 7
  %v2033 = vrot.slane %v2001, 7
  %v2034 = vrot.slane %v2002, 7
  %v2035 = vrot.slane %v2003, 7
  %v2036 = vrot.slane %v2004, 7
  %v2037 = vsel %vm525, %v2032, %v2036
  %v2038 = vrot.slane %v2005, 7
  %v2039 = vsel %vm525, %v2033, %v2038
  %v2040 = vrot.slane %v2006, 7
  %v2041 = vsel %vm525, %v2034, %v2040
  %v2042 = vrot.slane %v2007, 7
  %v2043 = vsel %vm525, %v2035, %v2042
  %v2044 = vrot.slane %v2008, 7
  %v2045 = vsel %vm525, %v2036, %v2044
  %v2046 = vrot.slane %v2009, 7
  %v2047 = vsel %vm525, %v2038, %v2046
  %v2048 = vrot.slane %v2010, 7
  %v2049 = vsel %vm525, %v2040, %v2048
  %v2050 = vrot.slane %v2011, 7
  %v2051 = vsel %vm525, %v2042, %v2050
  %v2052 = vrot.slane %v2012, 7
  %v2053 = vsel %vm525, %v2044, %v2052
  %v2054 = vrot.slane %v2013, 7
  %v2055 = vsel %vm525, %v2046, %v2054
  %v2056 = vrot.slane %v2014, 7
  %v2057 = vsel %vm525, %v2048, %v2056
  %v2058 = vrot.slane %v2015, 7
  %v2059 = vsel %vm525, %v2050, %v2058
  %s2076 = scalar_lea.vmem [#allocation2], 2944
  %2077 = vst [vmem:[%s2076] sm:$0xfe] %v2032
  %2078 = vst [vmem:[%s2076 + $0x8] sm:$0xfe] %v2033
  %2079 = vst [vmem:[%s2076 + $0x10] sm:$0xfe] %v2034
  %2080 = vst.msk [vmem:[%s2076 + $0x18] sm:$0xfe] %vm574, %v2035
  %2081 = vst [vmem:[%s2076 + $0x20] sm:$0xff] %v2037
  %2082 = vst [vmem:[%s2076 + $0x28] sm:$0xff] %v2039
  %2083 = vst [vmem:[%s2076 + $0x30] sm:$0xff] %v2041
  %2084 = vst.msk [vmem:[%s2076 + $0x38] sm:$0xff] %vm14, %v2043
  %2085 = vst [vmem:[%s2076 + $0x40] sm:$0xff] %v2045
  %2086 = vst [vmem:[%s2076 + $0x48] sm:$0xff] %v2047
  %2087 = vst [vmem:[%s2076 + $0x50] sm:$0xff] %v2049
  %2088 = vst.msk [vmem:[%s2076 + $0x58] sm:$0xff] %vm14, %v2051
  %2089 = vst [vmem:[%s2076 + $0x60] sm:$0x1f] %v2053
  %2090 = vst [vmem:[%s2076 + $0x68] sm:$0x1f] %v2055
  %2091 = vst [vmem:[%s2076 + $0x70] sm:$0x1f] %v2057
  %2092 = vst.msk [vmem:[%s2076 + $0x78] sm:$0x1f] %vm587, %v2059
  %s2093 = scalar_lea.vmem %s0, 2176
  %v2094 = vld [vmem:[%s2093] sm:$0xff]
  %v2095 = vld [vmem:[%s2093 + $0x8] sm:$0xff]
  %v2096 = vld [vmem:[%s2093 + $0x10] sm:$0xff]
  %v2097 = vld [vmem:[%s2093 + $0x18] sm:$0xff]
  %v2098 = vld [vmem:[%s2093 + $0x20] sm:$0xff]
  %v2099 = vld [vmem:[%s2093 + $0x28] sm:$0xff]
  %v2100 = vld [vmem:[%s2093 + $0x30] sm:$0xff]
  %v2101 = vld [vmem:[%s2093 + $0x38] sm:$0xff]
  %v2102 = vld [vmem:[%s2093 + $0x40] sm:$0xff]
  %v2103 = vld [vmem:[%s2093 + $0x48] sm:$0xff]
  %v2104 = vld [vmem:[%s2093 + $0x50] sm:$0xff]
  %v2105 = vld [vmem:[%s2093 + $0x58] sm:$0xff]
  %v2106 = vld [vmem:[%s2093 + $0x60] sm:$0xf]
  %v2107 = vld [vmem:[%s2093 + $0x68] sm:$0xf]
  %v2108 = vld [vmem:[%s2093 + $0x70] sm:$0xf]
  %v2109 = vld [vmem:[%s2093 + $0x78] sm:$0xf]
  %v2126 = vrot.slane %v2094, 7
  %v2127 = vrot.slane %v2095, 7
  %v2128 = vrot.slane %v2096, 7
  %v2129 = vrot.slane %v2097, 7
  %v2130 = vrot.slane %v2098, 7
  %v2131 = vsel %vm525, %v2126, %v2130
  %v2132 = vrot.slane %v2099, 7
  %v2133 = vsel %vm525, %v2127, %v2132
  %v2134 = vrot.slane %v2100, 7
  %v2135 = vsel %vm525, %v2128, %v2134
  %v2136 = vrot.slane %v2101, 7
  %v2137 = vsel %vm525, %v2129, %v2136
  %v2138 = vrot.slane %v2102, 7
  %v2139 = vsel %vm525, %v2130, %v2138
  %v2140 = vrot.slane %v2103, 7
  %v2141 = vsel %vm525, %v2132, %v2140
  %v2142 = vrot.slane %v2104, 7
  %v2143 = vsel %vm525, %v2134, %v2142
  %v2144 = vrot.slane %v2105, 7
  %v2145 = vsel %vm525, %v2136, %v2144
  %v2146 = vrot.slane %v2106, 7
  %v2147 = vsel %vm525, %v2138, %v2146
  %v2148 = vrot.slane %v2107, 7
  %v2149 = vsel %vm525, %v2140, %v2148
  %v2150 = vrot.slane %v2108, 7
  %v2151 = vsel %vm525, %v2142, %v2150
  %v2152 = vrot.slane %v2109, 7
  %v2153 = vsel %vm525, %v2144, %v2152
  %s2170 = scalar_lea.vmem [#allocation2], 1152
  %2171 = vst [vmem:[%s2170] sm:$0xfe] %v2126
  %2172 = vst [vmem:[%s2170 + $0x8] sm:$0xfe] %v2127
  %2173 = vst [vmem:[%s2170 + $0x10] sm:$0xfe] %v2128
  %2174 = vst.msk [vmem:[%s2170 + $0x18] sm:$0xfe] %vm574, %v2129
  %2175 = vst [vmem:[%s2170 + $0x20] sm:$0xff] %v2131
  %2176 = vst [vmem:[%s2170 + $0x28] sm:$0xff] %v2133
  %2177 = vst [vmem:[%s2170 + $0x30] sm:$0xff] %v2135
  %2178 = vst.msk [vmem:[%s2170 + $0x38] sm:$0xff] %vm14, %v2137
  %2179 = vst [vmem:[%s2170 + $0x40] sm:$0xff] %v2139
  %2180 = vst [vmem:[%s2170 + $0x48] sm:$0xff] %v2141
  %2181 = vst [vmem:[%s2170 + $0x50] sm:$0xff] %v2143
  %2182 = vst.msk [vmem:[%s2170 + $0x58] sm:$0xff] %vm14, %v2145
  %2183 = vst [vmem:[%s2170 + $0x60] sm:$0x1f] %v2147
  %2184 = vst [vmem:[%s2170 + $0x68] sm:$0x1f] %v2149
  %2185 = vst [vmem:[%s2170 + $0x70] sm:$0x1f] %v2151
  %2186 = vst.msk [vmem:[%s2170 + $0x78] sm:$0x1f] %vm587, %v2153
  %s2187 = scalar_lea.vmem %s0, 2304
  %v2188 = vld [vmem:[%s2187] sm:$0xff]
  %v2189 = vld [vmem:[%s2187 + $0x8] sm:$0xff]
  %v2190 = vld [vmem:[%s2187 + $0x10] sm:$0xff]
  %v2191 = vld [vmem:[%s2187 + $0x18] sm:$0xff]
  %v2192 = vld [vmem:[%s2187 + $0x20] sm:$0xff]
  %v2193 = vld [vmem:[%s2187 + $0x28] sm:$0xff]
  %v2194 = vld [vmem:[%s2187 + $0x30] sm:$0xff]
  %v2195 = vld [vmem:[%s2187 + $0x38] sm:$0xff]
  %v2196 = vld [vmem:[%s2187 + $0x40] sm:$0xff]
  %v2197 = vld [vmem:[%s2187 + $0x48] sm:$0xff]
  %v2198 = vld [vmem:[%s2187 + $0x50] sm:$0xff]
  %v2199 = vld [vmem:[%s2187 + $0x58] sm:$0xff]
  %v2200 = vld [vmem:[%s2187 + $0x60] sm:$0xf]
  %v2201 = vld [vmem:[%s2187 + $0x68] sm:$0xf]
  %v2202 = vld [vmem:[%s2187 + $0x70] sm:$0xf]
  %v2203 = vld [vmem:[%s2187 + $0x78] sm:$0xf]
  %v2220 = vrot.slane %v2188, 7
  %v2221 = vrot.slane %v2189, 7
  %v2222 = vrot.slane %v2190, 7
  %v2223 = vrot.slane %v2191, 7
  %v2224 = vrot.slane %v2192, 7
  %v2225 = vsel %vm525, %v2220, %v2224
  %v2226 = vrot.slane %v2193, 7
  %v2227 = vsel %vm525, %v2221, %v2226
  %v2228 = vrot.slane %v2194, 7
  %v2229 = vsel %vm525, %v2222, %v2228
  %v2230 = vrot.slane %v2195, 7
  %v2231 = vsel %vm525, %v2223, %v2230
  %v2232 = vrot.slane %v2196, 7
  %v2233 = vsel %vm525, %v2224, %v2232
  %v2234 = vrot.slane %v2197, 7
  %v2235 = vsel %vm525, %v2226, %v2234
  %v2236 = vrot.slane %v2198, 7
  %v2237 = vsel %vm525, %v2228, %v2236
  %v2238 = vrot.slane %v2199, 7
  %v2239 = vsel %vm525, %v2230, %v2238
  %v2240 = vrot.slane %v2200, 7
  %v2241 = vsel %vm525, %v2232, %v2240
  %v2242 = vrot.slane %v2201, 7
  %v2243 = vsel %vm525, %v2234, %v2242
  %v2244 = vrot.slane %v2202, 7
  %v2245 = vsel %vm525, %v2236, %v2244
  %v2246 = vrot.slane %v2203, 7
  %v2247 = vsel %vm525, %v2238, %v2246
  %s2264 = scalar_lea.vmem [#allocation2], 3072
  %2265 = vst [vmem:[%s2264] sm:$0xfe] %v2220
  %2266 = vst [vmem:[%s2264 + $0x8] sm:$0xfe] %v2221
  %2267 = vst [vmem:[%s2264 + $0x10] sm:$0xfe] %v2222
  %2268 = vst.msk [vmem:[%s2264 + $0x18] sm:$0xfe] %vm574, %v2223
  %2269 = vst [vmem:[%s2264 + $0x20] sm:$0xff] %v2225
  %2270 = vst [vmem:[%s2264 + $0x28] sm:$0xff] %v2227
  %2271 = vst [vmem:[%s2264 + $0x30] sm:$0xff] %v2229
  %2272 = vst.msk [vmem:[%s2264 + $0x38] sm:$0xff] %vm14, %v2231
  %2273 = vst [vmem:[%s2264 + $0x40] sm:$0xff] %v2233
  %2274 = vst [vmem:[%s2264 + $0x48] sm:$0xff] %v2235
  %2275 = vst [vmem:[%s2264 + $0x50] sm:$0xff] %v2237
  %2276 = vst.msk [vmem:[%s2264 + $0x58] sm:$0xff] %vm14, %v2239
  %2277 = vst [vmem:[%s2264 + $0x60] sm:$0x1f] %v2241
  %2278 = vst [vmem:[%s2264 + $0x68] sm:$0x1f] %v2243
  %2279 = vst [vmem:[%s2264 + $0x70] sm:$0x1f] %v2245
  %2280 = vst.msk [vmem:[%s2264 + $0x78] sm:$0x1f] %vm587, %v2247
  %s2281 = scalar_lea.vmem %s0, 2432
  %v2282 = vld [vmem:[%s2281] sm:$0xff]
  %v2283 = vld [vmem:[%s2281 + $0x8] sm:$0xff]
  %v2284 = vld [vmem:[%s2281 + $0x10] sm:$0xff]
  %v2285 = vld [vmem:[%s2281 + $0x18] sm:$0xff]
  %v2286 = vld [vmem:[%s2281 + $0x20] sm:$0xff]
  %v2287 = vld [vmem:[%s2281 + $0x28] sm:$0xff]
  %v2288 = vld [vmem:[%s2281 + $0x30] sm:$0xff]
  %v2289 = vld [vmem:[%s2281 + $0x38] sm:$0xff]
  %v2290 = vld [vmem:[%s2281 + $0x40] sm:$0xff]
  %v2291 = vld [vmem:[%s2281 + $0x48] sm:$0xff]
  %v2292 = vld [vmem:[%s2281 + $0x50] sm:$0xff]
  %v2293 = vld [vmem:[%s2281 + $0x58] sm:$0xff]
  %v2294 = vld [vmem:[%s2281 + $0x60] sm:$0xf]
  %v2295 = vld [vmem:[%s2281 + $0x68] sm:$0xf]
  %v2296 = vld [vmem:[%s2281 + $0x70] sm:$0xf]
  %v2297 = vld [vmem:[%s2281 + $0x78] sm:$0xf]
  %v2314 = vrot.slane %v2282, 7
  %v2315 = vrot.slane %v2283, 7
  %v2316 = vrot.slane %v2284, 7
  %v2317 = vrot.slane %v2285, 7
  %v2318 = vrot.slane %v2286, 7
  %v2319 = vsel %vm525, %v2314, %v2318
  %v2320 = vrot.slane %v2287, 7
  %v2321 = vsel %vm525, %v2315, %v2320
  %v2322 = vrot.slane %v2288, 7
  %v2323 = vsel %vm525, %v2316, %v2322
  %v2324 = vrot.slane %v2289, 7
  %v2325 = vsel %vm525, %v2317, %v2324
  %v2326 = vrot.slane %v2290, 7
  %v2327 = vsel %vm525, %v2318, %v2326
  %v2328 = vrot.slane %v2291, 7
  %v2329 = vsel %vm525, %v2320, %v2328
  %v2330 = vrot.slane %v2292, 7
  %v2331 = vsel %vm525, %v2322, %v2330
  %v2332 = vrot.slane %v2293, 7
  %v2333 = vsel %vm525, %v2324, %v2332
  %v2334 = vrot.slane %v2294, 7
  %v2335 = vsel %vm525, %v2326, %v2334
  %v2336 = vrot.slane %v2295, 7
  %v2337 = vsel %vm525, %v2328, %v2336
  %v2338 = vrot.slane %v2296, 7
  %v2339 = vsel %vm525, %v2330, %v2338
  %v2340 = vrot.slane %v2297, 7
  %v2341 = vsel %vm525, %v2332, %v2340
  %s2358 = scalar_lea.vmem [#allocation2], 1280
  %2359 = vst [vmem:[%s2358] sm:$0xfe] %v2314
  %2360 = vst [vmem:[%s2358 + $0x8] sm:$0xfe] %v2315
  %2361 = vst [vmem:[%s2358 + $0x10] sm:$0xfe] %v2316
  %2362 = vst.msk [vmem:[%s2358 + $0x18] sm:$0xfe] %vm574, %v2317
  %2363 = vst [vmem:[%s2358 + $0x20] sm:$0xff] %v2319
  %2364 = vst [vmem:[%s2358 + $0x28] sm:$0xff] %v2321
  %2365 = vst [vmem:[%s2358 + $0x30] sm:$0xff] %v2323
  %2366 = vst.msk [vmem:[%s2358 + $0x38] sm:$0xff] %vm14, %v2325
  %2367 = vst [vmem:[%s2358 + $0x40] sm:$0xff] %v2327
  %2368 = vst [vmem:[%s2358 + $0x48] sm:$0xff] %v2329
  %2369 = vst [vmem:[%s2358 + $0x50] sm:$0xff] %v2331
  %2370 = vst.msk [vmem:[%s2358 + $0x58] sm:$0xff] %vm14, %v2333
  %2371 = vst [vmem:[%s2358 + $0x60] sm:$0x1f] %v2335
  %2372 = vst [vmem:[%s2358 + $0x68] sm:$0x1f] %v2337
  %2373 = vst [vmem:[%s2358 + $0x70] sm:$0x1f] %v2339
  %2374 = vst.msk [vmem:[%s2358 + $0x78] sm:$0x1f] %vm587, %v2341
  %s2375 = scalar_lea.vmem %s0, 2560
  %v2376 = vld [vmem:[%s2375] sm:$0xff]
  %v2377 = vld [vmem:[%s2375 + $0x8] sm:$0xff]
  %v2378 = vld [vmem:[%s2375 + $0x10] sm:$0xff]
  %v2379 = vld [vmem:[%s2375 + $0x18] sm:$0xff]
  %v2380 = vld [vmem:[%s2375 + $0x20] sm:$0xff]
  %v2381 = vld [vmem:[%s2375 + $0x28] sm:$0xff]
  %v2382 = vld [vmem:[%s2375 + $0x30] sm:$0xff]
  %v2383 = vld [vmem:[%s2375 + $0x38] sm:$0xff]
  %v2384 = vld [vmem:[%s2375 + $0x40] sm:$0xff]
  %v2385 = vld [vmem:[%s2375 + $0x48] sm:$0xff]
  %v2386 = vld [vmem:[%s2375 + $0x50] sm:$0xff]
  %v2387 = vld [vmem:[%s2375 + $0x58] sm:$0xff]
  %v2388 = vld [vmem:[%s2375 + $0x60] sm:$0xf]
  %v2389 = vld [vmem:[%s2375 + $0x68] sm:$0xf]
  %v2390 = vld [vmem:[%s2375 + $0x70] sm:$0xf]
  %v2391 = vld [vmem:[%s2375 + $0x78] sm:$0xf]
  %v2408 = vrot.slane %v2376, 7
  %v2409 = vrot.slane %v2377, 7
  %v2410 = vrot.slane %v2378, 7
  %v2411 = vrot.slane %v2379, 7
  %v2412 = vrot.slane %v2380, 7
  %v2413 = vsel %vm525, %v2408, %v2412
  %v2414 = vrot.slane %v2381, 7
  %v2415 = vsel %vm525, %v2409, %v2414
  %v2416 = vrot.slane %v2382, 7
  %v2417 = vsel %vm525, %v2410, %v2416
  %v2418 = vrot.slane %v2383, 7
  %v2419 = vsel %vm525, %v2411, %v2418
  %v2420 = vrot.slane %v2384, 7
  %v2421 = vsel %vm525, %v2412, %v2420
  %v2422 = vrot.slane %v2385, 7
  %v2423 = vsel %vm525, %v2414, %v2422
  %v2424 = vrot.slane %v2386, 7
  %v2425 = vsel %vm525, %v2416, %v2424
  %v2426 = vrot.slane %v2387, 7
  %v2427 = vsel %vm525, %v2418, %v2426
  %v2428 = vrot.slane %v2388, 7
  %v2429 = vsel %vm525, %v2420, %v2428
  %v2430 = vrot.slane %v2389, 7
  %v2431 = vsel %vm525, %v2422, %v2430
  %v2432 = vrot.slane %v2390, 7
  %v2433 = vsel %vm525, %v2424, %v2432
  %v2434 = vrot.slane %v2391, 7
  %v2435 = vsel %vm525, %v2426, %v2434
  %s2452 = scalar_lea.vmem [#allocation2], 3200
  %2453 = vst [vmem:[%s2452] sm:$0xfe] %v2408
  %2454 = vst [vmem:[%s2452 + $0x8] sm:$0xfe] %v2409
  %2455 = vst [vmem:[%s2452 + $0x10] sm:$0xfe] %v2410
  %2456 = vst.msk [vmem:[%s2452 + $0x18] sm:$0xfe] %vm574, %v2411
  %2457 = vst [vmem:[%s2452 + $0x20] sm:$0xff] %v2413
  %2458 = vst [vmem:[%s2452 + $0x28] sm:$0xff] %v2415
  %2459 = vst [vmem:[%s2452 + $0x30] sm:$0xff] %v2417
  %2460 = vst.msk [vmem:[%s2452 + $0x38] sm:$0xff] %vm14, %v2419
  %2461 = vst [vmem:[%s2452 + $0x40] sm:$0xff] %v2421
  %2462 = vst [vmem:[%s2452 + $0x48] sm:$0xff] %v2423
  %2463 = vst [vmem:[%s2452 + $0x50] sm:$0xff] %v2425
  %2464 = vst.msk [vmem:[%s2452 + $0x58] sm:$0xff] %vm14, %v2427
  %2465 = vst [vmem:[%s2452 + $0x60] sm:$0x1f] %v2429
  %2466 = vst [vmem:[%s2452 + $0x68] sm:$0x1f] %v2431
  %2467 = vst [vmem:[%s2452 + $0x70] sm:$0x1f] %v2433
  %2468 = vst.msk [vmem:[%s2452 + $0x78] sm:$0x1f] %vm587, %v2435
  %s2469 = scalar_lea.vmem %s0, 2688
  %v2470 = vld [vmem:[%s2469] sm:$0xff]
  %v2471 = vld [vmem:[%s2469 + $0x8] sm:$0xff]
  %v2472 = vld [vmem:[%s2469 + $0x10] sm:$0xff]
  %v2473 = vld [vmem:[%s2469 + $0x18] sm:$0xff]
  %v2474 = vld [vmem:[%s2469 + $0x20] sm:$0xff]
  %v2475 = vld [vmem:[%s2469 + $0x28] sm:$0xff]
  %v2476 = vld [vmem:[%s2469 + $0x30] sm:$0xff]
  %v2477 = vld [vmem:[%s2469 + $0x38] sm:$0xff]
  %v2478 = vld [vmem:[%s2469 + $0x40] sm:$0xff]
  %v2479 = vld [vmem:[%s2469 + $0x48] sm:$0xff]
  %v2480 = vld [vmem:[%s2469 + $0x50] sm:$0xff]
  %v2481 = vld [vmem:[%s2469 + $0x58] sm:$0xff]
  %v2482 = vld [vmem:[%s2469 + $0x60] sm:$0xf]
  %v2483 = vld [vmem:[%s2469 + $0x68] sm:$0xf]
  %v2484 = vld [vmem:[%s2469 + $0x70] sm:$0xf]
  %v2485 = vld [vmem:[%s2469 + $0x78] sm:$0xf]
  %v2502 = vrot.slane %v2470, 7
  %v2503 = vrot.slane %v2471, 7
  %v2504 = vrot.slane %v2472, 7
  %v2505 = vrot.slane %v2473, 7
  %v2506 = vrot.slane %v2474, 7
  %v2507 = vsel %vm525, %v2502, %v2506
  %v2508 = vrot.slane %v2475, 7
  %v2509 = vsel %vm525, %v2503, %v2508
  %v2510 = vrot.slane %v2476, 7
  %v2511 = vsel %vm525, %v2504, %v2510
  %v2512 = vrot.slane %v2477, 7
  %v2513 = vsel %vm525, %v2505, %v2512
  %v2514 = vrot.slane %v2478, 7
  %v2515 = vsel %vm525, %v2506, %v2514
  %v2516 = vrot.slane %v2479, 7
  %v2517 = vsel %vm525, %v2508, %v2516
  %v2518 = vrot.slane %v2480, 7
  %v2519 = vsel %vm525, %v2510, %v2518
  %v2520 = vrot.slane %v2481, 7
  %v2521 = vsel %vm525, %v2512, %v2520
  %v2522 = vrot.slane %v2482, 7
  %v2523 = vsel %vm525, %v2514, %v2522
  %v2524 = vrot.slane %v2483, 7
  %v2525 = vsel %vm525, %v2516, %v2524
  %v2526 = vrot.slane %v2484, 7
  %v2527 = vsel %vm525, %v2518, %v2526
  %v2528 = vrot.slane %v2485, 7
  %v2529 = vsel %vm525, %v2520, %v2528
  %s2546 = scalar_lea.vmem [#allocation2], 1408
  %2547 = vst [vmem:[%s2546] sm:$0xfe] %v2502
  %2548 = vst [vmem:[%s2546 + $0x8] sm:$0xfe] %v2503
  %2549 = vst [vmem:[%s2546 + $0x10] sm:$0xfe] %v2504
  %2550 = vst.msk [vmem:[%s2546 + $0x18] sm:$0xfe] %vm574, %v2505
  %2551 = vst [vmem:[%s2546 + $0x20] sm:$0xff] %v2507
  %2552 = vst [vmem:[%s2546 + $0x28] sm:$0xff] %v2509
  %2553 = vst [vmem:[%s2546 + $0x30] sm:$0xff] %v2511
  %2554 = vst.msk [vmem:[%s2546 + $0x38] sm:$0xff] %vm14, %v2513
  %2555 = vst [vmem:[%s2546 + $0x40] sm:$0xff] %v2515
  %2556 = vst [vmem:[%s2546 + $0x48] sm:$0xff] %v2517
  %2557 = vst [vmem:[%s2546 + $0x50] sm:$0xff] %v2519
  %2558 = vst.msk [vmem:[%s2546 + $0x58] sm:$0xff] %vm14, %v2521
  %2559 = vst [vmem:[%s2546 + $0x60] sm:$0x1f] %v2523
  %2560 = vst [vmem:[%s2546 + $0x68] sm:$0x1f] %v2525
  %2561 = vst [vmem:[%s2546 + $0x70] sm:$0x1f] %v2527
  %2562 = vst.msk [vmem:[%s2546 + $0x78] sm:$0x1f] %vm587, %v2529
  %s2563 = scalar_lea.vmem %s0, 2816
  %v2564 = vld [vmem:[%s2563] sm:$0xff]
  %v2565 = vld [vmem:[%s2563 + $0x8] sm:$0xff]
  %v2566 = vld [vmem:[%s2563 + $0x10] sm:$0xff]
  %v2567 = vld [vmem:[%s2563 + $0x18] sm:$0xff]
  %v2568 = vld [vmem:[%s2563 + $0x20] sm:$0xff]
  %v2569 = vld [vmem:[%s2563 + $0x28] sm:$0xff]
  %v2570 = vld [vmem:[%s2563 + $0x30] sm:$0xff]
  %v2571 = vld [vmem:[%s2563 + $0x38] sm:$0xff]
  %v2572 = vld [vmem:[%s2563 + $0x40] sm:$0xff]
  %v2573 = vld [vmem:[%s2563 + $0x48] sm:$0xff]
  %v2574 = vld [vmem:[%s2563 + $0x50] sm:$0xff]
  %v2575 = vld [vmem:[%s2563 + $0x58] sm:$0xff]
  %v2576 = vld [vmem:[%s2563 + $0x60] sm:$0xf]
  %v2577 = vld [vmem:[%s2563 + $0x68] sm:$0xf]
  %v2578 = vld [vmem:[%s2563 + $0x70] sm:$0xf]
  %v2579 = vld [vmem:[%s2563 + $0x78] sm:$0xf]
  %v2596 = vrot.slane %v2564, 7
  %v2597 = vrot.slane %v2565, 7
  %v2598 = vrot.slane %v2566, 7
  %v2599 = vrot.slane %v2567, 7
  %v2600 = vrot.slane %v2568, 7
  %v2601 = vsel %vm525, %v2596, %v2600
  %v2602 = vrot.slane %v2569, 7
  %v2603 = vsel %vm525, %v2597, %v2602
  %v2604 = vrot.slane %v2570, 7
  %v2605 = vsel %vm525, %v2598, %v2604
  %v2606 = vrot.slane %v2571, 7
  %v2607 = vsel %vm525, %v2599, %v2606
  %v2608 = vrot.slane %v2572, 7
  %v2609 = vsel %vm525, %v2600, %v2608
  %v2610 = vrot.slane %v2573, 7
  %v2611 = vsel %vm525, %v2602, %v2610
  %v2612 = vrot.slane %v2574, 7
  %v2613 = vsel %vm525, %v2604, %v2612
  %v2614 = vrot.slane %v2575, 7
  %v2615 = vsel %vm525, %v2606, %v2614
  %v2616 = vrot.slane %v2576, 7
  %v2617 = vsel %vm525, %v2608, %v2616
  %v2618 = vrot.slane %v2577, 7
  %v2619 = vsel %vm525, %v2610, %v2618
  %v2620 = vrot.slane %v2578, 7
  %v2621 = vsel %vm525, %v2612, %v2620
  %v2622 = vrot.slane %v2579, 7
  %v2623 = vsel %vm525, %v2614, %v2622
  %s2640 = scalar_lea.vmem [#allocation2], 3328
  %2641 = vst [vmem:[%s2640] sm:$0xfe] %v2596
  %2642 = vst [vmem:[%s2640 + $0x8] sm:$0xfe] %v2597
  %2643 = vst [vmem:[%s2640 + $0x10] sm:$0xfe] %v2598
  %2644 = vst.msk [vmem:[%s2640 + $0x18] sm:$0xfe] %vm574, %v2599
  %2645 = vst [vmem:[%s2640 + $0x20] sm:$0xff] %v2601
  %2646 = vst [vmem:[%s2640 + $0x28] sm:$0xff] %v2603
  %2647 = vst [vmem:[%s2640 + $0x30] sm:$0xff] %v2605
  %2648 = vst.msk [vmem:[%s2640 + $0x38] sm:$0xff] %vm14, %v2607
  %2649 = vst [vmem:[%s2640 + $0x40] sm:$0xff] %v2609
  %2650 = vst [vmem:[%s2640 + $0x48] sm:$0xff] %v2611
  %2651 = vst [vmem:[%s2640 + $0x50] sm:$0xff] %v2613
  %2652 = vst.msk [vmem:[%s2640 + $0x58] sm:$0xff] %vm14, %v2615
  %2653 = vst [vmem:[%s2640 + $0x60] sm:$0x1f] %v2617
  %2654 = vst [vmem:[%s2640 + $0x68] sm:$0x1f] %v2619
  %2655 = vst [vmem:[%s2640 + $0x70] sm:$0x1f] %v2621
  %2656 = vst.msk [vmem:[%s2640 + $0x78] sm:$0x1f] %vm587, %v2623
  %s2657 = scalar_lea.vmem %s0, 2944
  %v2658 = vld [vmem:[%s2657] sm:$0xff]
  %v2659 = vld [vmem:[%s2657 + $0x8] sm:$0xff]
  %v2660 = vld [vmem:[%s2657 + $0x10] sm:$0xff]
  %v2661 = vld [vmem:[%s2657 + $0x18] sm:$0xff]
  %v2662 = vld [vmem:[%s2657 + $0x20] sm:$0xff]
  %v2663 = vld [vmem:[%s2657 + $0x28] sm:$0xff]
  %v2664 = vld [vmem:[%s2657 + $0x30] sm:$0xff]
  %v2665 = vld [vmem:[%s2657 + $0x38] sm:$0xff]
  %v2666 = vld [vmem:[%s2657 + $0x40] sm:$0xff]
  %v2667 = vld [vmem:[%s2657 + $0x48] sm:$0xff]
  %v2668 = vld [vmem:[%s2657 + $0x50] sm:$0xff]
  %v2669 = vld [vmem:[%s2657 + $0x58] sm:$0xff]
  %v2670 = vld [vmem:[%s2657 + $0x60] sm:$0xf]
  %v2671 = vld [vmem:[%s2657 + $0x68] sm:$0xf]
  %v2672 = vld [vmem:[%s2657 + $0x70] sm:$0xf]
  %v2673 = vld [vmem:[%s2657 + $0x78] sm:$0xf]
  %v2690 = vrot.slane %v2658, 7
  %v2691 = vrot.slane %v2659, 7
  %v2692 = vrot.slane %v2660, 7
  %v2693 = vrot.slane %v2661, 7
  %v2694 = vrot.slane %v2662, 7
  %v2695 = vsel %vm525, %v2690, %v2694
  %v2696 = vrot.slane %v2663, 7
  %v2697 = vsel %vm525, %v2691, %v2696
  %v2698 = vrot.slane %v2664, 7
  %v2699 = vsel %vm525, %v2692, %v2698
  %v2700 = vrot.slane %v2665, 7
  %v2701 = vsel %vm525, %v2693, %v2700
  %v2702 = vrot.slane %v2666, 7
  %v2703 = vsel %vm525, %v2694, %v2702
  %v2704 = vrot.slane %v2667, 7
  %v2705 = vsel %vm525, %v2696, %v2704
  %v2706 = vrot.slane %v2668, 7
  %v2707 = vsel %vm525, %v2698, %v2706
  %v2708 = vrot.slane %v2669, 7
  %v2709 = vsel %vm525, %v2700, %v2708
  %v2710 = vrot.slane %v2670, 7
  %v2711 = vsel %vm525, %v2702, %v2710
  %v2712 = vrot.slane %v2671, 7
  %v2713 = vsel %vm525, %v2704, %v2712
  %v2714 = vrot.slane %v2672, 7
  %v2715 = vsel %vm525, %v2706, %v2714
  %v2716 = vrot.slane %v2673, 7
  %v2717 = vsel %vm525, %v2708, %v2716
  %s2734 = scalar_lea.vmem [#allocation2], 1536
  %2735 = vst [vmem:[%s2734] sm:$0xfe] %v2690
  %2736 = vst [vmem:[%s2734 + $0x8] sm:$0xfe] %v2691
  %2737 = vst [vmem:[%s2734 + $0x10] sm:$0xfe] %v2692
  %2738 = vst.msk [vmem:[%s2734 + $0x18] sm:$0xfe] %vm574, %v2693
  %2739 = vst [vmem:[%s2734 + $0x20] sm:$0xff] %v2695
  %2740 = vst [vmem:[%s2734 + $0x28] sm:$0xff] %v2697
  %2741 = vst [vmem:[%s2734 + $0x30] sm:$0xff] %v2699
  %2742 = vst.msk [vmem:[%s2734 + $0x38] sm:$0xff] %vm14, %v2701
  %2743 = vst [vmem:[%s2734 + $0x40] sm:$0xff] %v2703
  %2744 = vst [vmem:[%s2734 + $0x48] sm:$0xff] %v2705
  %2745 = vst [vmem:[%s2734 + $0x50] sm:$0xff] %v2707
  %2746 = vst.msk [vmem:[%s2734 + $0x58] sm:$0xff] %vm14, %v2709
  %2747 = vst [vmem:[%s2734 + $0x60] sm:$0x1f] %v2711
  %2748 = vst [vmem:[%s2734 + $0x68] sm:$0x1f] %v2713
  %2749 = vst [vmem:[%s2734 + $0x70] sm:$0x1f] %v2715
  %2750 = vst.msk [vmem:[%s2734 + $0x78] sm:$0x1f] %vm587, %v2717
  %s2751 = scalar_lea.vmem %s0, 3072
  %v2752 = vld [vmem:[%s2751] sm:$0xff]
  %v2753 = vld [vmem:[%s2751 + $0x8] sm:$0xff]
  %v2754 = vld [vmem:[%s2751 + $0x10] sm:$0xff]
  %v2755 = vld [vmem:[%s2751 + $0x18] sm:$0xff]
  %v2756 = vld [vmem:[%s2751 + $0x20] sm:$0xff]
  %v2757 = vld [vmem:[%s2751 + $0x28] sm:$0xff]
  %v2758 = vld [vmem:[%s2751 + $0x30] sm:$0xff]
  %v2759 = vld [vmem:[%s2751 + $0x38] sm:$0xff]
  %v2760 = vld [vmem:[%s2751 + $0x40] sm:$0xff]
  %v2761 = vld [vmem:[%s2751 + $0x48] sm:$0xff]
  %v2762 = vld [vmem:[%s2751 + $0x50] sm:$0xff]
  %v2763 = vld [vmem:[%s2751 + $0x58] sm:$0xff]
  %v2764 = vld [vmem:[%s2751 + $0x60] sm:$0xf]
  %v2765 = vld [vmem:[%s2751 + $0x68] sm:$0xf]
  %v2766 = vld [vmem:[%s2751 + $0x70] sm:$0xf]
  %v2767 = vld [vmem:[%s2751 + $0x78] sm:$0xf]
  %v2784 = vrot.slane %v2752, 7
  %v2785 = vrot.slane %v2753, 7
  %v2786 = vrot.slane %v2754, 7
  %v2787 = vrot.slane %v2755, 7
  %v2788 = vrot.slane %v2756, 7
  %v2789 = vsel %vm525, %v2784, %v2788
  %v2790 = vrot.slane %v2757, 7
  %v2791 = vsel %vm525, %v2785, %v2790
  %v2792 = vrot.slane %v2758, 7
  %v2793 = vsel %vm525, %v2786, %v2792
  %v2794 = vrot.slane %v2759, 7
  %v2795 = vsel %vm525, %v2787, %v2794
  %v2796 = vrot.slane %v2760, 7
  %v2797 = vsel %vm525, %v2788, %v2796
  %v2798 = vrot.slane %v2761, 7
  %v2799 = vsel %vm525, %v2790, %v2798
  %v2800 = vrot.slane %v2762, 7
  %v2801 = vsel %vm525, %v2792, %v2800
  %v2802 = vrot.slane %v2763, 7
  %v2803 = vsel %vm525, %v2794, %v2802
  %v2804 = vrot.slane %v2764, 7
  %v2805 = vsel %vm525, %v2796, %v2804
  %v2806 = vrot.slane %v2765, 7
  %v2807 = vsel %vm525, %v2798, %v2806
  %v2808 = vrot.slane %v2766, 7
  %v2809 = vsel %vm525, %v2800, %v2808
  %v2810 = vrot.slane %v2767, 7
  %v2811 = vsel %vm525, %v2802, %v2810
  %s2828 = scalar_lea.vmem [#allocation2], 3456
  %2829 = vst [vmem:[%s2828] sm:$0xfe] %v2784
  %2830 = vst [vmem:[%s2828 + $0x8] sm:$0xfe] %v2785
  %2831 = vst [vmem:[%s2828 + $0x10] sm:$0xfe] %v2786
  %2832 = vst.msk [vmem:[%s2828 + $0x18] sm:$0xfe] %vm574, %v2787
  %2833 = vst [vmem:[%s2828 + $0x20] sm:$0xff] %v2789
  %2834 = vst [vmem:[%s2828 + $0x28] sm:$0xff] %v2791
  %2835 = vst [vmem:[%s2828 + $0x30] sm:$0xff] %v2793
  %2836 = vst.msk [vmem:[%s2828 + $0x38] sm:$0xff] %vm14, %v2795
  %2837 = vst [vmem:[%s2828 + $0x40] sm:$0xff] %v2797
  %2838 = vst [vmem:[%s2828 + $0x48] sm:$0xff] %v2799
  %2839 = vst [vmem:[%s2828 + $0x50] sm:$0xff] %v2801
  %2840 = vst.msk [vmem:[%s2828 + $0x58] sm:$0xff] %vm14, %v2803
  %2841 = vst [vmem:[%s2828 + $0x60] sm:$0x1f] %v2805
  %2842 = vst [vmem:[%s2828 + $0x68] sm:$0x1f] %v2807
  %2843 = vst [vmem:[%s2828 + $0x70] sm:$0x1f] %v2809
  %2844 = vst.msk [vmem:[%s2828 + $0x78] sm:$0x1f] %vm587, %v2811
  %s2845 = scalar_lea.vmem %s0, 3200
  %v2846 = vld [vmem:[%s2845] sm:$0xff]
  %v2847 = vld [vmem:[%s2845 + $0x8] sm:$0xff]
  %v2848 = vld [vmem:[%s2845 + $0x10] sm:$0xff]
  %v2849 = vld [vmem:[%s2845 + $0x18] sm:$0xff]
  %v2850 = vld [vmem:[%s2845 + $0x20] sm:$0xff]
  %v2851 = vld [vmem:[%s2845 + $0x28] sm:$0xff]
  %v2852 = vld [vmem:[%s2845 + $0x30] sm:$0xff]
  %v2853 = vld [vmem:[%s2845 + $0x38] sm:$0xff]
  %v2854 = vld [vmem:[%s2845 + $0x40] sm:$0xff]
  %v2855 = vld [vmem:[%s2845 + $0x48] sm:$0xff]
  %v2856 = vld [vmem:[%s2845 + $0x50] sm:$0xff]
  %v2857 = vld [vmem:[%s2845 + $0x58] sm:$0xff]
  %v2858 = vld [vmem:[%s2845 + $0x60] sm:$0xf]
  %v2859 = vld [vmem:[%s2845 + $0x68] sm:$0xf]
  %v2860 = vld [vmem:[%s2845 + $0x70] sm:$0xf]
  %v2861 = vld [vmem:[%s2845 + $0x78] sm:$0xf]
  %v2878 = vrot.slane %v2846, 7
  %v2879 = vrot.slane %v2847, 7
  %v2880 = vrot.slane %v2848, 7
  %v2881 = vrot.slane %v2849, 7
  %v2882 = vrot.slane %v2850, 7
  %v2883 = vsel %vm525, %v2878, %v2882
  %v2884 = vrot.slane %v2851, 7
  %v2885 = vsel %vm525, %v2879, %v2884
  %v2886 = vrot.slane %v2852, 7
  %v2887 = vsel %vm525, %v2880, %v2886
  %v2888 = vrot.slane %v2853, 7
  %v2889 = vsel %vm525, %v2881, %v2888
  %v2890 = vrot.slane %v2854, 7
  %v2891 = vsel %vm525, %v2882, %v2890
  %v2892 = vrot.slane %v2855, 7
  %v2893 = vsel %vm525, %v2884, %v2892
  %v2894 = vrot.slane %v2856, 7
  %v2895 = vsel %vm525, %v2886, %v2894
  %v2896 = vrot.slane %v2857, 7
  %v2897 = vsel %vm525, %v2888, %v2896
  %v2898 = vrot.slane %v2858, 7
  %v2899 = vsel %vm525, %v2890, %v2898
  %v2900 = vrot.slane %v2859, 7
  %v2901 = vsel %vm525, %v2892, %v2900
  %v2902 = vrot.slane %v2860, 7
  %v2903 = vsel %vm525, %v2894, %v2902
  %v2904 = vrot.slane %v2861, 7
  %v2905 = vsel %vm525, %v2896, %v2904
  %s2922 = scalar_lea.vmem [#allocation2], 1664
  %2923 = vst [vmem:[%s2922] sm:$0xfe] %v2878
  %2924 = vst [vmem:[%s2922 + $0x8] sm:$0xfe] %v2879
  %2925 = vst [vmem:[%s2922 + $0x10] sm:$0xfe] %v2880
  %2926 = vst.msk [vmem:[%s2922 + $0x18] sm:$0xfe] %vm574, %v2881
  %2927 = vst [vmem:[%s2922 + $0x20] sm:$0xff] %v2883
  %2928 = vst [vmem:[%s2922 + $0x28] sm:$0xff] %v2885
  %2929 = vst [vmem:[%s2922 + $0x30] sm:$0xff] %v2887
  %2930 = vst.msk [vmem:[%s2922 + $0x38] sm:$0xff] %vm14, %v2889
  %2931 = vst [vmem:[%s2922 + $0x40] sm:$0xff] %v2891
  %2932 = vst [vmem:[%s2922 + $0x48] sm:$0xff] %v2893
  %2933 = vst [vmem:[%s2922 + $0x50] sm:$0xff] %v2895
  %2934 = vst.msk [vmem:[%s2922 + $0x58] sm:$0xff] %vm14, %v2897
  %2935 = vst [vmem:[%s2922 + $0x60] sm:$0x1f] %v2899
  %2936 = vst [vmem:[%s2922 + $0x68] sm:$0x1f] %v2901
  %2937 = vst [vmem:[%s2922 + $0x70] sm:$0x1f] %v2903
  %2938 = vst.msk [vmem:[%s2922 + $0x78] sm:$0x1f] %vm587, %v2905
  %s2939 = scalar_lea.vmem %s0, 3328
  %v2940 = vld [vmem:[%s2939] sm:$0xff]
  %v2941 = vld [vmem:[%s2939 + $0x8] sm:$0xff]
  %v2942 = vld [vmem:[%s2939 + $0x10] sm:$0xff]
  %v2943 = vld [vmem:[%s2939 + $0x18] sm:$0xff]
  %v2944 = vld [vmem:[%s2939 + $0x20] sm:$0xff]
  %v2945 = vld [vmem:[%s2939 + $0x28] sm:$0xff]
  %v2946 = vld [vmem:[%s2939 + $0x30] sm:$0xff]
  %v2947 = vld [vmem:[%s2939 + $0x38] sm:$0xff]
  %v2948 = vld [vmem:[%s2939 + $0x40] sm:$0xff]
  %v2949 = vld [vmem:[%s2939 + $0x48] sm:$0xff]
  %v2950 = vld [vmem:[%s2939 + $0x50] sm:$0xff]
  %v2951 = vld [vmem:[%s2939 + $0x58] sm:$0xff]
  %v2952 = vld [vmem:[%s2939 + $0x60] sm:$0xf]
  %v2953 = vld [vmem:[%s2939 + $0x68] sm:$0xf]
  %v2954 = vld [vmem:[%s2939 + $0x70] sm:$0xf]
  %v2955 = vld [vmem:[%s2939 + $0x78] sm:$0xf]
  %v2972 = vrot.slane %v2940, 7
  %v2973 = vrot.slane %v2941, 7
  %v2974 = vrot.slane %v2942, 7
  %v2975 = vrot.slane %v2943, 7
  %v2976 = vrot.slane %v2944, 7
  %v2977 = vsel %vm525, %v2972, %v2976
  %v2978 = vrot.slane %v2945, 7
  %v2979 = vsel %vm525, %v2973, %v2978
  %v2980 = vrot.slane %v2946, 7
  %v2981 = vsel %vm525, %v2974, %v2980
  %v2982 = vrot.slane %v2947, 7
  %v2983 = vsel %vm525, %v2975, %v2982
  %v2984 = vrot.slane %v2948, 7
  %v2985 = vsel %vm525, %v2976, %v2984
  %v2986 = vrot.slane %v2949, 7
  %v2987 = vsel %vm525, %v2978, %v2986
  %v2988 = vrot.slane %v2950, 7
  %v2989 = vsel %vm525, %v2980, %v2988
  %v2990 = vrot.slane %v2951, 7
  %v2991 = vsel %vm525, %v2982, %v2990
  %v2992 = vrot.slane %v2952, 7
  %v2993 = vsel %vm525, %v2984, %v2992
  %v2994 = vrot.slane %v2953, 7
  %v2995 = vsel %vm525, %v2986, %v2994
  %v2996 = vrot.slane %v2954, 7
  %v2997 = vsel %vm525, %v2988, %v2996
  %v2998 = vrot.slane %v2955, 7
  %v2999 = vsel %vm525, %v2990, %v2998
  %s3016 = scalar_lea.vmem [#allocation2], 3584
  %3017 = vst [vmem:[%s3016] sm:$0xfe] %v2972
  %3018 = vst [vmem:[%s3016 + $0x8] sm:$0xfe] %v2973
  %3019 = vst [vmem:[%s3016 + $0x10] sm:$0xfe] %v2974
  %3020 = vst.msk [vmem:[%s3016 + $0x18] sm:$0xfe] %vm574, %v2975
  %3021 = vst [vmem:[%s3016 + $0x20] sm:$0xff] %v2977
  %3022 = vst [vmem:[%s3016 + $0x28] sm:$0xff] %v2979
  %3023 = vst [vmem:[%s3016 + $0x30] sm:$0xff] %v2981
  %3024 = vst.msk [vmem:[%s3016 + $0x38] sm:$0xff] %vm14, %v2983
  %3025 = vst [vmem:[%s3016 + $0x40] sm:$0xff] %v2985
  %3026 = vst [vmem:[%s3016 + $0x48] sm:$0xff] %v2987
  %3027 = vst [vmem:[%s3016 + $0x50] sm:$0xff] %v2989
  %3028 = vst.msk [vmem:[%s3016 + $0x58] sm:$0xff] %vm14, %v2991
  %3029 = vst [vmem:[%s3016 + $0x60] sm:$0x1f] %v2993
  %3030 = vst [vmem:[%s3016 + $0x68] sm:$0x1f] %v2995
  %3031 = vst [vmem:[%s3016 + $0x70] sm:$0x1f] %v2997
  %3032 = vst.msk [vmem:[%s3016 + $0x78] sm:$0x1f] %vm587, %v2999
  %s3033 = scalar_lea.vmem %s0, 3456
  %v3034 = vld [vmem:[%s3033] sm:$0xff]
  %v3035 = vld [vmem:[%s3033 + $0x8] sm:$0xff]
  %v3036 = vld [vmem:[%s3033 + $0x10] sm:$0xff]
  %v3037 = vld [vmem:[%s3033 + $0x18] sm:$0xff]
  %v3038 = vld [vmem:[%s3033 + $0x20] sm:$0xff]
  %v3039 = vld [vmem:[%s3033 + $0x28] sm:$0xff]
  %v3040 = vld [vmem:[%s3033 + $0x30] sm:$0xff]
  %v3041 = vld [vmem:[%s3033 + $0x38] sm:$0xff]
  %v3042 = vld [vmem:[%s3033 + $0x40] sm:$0xff]
  %v3043 = vld [vmem:[%s3033 + $0x48] sm:$0xff]
  %v3044 = vld [vmem:[%s3033 + $0x50] sm:$0xff]
  %v3045 = vld [vmem:[%s3033 + $0x58] sm:$0xff]
  %v3046 = vld [vmem:[%s3033 + $0x60] sm:$0xf]
  %v3047 = vld [vmem:[%s3033 + $0x68] sm:$0xf]
  %v3048 = vld [vmem:[%s3033 + $0x70] sm:$0xf]
  %v3049 = vld [vmem:[%s3033 + $0x78] sm:$0xf]
  %v3066 = vrot.slane %v3034, 7
  %v3067 = vrot.slane %v3035, 7
  %v3068 = vrot.slane %v3036, 7
  %v3069 = vrot.slane %v3037, 7
  %v3070 = vrot.slane %v3038, 7
  %v3071 = vsel %vm525, %v3066, %v3070
  %v3072 = vrot.slane %v3039, 7
  %v3073 = vsel %vm525, %v3067, %v3072
  %v3074 = vrot.slane %v3040, 7
  %v3075 = vsel %vm525, %v3068, %v3074
  %v3076 = vrot.slane %v3041, 7
  %v3077 = vsel %vm525, %v3069, %v3076
  %v3078 = vrot.slane %v3042, 7
  %v3079 = vsel %vm525, %v3070, %v3078
  %v3080 = vrot.slane %v3043, 7
  %v3081 = vsel %vm525, %v3072, %v3080
  %v3082 = vrot.slane %v3044, 7
  %v3083 = vsel %vm525, %v3074, %v3082
  %v3084 = vrot.slane %v3045, 7
  %v3085 = vsel %vm525, %v3076, %v3084
  %v3086 = vrot.slane %v3046, 7
  %v3087 = vsel %vm525, %v3078, %v3086
  %v3088 = vrot.slane %v3047, 7
  %v3089 = vsel %vm525, %v3080, %v3088
  %v3090 = vrot.slane %v3048, 7
  %v3091 = vsel %vm525, %v3082, %v3090
  %v3092 = vrot.slane %v3049, 7
  %v3093 = vsel %vm525, %v3084, %v3092
  %s3110 = scalar_lea.vmem [#allocation2], 1792
  %3111 = vst [vmem:[%s3110] sm:$0xfe] %v3066
  %3112 = vst [vmem:[%s3110 + $0x8] sm:$0xfe] %v3067
  %3113 = vst [vmem:[%s3110 + $0x10] sm:$0xfe] %v3068
  %3114 = vst.msk [vmem:[%s3110 + $0x18] sm:$0xfe] %vm574, %v3069
  %3115 = vst [vmem:[%s3110 + $0x20] sm:$0xff] %v3071
  %3116 = vst [vmem:[%s3110 + $0x28] sm:$0xff] %v3073
  %3117 = vst [vmem:[%s3110 + $0x30] sm:$0xff] %v3075
  %3118 = vst.msk [vmem:[%s3110 + $0x38] sm:$0xff] %vm14, %v3077
  %3119 = vst [vmem:[%s3110 + $0x40] sm:$0xff] %v3079
  %3120 = vst [vmem:[%s3110 + $0x48] sm:$0xff] %v3081
  %3121 = vst [vmem:[%s3110 + $0x50] sm:$0xff] %v3083
  %3122 = vst.msk [vmem:[%s3110 + $0x58] sm:$0xff] %vm14, %v3085
  %3123 = vst [vmem:[%s3110 + $0x60] sm:$0x1f] %v3087
  %3124 = vst [vmem:[%s3110 + $0x68] sm:$0x1f] %v3089
  %3125 = vst [vmem:[%s3110 + $0x70] sm:$0x1f] %v3091
  %3126 = vst.msk [vmem:[%s3110 + $0x78] sm:$0x1f] %vm587, %v3093
  %v3127 = vld [vmem:[#allocation2] sm:$0xff]
  %v3128 = vld [vmem:[#allocation2 + $0x8] sm:$0xff]
  %v3129 = vld [vmem:[#allocation2 + $0x10] sm:$0xff]
  %v3130 = vld [vmem:[#allocation2 + $0x18] sm:$0xff]
  %v3131 = vld [vmem:[#allocation2 + $0x20] sm:$0xff]
  %v3132 = vld [vmem:[#allocation2 + $0x28] sm:$0xff]
  %v3133 = vld [vmem:[#allocation2 + $0x30] sm:$0xff]
  %v3134 = vld [vmem:[#allocation2 + $0x38] sm:$0xff]
  %v3135 = vld [vmem:[#allocation2 + $0x40] sm:$0xff]
  %v3136 = vld [vmem:[#allocation2 + $0x48] sm:$0xff]
  %v3137 = vld [vmem:[#allocation2 + $0x50] sm:$0xff]
  %v3138 = vld [vmem:[#allocation2 + $0x58] sm:$0xff]
  %v3139 = vld [vmem:[#allocation2 + $0x60] sm:$0xf]
  %v3140 = vld [vmem:[#allocation2 + $0x68] sm:$0xf]
  %v3141 = vld [vmem:[#allocation2 + $0x70] sm:$0xf]
  %v3142 = vld [vmem:[#allocation2 + $0x78] sm:$0xf]
  %v3143 = vld [vmem:[#allocation2 + $0x80] sm:$0xff]
  %v3144 = vld [vmem:[#allocation2 + $0x88] sm:$0xff]
  %v3145 = vld [vmem:[#allocation2 + $0x90] sm:$0xff]
  %v3146 = vld [vmem:[#allocation2 + $0x98] sm:$0xff]
  %v3147 = vld [vmem:[#allocation2 + $0xa0] sm:$0xff]
  %v3148 = vld [vmem:[#allocation2 + $0xa8] sm:$0xff]
  %v3149 = vld [vmem:[#allocation2 + $0xb0] sm:$0xff]
  %v3150 = vld [vmem:[#allocation2 + $0xb8] sm:$0xff]
  %v3151 = vld [vmem:[#allocation2 + $0xc0] sm:$0xff]
  %v3152 = vld [vmem:[#allocation2 + $0xc8] sm:$0xff]
  %v3153 = vld [vmem:[#allocation2 + $0xd0] sm:$0xff]
  %v3154 = vld [vmem:[#allocation2 + $0xd8] sm:$0xff]
  %v3155 = vld [vmem:[#allocation2 + $0xe0] sm:$0xf]
  %v3156 = vld [vmem:[#allocation2 + $0xe8] sm:$0xf]
  %v3157 = vld [vmem:[#allocation2 + $0xf0] sm:$0xf]
  %v3158 = vld [vmem:[#allocation2 + $0xf8] sm:$0xf]
  %v3159 = vld [vmem:[#allocation2 + $0x100] sm:$0xff]
  %v3160 = vld [vmem:[#allocation2 + $0x108] sm:$0xff]
  %v3161 = vld [vmem:[#allocation2 + $0x110] sm:$0xff]
  %v3162 = vld [vmem:[#allocation2 + $0x118] sm:$0xff]
  %v3163 = vld [vmem:[#allocation2 + $0x120] sm:$0xff]
  %v3164 = vld [vmem:[#allocation2 + $0x128] sm:$0xff]
  %v3165 = vld [vmem:[#allocation2 + $0x130] sm:$0xff]
  %v3166 = vld [vmem:[#allocation2 + $0x138] sm:$0xff]
  %v3167 = vld [vmem:[#allocation2 + $0x140] sm:$0xff]
  %v3168 = vld [vmem:[#allocation2 + $0x148] sm:$0xff]
  %v3169 = vld [vmem:[#allocation2 + $0x150] sm:$0xff]
  %v3170 = vld [vmem:[#allocation2 + $0x158] sm:$0xff]
  %v3171 = vld [vmem:[#allocation2 + $0x160] sm:$0xf]
  %v3172 = vld [vmem:[#allocation2 + $0x168] sm:$0xf]
  %v3173 = vld [vmem:[#allocation2 + $0x170] sm:$0xf]
  %v3174 = vld [vmem:[#allocation2 + $0x178] sm:$0xf]
  %v3175 = vld [vmem:[#allocation2 + $0x180] sm:$0xff]
  %v3176 = vld [vmem:[#allocation2 + $0x188] sm:$0xff]
  %v3177 = vld [vmem:[#allocation2 + $0x190] sm:$0xff]
  %v3178 = vld [vmem:[#allocation2 + $0x198] sm:$0xff]
  %v3179 = vld [vmem:[#allocation2 + $0x1a0] sm:$0xff]
  %v3180 = vld [vmem:[#allocation2 + $0x1a8] sm:$0xff]
  %v3181 = vld [vmem:[#allocation2 + $0x1b0] sm:$0xff]
  %v3182 = vld [vmem:[#allocation2 + $0x1b8] sm:$0xff]
  %v3183 = vld [vmem:[#allocation2 + $0x1c0] sm:$0xff]
  %v3184 = vld [vmem:[#allocation2 + $0x1c8] sm:$0xff]
  %v3185 = vld [vmem:[#allocation2 + $0x1d0] sm:$0xff]
  %v3186 = vld [vmem:[#allocation2 + $0x1d8] sm:$0xff]
  %v3187 = vld [vmem:[#allocation2 + $0x1e0] sm:$0xf]
  %v3188 = vld [vmem:[#allocation2 + $0x1e8] sm:$0xf]
  %v3189 = vld [vmem:[#allocation2 + $0x1f0] sm:$0xf]
  %v3190 = vld [vmem:[#allocation2 + $0x1f8] sm:$0xf]
  %v3191 = vld [vmem:[#allocation2 + $0x200] sm:$0xff]
  %v3192 = vld [vmem:[#allocation2 + $0x208] sm:$0xff]
  %v3193 = vld [vmem:[#allocation2 + $0x210] sm:$0xff]
  %v3194 = vld [vmem:[#allocation2 + $0x218] sm:$0xff]
  %v3195 = vld [vmem:[#allocation2 + $0x220] sm:$0xff]
  %v3196 = vld [vmem:[#allocation2 + $0x228] sm:$0xff]
  %v3197 = vld [vmem:[#allocation2 + $0x230] sm:$0xff]
  %v3198 = vld [vmem:[#allocation2 + $0x238] sm:$0xff]
  %v3199 = vld [vmem:[#allocation2 + $0x240] sm:$0xff]
  %v3200 = vld [vmem:[#allocation2 + $0x248] sm:$0xff]
  %v3201 = vld [vmem:[#allocation2 + $0x250] sm:$0xff]
  %v3202 = vld [vmem:[#allocation2 + $0x258] sm:$0xff]
  %v3203 = vld [vmem:[#allocation2 + $0x260] sm:$0xf]
  %v3204 = vld [vmem:[#allocation2 + $0x268] sm:$0xf]
  %v3205 = vld [vmem:[#allocation2 + $0x270] sm:$0xf]
  %v3206 = vld [vmem:[#allocation2 + $0x278] sm:$0xf]
  %v3207 = vld [vmem:[#allocation2 + $0x280] sm:$0xff]
  %v3208 = vld [vmem:[#allocation2 + $0x288] sm:$0xff]
  %v3209 = vld [vmem:[#allocation2 + $0x290] sm:$0xff]
  %v3210 = vld [vmem:[#allocation2 + $0x298] sm:$0xff]
  %v3211 = vld [vmem:[#allocation2 + $0x2a0] sm:$0xff]
  %v3212 = vld [vmem:[#allocation2 + $0x2a8] sm:$0xff]
  %v3213 = vld [vmem:[#allocation2 + $0x2b0] sm:$0xff]
  %v3214 = vld [vmem:[#allocation2 + $0x2b8] sm:$0xff]
  %v3215 = vld [vmem:[#allocation2 + $0x2c0] sm:$0xff]
  %v3216 = vld [vmem:[#allocation2 + $0x2c8] sm:$0xff]
  %v3217 = vld [vmem:[#allocation2 + $0x2d0] sm:$0xff]
  %v3218 = vld [vmem:[#allocation2 + $0x2d8] sm:$0xff]
  %v3219 = vld [vmem:[#allocation2 + $0x2e0] sm:$0xf]
  %v3220 = vld [vmem:[#allocation2 + $0x2e8] sm:$0xf]
  %v3221 = vld [vmem:[#allocation2 + $0x2f0] sm:$0xf]
  %v3222 = vld [vmem:[#allocation2 + $0x2f8] sm:$0xf]
  %v3223 = vld [vmem:[#allocation2 + $0x300] sm:$0xff]
  %v3224 = vld [vmem:[#allocation2 + $0x308] sm:$0xff]
  %v3225 = vld [vmem:[#allocation2 + $0x310] sm:$0xff]
  %v3226 = vld [vmem:[#allocation2 + $0x318] sm:$0xff]
  %v3227 = vld [vmem:[#allocation2 + $0x320] sm:$0xff]
  %v3228 = vld [vmem:[#allocation2 + $0x328] sm:$0xff]
  %v3229 = vld [vmem:[#allocation2 + $0x330] sm:$0xff]
  %v3230 = vld [vmem:[#allocation2 + $0x338] sm:$0xff]
  %v3231 = vld [vmem:[#allocation2 + $0x340] sm:$0xff]
  %v3232 = vld [vmem:[#allocation2 + $0x348] sm:$0xff]
  %v3233 = vld [vmem:[#allocation2 + $0x350] sm:$0xff]
  %v3234 = vld [vmem:[#allocation2 + $0x358] sm:$0xff]
  %v3235 = vld [vmem:[#allocation2 + $0x360] sm:$0xf]
  %v3236 = vld [vmem:[#allocation2 + $0x368] sm:$0xf]
  %v3237 = vld [vmem:[#allocation2 + $0x370] sm:$0xf]
  %v3238 = vld [vmem:[#allocation2 + $0x378] sm:$0xf]
  %v3239 = vld [vmem:[#allocation2 + $0x380] sm:$0xff]
  %v3240 = vld [vmem:[#allocation2 + $0x388] sm:$0xff]
  %v3241 = vld [vmem:[#allocation2 + $0x390] sm:$0xff]
  %v3242 = vld [vmem:[#allocation2 + $0x398] sm:$0xff]
  %v3243 = vld [vmem:[#allocation2 + $0x3a0] sm:$0xff]
  %v3244 = vld [vmem:[#allocation2 + $0x3a8] sm:$0xff]
  %v3245 = vld [vmem:[#allocation2 + $0x3b0] sm:$0xff]
  %v3246 = vld [vmem:[#allocation2 + $0x3b8] sm:$0xff]
  %v3247 = vld [vmem:[#allocation2 + $0x3c0] sm:$0xff]
  %v3248 = vld [vmem:[#allocation2 + $0x3c8] sm:$0xff]
  %v3249 = vld [vmem:[#allocation2 + $0x3d0] sm:$0xff]
  %v3250 = vld [vmem:[#allocation2 + $0x3d8] sm:$0xff]
  %v3251 = vld [vmem:[#allocation2 + $0x3e0] sm:$0xf]
  %v3252 = vld [vmem:[#allocation2 + $0x3e8] sm:$0xf]
  %v3253 = vld [vmem:[#allocation2 + $0x3f0] sm:$0xf]
  %v3254 = vld [vmem:[#allocation2 + $0x3f8] sm:$0xf]
  %v3255 = vld [vmem:[#allocation2 + $0x400] sm:$0xff]
  %v3256 = vld [vmem:[#allocation2 + $0x408] sm:$0xff]
  %v3257 = vld [vmem:[#allocation2 + $0x410] sm:$0xff]
  %v3258 = vld [vmem:[#allocation2 + $0x418] sm:$0xff]
  %v3259 = vld [vmem:[#allocation2 + $0x420] sm:$0xff]
  %v3260 = vld [vmem:[#allocation2 + $0x428] sm:$0xff]
  %v3261 = vld [vmem:[#allocation2 + $0x430] sm:$0xff]
  %v3262 = vld [vmem:[#allocation2 + $0x438] sm:$0xff]
  %v3263 = vld [vmem:[#allocation2 + $0x440] sm:$0xff]
  %v3264 = vld [vmem:[#allocation2 + $0x448] sm:$0xff]
  %v3265 = vld [vmem:[#allocation2 + $0x450] sm:$0xff]
  %v3266 = vld [vmem:[#allocation2 + $0x458] sm:$0xff]
  %v3267 = vld [vmem:[#allocation2 + $0x460] sm:$0xf]
  %v3268 = vld [vmem:[#allocation2 + $0x468] sm:$0xf]
  %v3269 = vld [vmem:[#allocation2 + $0x470] sm:$0xf]
  %v3270 = vld [vmem:[#allocation2 + $0x478] sm:$0xf]
  %v3271 = vld [vmem:[#allocation2 + $0x480] sm:$0xff]
  %v3272 = vld [vmem:[#allocation2 + $0x488] sm:$0xff]
  %v3273 = vld [vmem:[#allocation2 + $0x490] sm:$0xff]
  %v3274 = vld [vmem:[#allocation2 + $0x498] sm:$0xff]
  %v3275 = vld [vmem:[#allocation2 + $0x4a0] sm:$0xff]
  %v3276 = vld [vmem:[#allocation2 + $0x4a8] sm:$0xff]
  %v3277 = vld [vmem:[#allocation2 + $0x4b0] sm:$0xff]
  %v3278 = vld [vmem:[#allocation2 + $0x4b8] sm:$0xff]
  %v3279 = vld [vmem:[#allocation2 + $0x4c0] sm:$0xff]
  %v3280 = vld [vmem:[#allocation2 + $0x4c8] sm:$0xff]
  %v3281 = vld [vmem:[#allocation2 + $0x4d0] sm:$0xff]
  %v3282 = vld [vmem:[#allocation2 + $0x4d8] sm:$0xff]
  %v3283 = vld [vmem:[#allocation2 + $0x4e0] sm:$0xf]
  %v3284 = vld [vmem:[#allocation2 + $0x4e8] sm:$0xf]
  %v3285 = vld [vmem:[#allocation2 + $0x4f0] sm:$0xf]
  %v3286 = vld [vmem:[#allocation2 + $0x4f8] sm:$0xf]
  %v3287 = vld [vmem:[#allocation2 + $0x500] sm:$0xff]
  %v3288 = vld [vmem:[#allocation2 + $0x508] sm:$0xff]
  %v3289 = vld [vmem:[#allocation2 + $0x510] sm:$0xff]
  %v3290 = vld [vmem:[#allocation2 + $0x518] sm:$0xff]
  %v3291 = vld [vmem:[#allocation2 + $0x520] sm:$0xff]
  %v3292 = vld [vmem:[#allocation2 + $0x528] sm:$0xff]
  %v3293 = vld [vmem:[#allocation2 + $0x530] sm:$0xff]
  %v3294 = vld [vmem:[#allocation2 + $0x538] sm:$0xff]
  %v3295 = vld [vmem:[#allocation2 + $0x540] sm:$0xff]
  %v3296 = vld [vmem:[#allocation2 + $0x548] sm:$0xff]
  %v3297 = vld [vmem:[#allocation2 + $0x550] sm:$0xff]
  %v3298 = vld [vmem:[#allocation2 + $0x558] sm:$0xff]
  %v3299 = vld [vmem:[#allocation2 + $0x560] sm:$0xf]
  %v3300 = vld [vmem:[#allocation2 + $0x568] sm:$0xf]
  %v3301 = vld [vmem:[#allocation2 + $0x570] sm:$0xf]
  %v3302 = vld [vmem:[#allocation2 + $0x578] sm:$0xf]
  %v3303 = vld [vmem:[#allocation2 + $0x580] sm:$0xff]
  %v3304 = vld [vmem:[#allocation2 + $0x588] sm:$0xff]
  %v3305 = vld [vmem:[#allocation2 + $0x590] sm:$0xff]
  %v3306 = vld [vmem:[#allocation2 + $0x598] sm:$0xff]
  %v3307 = vld [vmem:[#allocation2 + $0x5a0] sm:$0xff]
  %v3308 = vld [vmem:[#allocation2 + $0x5a8] sm:$0xff]
  %v3309 = vld [vmem:[#allocation2 + $0x5b0] sm:$0xff]
  %v3310 = vld [vmem:[#allocation2 + $0x5b8] sm:$0xff]
  %v3311 = vld [vmem:[#allocation2 + $0x5c0] sm:$0xff]
  %v3312 = vld [vmem:[#allocation2 + $0x5c8] sm:$0xff]
  %v3313 = vld [vmem:[#allocation2 + $0x5d0] sm:$0xff]
  %v3314 = vld [vmem:[#allocation2 + $0x5d8] sm:$0xff]
  %v3315 = vld [vmem:[#allocation2 + $0x5e0] sm:$0xf]
  %v3316 = vld [vmem:[#allocation2 + $0x5e8] sm:$0xf]
  %v3317 = vld [vmem:[#allocation2 + $0x5f0] sm:$0xf]
  %v3318 = vld [vmem:[#allocation2 + $0x5f8] sm:$0xf]
  %v3319 = vld [vmem:[#allocation2 + $0x600] sm:$0xff]
  %v3320 = vld [vmem:[#allocation2 + $0x608] sm:$0xff]
  %v3321 = vld [vmem:[#allocation2 + $0x610] sm:$0xff]
  %v3322 = vld [vmem:[#allocation2 + $0x618] sm:$0xff]
  %v3323 = vld [vmem:[#allocation2 + $0x620] sm:$0xff]
  %v3324 = vld [vmem:[#allocation2 + $0x628] sm:$0xff]
  %v3325 = vld [vmem:[#allocation2 + $0x630] sm:$0xff]
  %v3326 = vld [vmem:[#allocation2 + $0x638] sm:$0xff]
  %v3327 = vld [vmem:[#allocation2 + $0x640] sm:$0xff]
  %v3328 = vld [vmem:[#allocation2 + $0x648] sm:$0xff]
  %v3329 = vld [vmem:[#allocation2 + $0x650] sm:$0xff]
  %v3330 = vld [vmem:[#allocation2 + $0x658] sm:$0xff]
  %v3331 = vld [vmem:[#allocation2 + $0x660] sm:$0xf]
  %v3332 = vld [vmem:[#allocation2 + $0x668] sm:$0xf]
  %v3333 = vld [vmem:[#allocation2 + $0x670] sm:$0xf]
  %v3334 = vld [vmem:[#allocation2 + $0x678] sm:$0xf]
  %v3335 = vld [vmem:[#allocation2 + $0x680] sm:$0xff]
  %v3336 = vld [vmem:[#allocation2 + $0x688] sm:$0xff]
  %v3337 = vld [vmem:[#allocation2 + $0x690] sm:$0xff]
  %v3338 = vld [vmem:[#allocation2 + $0x698] sm:$0xff]
  %v3339 = vld [vmem:[#allocation2 + $0x6a0] sm:$0xff]
  %v3340 = vld [vmem:[#allocation2 + $0x6a8] sm:$0xff]
  %v3341 = vld [vmem:[#allocation2 + $0x6b0] sm:$0xff]
  %v3342 = vld [vmem:[#allocation2 + $0x6b8] sm:$0xff]
  %v3343 = vld [vmem:[#allocation2 + $0x6c0] sm:$0xff]
  %v3344 = vld [vmem:[#allocation2 + $0x6c8] sm:$0xff]
  %v3345 = vld [vmem:[#allocation2 + $0x6d0] sm:$0xff]
  %v3346 = vld [vmem:[#allocation2 + $0x6d8] sm:$0xff]
  %v3347 = vld [vmem:[#allocation2 + $0x6e0] sm:$0xf]
  %v3348 = vld [vmem:[#allocation2 + $0x6e8] sm:$0xf]
  %v3349 = vld [vmem:[#allocation2 + $0x6f0] sm:$0xf]
  %v3350 = vld [vmem:[#allocation2 + $0x6f8] sm:$0xf]
  %v3351 = vld [vmem:[%s1] ss:$4 sm:$0xf]
  %v3353 = vlaneseq
  %v3354 = vshrl.u32 %v3353, 7
  %v3355 = vsub.s32 0, %v3354
  %v3356 = vrot.slane %v3351, %v3355
  %v3357 = vlaneseq
  %v3358 = vshrl.u32 %v3357, 7
  %v3359 = vsub.s32 1, %v3358
  %v3360 = vrot.slane %v3351, %v3359
  %v3361 = vlaneseq
  %v3362 = vshrl.u32 %v3361, 7
  %v3363 = vsub.s32 2, %v3362
  %v3364 = vrot.slane %v3351, %v3363
  %v3365 = vlaneseq
  %v3366 = vshrl.u32 %v3365, 7
  %v3367 = vsub.s32 3, %v3366
  %v3368 = vrot.slane %v3351, %v3367
  %v3373 = vmul.f32 %v3127, %v3356
  %v3374 = vmul.f32 %v3128, %v3360
  %v3375 = vmul.f32 %v3129, %v3364
  %v3376 = vmul.f32 %v3130, %v3368
  %v3377 = vmul.f32 %v3131, %v3356
  %v3378 = vmul.f32 %v3132, %v3360
  %v3379 = vmul.f32 %v3133, %v3364
  %v3380 = vmul.f32 %v3134, %v3368
  %v3381 = vmul.f32 %v3135, %v3356
  %v3382 = vmul.f32 %v3136, %v3360
  %v3383 = vmul.f32 %v3137, %v3364
  %v3384 = vmul.f32 %v3138, %v3368
  %v3385 = vmul.f32 %v3139, %v3356
  %v3386 = vmul.f32 %v3140, %v3360
  %v3387 = vmul.f32 %v3141, %v3364
  %v3388 = vmul.f32 %v3142, %v3368
  %v3389 = vmul.f32 %v3143, %v3356
  %v3390 = vmul.f32 %v3144, %v3360
  %v3391 = vmul.f32 %v3145, %v3364
  %v3392 = vmul.f32 %v3146, %v3368
  %v3393 = vmul.f32 %v3147, %v3356
  %v3394 = vmul.f32 %v3148, %v3360
  %v3395 = vmul.f32 %v3149, %v3364
  %v3396 = vmul.f32 %v3150, %v3368
  %v3397 = vmul.f32 %v3151, %v3356
  %v3398 = vmul.f32 %v3152, %v3360
  %v3399 = vmul.f32 %v3153, %v3364
  %v3400 = vmul.f32 %v3154, %v3368
  %v3401 = vmul.f32 %v3155, %v3356
  %v3402 = vmul.f32 %v3156, %v3360
  %v3403 = vmul.f32 %v3157, %v3364
  %v3404 = vmul.f32 %v3158, %v3368
  %v3405 = vmul.f32 %v3159, %v3356
  %v3406 = vmul.f32 %v3160, %v3360
  %v3407 = vmul.f32 %v3161, %v3364
  %v3408 = vmul.f32 %v3162, %v3368
  %v3409 = vmul.f32 %v3163, %v3356
  %v3410 = vmul.f32 %v3164, %v3360
  %v3411 = vmul.f32 %v3165, %v3364
  %v3412 = vmul.f32 %v3166, %v3368
  %v3413 = vmul.f32 %v3167, %v3356
  %v3414 = vmul.f32 %v3168, %v3360
  %v3415 = vmul.f32 %v3169, %v3364
  %v3416 = vmul.f32 %v3170, %v3368
  %v3417 = vmul.f32 %v3171, %v3356
  %v3418 = vmul.f32 %v3172, %v3360
  %v3419 = vmul.f32 %v3173, %v3364
  %v3420 = vmul.f32 %v3174, %v3368
  %v3421 = vmul.f32 %v3175, %v3356
  %v3422 = vmul.f32 %v3176, %v3360
  %v3423 = vmul.f32 %v3177, %v3364
  %v3424 = vmul.f32 %v3178, %v3368
  %v3425 = vmul.f32 %v3179, %v3356
  %v3426 = vmul.f32 %v3180, %v3360
  %v3427 = vmul.f32 %v3181, %v3364
  %v3428 = vmul.f32 %v3182, %v3368
  %v3429 = vmul.f32 %v3183, %v3356
  %v3430 = vmul.f32 %v3184, %v3360
  %v3431 = vmul.f32 %v3185, %v3364
  %v3432 = vmul.f32 %v3186, %v3368
  %v3433 = vmul.f32 %v3187, %v3356
  %v3434 = vmul.f32 %v3188, %v3360
  %v3435 = vmul.f32 %v3189, %v3364
  %v3436 = vmul.f32 %v3190, %v3368
  %v3437 = vmul.f32 %v3191, %v3356
  %v3438 = vmul.f32 %v3192, %v3360
  %v3439 = vmul.f32 %v3193, %v3364
  %v3440 = vmul.f32 %v3194, %v3368
  %v3441 = vmul.f32 %v3195, %v3356
  %v3442 = vmul.f32 %v3196, %v3360
  %v3443 = vmul.f32 %v3197, %v3364
  %v3444 = vmul.f32 %v3198, %v3368
  %v3445 = vmul.f32 %v3199, %v3356
  %v3446 = vmul.f32 %v3200, %v3360
  %v3447 = vmul.f32 %v3201, %v3364
  %v3448 = vmul.f32 %v3202, %v3368
  %v3449 = vmul.f32 %v3203, %v3356
  %v3450 = vmul.f32 %v3204, %v3360
  %v3451 = vmul.f32 %v3205, %v3364
  %v3452 = vmul.f32 %v3206, %v3368
  %v3453 = vmul.f32 %v3207, %v3356
  %v3454 = vmul.f32 %v3208, %v3360
  %v3455 = vmul.f32 %v3209, %v3364
  %v3456 = vmul.f32 %v3210, %v3368
  %v3457 = vmul.f32 %v3211, %v3356
  %v3458 = vmul.f32 %v3212, %v3360
  %v3459 = vmul.f32 %v3213, %v3364
  %v3460 = vmul.f32 %v3214, %v3368
  %v3461 = vmul.f32 %v3215, %v3356
  %v3462 = vmul.f32 %v3216, %v3360
  %v3463 = vmul.f32 %v3217, %v3364
  %v3464 = vmul.f32 %v3218, %v3368
  %v3465 = vmul.f32 %v3219, %v3356
  %v3466 = vmul.f32 %v3220, %v3360
  %v3467 = vmul.f32 %v3221, %v3364
  %v3468 = vmul.f32 %v3222, %v3368
  %v3469 = vmul.f32 %v3223, %v3356
  %v3470 = vmul.f32 %v3224, %v3360
  %v3471 = vmul.f32 %v3225, %v3364
  %v3472 = vmul.f32 %v3226, %v3368
  %v3473 = vmul.f32 %v3227, %v3356
  %v3474 = vmul.f32 %v3228, %v3360
  %v3475 = vmul.f32 %v3229, %v3364
  %v3476 = vmul.f32 %v3230, %v3368
  %v3477 = vmul.f32 %v3231, %v3356
  %v3478 = vmul.f32 %v3232, %v3360
  %v3479 = vmul.f32 %v3233, %v3364
  %v3480 = vmul.f32 %v3234, %v3368
  %v3481 = vmul.f32 %v3235, %v3356
  %v3482 = vmul.f32 %v3236, %v3360
  %v3483 = vmul.f32 %v3237, %v3364
  %v3484 = vmul.f32 %v3238, %v3368
  %v3485 = vmul.f32 %v3239, %v3356
  %v3486 = vmul.f32 %v3240, %v3360
  %v3487 = vmul.f32 %v3241, %v3364
  %v3488 = vmul.f32 %v3242, %v3368
  %v3489 = vmul.f32 %v3243, %v3356
  %v3490 = vmul.f32 %v3244, %v3360
  %v3491 = vmul.f32 %v3245, %v3364
  %v3492 = vmul.f32 %v3246, %v3368
  %v3493 = vmul.f32 %v3247, %v3356
  %v3494 = vmul.f32 %v3248, %v3360
  %v3495 = vmul.f32 %v3249, %v3364
  %v3496 = vmul.f32 %v3250, %v3368
  %v3497 = vmul.f32 %v3251, %v3356
  %v3498 = vmul.f32 %v3252, %v3360
  %v3499 = vmul.f32 %v3253, %v3364
  %v3500 = vmul.f32 %v3254, %v3368
  %v3501 = vmul.f32 %v3255, %v3356
  %v3502 = vmul.f32 %v3256, %v3360
  %v3503 = vmul.f32 %v3257, %v3364
  %v3504 = vmul.f32 %v3258, %v3368
  %v3505 = vmul.f32 %v3259, %v3356
  %v3506 = vmul.f32 %v3260, %v3360
  %v3507 = vmul.f32 %v3261, %v3364
  %v3508 = vmul.f32 %v3262, %v3368
  %v3509 = vmul.f32 %v3263, %v3356
  %v3510 = vmul.f32 %v3264, %v3360
  %v3511 = vmul.f32 %v3265, %v3364
  %v3512 = vmul.f32 %v3266, %v3368
  %v3513 = vmul.f32 %v3267, %v3356
  %v3514 = vmul.f32 %v3268, %v3360
  %v3515 = vmul.f32 %v3269, %v3364
  %v3516 = vmul.f32 %v3270, %v3368
  %v3517 = vmul.f32 %v3271, %v3356
  %v3518 = vmul.f32 %v3272, %v3360
  %v3519 = vmul.f32 %v3273, %v3364
  %v3520 = vmul.f32 %v3274, %v3368
  %v3521 = vmul.f32 %v3275, %v3356
  %v3522 = vmul.f32 %v3276, %v3360
  %v3523 = vmul.f32 %v3277, %v3364
  %v3524 = vmul.f32 %v3278, %v3368
  %v3525 = vmul.f32 %v3279, %v3356
  %v3526 = vmul.f32 %v3280, %v3360
  %v3527 = vmul.f32 %v3281, %v3364
  %v3528 = vmul.f32 %v3282, %v3368
  %v3529 = vmul.f32 %v3283, %v3356
  %v3530 = vmul.f32 %v3284, %v3360
  %v3531 = vmul.f32 %v3285, %v3364
  %v3532 = vmul.f32 %v3286, %v3368
  %v3533 = vmul.f32 %v3287, %v3356
  %v3534 = vmul.f32 %v3288, %v3360
  %v3535 = vmul.f32 %v3289, %v3364
  %v3536 = vmul.f32 %v3290, %v3368
  %v3537 = vmul.f32 %v3291, %v3356
  %v3538 = vmul.f32 %v3292, %v3360
  %v3539 = vmul.f32 %v3293, %v3364
  %v3540 = vmul.f32 %v3294, %v3368
  %v3541 = vmul.f32 %v3295, %v3356
  %v3542 = vmul.f32 %v3296, %v3360
  %v3543 = vmul.f32 %v3297, %v3364
  %v3544 = vmul.f32 %v3298, %v3368
  %v3545 = vmul.f32 %v3299, %v3356
  %v3546 = vmul.f32 %v3300, %v3360
  %v3547 = vmul.f32 %v3301, %v3364
  %v3548 = vmul.f32 %v3302, %v3368
  %v3549 = vmul.f32 %v3303, %v3356
  %v3550 = vmul.f32 %v3304, %v3360
  %v3551 = vmul.f32 %v3305, %v3364
  %v3552 = vmul.f32 %v3306, %v3368
  %v3553 = vmul.f32 %v3307, %v3356
  %v3554 = vmul.f32 %v3308, %v3360
  %v3555 = vmul.f32 %v3309, %v3364
  %v3556 = vmul.f32 %v3310, %v3368
  %v3557 = vmul.f32 %v3311, %v3356
  %v3558 = vmul.f32 %v3312, %v3360
  %v3559 = vmul.f32 %v3313, %v3364
  %v3560 = vmul.f32 %v3314, %v3368
  %v3561 = vmul.f32 %v3315, %v3356
  %v3562 = vmul.f32 %v3316, %v3360
  %v3563 = vmul.f32 %v3317, %v3364
  %v3564 = vmul.f32 %v3318, %v3368
  %v3565 = vmul.f32 %v3319, %v3356
  %v3566 = vmul.f32 %v3320, %v3360
  %v3567 = vmul.f32 %v3321, %v3364
  %v3568 = vmul.f32 %v3322, %v3368
  %v3569 = vmul.f32 %v3323, %v3356
  %v3570 = vmul.f32 %v3324, %v3360
  %v3571 = vmul.f32 %v3325, %v3364
  %v3572 = vmul.f32 %v3326, %v3368
  %v3573 = vmul.f32 %v3327, %v3356
  %v3574 = vmul.f32 %v3328, %v3360
  %v3575 = vmul.f32 %v3329, %v3364
  %v3576 = vmul.f32 %v3330, %v3368
  %v3577 = vmul.f32 %v3331, %v3356
  %v3578 = vmul.f32 %v3332, %v3360
  %v3579 = vmul.f32 %v3333, %v3364
  %v3580 = vmul.f32 %v3334, %v3368
  %v3581 = vmul.f32 %v3335, %v3356
  %v3582 = vmul.f32 %v3336, %v3360
  %v3583 = vmul.f32 %v3337, %v3364
  %v3584 = vmul.f32 %v3338, %v3368
  %v3585 = vmul.f32 %v3339, %v3356
  %v3586 = vmul.f32 %v3340, %v3360
  %v3587 = vmul.f32 %v3341, %v3364
  %v3588 = vmul.f32 %v3342, %v3368
  %v3589 = vmul.f32 %v3343, %v3356
  %v3590 = vmul.f32 %v3344, %v3360
  %v3591 = vmul.f32 %v3345, %v3364
  %v3592 = vmul.f32 %v3346, %v3368
  %v3593 = vmul.f32 %v3347, %v3356
  %v3594 = vmul.f32 %v3348, %v3360
  %v3595 = vmul.f32 %v3349, %v3364
  %v3596 = vmul.f32 %v3350, %v3368
  %v3597 = vld [vmem:[#allocation2] sm:$0xfe]
  %v3598 = vld [vmem:[#allocation2 + $0x8] sm:$0xfe]
  %v3599 = vld [vmem:[#allocation2 + $0x10] sm:$0xfe]
  %v3600 = vld [vmem:[#allocation2 + $0x18] sm:$0xfe]
  %v3601 = vld [vmem:[#allocation2 + $0x60] sm:$0x1f]
  %v3602 = vld [vmem:[#allocation2 + $0x68] sm:$0x1f]
  %v3603 = vld [vmem:[#allocation2 + $0x70] sm:$0x1f]
  %v3604 = vld [vmem:[#allocation2 + $0x78] sm:$0x1f]
  %v3605 = vld [vmem:[#allocation2 + $0x80] sm:$0xfe]
  %v3606 = vld [vmem:[#allocation2 + $0x88] sm:$0xfe]
  %v3607 = vld [vmem:[#allocation2 + $0x90] sm:$0xfe]
  %v3608 = vld [vmem:[#allocation2 + $0x98] sm:$0xfe]
  %v3609 = vld [vmem:[#allocation2 + $0xe0] sm:$0x1f]
  %v3610 = vld [vmem:[#allocation2 + $0xe8] sm:$0x1f]
  %v3611 = vld [vmem:[#allocation2 + $0xf0] sm:$0x1f]
  %v3612 = vld [vmem:[#allocation2 + $0xf8] sm:$0x1f]
  %v3613 = vld [vmem:[#allocation2 + $0x100] sm:$0xfe]
  %v3614 = vld [vmem:[#allocation2 + $0x108] sm:$0xfe]
  %v3615 = vld [vmem:[#allocation2 + $0x110] sm:$0xfe]
  %v3616 = vld [vmem:[#allocation2 + $0x118] sm:$0xfe]
  %v3617 = vld [vmem:[#allocation2 + $0x160] sm:$0x1f]
  %v3618 = vld [vmem:[#allocation2 + $0x168] sm:$0x1f]
  %v3619 = vld [vmem:[#allocation2 + $0x170] sm:$0x1f]
  %v3620 = vld [vmem:[#allocation2 + $0x178] sm:$0x1f]
  %v3621 = vld [vmem:[#allocation2 + $0x180] sm:$0xfe]
  %v3622 = vld [vmem:[#allocation2 + $0x188] sm:$0xfe]
  %v3623 = vld [vmem:[#allocation2 + $0x190] sm:$0xfe]
  %v3624 = vld [vmem:[#allocation2 + $0x198] sm:$0xfe]
  %v3625 = vld [vmem:[#allocation2 + $0x1e0] sm:$0x1f]
  %v3626 = vld [vmem:[#allocation2 + $0x1e8] sm:$0x1f]
  %v3627 = vld [vmem:[#allocation2 + $0x1f0] sm:$0x1f]
  %v3628 = vld [vmem:[#allocation2 + $0x1f8] sm:$0x1f]
  %v3629 = vld [vmem:[#allocation2 + $0x200] sm:$0xfe]
  %v3630 = vld [vmem:[#allocation2 + $0x208] sm:$0xfe]
  %v3631 = vld [vmem:[#allocation2 + $0x210] sm:$0xfe]
  %v3632 = vld [vmem:[#allocation2 + $0x218] sm:$0xfe]
  %v3633 = vld [vmem:[#allocation2 + $0x260] sm:$0x1f]
  %v3634 = vld [vmem:[#allocation2 + $0x268] sm:$0x1f]
  %v3635 = vld [vmem:[#allocation2 + $0x270] sm:$0x1f]
  %v3636 = vld [vmem:[#allocation2 + $0x278] sm:$0x1f]
  %v3637 = vld [vmem:[#allocation2 + $0x280] sm:$0xfe]
  %v3638 = vld [vmem:[#allocation2 + $0x288] sm:$0xfe]
  %v3639 = vld [vmem:[#allocation2 + $0x290] sm:$0xfe]
  %v3640 = vld [vmem:[#allocation2 + $0x298] sm:$0xfe]
  %v3641 = vld [vmem:[#allocation2 + $0x2e0] sm:$0x1f]
  %v3642 = vld [vmem:[#allocation2 + $0x2e8] sm:$0x1f]
  %v3643 = vld [vmem:[#allocation2 + $0x2f0] sm:$0x1f]
  %v3644 = vld [vmem:[#allocation2 + $0x2f8] sm:$0x1f]
  %v3645 = vld [vmem:[#allocation2 + $0x300] sm:$0xfe]
  %v3646 = vld [vmem:[#allocation2 + $0x308] sm:$0xfe]
  %v3647 = vld [vmem:[#allocation2 + $0x310] sm:$0xfe]
  %v3648 = vld [vmem:[#allocation2 + $0x318] sm:$0xfe]
  %v3649 = vld [vmem:[#allocation2 + $0x360] sm:$0x1f]
  %v3650 = vld [vmem:[#allocation2 + $0x368] sm:$0x1f]
  %v3651 = vld [vmem:[#allocation2 + $0x370] sm:$0x1f]
  %v3652 = vld [vmem:[#allocation2 + $0x378] sm:$0x1f]
  %v3653 = vld [vmem:[#allocation2 + $0x380] sm:$0xfe]
  %v3654 = vld [vmem:[#allocation2 + $0x388] sm:$0xfe]
  %v3655 = vld [vmem:[#allocation2 + $0x390] sm:$0xfe]
  %v3656 = vld [vmem:[#allocation2 + $0x398] sm:$0xfe]
  %v3657 = vld [vmem:[#allocation2 + $0x3e0] sm:$0x1f]
  %v3658 = vld [vmem:[#allocation2 + $0x3e8] sm:$0x1f]
  %v3659 = vld [vmem:[#allocation2 + $0x3f0] sm:$0x1f]
  %v3660 = vld [vmem:[#allocation2 + $0x3f8] sm:$0x1f]
  %v3661 = vld [vmem:[#allocation2 + $0x400] sm:$0xfe]
  %v3662 = vld [vmem:[#allocation2 + $0x408] sm:$0xfe]
  %v3663 = vld [vmem:[#allocation2 + $0x410] sm:$0xfe]
  %v3664 = vld [vmem:[#allocation2 + $0x418] sm:$0xfe]
  %v3665 = vld [vmem:[#allocation2 + $0x460] sm:$0x1f]
  %v3666 = vld [vmem:[#allocation2 + $0x468] sm:$0x1f]
  %v3667 = vld [vmem:[#allocation2 + $0x470] sm:$0x1f]
  %v3668 = vld [vmem:[#allocation2 + $0x478] sm:$0x1f]
  %v3669 = vld [vmem:[#allocation2 + $0x480] sm:$0xfe]
  %v3670 = vld [vmem:[#allocation2 + $0x488] sm:$0xfe]
  %v3671 = vld [vmem:[#allocation2 + $0x490] sm:$0xfe]
  %v3672 = vld [vmem:[#allocation2 + $0x498] sm:$0xfe]
  %v3673 = vld [vmem:[#allocation2 + $0x4e0] sm:$0x1f]
  %v3674 = vld [vmem:[#allocation2 + $0x4e8] sm:$0x1f]
  %v3675 = vld [vmem:[#allocation2 + $0x4f0] sm:$0x1f]
  %v3676 = vld [vmem:[#allocation2 + $0x4f8] sm:$0x1f]
  %v3677 = vld [vmem:[#allocation2 + $0x500] sm:$0xfe]
  %v3678 = vld [vmem:[#allocation2 + $0x508] sm:$0xfe]
  %v3679 = vld [vmem:[#allocation2 + $0x510] sm:$0xfe]
  %v3680 = vld [vmem:[#allocation2 + $0x518] sm:$0xfe]
  %v3681 = vld [vmem:[#allocation2 + $0x560] sm:$0x1f]
  %v3682 = vld [vmem:[#allocation2 + $0x568] sm:$0x1f]
  %v3683 = vld [vmem:[#allocation2 + $0x570] sm:$0x1f]
  %v3684 = vld [vmem:[#allocation2 + $0x578] sm:$0x1f]
  %v3685 = vld [vmem:[#allocation2 + $0x580] sm:$0xfe]
  %v3686 = vld [vmem:[#allocation2 + $0x588] sm:$0xfe]
  %v3687 = vld [vmem:[#allocation2 + $0x590] sm:$0xfe]
  %v3688 = vld [vmem:[#allocation2 + $0x598] sm:$0xfe]
  %v3689 = vld [vmem:[#allocation2 + $0x5e0] sm:$0x1f]
  %v3690 = vld [vmem:[#allocation2 + $0x5e8] sm:$0x1f]
  %v3691 = vld [vmem:[#allocation2 + $0x5f0] sm:$0x1f]
  %v3692 = vld [vmem:[#allocation2 + $0x5f8] sm:$0x1f]
  %v3693 = vld [vmem:[#allocation2 + $0x600] sm:$0xfe]
  %v3694 = vld [vmem:[#allocation2 + $0x608] sm:$0xfe]
  %v3695 = vld [vmem:[#allocation2 + $0x610] sm:$0xfe]
  %v3696 = vld [vmem:[#allocation2 + $0x618] sm:$0xfe]
  %v3697 = vld [vmem:[#allocation2 + $0x660] sm:$0x1f]
  %v3698 = vld [vmem:[#allocation2 + $0x668] sm:$0x1f]
  %v3699 = vld [vmem:[#allocation2 + $0x670] sm:$0x1f]
  %v3700 = vld [vmem:[#allocation2 + $0x678] sm:$0x1f]
  %v3701 = vld [vmem:[#allocation2 + $0x680] sm:$0xfe]
  %v3702 = vld [vmem:[#allocation2 + $0x688] sm:$0xfe]
  %v3703 = vld [vmem:[#allocation2 + $0x690] sm:$0xfe]
  %v3704 = vld [vmem:[#allocation2 + $0x698] sm:$0xfe]
  %v3705 = vld [vmem:[#allocation2 + $0x6e0] sm:$0x1f]
  %v3706 = vld [vmem:[#allocation2 + $0x6e8] sm:$0x1f]
  %v3707 = vld [vmem:[#allocation2 + $0x6f0] sm:$0x1f]
  %v3708 = vld [vmem:[#allocation2 + $0x6f8] sm:$0x1f]
  %s3709 = scalar_lea.vmem %s1, 1
  %v3710 = vld [vmem:[%s3709] ss:$4 sm:$0xf]
  %v3712 = vlaneseq
  %v3713 = vshrl.u32 %v3712, 7
  %v3714 = vsub.s32 0, %v3713
  %v3715 = vrot.slane %v3710, %v3714
  %v3716 = vlaneseq
  %v3717 = vshrl.u32 %v3716, 7
  %v3718 = vsub.s32 1, %v3717
  %v3719 = vrot.slane %v3710, %v3718
  %v3720 = vlaneseq
  %v3721 = vshrl.u32 %v3720, 7
  %v3722 = vsub.s32 2, %v3721
  %v3723 = vrot.slane %v3710, %v3722
  %v3724 = vlaneseq
  %v3725 = vshrl.u32 %v3724, 7
  %v3726 = vsub.s32 3, %v3725
  %v3727 = vrot.slane %v3710, %v3726
  %v3732 = vmul.f32 %v3597, %v3715
  %v3733 = vmul.f32 %v3598, %v3719
  %v3734 = vmul.f32 %v3599, %v3723
  %v3735 = vmul.f32 %v3600, %v3727
  %v3736 = vmul.f32 %v3131, %v3715
  %v3737 = vmul.f32 %v3132, %v3719
  %v3738 = vmul.f32 %v3133, %v3723
  %v3739 = vmul.f32 %v3134, %v3727
  %v3740 = vmul.f32 %v3135, %v3715
  %v3741 = vmul.f32 %v3136, %v3719
  %v3742 = vmul.f32 %v3137, %v3723
  %v3743 = vmul.f32 %v3138, %v3727
  %v3744 = vmul.f32 %v3601, %v3715
  %v3745 = vmul.f32 %v3602, %v3719
  %v3746 = vmul.f32 %v3603, %v3723
  %v3747 = vmul.f32 %v3604, %v3727
  %v3748 = vmul.f32 %v3605, %v3715
  %v3749 = vmul.f32 %v3606, %v3719
  %v3750 = vmul.f32 %v3607, %v3723
  %v3751 = vmul.f32 %v3608, %v3727
  %v3752 = vmul.f32 %v3147, %v3715
  %v3753 = vmul.f32 %v3148, %v3719
  %v3754 = vmul.f32 %v3149, %v3723
  %v3755 = vmul.f32 %v3150, %v3727
  %v3756 = vmul.f32 %v3151, %v3715
  %v3757 = vmul.f32 %v3152, %v3719
  %v3758 = vmul.f32 %v3153, %v3723
  %v3759 = vmul.f32 %v3154, %v3727
  %v3760 = vmul.f32 %v3609, %v3715
  %v3761 = vmul.f32 %v3610, %v3719
  %v3762 = vmul.f32 %v3611, %v3723
  %v3763 = vmul.f32 %v3612, %v3727
  %v3764 = vmul.f32 %v3613, %v3715
  %v3765 = vmul.f32 %v3614, %v3719
  %v3766 = vmul.f32 %v3615, %v3723
  %v3767 = vmul.f32 %v3616, %v3727
  %v3768 = vmul.f32 %v3163, %v3715
  %v3769 = vmul.f32 %v3164, %v3719
  %v3770 = vmul.f32 %v3165, %v3723
  %v3771 = vmul.f32 %v3166, %v3727
  %v3772 = vmul.f32 %v3167, %v3715
  %v3773 = vmul.f32 %v3168, %v3719
  %v3774 = vmul.f32 %v3169, %v3723
  %v3775 = vmul.f32 %v3170, %v3727
  %v3776 = vmul.f32 %v3617, %v3715
  %v3777 = vmul.f32 %v3618, %v3719
  %v3778 = vmul.f32 %v3619, %v3723
  %v3779 = vmul.f32 %v3620, %v3727
  %v3780 = vmul.f32 %v3621, %v3715
  %v3781 = vmul.f32 %v3622, %v3719
  %v3782 = vmul.f32 %v3623, %v3723
  %v3783 = vmul.f32 %v3624, %v3727
  %v3784 = vmul.f32 %v3179, %v3715
  %v3785 = vmul.f32 %v3180, %v3719
  %v3786 = vmul.f32 %v3181, %v3723
  %v3787 = vmul.f32 %v3182, %v3727
  %v3788 = vmul.f32 %v3183, %v3715
  %v3789 = vmul.f32 %v3184, %v3719
  %v3790 = vmul.f32 %v3185, %v3723
  %v3791 = vmul.f32 %v3186, %v3727
  %v3792 = vmul.f32 %v3625, %v3715
  %v3793 = vmul.f32 %v3626, %v3719
  %v3794 = vmul.f32 %v3627, %v3723
  %v3795 = vmul.f32 %v3628, %v3727
  %v3796 = vmul.f32 %v3629, %v3715
  %v3797 = vmul.f32 %v3630, %v3719
  %v3798 = vmul.f32 %v3631, %v3723
  %v3799 = vmul.f32 %v3632, %v3727
  %v3800 = vmul.f32 %v3195, %v3715
  %v3801 = vmul.f32 %v3196, %v3719
  %v3802 = vmul.f32 %v3197, %v3723
  %v3803 = vmul.f32 %v3198, %v3727
  %v3804 = vmul.f32 %v3199, %v3715
  %v3805 = vmul.f32 %v3200, %v3719
  %v3806 = vmul.f32 %v3201, %v3723
  %v3807 = vmul.f32 %v3202, %v3727
  %v3808 = vmul.f32 %v3633, %v3715
  %v3809 = vmul.f32 %v3634, %v3719
  %v3810 = vmul.f32 %v3635, %v3723
  %v3811 = vmul.f32 %v3636, %v3727
  %v3812 = vmul.f32 %v3637, %v3715
  %v3813 = vmul.f32 %v3638, %v3719
  %v3814 = vmul.f32 %v3639, %v3723
  %v3815 = vmul.f32 %v3640, %v3727
  %v3816 = vmul.f32 %v3211, %v3715
  %v3817 = vmul.f32 %v3212, %v3719
  %v3818 = vmul.f32 %v3213, %v3723
  %v3819 = vmul.f32 %v3214, %v3727
  %v3820 = vmul.f32 %v3215, %v3715
  %v3821 = vmul.f32 %v3216, %v3719
  %v3822 = vmul.f32 %v3217, %v3723
  %v3823 = vmul.f32 %v3218, %v3727
  %v3824 = vmul.f32 %v3641, %v3715
  %v3825 = vmul.f32 %v3642, %v3719
  %v3826 = vmul.f32 %v3643, %v3723
  %v3827 = vmul.f32 %v3644, %v3727
  %v3828 = vmul.f32 %v3645, %v3715
  %v3829 = vmul.f32 %v3646, %v3719
  %v3830 = vmul.f32 %v3647, %v3723
  %v3831 = vmul.f32 %v3648, %v3727
  %v3832 = vmul.f32 %v3227, %v3715
  %v3833 = vmul.f32 %v3228, %v3719
  %v3834 = vmul.f32 %v3229, %v3723
  %v3835 = vmul.f32 %v3230, %v3727
  %v3836 = vmul.f32 %v3231, %v3715
  %v3837 = vmul.f32 %v3232, %v3719
  %v3838 = vmul.f32 %v3233, %v3723
  %v3839 = vmul.f32 %v3234, %v3727
  %v3840 = vmul.f32 %v3649, %v3715
  %v3841 = vmul.f32 %v3650, %v3719
  %v3842 = vmul.f32 %v3651, %v3723
  %v3843 = vmul.f32 %v3652, %v3727
  %v3844 = vmul.f32 %v3653, %v3715
  %v3845 = vmul.f32 %v3654, %v3719
  %v3846 = vmul.f32 %v3655, %v3723
  %v3847 = vmul.f32 %v3656, %v3727
  %v3848 = vmul.f32 %v3243, %v3715
  %v3849 = vmul.f32 %v3244, %v3719
  %v3850 = vmul.f32 %v3245, %v3723
  %v3851 = vmul.f32 %v3246, %v3727
  %v3852 = vmul.f32 %v3247, %v3715
  %v3853 = vmul.f32 %v3248, %v3719
  %v3854 = vmul.f32 %v3249, %v3723
  %v3855 = vmul.f32 %v3250, %v3727
  %v3856 = vmul.f32 %v3657, %v3715
  %v3857 = vmul.f32 %v3658, %v3719
  %v3858 = vmul.f32 %v3659, %v3723
  %v3859 = vmul.f32 %v3660, %v3727
  %v3860 = vmul.f32 %v3661, %v3715
  %v3861 = vmul.f32 %v3662, %v3719
  %v3862 = vmul.f32 %v3663, %v3723
  %v3863 = vmul.f32 %v3664, %v3727
  %v3864 = vmul.f32 %v3259, %v3715
  %v3865 = vmul.f32 %v3260, %v3719
  %v3866 = vmul.f32 %v3261, %v3723
  %v3867 = vmul.f32 %v3262, %v3727
  %v3868 = vmul.f32 %v3263, %v3715
  %v3869 = vmul.f32 %v3264, %v3719
  %v3870 = vmul.f32 %v3265, %v3723
  %v3871 = vmul.f32 %v3266, %v3727
  %v3872 = vmul.f32 %v3665, %v3715
  %v3873 = vmul.f32 %v3666, %v3719
  %v3874 = vmul.f32 %v3667, %v3723
  %v3875 = vmul.f32 %v3668, %v3727
  %v3876 = vmul.f32 %v3669, %v3715
  %v3877 = vmul.f32 %v3670, %v3719
  %v3878 = vmul.f32 %v3671, %v3723
  %v3879 = vmul.f32 %v3672, %v3727
  %v3880 = vmul.f32 %v3275, %v3715
  %v3881 = vmul.f32 %v3276, %v3719
  %v3882 = vmul.f32 %v3277, %v3723
  %v3883 = vmul.f32 %v3278, %v3727
  %v3884 = vmul.f32 %v3279, %v3715
  %v3885 = vmul.f32 %v3280, %v3719
  %v3886 = vmul.f32 %v3281, %v3723
  %v3887 = vmul.f32 %v3282, %v3727
  %v3888 = vmul.f32 %v3673, %v3715
  %v3889 = vmul.f32 %v3674, %v3719
  %v3890 = vmul.f32 %v3675, %v3723
  %v3891 = vmul.f32 %v3676, %v3727
  %v3892 = vmul.f32 %v3677, %v3715
  %v3893 = vmul.f32 %v3678, %v3719
  %v3894 = vmul.f32 %v3679, %v3723
  %v3895 = vmul.f32 %v3680, %v3727
  %v3896 = vmul.f32 %v3291, %v3715
  %v3897 = vmul.f32 %v3292, %v3719
  %v3898 = vmul.f32 %v3293, %v3723
  %v3899 = vmul.f32 %v3294, %v3727
  %v3900 = vmul.f32 %v3295, %v3715
  %v3901 = vmul.f32 %v3296, %v3719
  %v3902 = vmul.f32 %v3297, %v3723
  %v3903 = vmul.f32 %v3298, %v3727
  %v3904 = vmul.f32 %v3681, %v3715
  %v3905 = vmul.f32 %v3682, %v3719
  %v3906 = vmul.f32 %v3683, %v3723
  %v3907 = vmul.f32 %v3684, %v3727
  %v3908 = vmul.f32 %v3685, %v3715
  %v3909 = vmul.f32 %v3686, %v3719
  %v3910 = vmul.f32 %v3687, %v3723
  %v3911 = vmul.f32 %v3688, %v3727
  %v3912 = vmul.f32 %v3307, %v3715
  %v3913 = vmul.f32 %v3308, %v3719
  %v3914 = vmul.f32 %v3309, %v3723
  %v3915 = vmul.f32 %v3310, %v3727
  %v3916 = vmul.f32 %v3311, %v3715
  %v3917 = vmul.f32 %v3312, %v3719
  %v3918 = vmul.f32 %v3313, %v3723
  %v3919 = vmul.f32 %v3314, %v3727
  %v3920 = vmul.f32 %v3689, %v3715
  %v3921 = vmul.f32 %v3690, %v3719
  %v3922 = vmul.f32 %v3691, %v3723
  %v3923 = vmul.f32 %v3692, %v3727
  %v3924 = vmul.f32 %v3693, %v3715
  %v3925 = vmul.f32 %v3694, %v3719
  %v3926 = vmul.f32 %v3695, %v3723
  %v3927 = vmul.f32 %v3696, %v3727
  %v3928 = vmul.f32 %v3323, %v3715
  %v3929 = vmul.f32 %v3324, %v3719
  %v3930 = vmul.f32 %v3325, %v3723
  %v3931 = vmul.f32 %v3326, %v3727
  %v3932 = vmul.f32 %v3327, %v3715
  %v3933 = vmul.f32 %v3328, %v3719
  %v3934 = vmul.f32 %v3329, %v3723
  %v3935 = vmul.f32 %v3330, %v3727
  %v3936 = vmul.f32 %v3697, %v3715
  %v3937 = vmul.f32 %v3698, %v3719
  %v3938 = vmul.f32 %v3699, %v3723
  %v3939 = vmul.f32 %v3700, %v3727
  %v3940 = vmul.f32 %v3701, %v3715
  %v3941 = vmul.f32 %v3702, %v3719
  %v3942 = vmul.f32 %v3703, %v3723
  %v3943 = vmul.f32 %v3704, %v3727
  %v3944 = vmul.f32 %v3339, %v3715
  %v3945 = vmul.f32 %v3340, %v3719
  %v3946 = vmul.f32 %v3341, %v3723
  %v3947 = vmul.f32 %v3342, %v3727
  %v3948 = vmul.f32 %v3343, %v3715
  %v3949 = vmul.f32 %v3344, %v3719
  %v3950 = vmul.f32 %v3345, %v3723
  %v3951 = vmul.f32 %v3346, %v3727
  %v3952 = vmul.f32 %v3705, %v3715
  %v3953 = vmul.f32 %v3706, %v3719
  %v3954 = vmul.f32 %v3707, %v3723
  %v3955 = vmul.f32 %v3708, %v3727
  %vm4180 = vcmask 1046528
  %v4181 = vrot.slane %v3732, 1
  %v4182 = vrot.slane %v3736, 1
  %v4183 = vsel %vm4180, %v4181, %v4182
  %v4184 = vrot.slane %v3733, 1
  %v4185 = vrot.slane %v3737, 1
  %v4186 = vsel %vm4180, %v4184, %v4185
  %v4187 = vrot.slane %v3734, 1
  %v4188 = vrot.slane %v3738, 1
  %v4189 = vsel %vm4180, %v4187, %v4188
  %v4190 = vrot.slane %v3735, 1
  %v4191 = vrot.slane %v3739, 1
  %v4192 = vsel %vm4180, %v4190, %v4191
  %v4193 = vrot.slane %v3740, 1
  %v4194 = vsel %vm4180, %v4182, %v4193
  %v4195 = vrot.slane %v3741, 1
  %v4196 = vsel %vm4180, %v4185, %v4195
  %v4197 = vrot.slane %v3742, 1
  %v4198 = vsel %vm4180, %v4188, %v4197
  %v4199 = vrot.slane %v3743, 1
  %v4200 = vsel %vm4180, %v4191, %v4199
  %v4201 = vrot.slane %v3744, 1
  %v4202 = vsel %vm4180, %v4193, %v4201
  %v4203 = vrot.slane %v3745, 1
  %v4204 = vsel %vm4180, %v4195, %v4203
  %v4205 = vrot.slane %v3746, 1
  %v4206 = vsel %vm4180, %v4197, %v4205
  %v4207 = vrot.slane %v3747, 1
  %v4208 = vsel %vm4180, %v4199, %v4207
  %v4209 = vrot.slane %v3748, 1
  %v4210 = vrot.slane %v3752, 1
  %v4211 = vsel %vm4180, %v4209, %v4210
  %v4212 = vrot.slane %v3749, 1
  %v4213 = vrot.slane %v3753, 1
  %v4214 = vsel %vm4180, %v4212, %v4213
  %v4215 = vrot.slane %v3750, 1
  %v4216 = vrot.slane %v3754, 1
  %v4217 = vsel %vm4180, %v4215, %v4216
  %v4218 = vrot.slane %v3751, 1
  %v4219 = vrot.slane %v3755, 1
  %v4220 = vsel %vm4180, %v4218, %v4219
  %v4221 = vrot.slane %v3756, 1
  %v4222 = vsel %vm4180, %v4210, %v4221
  %v4223 = vrot.slane %v3757, 1
  %v4224 = vsel %vm4180, %v4213, %v4223
  %v4225 = vrot.slane %v3758, 1
  %v4226 = vsel %vm4180, %v4216, %v4225
  %v4227 = vrot.slane %v3759, 1
  %v4228 = vsel %vm4180, %v4219, %v4227
  %v4229 = vrot.slane %v3760, 1
  %v4230 = vsel %vm4180, %v4221, %v4229
  %v4231 = vrot.slane %v3761, 1
  %v4232 = vsel %vm4180, %v4223, %v4231
  %v4233 = vrot.slane %v3762, 1
  %v4234 = vsel %vm4180, %v4225, %v4233
  %v4235 = vrot.slane %v3763, 1
  %v4236 = vsel %vm4180, %v4227, %v4235
  %v4237 = vrot.slane %v3764, 1
  %v4238 = vrot.slane %v3768, 1
  %v4239 = vsel %vm4180, %v4237, %v4238
  %v4240 = vrot.slane %v3765, 1
  %v4241 = vrot.slane %v3769, 1
  %v4242 = vsel %vm4180, %v4240, %v4241
  %v4243 = vrot.slane %v3766, 1
  %v4244 = vrot.slane %v3770, 1
  %v4245 = vsel %vm4180, %v4243, %v4244
  %v4246 = vrot.slane %v3767, 1
  %v4247 = vrot.slane %v3771, 1
  %v4248 = vsel %vm4180, %v4246, %v4247
  %v4249 = vrot.slane %v3772, 1
  %v4250 = vsel %vm4180, %v4238, %v4249
  %v4251 = vrot.slane %v3773, 1
  %v4252 = vsel %vm4180, %v4241, %v4251
  %v4253 = vrot.slane %v3774, 1
  %v4254 = vsel %vm4180, %v4244, %v4253
  %v4255 = vrot.slane %v3775, 1
  %v4256 = vsel %vm4180, %v4247, %v4255
  %v4257 = vrot.slane %v3776, 1
  %v4258 = vsel %vm4180, %v4249, %v4257
  %v4259 = vrot.slane %v3777, 1
  %v4260 = vsel %vm4180, %v4251, %v4259
  %v4261 = vrot.slane %v3778, 1
  %v4262 = vsel %vm4180, %v4253, %v4261
  %v4263 = vrot.slane %v3779, 1
  %v4264 = vsel %vm4180, %v4255, %v4263
  %v4265 = vrot.slane %v3780, 1
  %v4266 = vrot.slane %v3784, 1
  %v4267 = vsel %vm4180, %v4265, %v4266
  %v4268 = vrot.slane %v3781, 1
  %v4269 = vrot.slane %v3785, 1
  %v4270 = vsel %vm4180, %v4268, %v4269
  %v4271 = vrot.slane %v3782, 1
  %v4272 = vrot.slane %v3786, 1
  %v4273 = vsel %vm4180, %v4271, %v4272
  %v4274 = vrot.slane %v3783, 1
  %v4275 = vrot.slane %v3787, 1
  %v4276 = vsel %vm4180, %v4274, %v4275
  %v4277 = vrot.slane %v3788, 1
  %v4278 = vsel %vm4180, %v4266, %v4277
  %v4279 = vrot.slane %v3789, 1
  %v4280 = vsel %vm4180, %v4269, %v4279
  %v4281 = vrot.slane %v3790, 1
  %v4282 = vsel %vm4180, %v4272, %v4281
  %v4283 = vrot.slane %v3791, 1
  %v4284 = vsel %vm4180, %v4275, %v4283
  %v4285 = vrot.slane %v3792, 1
  %v4286 = vsel %vm4180, %v4277, %v4285
  %v4287 = vrot.slane %v3793, 1
  %v4288 = vsel %vm4180, %v4279, %v4287
  %v4289 = vrot.slane %v3794, 1
  %v4290 = vsel %vm4180, %v4281, %v4289
  %v4291 = vrot.slane %v3795, 1
  %v4292 = vsel %vm4180, %v4283, %v4291
  %v4293 = vrot.slane %v3796, 1
  %v4294 = vrot.slane %v3800, 1
  %v4295 = vsel %vm4180, %v4293, %v4294
  %v4296 = vrot.slane %v3797, 1
  %v4297 = vrot.slane %v3801, 1
  %v4298 = vsel %vm4180, %v4296, %v4297
  %v4299 = vrot.slane %v3798, 1
  %v4300 = vrot.slane %v3802, 1
  %v4301 = vsel %vm4180, %v4299, %v4300
  %v4302 = vrot.slane %v3799, 1
  %v4303 = vrot.slane %v3803, 1
  %v4304 = vsel %vm4180, %v4302, %v4303
  %v4305 = vrot.slane %v3804, 1
  %v4306 = vsel %vm4180, %v4294, %v4305
  %v4307 = vrot.slane %v3805, 1
  %v4308 = vsel %vm4180, %v4297, %v4307
  %v4309 = vrot.slane %v3806, 1
  %v4310 = vsel %vm4180, %v4300, %v4309
  %v4311 = vrot.slane %v3807, 1
  %v4312 = vsel %vm4180, %v4303, %v4311
  %v4313 = vrot.slane %v3808, 1
  %v4314 = vsel %vm4180, %v4305, %v4313
  %v4315 = vrot.slane %v3809, 1
  %v4316 = vsel %vm4180, %v4307, %v4315
  %v4317 = vrot.slane %v3810, 1
  %v4318 = vsel %vm4180, %v4309, %v4317
  %v4319 = vrot.slane %v3811, 1
  %v4320 = vsel %vm4180, %v4311, %v4319
  %v4321 = vrot.slane %v3812, 1
  %v4322 = vrot.slane %v3816, 1
  %v4323 = vsel %vm4180, %v4321, %v4322
  %v4324 = vrot.slane %v3813, 1
  %v4325 = vrot.slane %v3817, 1
  %v4326 = vsel %vm4180, %v4324, %v4325
  %v4327 = vrot.slane %v3814, 1
  %v4328 = vrot.slane %v3818, 1
  %v4329 = vsel %vm4180, %v4327, %v4328
  %v4330 = vrot.slane %v3815, 1
  %v4331 = vrot.slane %v3819, 1
  %v4332 = vsel %vm4180, %v4330, %v4331
  %v4333 = vrot.slane %v3820, 1
  %v4334 = vsel %vm4180, %v4322, %v4333
  %v4335 = vrot.slane %v3821, 1
  %v4336 = vsel %vm4180, %v4325, %v4335
  %v4337 = vrot.slane %v3822, 1
  %v4338 = vsel %vm4180, %v4328, %v4337
  %v4339 = vrot.slane %v3823, 1
  %v4340 = vsel %vm4180, %v4331, %v4339
  %v4341 = vrot.slane %v3824, 1
  %v4342 = vsel %vm4180, %v4333, %v4341
  %v4343 = vrot.slane %v3825, 1
  %v4344 = vsel %vm4180, %v4335, %v4343
  %v4345 = vrot.slane %v3826, 1
  %v4346 = vsel %vm4180, %v4337, %v4345
  %v4347 = vrot.slane %v3827, 1
  %v4348 = vsel %vm4180, %v4339, %v4347
  %v4349 = vrot.slane %v3828, 1
  %v4350 = vrot.slane %v3832, 1
  %v4351 = vsel %vm4180, %v4349, %v4350
  %v4352 = vrot.slane %v3829, 1
  %v4353 = vrot.slane %v3833, 1
  %v4354 = vsel %vm4180, %v4352, %v4353
  %v4355 = vrot.slane %v3830, 1
  %v4356 = vrot.slane %v3834, 1
  %v4357 = vsel %vm4180, %v4355, %v4356
  %v4358 = vrot.slane %v3831, 1
  %v4359 = vrot.slane %v3835, 1
  %v4360 = vsel %vm4180, %v4358, %v4359
  %v4361 = vrot.slane %v3836, 1
  %v4362 = vsel %vm4180, %v4350, %v4361
  %v4363 = vrot.slane %v3837, 1
  %v4364 = vsel %vm4180, %v4353, %v4363
  %v4365 = vrot.slane %v3838, 1
  %v4366 = vsel %vm4180, %v4356, %v4365
  %v4367 = vrot.slane %v3839, 1
  %v4368 = vsel %vm4180, %v4359, %v4367
  %v4369 = vrot.slane %v3840, 1
  %v4370 = vsel %vm4180, %v4361, %v4369
  %v4371 = vrot.slane %v3841, 1
  %v4372 = vsel %vm4180, %v4363, %v4371
  %v4373 = vrot.slane %v3842, 1
  %v4374 = vsel %vm4180, %v4365, %v4373
  %v4375 = vrot.slane %v3843, 1
  %v4376 = vsel %vm4180, %v4367, %v4375
  %v4377 = vrot.slane %v3844, 1
  %v4378 = vrot.slane %v3848, 1
  %v4379 = vsel %vm4180, %v4377, %v4378
  %v4380 = vrot.slane %v3845, 1
  %v4381 = vrot.slane %v3849, 1
  %v4382 = vsel %vm4180, %v4380, %v4381
  %v4383 = vrot.slane %v3846, 1
  %v4384 = vrot.slane %v3850, 1
  %v4385 = vsel %vm4180, %v4383, %v4384
  %v4386 = vrot.slane %v3847, 1
  %v4387 = vrot.slane %v3851, 1
  %v4388 = vsel %vm4180, %v4386, %v4387
  %v4389 = vrot.slane %v3852, 1
  %v4390 = vsel %vm4180, %v4378, %v4389
  %v4391 = vrot.slane %v3853, 1
  %v4392 = vsel %vm4180, %v4381, %v4391
  %v4393 = vrot.slane %v3854, 1
  %v4394 = vsel %vm4180, %v4384, %v4393
  %v4395 = vrot.slane %v3855, 1
  %v4396 = vsel %vm4180, %v4387, %v4395
  %v4397 = vrot.slane %v3856, 1
  %v4398 = vsel %vm4180, %v4389, %v4397
  %v4399 = vrot.slane %v3857, 1
  %v4400 = vsel %vm4180, %v4391, %v4399
  %v4401 = vrot.slane %v3858, 1
  %v4402 = vsel %vm4180, %v4393, %v4401
  %v4403 = vrot.slane %v3859, 1
  %v4404 = vsel %vm4180, %v4395, %v4403
  %v4405 = vrot.slane %v3860, 1
  %v4406 = vrot.slane %v3864, 1
  %v4407 = vsel %vm4180, %v4405, %v4406
  %v4408 = vrot.slane %v3861, 1
  %v4409 = vrot.slane %v3865, 1
  %v4410 = vsel %vm4180, %v4408, %v4409
  %v4411 = vrot.slane %v3862, 1
  %v4412 = vrot.slane %v3866, 1
  %v4413 = vsel %vm4180, %v4411, %v4412
  %v4414 = vrot.slane %v3863, 1
  %v4415 = vrot.slane %v3867, 1
  %v4416 = vsel %vm4180, %v4414, %v4415
  %v4417 = vrot.slane %v3868, 1
  %v4418 = vsel %vm4180, %v4406, %v4417
  %v4419 = vrot.slane %v3869, 1
  %v4420 = vsel %vm4180, %v4409, %v4419
  %v4421 = vrot.slane %v3870, 1
  %v4422 = vsel %vm4180, %v4412, %v4421
  %v4423 = vrot.slane %v3871, 1
  %v4424 = vsel %vm4180, %v4415, %v4423
  %v4425 = vrot.slane %v3872, 1
  %v4426 = vsel %vm4180, %v4417, %v4425
  %v4427 = vrot.slane %v3873, 1
  %v4428 = vsel %vm4180, %v4419, %v4427
  %v4429 = vrot.slane %v3874, 1
  %v4430 = vsel %vm4180, %v4421, %v4429
  %v4431 = vrot.slane %v3875, 1
  %v4432 = vsel %vm4180, %v4423, %v4431
  %v4433 = vrot.slane %v3876, 1
  %v4434 = vrot.slane %v3880, 1
  %v4435 = vsel %vm4180, %v4433, %v4434
  %v4436 = vrot.slane %v3877, 1
  %v4437 = vrot.slane %v3881, 1
  %v4438 = vsel %vm4180, %v4436, %v4437
  %v4439 = vrot.slane %v3878, 1
  %v4440 = vrot.slane %v3882, 1
  %v4441 = vsel %vm4180, %v4439, %v4440
  %v4442 = vrot.slane %v3879, 1
  %v4443 = vrot.slane %v3883, 1
  %v4444 = vsel %vm4180, %v4442, %v4443
  %v4445 = vrot.slane %v3884, 1
  %v4446 = vsel %vm4180, %v4434, %v4445
  %v4447 = vrot.slane %v3885, 1
  %v4448 = vsel %vm4180, %v4437, %v4447
  %v4449 = vrot.slane %v3886, 1
  %v4450 = vsel %vm4180, %v4440, %v4449
  %v4451 = vrot.slane %v3887, 1
  %v4452 = vsel %vm4180, %v4443, %v4451
  %v4453 = vrot.slane %v3888, 1
  %v4454 = vsel %vm4180, %v4445, %v4453
  %v4455 = vrot.slane %v3889, 1
  %v4456 = vsel %vm4180, %v4447, %v4455
  %v4457 = vrot.slane %v3890, 1
  %v4458 = vsel %vm4180, %v4449, %v4457
  %v4459 = vrot.slane %v3891, 1
  %v4460 = vsel %vm4180, %v4451, %v4459
  %v4461 = vrot.slane %v3892, 1
  %v4462 = vrot.slane %v3896, 1
  %v4463 = vsel %vm4180, %v4461, %v4462
  %v4464 = vrot.slane %v3893, 1
  %v4465 = vrot.slane %v3897, 1
  %v4466 = vsel %vm4180, %v4464, %v4465
  %v4467 = vrot.slane %v3894, 1
  %v4468 = vrot.slane %v3898, 1
  %v4469 = vsel %vm4180, %v4467, %v4468
  %v4470 = vrot.slane %v3895, 1
  %v4471 = vrot.slane %v3899, 1
  %v4472 = vsel %vm4180, %v4470, %v4471
  %v4473 = vrot.slane %v3900, 1
  %v4474 = vsel %vm4180, %v4462, %v4473
  %v4475 = vrot.slane %v3901, 1
  %v4476 = vsel %vm4180, %v4465, %v4475
  %v4477 = vrot.slane %v3902, 1
  %v4478 = vsel %vm4180, %v4468, %v4477
  %v4479 = vrot.slane %v3903, 1
  %v4480 = vsel %vm4180, %v4471, %v4479
  %v4481 = vrot.slane %v3904, 1
  %v4482 = vsel %vm4180, %v4473, %v4481
  %v4483 = vrot.slane %v3905, 1
  %v4484 = vsel %vm4180, %v4475, %v4483
  %v4485 = vrot.slane %v3906, 1
  %v4486 = vsel %vm4180, %v4477, %v4485
  %v4487 = vrot.slane %v3907, 1
  %v4488 = vsel %vm4180, %v4479, %v4487
  %v4489 = vrot.slane %v3908, 1
  %v4490 = vrot.slane %v3912, 1
  %v4491 = vsel %vm4180, %v4489, %v4490
  %v4492 = vrot.slane %v3909, 1
  %v4493 = vrot.slane %v3913, 1
  %v4494 = vsel %vm4180, %v4492, %v4493
  %v4495 = vrot.slane %v3910, 1
  %v4496 = vrot.slane %v3914, 1
  %v4497 = vsel %vm4180, %v4495, %v4496
  %v4498 = vrot.slane %v3911, 1
  %v4499 = vrot.slane %v3915, 1
  %v4500 = vsel %vm4180, %v4498, %v4499
  %v4501 = vrot.slane %v3916, 1
  %v4502 = vsel %vm4180, %v4490, %v4501
  %v4503 = vrot.slane %v3917, 1
  %v4504 = vsel %vm4180, %v4493, %v4503
  %v4505 = vrot.slane %v3918, 1
  %v4506 = vsel %vm4180, %v4496, %v4505
  %v4507 = vrot.slane %v3919, 1
  %v4508 = vsel %vm4180, %v4499, %v4507
  %v4509 = vrot.slane %v3920, 1
  %v4510 = vsel %vm4180, %v4501, %v4509
  %v4511 = vrot.slane %v3921, 1
  %v4512 = vsel %vm4180, %v4503, %v4511
  %v4513 = vrot.slane %v3922, 1
  %v4514 = vsel %vm4180, %v4505, %v4513
  %v4515 = vrot.slane %v3923, 1
  %v4516 = vsel %vm4180, %v4507, %v4515
  %v4517 = vrot.slane %v3924, 1
  %v4518 = vrot.slane %v3928, 1
  %v4519 = vsel %vm4180, %v4517, %v4518
  %v4520 = vrot.slane %v3925, 1
  %v4521 = vrot.slane %v3929, 1
  %v4522 = vsel %vm4180, %v4520, %v4521
  %v4523 = vrot.slane %v3926, 1
  %v4524 = vrot.slane %v3930, 1
  %v4525 = vsel %vm4180, %v4523, %v4524
  %v4526 = vrot.slane %v3927, 1
  %v4527 = vrot.slane %v3931, 1
  %v4528 = vsel %vm4180, %v4526, %v4527
  %v4529 = vrot.slane %v3932, 1
  %v4530 = vsel %vm4180, %v4518, %v4529
  %v4531 = vrot.slane %v3933, 1
  %v4532 = vsel %vm4180, %v4521, %v4531
  %v4533 = vrot.slane %v3934, 1
  %v4534 = vsel %vm4180, %v4524, %v4533
  %v4535 = vrot.slane %v3935, 1
  %v4536 = vsel %vm4180, %v4527, %v4535
  %v4537 = vrot.slane %v3936, 1
  %v4538 = vsel %vm4180, %v4529, %v4537
  %v4539 = vrot.slane %v3937, 1
  %v4540 = vsel %vm4180, %v4531, %v4539
  %v4541 = vrot.slane %v3938, 1
  %v4542 = vsel %vm4180, %v4533, %v4541
  %v4543 = vrot.slane %v3939, 1
  %v4544 = vsel %vm4180, %v4535, %v4543
  %v4545 = vrot.slane %v3940, 1
  %v4546 = vrot.slane %v3944, 1
  %v4547 = vsel %vm4180, %v4545, %v4546
  %v4548 = vrot.slane %v3941, 1
  %v4549 = vrot.slane %v3945, 1
  %v4550 = vsel %vm4180, %v4548, %v4549
  %v4551 = vrot.slane %v3942, 1
  %v4552 = vrot.slane %v3946, 1
  %v4553 = vsel %vm4180, %v4551, %v4552
  %v4554 = vrot.slane %v3943, 1
  %v4555 = vrot.slane %v3947, 1
  %v4556 = vsel %vm4180, %v4554, %v4555
  %v4557 = vrot.slane %v3948, 1
  %v4558 = vsel %vm4180, %v4546, %v4557
  %v4559 = vrot.slane %v3949, 1
  %v4560 = vsel %vm4180, %v4549, %v4559
  %v4561 = vrot.slane %v3950, 1
  %v4562 = vsel %vm4180, %v4552, %v4561
  %v4563 = vrot.slane %v3951, 1
  %v4564 = vsel %vm4180, %v4555, %v4563
  %v4565 = vrot.slane %v3952, 1
  %v4566 = vsel %vm4180, %v4557, %v4565
  %v4567 = vrot.slane %v3953, 1
  %v4568 = vsel %vm4180, %v4559, %v4567
  %v4569 = vrot.slane %v3954, 1
  %v4570 = vsel %vm4180, %v4561, %v4569
  %v4571 = vrot.slane %v3955, 1
  %v4572 = vsel %vm4180, %v4563, %v4571
  %v4797 = vadd.f32 %v3373, %v4183
  %v4798 = vadd.f32 %v3374, %v4186
  %v4799 = vadd.f32 %v3375, %v4189
  %v4800 = vadd.f32 %v3376, %v4192
  %v4801 = vadd.f32 %v3377, %v4194
  %v4802 = vadd.f32 %v3378, %v4196
  %v4803 = vadd.f32 %v3379, %v4198
  %v4804 = vadd.f32 %v3380, %v4200
  %v4805 = vadd.f32 %v3381, %v4202
  %v4806 = vadd.f32 %v3382, %v4204
  %v4807 = vadd.f32 %v3383, %v4206
  %v4808 = vadd.f32 %v3384, %v4208
  %v4809 = vadd.f32 %v3385, %v4201
  %v4810 = vadd.f32 %v3386, %v4203
  %v4811 = vadd.f32 %v3387, %v4205
  %v4812 = vadd.f32 %v3388, %v4207
  %v4813 = vadd.f32 %v3389, %v4211
  %v4814 = vadd.f32 %v3390, %v4214
  %v4815 = vadd.f32 %v3391, %v4217
  %v4816 = vadd.f32 %v3392, %v4220
  %v4817 = vadd.f32 %v3393, %v4222
  %v4818 = vadd.f32 %v3394, %v4224
  %v4819 = vadd.f32 %v3395, %v4226
  %v4820 = vadd.f32 %v3396, %v4228
  %v4821 = vadd.f32 %v3397, %v4230
  %v4822 = vadd.f32 %v3398, %v4232
  %v4823 = vadd.f32 %v3399, %v4234
  %v4824 = vadd.f32 %v3400, %v4236
  %v4825 = vadd.f32 %v3401, %v4229
  %v4826 = vadd.f32 %v3402, %v4231
  %v4827 = vadd.f32 %v3403, %v4233
  %v4828 = vadd.f32 %v3404, %v4235
  %v4829 = vadd.f32 %v3405, %v4239
  %v4830 = vadd.f32 %v3406, %v4242
  %v4831 = vadd.f32 %v3407, %v4245
  %v4832 = vadd.f32 %v3408, %v4248
  %v4833 = vadd.f32 %v3409, %v4250
  %v4834 = vadd.f32 %v3410, %v4252
  %v4835 = vadd.f32 %v3411, %v4254
  %v4836 = vadd.f32 %v3412, %v4256
  %v4837 = vadd.f32 %v3413, %v4258
  %v4838 = vadd.f32 %v3414, %v4260
  %v4839 = vadd.f32 %v3415, %v4262
  %v4840 = vadd.f32 %v3416, %v4264
  %v4841 = vadd.f32 %v3417, %v4257
  %v4842 = vadd.f32 %v3418, %v4259
  %v4843 = vadd.f32 %v3419, %v4261
  %v4844 = vadd.f32 %v3420, %v4263
  %v4845 = vadd.f32 %v3421, %v4267
  %v4846 = vadd.f32 %v3422, %v4270
  %v4847 = vadd.f32 %v3423, %v4273
  %v4848 = vadd.f32 %v3424, %v4276
  %v4849 = vadd.f32 %v3425, %v4278
  %v4850 = vadd.f32 %v3426, %v4280
  %v4851 = vadd.f32 %v3427, %v4282
  %v4852 = vadd.f32 %v3428, %v4284
  %v4853 = vadd.f32 %v3429, %v4286
  %v4854 = vadd.f32 %v3430, %v4288
  %v4855 = vadd.f32 %v3431, %v4290
  %v4856 = vadd.f32 %v3432, %v4292
  %v4857 = vadd.f32 %v3433, %v4285
  %v4858 = vadd.f32 %v3434, %v4287
  %v4859 = vadd.f32 %v3435, %v4289
  %v4860 = vadd.f32 %v3436, %v4291
  %v4861 = vadd.f32 %v3437, %v4295
  %v4862 = vadd.f32 %v3438, %v4298
  %v4863 = vadd.f32 %v3439, %v4301
  %v4864 = vadd.f32 %v3440, %v4304
  %v4865 = vadd.f32 %v3441, %v4306
  %v4866 = vadd.f32 %v3442, %v4308
  %v4867 = vadd.f32 %v3443, %v4310
  %v4868 = vadd.f32 %v3444, %v4312
  %v4869 = vadd.f32 %v3445, %v4314
  %v4870 = vadd.f32 %v3446, %v4316
  %v4871 = vadd.f32 %v3447, %v4318
  %v4872 = vadd.f32 %v3448, %v4320
  %v4873 = vadd.f32 %v3449, %v4313
  %v4874 = vadd.f32 %v3450, %v4315
  %v4875 = vadd.f32 %v3451, %v4317
  %v4876 = vadd.f32 %v3452, %v4319
  %v4877 = vadd.f32 %v3453, %v4323
  %v4878 = vadd.f32 %v3454, %v4326
  %v4879 = vadd.f32 %v3455, %v4329
  %v4880 = vadd.f32 %v3456, %v4332
  %v4881 = vadd.f32 %v3457, %v4334
  %v4882 = vadd.f32 %v3458, %v4336
  %v4883 = vadd.f32 %v3459, %v4338
  %v4884 = vadd.f32 %v3460, %v4340
  %v4885 = vadd.f32 %v3461, %v4342
  %v4886 = vadd.f32 %v3462, %v4344
  %v4887 = vadd.f32 %v3463, %v4346
  %v4888 = vadd.f32 %v3464, %v4348
  %v4889 = vadd.f32 %v3465, %v4341
  %v4890 = vadd.f32 %v3466, %v4343
  %v4891 = vadd.f32 %v3467, %v4345
  %v4892 = vadd.f32 %v3468, %v4347
  %v4893 = vadd.f32 %v3469, %v4351
  %v4894 = vadd.f32 %v3470, %v4354
  %v4895 = vadd.f32 %v3471, %v4357
  %v4896 = vadd.f32 %v3472, %v4360
  %v4897 = vadd.f32 %v3473, %v4362
  %v4898 = vadd.f32 %v3474, %v4364
  %v4899 = vadd.f32 %v3475, %v4366
  %v4900 = vadd.f32 %v3476, %v4368
  %v4901 = vadd.f32 %v3477, %v4370
  %v4902 = vadd.f32 %v3478, %v4372
  %v4903 = vadd.f32 %v3479, %v4374
  %v4904 = vadd.f32 %v3480, %v4376
  %v4905 = vadd.f32 %v3481, %v4369
  %v4906 = vadd.f32 %v3482, %v4371
  %v4907 = vadd.f32 %v3483, %v4373
  %v4908 = vadd.f32 %v3484, %v4375
  %v4909 = vadd.f32 %v3485, %v4379
  %v4910 = vadd.f32 %v3486, %v4382
  %v4911 = vadd.f32 %v3487, %v4385
  %v4912 = vadd.f32 %v3488, %v4388
  %v4913 = vadd.f32 %v3489, %v4390
  %v4914 = vadd.f32 %v3490, %v4392
  %v4915 = vadd.f32 %v3491, %v4394
  %v4916 = vadd.f32 %v3492, %v4396
  %v4917 = vadd.f32 %v3493, %v4398
  %v4918 = vadd.f32 %v3494, %v4400
  %v4919 = vadd.f32 %v3495, %v4402
  %v4920 = vadd.f32 %v3496, %v4404
  %v4921 = vadd.f32 %v3497, %v4397
  %v4922 = vadd.f32 %v3498, %v4399
  %v4923 = vadd.f32 %v3499, %v4401
  %v4924 = vadd.f32 %v3500, %v4403
  %v4925 = vadd.f32 %v3501, %v4407
  %v4926 = vadd.f32 %v3502, %v4410
  %v4927 = vadd.f32 %v3503, %v4413
  %v4928 = vadd.f32 %v3504, %v4416
  %v4929 = vadd.f32 %v3505, %v4418
  %v4930 = vadd.f32 %v3506, %v4420
  %v4931 = vadd.f32 %v3507, %v4422
  %v4932 = vadd.f32 %v3508, %v4424
  %v4933 = vadd.f32 %v3509, %v4426
  %v4934 = vadd.f32 %v3510, %v4428
  %v4935 = vadd.f32 %v3511, %v4430
  %v4936 = vadd.f32 %v3512, %v4432
  %v4937 = vadd.f32 %v3513, %v4425
  %v4938 = vadd.f32 %v3514, %v4427
  %v4939 = vadd.f32 %v3515, %v4429
  %v4940 = vadd.f32 %v3516, %v4431
  %v4941 = vadd.f32 %v3517, %v4435
  %v4942 = vadd.f32 %v3518, %v4438
  %v4943 = vadd.f32 %v3519, %v4441
  %v4944 = vadd.f32 %v3520, %v4444
  %v4945 = vadd.f32 %v3521, %v4446
  %v4946 = vadd.f32 %v3522, %v4448
  %v4947 = vadd.f32 %v3523, %v4450
  %v4948 = vadd.f32 %v3524, %v4452
  %v4949 = vadd.f32 %v3525, %v4454
  %v4950 = vadd.f32 %v3526, %v4456
  %v4951 = vadd.f32 %v3527, %v4458
  %v4952 = vadd.f32 %v3528, %v4460
  %v4953 = vadd.f32 %v3529, %v4453
  %v4954 = vadd.f32 %v3530, %v4455
  %v4955 = vadd.f32 %v3531, %v4457
  %v4956 = vadd.f32 %v3532, %v4459
  %v4957 = vadd.f32 %v3533, %v4463
  %v4958 = vadd.f32 %v3534, %v4466
  %v4959 = vadd.f32 %v3535, %v4469
  %v4960 = vadd.f32 %v3536, %v4472
  %v4961 = vadd.f32 %v3537, %v4474
  %v4962 = vadd.f32 %v3538, %v4476
  %v4963 = vadd.f32 %v3539, %v4478
  %v4964 = vadd.f32 %v3540, %v4480
  %v4965 = vadd.f32 %v3541, %v4482
  %v4966 = vadd.f32 %v3542, %v4484
  %v4967 = vadd.f32 %v3543, %v4486
  %v4968 = vadd.f32 %v3544, %v4488
  %v4969 = vadd.f32 %v3545, %v4481
  %v4970 = vadd.f32 %v3546, %v4483
  %v4971 = vadd.f32 %v3547, %v4485
  %v4972 = vadd.f32 %v3548, %v4487
  %v4973 = vadd.f32 %v3549, %v4491
  %v4974 = vadd.f32 %v3550, %v4494
  %v4975 = vadd.f32 %v3551, %v4497
  %v4976 = vadd.f32 %v3552, %v4500
  %v4977 = vadd.f32 %v3553, %v4502
  %v4978 = vadd.f32 %v3554, %v4504
  %v4979 = vadd.f32 %v3555, %v4506
  %v4980 = vadd.f32 %v3556, %v4508
  %v4981 = vadd.f32 %v3557, %v4510
  %v4982 = vadd.f32 %v3558, %v4512
  %v4983 = vadd.f32 %v3559, %v4514
  %v4984 = vadd.f32 %v3560, %v4516
  %v4985 = vadd.f32 %v3561, %v4509
  %v4986 = vadd.f32 %v3562, %v4511
  %v4987 = vadd.f32 %v3563, %v4513
  %v4988 = vadd.f32 %v3564, %v4515
  %v4989 = vadd.f32 %v3565, %v4519
  %v4990 = vadd.f32 %v3566, %v4522
  %v4991 = vadd.f32 %v3567, %v4525
  %v4992 = vadd.f32 %v3568, %v4528
  %v4993 = vadd.f32 %v3569, %v4530
  %v4994 = vadd.f32 %v3570, %v4532
  %v4995 = vadd.f32 %v3571, %v4534
  %v4996 = vadd.f32 %v3572, %v4536
  %v4997 = vadd.f32 %v3573, %v4538
  %v4998 = vadd.f32 %v3574, %v4540
  %v4999 = vadd.f32 %v3575, %v4542
  %v5000 = vadd.f32 %v3576, %v4544
  %v5001 = vadd.f32 %v3577, %v4537
  %v5002 = vadd.f32 %v3578, %v4539
  %v5003 = vadd.f32 %v3579, %v4541
  %v5004 = vadd.f32 %v3580, %v4543
  %v5005 = vadd.f32 %v3581, %v4547
  %v5006 = vadd.f32 %v3582, %v4550
  %v5007 = vadd.f32 %v3583, %v4553
  %v5008 = vadd.f32 %v3584, %v4556
  %v5009 = vadd.f32 %v3585, %v4558
  %v5010 = vadd.f32 %v3586, %v4560
  %v5011 = vadd.f32 %v3587, %v4562
  %v5012 = vadd.f32 %v3588, %v4564
  %v5013 = vadd.f32 %v3589, %v4566
  %v5014 = vadd.f32 %v3590, %v4568
  %v5015 = vadd.f32 %v3591, %v4570
  %v5016 = vadd.f32 %v3592, %v4572
  %v5017 = vadd.f32 %v3593, %v4565
  %v5018 = vadd.f32 %v3594, %v4567
  %v5019 = vadd.f32 %v3595, %v4569
  %v5020 = vadd.f32 %v3596, %v4571
  %v5021 = vld [vmem:[#allocation2] sm:$0xfc]
  %v5022 = vld [vmem:[#allocation2 + $0x8] sm:$0xfc]
  %v5023 = vld [vmem:[#allocation2 + $0x10] sm:$0xfc]
  %v5024 = vld [vmem:[#allocation2 + $0x18] sm:$0xfc]
  %v5025 = vld [vmem:[#allocation2 + $0x60] sm:$0x3f]
  %v5026 = vld [vmem:[#allocation2 + $0x68] sm:$0x3f]
  %v5027 = vld [vmem:[#allocation2 + $0x70] sm:$0x3f]
  %v5028 = vld [vmem:[#allocation2 + $0x78] sm:$0x3f]
  %v5029 = vld [vmem:[#allocation2 + $0x80] sm:$0xfc]
  %v5030 = vld [vmem:[#allocation2 + $0x88] sm:$0xfc]
  %v5031 = vld [vmem:[#allocation2 + $0x90] sm:$0xfc]
  %v5032 = vld [vmem:[#allocation2 + $0x98] sm:$0xfc]
  %v5033 = vld [vmem:[#allocation2 + $0xe0] sm:$0x3f]
  %v5034 = vld [vmem:[#allocation2 + $0xe8] sm:$0x3f]
  %v5035 = vld [vmem:[#allocation2 + $0xf0] sm:$0x3f]
  %v5036 = vld [vmem:[#allocation2 + $0xf8] sm:$0x3f]
  %v5037 = vld [vmem:[#allocation2 + $0x100] sm:$0xfc]
  %v5038 = vld [vmem:[#allocation2 + $0x108] sm:$0xfc]
  %v5039 = vld [vmem:[#allocation2 + $0x110] sm:$0xfc]
  %v5040 = vld [vmem:[#allocation2 + $0x118] sm:$0xfc]
  %v5041 = vld [vmem:[#allocation2 + $0x160] sm:$0x3f]
  %v5042 = vld [vmem:[#allocation2 + $0x168] sm:$0x3f]
  %v5043 = vld [vmem:[#allocation2 + $0x170] sm:$0x3f]
  %v5044 = vld [vmem:[#allocation2 + $0x178] sm:$0x3f]
  %v5045 = vld [vmem:[#allocation2 + $0x180] sm:$0xfc]
  %v5046 = vld [vmem:[#allocation2 + $0x188] sm:$0xfc]
  %v5047 = vld [vmem:[#allocation2 + $0x190] sm:$0xfc]
  %v5048 = vld [vmem:[#allocation2 + $0x198] sm:$0xfc]
  %v5049 = vld [vmem:[#allocation2 + $0x1e0] sm:$0x3f]
  %v5050 = vld [vmem:[#allocation2 + $0x1e8] sm:$0x3f]
  %v5051 = vld [vmem:[#allocation2 + $0x1f0] sm:$0x3f]
  %v5052 = vld [vmem:[#allocation2 + $0x1f8] sm:$0x3f]
  %v5053 = vld [vmem:[#allocation2 + $0x200] sm:$0xfc]
  %v5054 = vld [vmem:[#allocation2 + $0x208] sm:$0xfc]
  %v5055 = vld [vmem:[#allocation2 + $0x210] sm:$0xfc]
  %v5056 = vld [vmem:[#allocation2 + $0x218] sm:$0xfc]
  %v5057 = vld [vmem:[#allocation2 + $0x260] sm:$0x3f]
  %v5058 = vld [vmem:[#allocation2 + $0x268] sm:$0x3f]
  %v5059 = vld [vmem:[#allocation2 + $0x270] sm:$0x3f]
  %v5060 = vld [vmem:[#allocation2 + $0x278] sm:$0x3f]
  %v5061 = vld [vmem:[#allocation2 + $0x280] sm:$0xfc]
  %v5062 = vld [vmem:[#allocation2 + $0x288] sm:$0xfc]
  %v5063 = vld [vmem:[#allocation2 + $0x290] sm:$0xfc]
  %v5064 = vld [vmem:[#allocation2 + $0x298] sm:$0xfc]
  %v5065 = vld [vmem:[#allocation2 + $0x2e0] sm:$0x3f]
  %v5066 = vld [vmem:[#allocation2 + $0x2e8] sm:$0x3f]
  %v5067 = vld [vmem:[#allocation2 + $0x2f0] sm:$0x3f]
  %v5068 = vld [vmem:[#allocation2 + $0x2f8] sm:$0x3f]
  %v5069 = vld [vmem:[#allocation2 + $0x300] sm:$0xfc]
  %v5070 = vld [vmem:[#allocation2 + $0x308] sm:$0xfc]
  %v5071 = vld [vmem:[#allocation2 + $0x310] sm:$0xfc]
  %v5072 = vld [vmem:[#allocation2 + $0x318] sm:$0xfc]
  %v5073 = vld [vmem:[#allocation2 + $0x360] sm:$0x3f]
  %v5074 = vld [vmem:[#allocation2 + $0x368] sm:$0x3f]
  %v5075 = vld [vmem:[#allocation2 + $0x370] sm:$0x3f]
  %v5076 = vld [vmem:[#allocation2 + $0x378] sm:$0x3f]
  %v5077 = vld [vmem:[#allocation2 + $0x380] sm:$0xfc]
  %v5078 = vld [vmem:[#allocation2 + $0x388] sm:$0xfc]
  %v5079 = vld [vmem:[#allocation2 + $0x390] sm:$0xfc]
  %v5080 = vld [vmem:[#allocation2 + $0x398] sm:$0xfc]
  %v5081 = vld [vmem:[#allocation2 + $0x3e0] sm:$0x3f]
  %v5082 = vld [vmem:[#allocation2 + $0x3e8] sm:$0x3f]
  %v5083 = vld [vmem:[#allocation2 + $0x3f0] sm:$0x3f]
  %v5084 = vld [vmem:[#allocation2 + $0x3f8] sm:$0x3f]
  %v5085 = vld [vmem:[#allocation2 + $0x400] sm:$0xfc]
  %v5086 = vld [vmem:[#allocation2 + $0x408] sm:$0xfc]
  %v5087 = vld [vmem:[#allocation2 + $0x410] sm:$0xfc]
  %v5088 = vld [vmem:[#allocation2 + $0x418] sm:$0xfc]
  %v5089 = vld [vmem:[#allocation2 + $0x460] sm:$0x3f]
  %v5090 = vld [vmem:[#allocation2 + $0x468] sm:$0x3f]
  %v5091 = vld [vmem:[#allocation2 + $0x470] sm:$0x3f]
  %v5092 = vld [vmem:[#allocation2 + $0x478] sm:$0x3f]
  %v5093 = vld [vmem:[#allocation2 + $0x480] sm:$0xfc]
  %v5094 = vld [vmem:[#allocation2 + $0x488] sm:$0xfc]
  %v5095 = vld [vmem:[#allocation2 + $0x490] sm:$0xfc]
  %v5096 = vld [vmem:[#allocation2 + $0x498] sm:$0xfc]
  %v5097 = vld [vmem:[#allocation2 + $0x4e0] sm:$0x3f]
  %v5098 = vld [vmem:[#allocation2 + $0x4e8] sm:$0x3f]
  %v5099 = vld [vmem:[#allocation2 + $0x4f0] sm:$0x3f]
  %v5100 = vld [vmem:[#allocation2 + $0x4f8] sm:$0x3f]
  %v5101 = vld [vmem:[#allocation2 + $0x500] sm:$0xfc]
  %v5102 = vld [vmem:[#allocation2 + $0x508] sm:$0xfc]
  %v5103 = vld [vmem:[#allocation2 + $0x510] sm:$0xfc]
  %v5104 = vld [vmem:[#allocation2 + $0x518] sm:$0xfc]
  %v5105 = vld [vmem:[#allocation2 + $0x560] sm:$0x3f]
  %v5106 = vld [vmem:[#allocation2 + $0x568] sm:$0x3f]
  %v5107 = vld [vmem:[#allocation2 + $0x570] sm:$0x3f]
  %v5108 = vld [vmem:[#allocation2 + $0x578] sm:$0x3f]
  %v5109 = vld [vmem:[#allocation2 + $0x580] sm:$0xfc]
  %v5110 = vld [vmem:[#allocation2 + $0x588] sm:$0xfc]
  %v5111 = vld [vmem:[#allocation2 + $0x590] sm:$0xfc]
  %v5112 = vld [vmem:[#allocation2 + $0x598] sm:$0xfc]
  %v5113 = vld [vmem:[#allocation2 + $0x5e0] sm:$0x3f]
  %v5114 = vld [vmem:[#allocation2 + $0x5e8] sm:$0x3f]
  %v5115 = vld [vmem:[#allocation2 + $0x5f0] sm:$0x3f]
  %v5116 = vld [vmem:[#allocation2 + $0x5f8] sm:$0x3f]
  %v5117 = vld [vmem:[#allocation2 + $0x600] sm:$0xfc]
  %v5118 = vld [vmem:[#allocation2 + $0x608] sm:$0xfc]
  %v5119 = vld [vmem:[#allocation2 + $0x610] sm:$0xfc]
  %v5120 = vld [vmem:[#allocation2 + $0x618] sm:$0xfc]
  %v5121 = vld [vmem:[#allocation2 + $0x660] sm:$0x3f]
  %v5122 = vld [vmem:[#allocation2 + $0x668] sm:$0x3f]
  %v5123 = vld [vmem:[#allocation2 + $0x670] sm:$0x3f]
  %v5124 = vld [vmem:[#allocation2 + $0x678] sm:$0x3f]
  %v5125 = vld [vmem:[#allocation2 + $0x680] sm:$0xfc]
  %v5126 = vld [vmem:[#allocation2 + $0x688] sm:$0xfc]
  %v5127 = vld [vmem:[#allocation2 + $0x690] sm:$0xfc]
  %v5128 = vld [vmem:[#allocation2 + $0x698] sm:$0xfc]
  %v5129 = vld [vmem:[#allocation2 + $0x6e0] sm:$0x3f]
  %v5130 = vld [vmem:[#allocation2 + $0x6e8] sm:$0x3f]
  %v5131 = vld [vmem:[#allocation2 + $0x6f0] sm:$0x3f]
  %v5132 = vld [vmem:[#allocation2 + $0x6f8] sm:$0x3f]
  %s5133 = scalar_lea.vmem %s1, 2
  %v5134 = vld [vmem:[%s5133] ss:$4 sm:$0xf]
  %v5136 = vlaneseq
  %v5137 = vshrl.u32 %v5136, 7
  %v5138 = vsub.s32 0, %v5137
  %v5139 = vrot.slane %v5134, %v5138
  %v5140 = vlaneseq
  %v5141 = vshrl.u32 %v5140, 7
  %v5142 = vsub.s32 1, %v5141
  %v5143 = vrot.slane %v5134, %v5142
  %v5144 = vlaneseq
  %v5145 = vshrl.u32 %v5144, 7
  %v5146 = vsub.s32 2, %v5145
  %v5147 = vrot.slane %v5134, %v5146
  %v5148 = vlaneseq
  %v5149 = vshrl.u32 %v5148, 7
  %v5150 = vsub.s32 3, %v5149
  %v5151 = vrot.slane %v5134, %v5150
  %v5156 = vmul.f32 %v5021, %v5139
  %v5157 = vmul.f32 %v5022, %v5143
  %v5158 = vmul.f32 %v5023, %v5147
  %v5159 = vmul.f32 %v5024, %v5151
  %v5160 = vmul.f32 %v3131, %v5139
  %v5161 = vmul.f32 %v3132, %v5143
  %v5162 = vmul.f32 %v3133, %v5147
  %v5163 = vmul.f32 %v3134, %v5151
  %v5164 = vmul.f32 %v3135, %v5139
  %v5165 = vmul.f32 %v3136, %v5143
  %v5166 = vmul.f32 %v3137, %v5147
  %v5167 = vmul.f32 %v3138, %v5151
  %v5168 = vmul.f32 %v5025, %v5139
  %v5169 = vmul.f32 %v5026, %v5143
  %v5170 = vmul.f32 %v5027, %v5147
  %v5171 = vmul.f32 %v5028, %v5151
  %v5172 = vmul.f32 %v5029, %v5139
  %v5173 = vmul.f32 %v5030, %v5143
  %v5174 = vmul.f32 %v5031, %v5147
  %v5175 = vmul.f32 %v5032, %v5151
  %v5176 = vmul.f32 %v3147, %v5139
  %v5177 = vmul.f32 %v3148, %v5143
  %v5178 = vmul.f32 %v3149, %v5147
  %v5179 = vmul.f32 %v3150, %v5151
  %v5180 = vmul.f32 %v3151, %v5139
  %v5181 = vmul.f32 %v3152, %v5143
  %v5182 = vmul.f32 %v3153, %v5147
  %v5183 = vmul.f32 %v3154, %v5151
  %v5184 = vmul.f32 %v5033, %v5139
  %v5185 = vmul.f32 %v5034, %v5143
  %v5186 = vmul.f32 %v5035, %v5147
  %v5187 = vmul.f32 %v5036, %v5151
  %v5188 = vmul.f32 %v5037, %v5139
  %v5189 = vmul.f32 %v5038, %v5143
  %v5190 = vmul.f32 %v5039, %v5147
  %v5191 = vmul.f32 %v5040, %v5151
  %v5192 = vmul.f32 %v3163, %v5139
  %v5193 = vmul.f32 %v3164, %v5143
  %v5194 = vmul.f32 %v3165, %v5147
  %v5195 = vmul.f32 %v3166, %v5151
  %v5196 = vmul.f32 %v3167, %v5139
  %v5197 = vmul.f32 %v3168, %v5143
  %v5198 = vmul.f32 %v3169, %v5147
  %v5199 = vmul.f32 %v3170, %v5151
  %v5200 = vmul.f32 %v5041, %v5139
  %v5201 = vmul.f32 %v5042, %v5143
  %v5202 = vmul.f32 %v5043, %v5147
  %v5203 = vmul.f32 %v5044, %v5151
  %v5204 = vmul.f32 %v5045, %v5139
  %v5205 = vmul.f32 %v5046, %v5143
  %v5206 = vmul.f32 %v5047, %v5147
  %v5207 = vmul.f32 %v5048, %v5151
  %v5208 = vmul.f32 %v3179, %v5139
  %v5209 = vmul.f32 %v3180, %v5143
  %v5210 = vmul.f32 %v3181, %v5147
  %v5211 = vmul.f32 %v3182, %v5151
  %v5212 = vmul.f32 %v3183, %v5139
  %v5213 = vmul.f32 %v3184, %v5143
  %v5214 = vmul.f32 %v3185, %v5147
  %v5215 = vmul.f32 %v3186, %v5151
  %v5216 = vmul.f32 %v5049, %v5139
  %v5217 = vmul.f32 %v5050, %v5143
  %v5218 = vmul.f32 %v5051, %v5147
  %v5219 = vmul.f32 %v5052, %v5151
  %v5220 = vmul.f32 %v5053, %v5139
  %v5221 = vmul.f32 %v5054, %v5143
  %v5222 = vmul.f32 %v5055, %v5147
  %v5223 = vmul.f32 %v5056, %v5151
  %v5224 = vmul.f32 %v3195, %v5139
  %v5225 = vmul.f32 %v3196, %v5143
  %v5226 = vmul.f32 %v3197, %v5147
  %v5227 = vmul.f32 %v3198, %v5151
  %v5228 = vmul.f32 %v3199, %v5139
  %v5229 = vmul.f32 %v3200, %v5143
  %v5230 = vmul.f32 %v3201, %v5147
  %v5231 = vmul.f32 %v3202, %v5151
  %v5232 = vmul.f32 %v5057, %v5139
  %v5233 = vmul.f32 %v5058, %v5143
  %v5234 = vmul.f32 %v5059, %v5147
  %v5235 = vmul.f32 %v5060, %v5151
  %v5236 = vmul.f32 %v5061, %v5139
  %v5237 = vmul.f32 %v5062, %v5143
  %v5238 = vmul.f32 %v5063, %v5147
  %v5239 = vmul.f32 %v5064, %v5151
  %v5240 = vmul.f32 %v3211, %v5139
  %v5241 = vmul.f32 %v3212, %v5143
  %v5242 = vmul.f32 %v3213, %v5147
  %v5243 = vmul.f32 %v3214, %v5151
  %v5244 = vmul.f32 %v3215, %v5139
  %v5245 = vmul.f32 %v3216, %v5143
  %v5246 = vmul.f32 %v3217, %v5147
  %v5247 = vmul.f32 %v3218, %v5151
  %v5248 = vmul.f32 %v5065, %v5139
  %v5249 = vmul.f32 %v5066, %v5143
  %v5250 = vmul.f32 %v5067, %v5147
  %v5251 = vmul.f32 %v5068, %v5151
  %v5252 = vmul.f32 %v5069, %v5139
  %v5253 = vmul.f32 %v5070, %v5143
  %v5254 = vmul.f32 %v5071, %v5147
  %v5255 = vmul.f32 %v5072, %v5151
  %v5256 = vmul.f32 %v3227, %v5139
  %v5257 = vmul.f32 %v3228, %v5143
  %v5258 = vmul.f32 %v3229, %v5147
  %v5259 = vmul.f32 %v3230, %v5151
  %v5260 = vmul.f32 %v3231, %v5139
  %v5261 = vmul.f32 %v3232, %v5143
  %v5262 = vmul.f32 %v3233, %v5147
  %v5263 = vmul.f32 %v3234, %v5151
  %v5264 = vmul.f32 %v5073, %v5139
  %v5265 = vmul.f32 %v5074, %v5143
  %v5266 = vmul.f32 %v5075, %v5147
  %v5267 = vmul.f32 %v5076, %v5151
  %v5268 = vmul.f32 %v5077, %v5139
  %v5269 = vmul.f32 %v5078, %v5143
  %v5270 = vmul.f32 %v5079, %v5147
  %v5271 = vmul.f32 %v5080, %v5151
  %v5272 = vmul.f32 %v3243, %v5139
  %v5273 = vmul.f32 %v3244, %v5143
  %v5274 = vmul.f32 %v3245, %v5147
  %v5275 = vmul.f32 %v3246, %v5151
  %v5276 = vmul.f32 %v3247, %v5139
  %v5277 = vmul.f32 %v3248, %v5143
  %v5278 = vmul.f32 %v3249, %v5147
  %v5279 = vmul.f32 %v3250, %v5151
  %v5280 = vmul.f32 %v5081, %v5139
  %v5281 = vmul.f32 %v5082, %v5143
  %v5282 = vmul.f32 %v5083, %v5147
  %v5283 = vmul.f32 %v5084, %v5151
  %v5284 = vmul.f32 %v5085, %v5139
  %v5285 = vmul.f32 %v5086, %v5143
  %v5286 = vmul.f32 %v5087, %v5147
  %v5287 = vmul.f32 %v5088, %v5151
  %v5288 = vmul.f32 %v3259, %v5139
  %v5289 = vmul.f32 %v3260, %v5143
  %v5290 = vmul.f32 %v3261, %v5147
  %v5291 = vmul.f32 %v3262, %v5151
  %v5292 = vmul.f32 %v3263, %v5139
  %v5293 = vmul.f32 %v3264, %v5143
  %v5294 = vmul.f32 %v3265, %v5147
  %v5295 = vmul.f32 %v3266, %v5151
  %v5296 = vmul.f32 %v5089, %v5139
  %v5297 = vmul.f32 %v5090, %v5143
  %v5298 = vmul.f32 %v5091, %v5147
  %v5299 = vmul.f32 %v5092, %v5151
  %v5300 = vmul.f32 %v5093, %v5139
  %v5301 = vmul.f32 %v5094, %v5143
  %v5302 = vmul.f32 %v5095, %v5147
  %v5303 = vmul.f32 %v5096, %v5151
  %v5304 = vmul.f32 %v3275, %v5139
  %v5305 = vmul.f32 %v3276, %v5143
  %v5306 = vmul.f32 %v3277, %v5147
  %v5307 = vmul.f32 %v3278, %v5151
  %v5308 = vmul.f32 %v3279, %v5139
  %v5309 = vmul.f32 %v3280, %v5143
  %v5310 = vmul.f32 %v3281, %v5147
  %v5311 = vmul.f32 %v3282, %v5151
  %v5312 = vmul.f32 %v5097, %v5139
  %v5313 = vmul.f32 %v5098, %v5143
  %v5314 = vmul.f32 %v5099, %v5147
  %v5315 = vmul.f32 %v5100, %v5151
  %v5316 = vmul.f32 %v5101, %v5139
  %v5317 = vmul.f32 %v5102, %v5143
  %v5318 = vmul.f32 %v5103, %v5147
  %v5319 = vmul.f32 %v5104, %v5151
  %v5320 = vmul.f32 %v3291, %v5139
  %v5321 = vmul.f32 %v3292, %v5143
  %v5322 = vmul.f32 %v3293, %v5147
  %v5323 = vmul.f32 %v3294, %v5151
  %v5324 = vmul.f32 %v3295, %v5139
  %v5325 = vmul.f32 %v3296, %v5143
  %v5326 = vmul.f32 %v3297, %v5147
  %v5327 = vmul.f32 %v3298, %v5151
  %v5328 = vmul.f32 %v5105, %v5139
  %v5329 = vmul.f32 %v5106, %v5143
  %v5330 = vmul.f32 %v5107, %v5147
  %v5331 = vmul.f32 %v5108, %v5151
  %v5332 = vmul.f32 %v5109, %v5139
  %v5333 = vmul.f32 %v5110, %v5143
  %v5334 = vmul.f32 %v5111, %v5147
  %v5335 = vmul.f32 %v5112, %v5151
  %v5336 = vmul.f32 %v3307, %v5139
  %v5337 = vmul.f32 %v3308, %v5143
  %v5338 = vmul.f32 %v3309, %v5147
  %v5339 = vmul.f32 %v3310, %v5151
  %v5340 = vmul.f32 %v3311, %v5139
  %v5341 = vmul.f32 %v3312, %v5143
  %v5342 = vmul.f32 %v3313, %v5147
  %v5343 = vmul.f32 %v3314, %v5151
  %v5344 = vmul.f32 %v5113, %v5139
  %v5345 = vmul.f32 %v5114, %v5143
  %v5346 = vmul.f32 %v5115, %v5147
  %v5347 = vmul.f32 %v5116, %v5151
  %v5348 = vmul.f32 %v5117, %v5139
  %v5349 = vmul.f32 %v5118, %v5143
  %v5350 = vmul.f32 %v5119, %v5147
  %v5351 = vmul.f32 %v5120, %v5151
  %v5352 = vmul.f32 %v3323, %v5139
  %v5353 = vmul.f32 %v3324, %v5143
  %v5354 = vmul.f32 %v3325, %v5147
  %v5355 = vmul.f32 %v3326, %v5151
  %v5356 = vmul.f32 %v3327, %v5139
  %v5357 = vmul.f32 %v3328, %v5143
  %v5358 = vmul.f32 %v3329, %v5147
  %v5359 = vmul.f32 %v3330, %v5151
  %v5360 = vmul.f32 %v5121, %v5139
  %v5361 = vmul.f32 %v5122, %v5143
  %v5362 = vmul.f32 %v5123, %v5147
  %v5363 = vmul.f32 %v5124, %v5151
  %v5364 = vmul.f32 %v5125, %v5139
  %v5365 = vmul.f32 %v5126, %v5143
  %v5366 = vmul.f32 %v5127, %v5147
  %v5367 = vmul.f32 %v5128, %v5151
  %v5368 = vmul.f32 %v3339, %v5139
  %v5369 = vmul.f32 %v3340, %v5143
  %v5370 = vmul.f32 %v3341, %v5147
  %v5371 = vmul.f32 %v3342, %v5151
  %v5372 = vmul.f32 %v3343, %v5139
  %v5373 = vmul.f32 %v3344, %v5143
  %v5374 = vmul.f32 %v3345, %v5147
  %v5375 = vmul.f32 %v3346, %v5151
  %v5376 = vmul.f32 %v5129, %v5139
  %v5377 = vmul.f32 %v5130, %v5143
  %v5378 = vmul.f32 %v5131, %v5147
  %v5379 = vmul.f32 %v5132, %v5151
  %vm5604 = vcmask 1045504
  %v5605 = vrot.slane %v5156, 2
  %v5606 = vrot.slane %v5160, 2
  %v5607 = vsel %vm5604, %v5605, %v5606
  %v5608 = vrot.slane %v5157, 2
  %v5609 = vrot.slane %v5161, 2
  %v5610 = vsel %vm5604, %v5608, %v5609
  %v5611 = vrot.slane %v5158, 2
  %v5612 = vrot.slane %v5162, 2
  %v5613 = vsel %vm5604, %v5611, %v5612
  %v5614 = vrot.slane %v5159, 2
  %v5615 = vrot.slane %v5163, 2
  %v5616 = vsel %vm5604, %v5614, %v5615
  %v5617 = vrot.slane %v5164, 2
  %v5618 = vsel %vm5604, %v5606, %v5617
  %v5619 = vrot.slane %v5165, 2
  %v5620 = vsel %vm5604, %v5609, %v5619
  %v5621 = vrot.slane %v5166, 2
  %v5622 = vsel %vm5604, %v5612, %v5621
  %v5623 = vrot.slane %v5167, 2
  %v5624 = vsel %vm5604, %v5615, %v5623
  %v5625 = vrot.slane %v5168, 2
  %v5626 = vsel %vm5604, %v5617, %v5625
  %v5627 = vrot.slane %v5169, 2
  %v5628 = vsel %vm5604, %v5619, %v5627
  %v5629 = vrot.slane %v5170, 2
  %v5630 = vsel %vm5604, %v5621, %v5629
  %v5631 = vrot.slane %v5171, 2
  %v5632 = vsel %vm5604, %v5623, %v5631
  %v5633 = vrot.slane %v5172, 2
  %v5634 = vrot.slane %v5176, 2
  %v5635 = vsel %vm5604, %v5633, %v5634
  %v5636 = vrot.slane %v5173, 2
  %v5637 = vrot.slane %v5177, 2
  %v5638 = vsel %vm5604, %v5636, %v5637
  %v5639 = vrot.slane %v5174, 2
  %v5640 = vrot.slane %v5178, 2
  %v5641 = vsel %vm5604, %v5639, %v5640
  %v5642 = vrot.slane %v5175, 2
  %v5643 = vrot.slane %v5179, 2
  %v5644 = vsel %vm5604, %v5642, %v5643
  %v5645 = vrot.slane %v5180, 2
  %v5646 = vsel %vm5604, %v5634, %v5645
  %v5647 = vrot.slane %v5181, 2
  %v5648 = vsel %vm5604, %v5637, %v5647
  %v5649 = vrot.slane %v5182, 2
  %v5650 = vsel %vm5604, %v5640, %v5649
  %v5651 = vrot.slane %v5183, 2
  %v5652 = vsel %vm5604, %v5643, %v5651
  %v5653 = vrot.slane %v5184, 2
  %v5654 = vsel %vm5604, %v5645, %v5653
  %v5655 = vrot.slane %v5185, 2
  %v5656 = vsel %vm5604, %v5647, %v5655
  %v5657 = vrot.slane %v5186, 2
  %v5658 = vsel %vm5604, %v5649, %v5657
  %v5659 = vrot.slane %v5187, 2
  %v5660 = vsel %vm5604, %v5651, %v5659
  %v5661 = vrot.slane %v5188, 2
  %v5662 = vrot.slane %v5192, 2
  %v5663 = vsel %vm5604, %v5661, %v5662
  %v5664 = vrot.slane %v5189, 2
  %v5665 = vrot.slane %v5193, 2
  %v5666 = vsel %vm5604, %v5664, %v5665
  %v5667 = vrot.slane %v5190, 2
  %v5668 = vrot.slane %v5194, 2
  %v5669 = vsel %vm5604, %v5667, %v5668
  %v5670 = vrot.slane %v5191, 2
  %v5671 = vrot.slane %v5195, 2
  %v5672 = vsel %vm5604, %v5670, %v5671
  %v5673 = vrot.slane %v5196, 2
  %v5674 = vsel %vm5604, %v5662, %v5673
  %v5675 = vrot.slane %v5197, 2
  %v5676 = vsel %vm5604, %v5665, %v5675
  %v5677 = vrot.slane %v5198, 2
  %v5678 = vsel %vm5604, %v5668, %v5677
  %v5679 = vrot.slane %v5199, 2
  %v5680 = vsel %vm5604, %v5671, %v5679
  %v5681 = vrot.slane %v5200, 2
  %v5682 = vsel %vm5604, %v5673, %v5681
  %v5683 = vrot.slane %v5201, 2
  %v5684 = vsel %vm5604, %v5675, %v5683
  %v5685 = vrot.slane %v5202, 2
  %v5686 = vsel %vm5604, %v5677, %v5685
  %v5687 = vrot.slane %v5203, 2
  %v5688 = vsel %vm5604, %v5679, %v5687
  %v5689 = vrot.slane %v5204, 2
  %v5690 = vrot.slane %v5208, 2
  %v5691 = vsel %vm5604, %v5689, %v5690
  %v5692 = vrot.slane %v5205, 2
  %v5693 = vrot.slane %v5209, 2
  %v5694 = vsel %vm5604, %v5692, %v5693
  %v5695 = vrot.slane %v5206, 2
  %v5696 = vrot.slane %v5210, 2
  %v5697 = vsel %vm5604, %v5695, %v5696
  %v5698 = vrot.slane %v5207, 2
  %v5699 = vrot.slane %v5211, 2
  %v5700 = vsel %vm5604, %v5698, %v5699
  %v5701 = vrot.slane %v5212, 2
  %v5702 = vsel %vm5604, %v5690, %v5701
  %v5703 = vrot.slane %v5213, 2
  %v5704 = vsel %vm5604, %v5693, %v5703
  %v5705 = vrot.slane %v5214, 2
  %v5706 = vsel %vm5604, %v5696, %v5705
  %v5707 = vrot.slane %v5215, 2
  %v5708 = vsel %vm5604, %v5699, %v5707
  %v5709 = vrot.slane %v5216, 2
  %v5710 = vsel %vm5604, %v5701, %v5709
  %v5711 = vrot.slane %v5217, 2
  %v5712 = vsel %vm5604, %v5703, %v5711
  %v5713 = vrot.slane %v5218, 2
  %v5714 = vsel %vm5604, %v5705, %v5713
  %v5715 = vrot.slane %v5219, 2
  %v5716 = vsel %vm5604, %v5707, %v5715
  %v5717 = vrot.slane %v5220, 2
  %v5718 = vrot.slane %v5224, 2
  %v5719 = vsel %vm5604, %v5717, %v5718
  %v5720 = vrot.slane %v5221, 2
  %v5721 = vrot.slane %v5225, 2
  %v5722 = vsel %vm5604, %v5720, %v5721
  %v5723 = vrot.slane %v5222, 2
  %v5724 = vrot.slane %v5226, 2
  %v5725 = vsel %vm5604, %v5723, %v5724
  %v5726 = vrot.slane %v5223, 2
  %v5727 = vrot.slane %v5227, 2
  %v5728 = vsel %vm5604, %v5726, %v5727
  %v5729 = vrot.slane %v5228, 2
  %v5730 = vsel %vm5604, %v5718, %v5729
  %v5731 = vrot.slane %v5229, 2
  %v5732 = vsel %vm5604, %v5721, %v5731
  %v5733 = vrot.slane %v5230, 2
  %v5734 = vsel %vm5604, %v5724, %v5733
  %v5735 = vrot.slane %v5231, 2
  %v5736 = vsel %vm5604, %v5727, %v5735
  %v5737 = vrot.slane %v5232, 2
  %v5738 = vsel %vm5604, %v5729, %v5737
  %v5739 = vrot.slane %v5233, 2
  %v5740 = vsel %vm5604, %v5731, %v5739
  %v5741 = vrot.slane %v5234, 2
  %v5742 = vsel %vm5604, %v5733, %v5741
  %v5743 = vrot.slane %v5235, 2
  %v5744 = vsel %vm5604, %v5735, %v5743
  %v5745 = vrot.slane %v5236, 2
  %v5746 = vrot.slane %v5240, 2
  %v5747 = vsel %vm5604, %v5745, %v5746
  %v5748 = vrot.slane %v5237, 2
  %v5749 = vrot.slane %v5241, 2
  %v5750 = vsel %vm5604, %v5748, %v5749
  %v5751 = vrot.slane %v5238, 2
  %v5752 = vrot.slane %v5242, 2
  %v5753 = vsel %vm5604, %v5751, %v5752
  %v5754 = vrot.slane %v5239, 2
  %v5755 = vrot.slane %v5243, 2
  %v5756 = vsel %vm5604, %v5754, %v5755
  %v5757 = vrot.slane %v5244, 2
  %v5758 = vsel %vm5604, %v5746, %v5757
  %v5759 = vrot.slane %v5245, 2
  %v5760 = vsel %vm5604, %v5749, %v5759
  %v5761 = vrot.slane %v5246, 2
  %v5762 = vsel %vm5604, %v5752, %v5761
  %v5763 = vrot.slane %v5247, 2
  %v5764 = vsel %vm5604, %v5755, %v5763
  %v5765 = vrot.slane %v5248, 2
  %v5766 = vsel %vm5604, %v5757, %v5765
  %v5767 = vrot.slane %v5249, 2
  %v5768 = vsel %vm5604, %v5759, %v5767
  %v5769 = vrot.slane %v5250, 2
  %v5770 = vsel %vm5604, %v5761, %v5769
  %v5771 = vrot.slane %v5251, 2
  %v5772 = vsel %vm5604, %v5763, %v5771
  %v5773 = vrot.slane %v5252, 2
  %v5774 = vrot.slane %v5256, 2
  %v5775 = vsel %vm5604, %v5773, %v5774
  %v5776 = vrot.slane %v5253, 2
  %v5777 = vrot.slane %v5257, 2
  %v5778 = vsel %vm5604, %v5776, %v5777
  %v5779 = vrot.slane %v5254, 2
  %v5780 = vrot.slane %v5258, 2
  %v5781 = vsel %vm5604, %v5779, %v5780
  %v5782 = vrot.slane %v5255, 2
  %v5783 = vrot.slane %v5259, 2
  %v5784 = vsel %vm5604, %v5782, %v5783
  %v5785 = vrot.slane %v5260, 2
  %v5786 = vsel %vm5604, %v5774, %v5785
  %v5787 = vrot.slane %v5261, 2
  %v5788 = vsel %vm5604, %v5777, %v5787
  %v5789 = vrot.slane %v5262, 2
  %v5790 = vsel %vm5604, %v5780, %v5789
  %v5791 = vrot.slane %v5263, 2
  %v5792 = vsel %vm5604, %v5783, %v5791
  %v5793 = vrot.slane %v5264, 2
  %v5794 = vsel %vm5604, %v5785, %v5793
  %v5795 = vrot.slane %v5265, 2
  %v5796 = vsel %vm5604, %v5787, %v5795
  %v5797 = vrot.slane %v5266, 2
  %v5798 = vsel %vm5604, %v5789, %v5797
  %v5799 = vrot.slane %v5267, 2
  %v5800 = vsel %vm5604, %v5791, %v5799
  %v5801 = vrot.slane %v5268, 2
  %v5802 = vrot.slane %v5272, 2
  %v5803 = vsel %vm5604, %v5801, %v5802
  %v5804 = vrot.slane %v5269, 2
  %v5805 = vrot.slane %v5273, 2
  %v5806 = vsel %vm5604, %v5804, %v5805
  %v5807 = vrot.slane %v5270, 2
  %v5808 = vrot.slane %v5274, 2
  %v5809 = vsel %vm5604, %v5807, %v5808
  %v5810 = vrot.slane %v5271, 2
  %v5811 = vrot.slane %v5275, 2
  %v5812 = vsel %vm5604, %v5810, %v5811
  %v5813 = vrot.slane %v5276, 2
  %v5814 = vsel %vm5604, %v5802, %v5813
  %v5815 = vrot.slane %v5277, 2
  %v5816 = vsel %vm5604, %v5805, %v5815
  %v5817 = vrot.slane %v5278, 2
  %v5818 = vsel %vm5604, %v5808, %v5817
  %v5819 = vrot.slane %v5279, 2
  %v5820 = vsel %vm5604, %v5811, %v5819
  %v5821 = vrot.slane %v5280, 2
  %v5822 = vsel %vm5604, %v5813, %v5821
  %v5823 = vrot.slane %v5281, 2
  %v5824 = vsel %vm5604, %v5815, %v5823
  %v5825 = vrot.slane %v5282, 2
  %v5826 = vsel %vm5604, %v5817, %v5825
  %v5827 = vrot.slane %v5283, 2
  %v5828 = vsel %vm5604, %v5819, %v5827
  %v5829 = vrot.slane %v5284, 2
  %v5830 = vrot.slane %v5288, 2
  %v5831 = vsel %vm5604, %v5829, %v5830
  %v5832 = vrot.slane %v5285, 2
  %v5833 = vrot.slane %v5289, 2
  %v5834 = vsel %vm5604, %v5832, %v5833
  %v5835 = vrot.slane %v5286, 2
  %v5836 = vrot.slane %v5290, 2
  %v5837 = vsel %vm5604, %v5835, %v5836
  %v5838 = vrot.slane %v5287, 2
  %v5839 = vrot.slane %v5291, 2
  %v5840 = vsel %vm5604, %v5838, %v5839
  %v5841 = vrot.slane %v5292, 2
  %v5842 = vsel %vm5604, %v5830, %v5841
  %v5843 = vrot.slane %v5293, 2
  %v5844 = vsel %vm5604, %v5833, %v5843
  %v5845 = vrot.slane %v5294, 2
  %v5846 = vsel %vm5604, %v5836, %v5845
  %v5847 = vrot.slane %v5295, 2
  %v5848 = vsel %vm5604, %v5839, %v5847
  %v5849 = vrot.slane %v5296, 2
  %v5850 = vsel %vm5604, %v5841, %v5849
  %v5851 = vrot.slane %v5297, 2
  %v5852 = vsel %vm5604, %v5843, %v5851
  %v5853 = vrot.slane %v5298, 2
  %v5854 = vsel %vm5604, %v5845, %v5853
  %v5855 = vrot.slane %v5299, 2
  %v5856 = vsel %vm5604, %v5847, %v5855
  %v5857 = vrot.slane %v5300, 2
  %v5858 = vrot.slane %v5304, 2
  %v5859 = vsel %vm5604, %v5857, %v5858
  %v5860 = vrot.slane %v5301, 2
  %v5861 = vrot.slane %v5305, 2
  %v5862 = vsel %vm5604, %v5860, %v5861
  %v5863 = vrot.slane %v5302, 2
  %v5864 = vrot.slane %v5306, 2
  %v5865 = vsel %vm5604, %v5863, %v5864
  %v5866 = vrot.slane %v5303, 2
  %v5867 = vrot.slane %v5307, 2
  %v5868 = vsel %vm5604, %v5866, %v5867
  %v5869 = vrot.slane %v5308, 2
  %v5870 = vsel %vm5604, %v5858, %v5869
  %v5871 = vrot.slane %v5309, 2
  %v5872 = vsel %vm5604, %v5861, %v5871
  %v5873 = vrot.slane %v5310, 2
  %v5874 = vsel %vm5604, %v5864, %v5873
  %v5875 = vrot.slane %v5311, 2
  %v5876 = vsel %vm5604, %v5867, %v5875
  %v5877 = vrot.slane %v5312, 2
  %v5878 = vsel %vm5604, %v5869, %v5877
  %v5879 = vrot.slane %v5313, 2
  %v5880 = vsel %vm5604, %v5871, %v5879
  %v5881 = vrot.slane %v5314, 2
  %v5882 = vsel %vm5604, %v5873, %v5881
  %v5883 = vrot.slane %v5315, 2
  %v5884 = vsel %vm5604, %v5875, %v5883
  %v5885 = vrot.slane %v5316, 2
  %v5886 = vrot.slane %v5320, 2
  %v5887 = vsel %vm5604, %v5885, %v5886
  %v5888 = vrot.slane %v5317, 2
  %v5889 = vrot.slane %v5321, 2
  %v5890 = vsel %vm5604, %v5888, %v5889
  %v5891 = vrot.slane %v5318, 2
  %v5892 = vrot.slane %v5322, 2
  %v5893 = vsel %vm5604, %v5891, %v5892
  %v5894 = vrot.slane %v5319, 2
  %v5895 = vrot.slane %v5323, 2
  %v5896 = vsel %vm5604, %v5894, %v5895
  %v5897 = vrot.slane %v5324, 2
  %v5898 = vsel %vm5604, %v5886, %v5897
  %v5899 = vrot.slane %v5325, 2
  %v5900 = vsel %vm5604, %v5889, %v5899
  %v5901 = vrot.slane %v5326, 2
  %v5902 = vsel %vm5604, %v5892, %v5901
  %v5903 = vrot.slane %v5327, 2
  %v5904 = vsel %vm5604, %v5895, %v5903
  %v5905 = vrot.slane %v5328, 2
  %v5906 = vsel %vm5604, %v5897, %v5905
  %v5907 = vrot.slane %v5329, 2
  %v5908 = vsel %vm5604, %v5899, %v5907
  %v5909 = vrot.slane %v5330, 2
  %v5910 = vsel %vm5604, %v5901, %v5909
  %v5911 = vrot.slane %v5331, 2
  %v5912 = vsel %vm5604, %v5903, %v5911
  %v5913 = vrot.slane %v5332, 2
  %v5914 = vrot.slane %v5336, 2
  %v5915 = vsel %vm5604, %v5913, %v5914
  %v5916 = vrot.slane %v5333, 2
  %v5917 = vrot.slane %v5337, 2
  %v5918 = vsel %vm5604, %v5916, %v5917
  %v5919 = vrot.slane %v5334, 2
  %v5920 = vrot.slane %v5338, 2
  %v5921 = vsel %vm5604, %v5919, %v5920
  %v5922 = vrot.slane %v5335, 2
  %v5923 = vrot.slane %v5339, 2
  %v5924 = vsel %vm5604, %v5922, %v5923
  %v5925 = vrot.slane %v5340, 2
  %v5926 = vsel %vm5604, %v5914, %v5925
  %v5927 = vrot.slane %v5341, 2
  %v5928 = vsel %vm5604, %v5917, %v5927
  %v5929 = vrot.slane %v5342, 2
  %v5930 = vsel %vm5604, %v5920, %v5929
  %v5931 = vrot.slane %v5343, 2
  %v5932 = vsel %vm5604, %v5923, %v5931
  %v5933 = vrot.slane %v5344, 2
  %v5934 = vsel %vm5604, %v5925, %v5933
  %v5935 = vrot.slane %v5345, 2
  %v5936 = vsel %vm5604, %v5927, %v5935
  %v5937 = vrot.slane %v5346, 2
  %v5938 = vsel %vm5604, %v5929, %v5937
  %v5939 = vrot.slane %v5347, 2
  %v5940 = vsel %vm5604, %v5931, %v5939
  %v5941 = vrot.slane %v5348, 2
  %v5942 = vrot.slane %v5352, 2
  %v5943 = vsel %vm5604, %v5941, %v5942
  %v5944 = vrot.slane %v5349, 2
  %v5945 = vrot.slane %v5353, 2
  %v5946 = vsel %vm5604, %v5944, %v5945
  %v5947 = vrot.slane %v5350, 2
  %v5948 = vrot.slane %v5354, 2
  %v5949 = vsel %vm5604, %v5947, %v5948
  %v5950 = vrot.slane %v5351, 2
  %v5951 = vrot.slane %v5355, 2
  %v5952 = vsel %vm5604, %v5950, %v5951
  %v5953 = vrot.slane %v5356, 2
  %v5954 = vsel %vm5604, %v5942, %v5953
  %v5955 = vrot.slane %v5357, 2
  %v5956 = vsel %vm5604, %v5945, %v5955
  %v5957 = vrot.slane %v5358, 2
  %v5958 = vsel %vm5604, %v5948, %v5957
  %v5959 = vrot.slane %v5359, 2
  %v5960 = vsel %vm5604, %v5951, %v5959
  %v5961 = vrot.slane %v5360, 2
  %v5962 = vsel %vm5604, %v5953, %v5961
  %v5963 = vrot.slane %v5361, 2
  %v5964 = vsel %vm5604, %v5955, %v5963
  %v5965 = vrot.slane %v5362, 2
  %v5966 = vsel %vm5604, %v5957, %v5965
  %v5967 = vrot.slane %v5363, 2
  %v5968 = vsel %vm5604, %v5959, %v5967
  %v5969 = vrot.slane %v5364, 2
  %v5970 = vrot.slane %v5368, 2
  %v5971 = vsel %vm5604, %v5969, %v5970
  %v5972 = vrot.slane %v5365, 2
  %v5973 = vrot.slane %v5369, 2
  %v5974 = vsel %vm5604, %v5972, %v5973
  %v5975 = vrot.slane %v5366, 2
  %v5976 = vrot.slane %v5370, 2
  %v5977 = vsel %vm5604, %v5975, %v5976
  %v5978 = vrot.slane %v5367, 2
  %v5979 = vrot.slane %v5371, 2
  %v5980 = vsel %vm5604, %v5978, %v5979
  %v5981 = vrot.slane %v5372, 2
  %v5982 = vsel %vm5604, %v5970, %v5981
  %v5983 = vrot.slane %v5373, 2
  %v5984 = vsel %vm5604, %v5973, %v5983
  %v5985 = vrot.slane %v5374, 2
  %v5986 = vsel %vm5604, %v5976, %v5985
  %v5987 = vrot.slane %v5375, 2
  %v5988 = vsel %vm5604, %v5979, %v5987
  %v5989 = vrot.slane %v5376, 2
  %v5990 = vsel %vm5604, %v5981, %v5989
  %v5991 = vrot.slane %v5377, 2
  %v5992 = vsel %vm5604, %v5983, %v5991
  %v5993 = vrot.slane %v5378, 2
  %v5994 = vsel %vm5604, %v5985, %v5993
  %v5995 = vrot.slane %v5379, 2
  %v5996 = vsel %vm5604, %v5987, %v5995
  %v6221 = vadd.f32 %v4797, %v5607
  %v6222 = vadd.f32 %v4798, %v5610
  %v6223 = vadd.f32 %v4799, %v5613
  %v6224 = vadd.f32 %v4800, %v5616
  %v6225 = vadd.f32 %v4801, %v5618
  %v6226 = vadd.f32 %v4802, %v5620
  %v6227 = vadd.f32 %v4803, %v5622
  %v6228 = vadd.f32 %v4804, %v5624
  %v6229 = vadd.f32 %v4805, %v5626
  %v6230 = vadd.f32 %v4806, %v5628
  %v6231 = vadd.f32 %v4807, %v5630
  %v6232 = vadd.f32 %v4808, %v5632
  %v6233 = vadd.f32 %v4809, %v5625
  %v6234 = vadd.f32 %v4810, %v5627
  %v6235 = vadd.f32 %v4811, %v5629
  %v6236 = vadd.f32 %v4812, %v5631
  %v6237 = vadd.f32 %v4813, %v5635
  %v6238 = vadd.f32 %v4814, %v5638
  %v6239 = vadd.f32 %v4815, %v5641
  %v6240 = vadd.f32 %v4816, %v5644
  %v6241 = vadd.f32 %v4817, %v5646
  %v6242 = vadd.f32 %v4818, %v5648
  %v6243 = vadd.f32 %v4819, %v5650
  %v6244 = vadd.f32 %v4820, %v5652
  %v6245 = vadd.f32 %v4821, %v5654
  %v6246 = vadd.f32 %v4822, %v5656
  %v6247 = vadd.f32 %v4823, %v5658
  %v6248 = vadd.f32 %v4824, %v5660
  %v6249 = vadd.f32 %v4825, %v5653
  %v6250 = vadd.f32 %v4826, %v5655
  %v6251 = vadd.f32 %v4827, %v5657
  %v6252 = vadd.f32 %v4828, %v5659
  %v6253 = vadd.f32 %v4829, %v5663
  %v6254 = vadd.f32 %v4830, %v5666
  %v6255 = vadd.f32 %v4831, %v5669
  %v6256 = vadd.f32 %v4832, %v5672
  %v6257 = vadd.f32 %v4833, %v5674
  %v6258 = vadd.f32 %v4834, %v5676
  %v6259 = vadd.f32 %v4835, %v5678
  %v6260 = vadd.f32 %v4836, %v5680
  %v6261 = vadd.f32 %v4837, %v5682
  %v6262 = vadd.f32 %v4838, %v5684
  %v6263 = vadd.f32 %v4839, %v5686
  %v6264 = vadd.f32 %v4840, %v5688
  %v6265 = vadd.f32 %v4841, %v5681
  %v6266 = vadd.f32 %v4842, %v5683
  %v6267 = vadd.f32 %v4843, %v5685
  %v6268 = vadd.f32 %v4844, %v5687
  %v6269 = vadd.f32 %v4845, %v5691
  %v6270 = vadd.f32 %v4846, %v5694
  %v6271 = vadd.f32 %v4847, %v5697
  %v6272 = vadd.f32 %v4848, %v5700
  %v6273 = vadd.f32 %v4849, %v5702
  %v6274 = vadd.f32 %v4850, %v5704
  %v6275 = vadd.f32 %v4851, %v5706
  %v6276 = vadd.f32 %v4852, %v5708
  %v6277 = vadd.f32 %v4853, %v5710
  %v6278 = vadd.f32 %v4854, %v5712
  %v6279 = vadd.f32 %v4855, %v5714
  %v6280 = vadd.f32 %v4856, %v5716
  %v6281 = vadd.f32 %v4857, %v5709
  %v6282 = vadd.f32 %v4858, %v5711
  %v6283 = vadd.f32 %v4859, %v5713
  %v6284 = vadd.f32 %v4860, %v5715
  %v6285 = vadd.f32 %v4861, %v5719
  %v6286 = vadd.f32 %v4862, %v5722
  %v6287 = vadd.f32 %v4863, %v5725
  %v6288 = vadd.f32 %v4864, %v5728
  %v6289 = vadd.f32 %v4865, %v5730
  %v6290 = vadd.f32 %v4866, %v5732
  %v6291 = vadd.f32 %v4867, %v5734
  %v6292 = vadd.f32 %v4868, %v5736
  %v6293 = vadd.f32 %v4869, %v5738
  %v6294 = vadd.f32 %v4870, %v5740
  %v6295 = vadd.f32 %v4871, %v5742
  %v6296 = vadd.f32 %v4872, %v5744
  %v6297 = vadd.f32 %v4873, %v5737
  %v6298 = vadd.f32 %v4874, %v5739
  %v6299 = vadd.f32 %v4875, %v5741
  %v6300 = vadd.f32 %v4876, %v5743
  %v6301 = vadd.f32 %v4877, %v5747
  %v6302 = vadd.f32 %v4878, %v5750
  %v6303 = vadd.f32 %v4879, %v5753
  %v6304 = vadd.f32 %v4880, %v5756
  %v6305 = vadd.f32 %v4881, %v5758
  %v6306 = vadd.f32 %v4882, %v5760
  %v6307 = vadd.f32 %v4883, %v5762
  %v6308 = vadd.f32 %v4884, %v5764
  %v6309 = vadd.f32 %v4885, %v5766
  %v6310 = vadd.f32 %v4886, %v5768
  %v6311 = vadd.f32 %v4887, %v5770
  %v6312 = vadd.f32 %v4888, %v5772
  %v6313 = vadd.f32 %v4889, %v5765
  %v6314 = vadd.f32 %v4890, %v5767
  %v6315 = vadd.f32 %v4891, %v5769
  %v6316 = vadd.f32 %v4892, %v5771
  %v6317 = vadd.f32 %v4893, %v5775
  %v6318 = vadd.f32 %v4894, %v5778
  %v6319 = vadd.f32 %v4895, %v5781
  %v6320 = vadd.f32 %v4896, %v5784
  %v6321 = vadd.f32 %v4897, %v5786
  %v6322 = vadd.f32 %v4898, %v5788
  %v6323 = vadd.f32 %v4899, %v5790
  %v6324 = vadd.f32 %v4900, %v5792
  %v6325 = vadd.f32 %v4901, %v5794
  %v6326 = vadd.f32 %v4902, %v5796
  %v6327 = vadd.f32 %v4903, %v5798
  %v6328 = vadd.f32 %v4904, %v5800
  %v6329 = vadd.f32 %v4905, %v5793
  %v6330 = vadd.f32 %v4906, %v5795
  %v6331 = vadd.f32 %v4907, %v5797
  %v6332 = vadd.f32 %v4908, %v5799
  %v6333 = vadd.f32 %v4909, %v5803
  %v6334 = vadd.f32 %v4910, %v5806
  %v6335 = vadd.f32 %v4911, %v5809
  %v6336 = vadd.f32 %v4912, %v5812
  %v6337 = vadd.f32 %v4913, %v5814
  %v6338 = vadd.f32 %v4914, %v5816
  %v6339 = vadd.f32 %v4915, %v5818
  %v6340 = vadd.f32 %v4916, %v5820
  %v6341 = vadd.f32 %v4917, %v5822
  %v6342 = vadd.f32 %v4918, %v5824
  %v6343 = vadd.f32 %v4919, %v5826
  %v6344 = vadd.f32 %v4920, %v5828
  %v6345 = vadd.f32 %v4921, %v5821
  %v6346 = vadd.f32 %v4922, %v5823
  %v6347 = vadd.f32 %v4923, %v5825
  %v6348 = vadd.f32 %v4924, %v5827
  %v6349 = vadd.f32 %v4925, %v5831
  %v6350 = vadd.f32 %v4926, %v5834
  %v6351 = vadd.f32 %v4927, %v5837
  %v6352 = vadd.f32 %v4928, %v5840
  %v6353 = vadd.f32 %v4929, %v5842
  %v6354 = vadd.f32 %v4930, %v5844
  %v6355 = vadd.f32 %v4931, %v5846
  %v6356 = vadd.f32 %v4932, %v5848
  %v6357 = vadd.f32 %v4933, %v5850
  %v6358 = vadd.f32 %v4934, %v5852
  %v6359 = vadd.f32 %v4935, %v5854
  %v6360 = vadd.f32 %v4936, %v5856
  %v6361 = vadd.f32 %v4937, %v5849
  %v6362 = vadd.f32 %v4938, %v5851
  %v6363 = vadd.f32 %v4939, %v5853
  %v6364 = vadd.f32 %v4940, %v5855
  %v6365 = vadd.f32 %v4941, %v5859
  %v6366 = vadd.f32 %v4942, %v5862
  %v6367 = vadd.f32 %v4943, %v5865
  %v6368 = vadd.f32 %v4944, %v5868
  %v6369 = vadd.f32 %v4945, %v5870
  %v6370 = vadd.f32 %v4946, %v5872
  %v6371 = vadd.f32 %v4947, %v5874
  %v6372 = vadd.f32 %v4948, %v5876
  %v6373 = vadd.f32 %v4949, %v5878
  %v6374 = vadd.f32 %v4950, %v5880
  %v6375 = vadd.f32 %v4951, %v5882
  %v6376 = vadd.f32 %v4952, %v5884
  %v6377 = vadd.f32 %v4953, %v5877
  %v6378 = vadd.f32 %v4954, %v5879
  %v6379 = vadd.f32 %v4955, %v5881
  %v6380 = vadd.f32 %v4956, %v5883
  %v6381 = vadd.f32 %v4957, %v5887
  %v6382 = vadd.f32 %v4958, %v5890
  %v6383 = vadd.f32 %v4959, %v5893
  %v6384 = vadd.f32 %v4960, %v5896
  %v6385 = vadd.f32 %v4961, %v5898
  %v6386 = vadd.f32 %v4962, %v5900
  %v6387 = vadd.f32 %v4963, %v5902
  %v6388 = vadd.f32 %v4964, %v5904
  %v6389 = vadd.f32 %v4965, %v5906
  %v6390 = vadd.f32 %v4966, %v5908
  %v6391 = vadd.f32 %v4967, %v5910
  %v6392 = vadd.f32 %v4968, %v5912
  %v6393 = vadd.f32 %v4969, %v5905
  %v6394 = vadd.f32 %v4970, %v5907
  %v6395 = vadd.f32 %v4971, %v5909
  %v6396 = vadd.f32 %v4972, %v5911
  %v6397 = vadd.f32 %v4973, %v5915
  %v6398 = vadd.f32 %v4974, %v5918
  %v6399 = vadd.f32 %v4975, %v5921
  %v6400 = vadd.f32 %v4976, %v5924
  %v6401 = vadd.f32 %v4977, %v5926
  %v6402 = vadd.f32 %v4978, %v5928
  %v6403 = vadd.f32 %v4979, %v5930
  %v6404 = vadd.f32 %v4980, %v5932
  %v6405 = vadd.f32 %v4981, %v5934
  %v6406 = vadd.f32 %v4982, %v5936
  %v6407 = vadd.f32 %v4983, %v5938
  %v6408 = vadd.f32 %v4984, %v5940
  %v6409 = vadd.f32 %v4985, %v5933
  %v6410 = vadd.f32 %v4986, %v5935
  %v6411 = vadd.f32 %v4987, %v5937
  %v6412 = vadd.f32 %v4988, %v5939
  %v6413 = vadd.f32 %v4989, %v5943
  %v6414 = vadd.f32 %v4990, %v5946
  %v6415 = vadd.f32 %v4991, %v5949
  %v6416 = vadd.f32 %v4992, %v5952
  %v6417 = vadd.f32 %v4993, %v5954
  %v6418 = vadd.f32 %v4994, %v5956
  %v6419 = vadd.f32 %v4995, %v5958
  %v6420 = vadd.f32 %v4996, %v5960
  %v6421 = vadd.f32 %v4997, %v5962
  %v6422 = vadd.f32 %v4998, %v5964
  %v6423 = vadd.f32 %v4999, %v5966
  %v6424 = vadd.f32 %v5000, %v5968
  %v6425 = vadd.f32 %v5001, %v5961
  %v6426 = vadd.f32 %v5002, %v5963
  %v6427 = vadd.f32 %v5003, %v5965
  %v6428 = vadd.f32 %v5004, %v5967
  %v6429 = vadd.f32 %v5005, %v5971
  %v6430 = vadd.f32 %v5006, %v5974
  %v6431 = vadd.f32 %v5007, %v5977
  %v6432 = vadd.f32 %v5008, %v5980
  %v6433 = vadd.f32 %v5009, %v5982
  %v6434 = vadd.f32 %v5010, %v5984
  %v6435 = vadd.f32 %v5011, %v5986
  %v6436 = vadd.f32 %v5012, %v5988
  %v6437 = vadd.f32 %v5013, %v5990
  %v6438 = vadd.f32 %v5014, %v5992
  %v6439 = vadd.f32 %v5015, %v5994
  %v6440 = vadd.f32 %v5016, %v5996
  %v6441 = vadd.f32 %v5017, %v5989
  %v6442 = vadd.f32 %v5018, %v5991
  %v6443 = vadd.f32 %v5019, %v5993
  %v6444 = vadd.f32 %v5020, %v5995
  %v6445 = vld [vmem:[%s570] sm:$0xff]
  %v6446 = vld [vmem:[%s570 + $0x8] sm:$0xff]
  %v6447 = vld [vmem:[%s570 + $0x10] sm:$0xff]
  %v6448 = vld [vmem:[%s570 + $0x18] sm:$0xff]
  %v6449 = vld [vmem:[%s570 + $0x20] sm:$0xff]
  %v6450 = vld [vmem:[%s570 + $0x28] sm:$0xff]
  %v6451 = vld [vmem:[%s570 + $0x30] sm:$0xff]
  %v6452 = vld [vmem:[%s570 + $0x38] sm:$0xff]
  %v6453 = vld [vmem:[%s570 + $0x40] sm:$0xff]
  %v6454 = vld [vmem:[%s570 + $0x48] sm:$0xff]
  %v6455 = vld [vmem:[%s570 + $0x50] sm:$0xff]
  %v6456 = vld [vmem:[%s570 + $0x58] sm:$0xff]
  %v6457 = vld [vmem:[%s570 + $0x60] sm:$0xf]
  %v6458 = vld [vmem:[%s570 + $0x68] sm:$0xf]
  %v6459 = vld [vmem:[%s570 + $0x70] sm:$0xf]
  %v6460 = vld [vmem:[%s570 + $0x78] sm:$0xf]
  %v6461 = vld [vmem:[%s570 + $0x80] sm:$0xff]
  %v6462 = vld [vmem:[%s570 + $0x88] sm:$0xff]
  %v6463 = vld [vmem:[%s570 + $0x90] sm:$0xff]
  %v6464 = vld [vmem:[%s570 + $0x98] sm:$0xff]
  %v6465 = vld [vmem:[%s570 + $0xa0] sm:$0xff]
  %v6466 = vld [vmem:[%s570 + $0xa8] sm:$0xff]
  %v6467 = vld [vmem:[%s570 + $0xb0] sm:$0xff]
  %v6468 = vld [vmem:[%s570 + $0xb8] sm:$0xff]
  %v6469 = vld [vmem:[%s570 + $0xc0] sm:$0xff]
  %v6470 = vld [vmem:[%s570 + $0xc8] sm:$0xff]
  %v6471 = vld [vmem:[%s570 + $0xd0] sm:$0xff]
  %v6472 = vld [vmem:[%s570 + $0xd8] sm:$0xff]
  %v6473 = vld [vmem:[%s570 + $0xe0] sm:$0xf]
  %v6474 = vld [vmem:[%s570 + $0xe8] sm:$0xf]
  %v6475 = vld [vmem:[%s570 + $0xf0] sm:$0xf]
  %v6476 = vld [vmem:[%s570 + $0xf8] sm:$0xf]
  %v6477 = vld [vmem:[%s570 + $0x100] sm:$0xff]
  %v6478 = vld [vmem:[%s570 + $0x108] sm:$0xff]
  %v6479 = vld [vmem:[%s570 + $0x110] sm:$0xff]
  %v6480 = vld [vmem:[%s570 + $0x118] sm:$0xff]
  %v6481 = vld [vmem:[%s570 + $0x120] sm:$0xff]
  %v6482 = vld [vmem:[%s570 + $0x128] sm:$0xff]
  %v6483 = vld [vmem:[%s570 + $0x130] sm:$0xff]
  %v6484 = vld [vmem:[%s570 + $0x138] sm:$0xff]
  %v6485 = vld [vmem:[%s570 + $0x140] sm:$0xff]
  %v6486 = vld [vmem:[%s570 + $0x148] sm:$0xff]
  %v6487 = vld [vmem:[%s570 + $0x150] sm:$0xff]
  %v6488 = vld [vmem:[%s570 + $0x158] sm:$0xff]
  %v6489 = vld [vmem:[%s570 + $0x160] sm:$0xf]
  %v6490 = vld [vmem:[%s570 + $0x168] sm:$0xf]
  %v6491 = vld [vmem:[%s570 + $0x170] sm:$0xf]
  %v6492 = vld [vmem:[%s570 + $0x178] sm:$0xf]
  %v6493 = vld [vmem:[%s570 + $0x180] sm:$0xff]
  %v6494 = vld [vmem:[%s570 + $0x188] sm:$0xff]
  %v6495 = vld [vmem:[%s570 + $0x190] sm:$0xff]
  %v6496 = vld [vmem:[%s570 + $0x198] sm:$0xff]
  %v6497 = vld [vmem:[%s570 + $0x1a0] sm:$0xff]
  %v6498 = vld [vmem:[%s570 + $0x1a8] sm:$0xff]
  %v6499 = vld [vmem:[%s570 + $0x1b0] sm:$0xff]
  %v6500 = vld [vmem:[%s570 + $0x1b8] sm:$0xff]
  %v6501 = vld [vmem:[%s570 + $0x1c0] sm:$0xff]
  %v6502 = vld [vmem:[%s570 + $0x1c8] sm:$0xff]
  %v6503 = vld [vmem:[%s570 + $0x1d0] sm:$0xff]
  %v6504 = vld [vmem:[%s570 + $0x1d8] sm:$0xff]
  %v6505 = vld [vmem:[%s570 + $0x1e0] sm:$0xf]
  %v6506 = vld [vmem:[%s570 + $0x1e8] sm:$0xf]
  %v6507 = vld [vmem:[%s570 + $0x1f0] sm:$0xf]
  %v6508 = vld [vmem:[%s570 + $0x1f8] sm:$0xf]
  %v6509 = vld [vmem:[%s570 + $0x200] sm:$0xff]
  %v6510 = vld [vmem:[%s570 + $0x208] sm:$0xff]
  %v6511 = vld [vmem:[%s570 + $0x210] sm:$0xff]
  %v6512 = vld [vmem:[%s570 + $0x218] sm:$0xff]
  %v6513 = vld [vmem:[%s570 + $0x220] sm:$0xff]
  %v6514 = vld [vmem:[%s570 + $0x228] sm:$0xff]
  %v6515 = vld [vmem:[%s570 + $0x230] sm:$0xff]
  %v6516 = vld [vmem:[%s570 + $0x238] sm:$0xff]
  %v6517 = vld [vmem:[%s570 + $0x240] sm:$0xff]
  %v6518 = vld [vmem:[%s570 + $0x248] sm:$0xff]
  %v6519 = vld [vmem:[%s570 + $0x250] sm:$0xff]
  %v6520 = vld [vmem:[%s570 + $0x258] sm:$0xff]
  %v6521 = vld [vmem:[%s570 + $0x260] sm:$0xf]
  %v6522 = vld [vmem:[%s570 + $0x268] sm:$0xf]
  %v6523 = vld [vmem:[%s570 + $0x270] sm:$0xf]
  %v6524 = vld [vmem:[%s570 + $0x278] sm:$0xf]
  %v6525 = vld [vmem:[%s570 + $0x280] sm:$0xff]
  %v6526 = vld [vmem:[%s570 + $0x288] sm:$0xff]
  %v6527 = vld [vmem:[%s570 + $0x290] sm:$0xff]
  %v6528 = vld [vmem:[%s570 + $0x298] sm:$0xff]
  %v6529 = vld [vmem:[%s570 + $0x2a0] sm:$0xff]
  %v6530 = vld [vmem:[%s570 + $0x2a8] sm:$0xff]
  %v6531 = vld [vmem:[%s570 + $0x2b0] sm:$0xff]
  %v6532 = vld [vmem:[%s570 + $0x2b8] sm:$0xff]
  %v6533 = vld [vmem:[%s570 + $0x2c0] sm:$0xff]
  %v6534 = vld [vmem:[%s570 + $0x2c8] sm:$0xff]
  %v6535 = vld [vmem:[%s570 + $0x2d0] sm:$0xff]
  %v6536 = vld [vmem:[%s570 + $0x2d8] sm:$0xff]
  %v6537 = vld [vmem:[%s570 + $0x2e0] sm:$0xf]
  %v6538 = vld [vmem:[%s570 + $0x2e8] sm:$0xf]
  %v6539 = vld [vmem:[%s570 + $0x2f0] sm:$0xf]
  %v6540 = vld [vmem:[%s570 + $0x2f8] sm:$0xf]
  %v6541 = vld [vmem:[%s570 + $0x300] sm:$0xff]
  %v6542 = vld [vmem:[%s570 + $0x308] sm:$0xff]
  %v6543 = vld [vmem:[%s570 + $0x310] sm:$0xff]
  %v6544 = vld [vmem:[%s570 + $0x318] sm:$0xff]
  %v6545 = vld [vmem:[%s570 + $0x320] sm:$0xff]
  %v6546 = vld [vmem:[%s570 + $0x328] sm:$0xff]
  %v6547 = vld [vmem:[%s570 + $0x330] sm:$0xff]
  %v6548 = vld [vmem:[%s570 + $0x338] sm:$0xff]
  %v6549 = vld [vmem:[%s570 + $0x340] sm:$0xff]
  %v6550 = vld [vmem:[%s570 + $0x348] sm:$0xff]
  %v6551 = vld [vmem:[%s570 + $0x350] sm:$0xff]
  %v6552 = vld [vmem:[%s570 + $0x358] sm:$0xff]
  %v6553 = vld [vmem:[%s570 + $0x360] sm:$0xf]
  %v6554 = vld [vmem:[%s570 + $0x368] sm:$0xf]
  %v6555 = vld [vmem:[%s570 + $0x370] sm:$0xf]
  %v6556 = vld [vmem:[%s570 + $0x378] sm:$0xf]
  %v6557 = vld [vmem:[%s570 + $0x380] sm:$0xff]
  %v6558 = vld [vmem:[%s570 + $0x388] sm:$0xff]
  %v6559 = vld [vmem:[%s570 + $0x390] sm:$0xff]
  %v6560 = vld [vmem:[%s570 + $0x398] sm:$0xff]
  %v6561 = vld [vmem:[%s570 + $0x3a0] sm:$0xff]
  %v6562 = vld [vmem:[%s570 + $0x3a8] sm:$0xff]
  %v6563 = vld [vmem:[%s570 + $0x3b0] sm:$0xff]
  %v6564 = vld [vmem:[%s570 + $0x3b8] sm:$0xff]
  %v6565 = vld [vmem:[%s570 + $0x3c0] sm:$0xff]
  %v6566 = vld [vmem:[%s570 + $0x3c8] sm:$0xff]
  %v6567 = vld [vmem:[%s570 + $0x3d0] sm:$0xff]
  %v6568 = vld [vmem:[%s570 + $0x3d8] sm:$0xff]
  %v6569 = vld [vmem:[%s570 + $0x3e0] sm:$0xf]
  %v6570 = vld [vmem:[%s570 + $0x3e8] sm:$0xf]
  %v6571 = vld [vmem:[%s570 + $0x3f0] sm:$0xf]
  %v6572 = vld [vmem:[%s570 + $0x3f8] sm:$0xf]
  %v6573 = vld [vmem:[%s570 + $0x400] sm:$0xff]
  %v6574 = vld [vmem:[%s570 + $0x408] sm:$0xff]
  %v6575 = vld [vmem:[%s570 + $0x410] sm:$0xff]
  %v6576 = vld [vmem:[%s570 + $0x418] sm:$0xff]
  %v6577 = vld [vmem:[%s570 + $0x420] sm:$0xff]
  %v6578 = vld [vmem:[%s570 + $0x428] sm:$0xff]
  %v6579 = vld [vmem:[%s570 + $0x430] sm:$0xff]
  %v6580 = vld [vmem:[%s570 + $0x438] sm:$0xff]
  %v6581 = vld [vmem:[%s570 + $0x440] sm:$0xff]
  %v6582 = vld [vmem:[%s570 + $0x448] sm:$0xff]
  %v6583 = vld [vmem:[%s570 + $0x450] sm:$0xff]
  %v6584 = vld [vmem:[%s570 + $0x458] sm:$0xff]
  %v6585 = vld [vmem:[%s570 + $0x460] sm:$0xf]
  %v6586 = vld [vmem:[%s570 + $0x468] sm:$0xf]
  %v6587 = vld [vmem:[%s570 + $0x470] sm:$0xf]
  %v6588 = vld [vmem:[%s570 + $0x478] sm:$0xf]
  %v6589 = vld [vmem:[%s570 + $0x480] sm:$0xff]
  %v6590 = vld [vmem:[%s570 + $0x488] sm:$0xff]
  %v6591 = vld [vmem:[%s570 + $0x490] sm:$0xff]
  %v6592 = vld [vmem:[%s570 + $0x498] sm:$0xff]
  %v6593 = vld [vmem:[%s570 + $0x4a0] sm:$0xff]
  %v6594 = vld [vmem:[%s570 + $0x4a8] sm:$0xff]
  %v6595 = vld [vmem:[%s570 + $0x4b0] sm:$0xff]
  %v6596 = vld [vmem:[%s570 + $0x4b8] sm:$0xff]
  %v6597 = vld [vmem:[%s570 + $0x4c0] sm:$0xff]
  %v6598 = vld [vmem:[%s570 + $0x4c8] sm:$0xff]
  %v6599 = vld [vmem:[%s570 + $0x4d0] sm:$0xff]
  %v6600 = vld [vmem:[%s570 + $0x4d8] sm:$0xff]
  %v6601 = vld [vmem:[%s570 + $0x4e0] sm:$0xf]
  %v6602 = vld [vmem:[%s570 + $0x4e8] sm:$0xf]
  %v6603 = vld [vmem:[%s570 + $0x4f0] sm:$0xf]
  %v6604 = vld [vmem:[%s570 + $0x4f8] sm:$0xf]
  %v6605 = vld [vmem:[%s570 + $0x500] sm:$0xff]
  %v6606 = vld [vmem:[%s570 + $0x508] sm:$0xff]
  %v6607 = vld [vmem:[%s570 + $0x510] sm:$0xff]
  %v6608 = vld [vmem:[%s570 + $0x518] sm:$0xff]
  %v6609 = vld [vmem:[%s570 + $0x520] sm:$0xff]
  %v6610 = vld [vmem:[%s570 + $0x528] sm:$0xff]
  %v6611 = vld [vmem:[%s570 + $0x530] sm:$0xff]
  %v6612 = vld [vmem:[%s570 + $0x538] sm:$0xff]
  %v6613 = vld [vmem:[%s570 + $0x540] sm:$0xff]
  %v6614 = vld [vmem:[%s570 + $0x548] sm:$0xff]
  %v6615 = vld [vmem:[%s570 + $0x550] sm:$0xff]
  %v6616 = vld [vmem:[%s570 + $0x558] sm:$0xff]
  %v6617 = vld [vmem:[%s570 + $0x560] sm:$0xf]
  %v6618 = vld [vmem:[%s570 + $0x568] sm:$0xf]
  %v6619 = vld [vmem:[%s570 + $0x570] sm:$0xf]
  %v6620 = vld [vmem:[%s570 + $0x578] sm:$0xf]
  %v6621 = vld [vmem:[%s570 + $0x580] sm:$0xff]
  %v6622 = vld [vmem:[%s570 + $0x588] sm:$0xff]
  %v6623 = vld [vmem:[%s570 + $0x590] sm:$0xff]
  %v6624 = vld [vmem:[%s570 + $0x598] sm:$0xff]
  %v6625 = vld [vmem:[%s570 + $0x5a0] sm:$0xff]
  %v6626 = vld [vmem:[%s570 + $0x5a8] sm:$0xff]
  %v6627 = vld [vmem:[%s570 + $0x5b0] sm:$0xff]
  %v6628 = vld [vmem:[%s570 + $0x5b8] sm:$0xff]
  %v6629 = vld [vmem:[%s570 + $0x5c0] sm:$0xff]
  %v6630 = vld [vmem:[%s570 + $0x5c8] sm:$0xff]
  %v6631 = vld [vmem:[%s570 + $0x5d0] sm:$0xff]
  %v6632 = vld [vmem:[%s570 + $0x5d8] sm:$0xff]
  %v6633 = vld [vmem:[%s570 + $0x5e0] sm:$0xf]
  %v6634 = vld [vmem:[%s570 + $0x5e8] sm:$0xf]
  %v6635 = vld [vmem:[%s570 + $0x5f0] sm:$0xf]
  %v6636 = vld [vmem:[%s570 + $0x5f8] sm:$0xf]
  %v6637 = vld [vmem:[%s570 + $0x600] sm:$0xff]
  %v6638 = vld [vmem:[%s570 + $0x608] sm:$0xff]
  %v6639 = vld [vmem:[%s570 + $0x610] sm:$0xff]
  %v6640 = vld [vmem:[%s570 + $0x618] sm:$0xff]
  %v6641 = vld [vmem:[%s570 + $0x620] sm:$0xff]
  %v6642 = vld [vmem:[%s570 + $0x628] sm:$0xff]
  %v6643 = vld [vmem:[%s570 + $0x630] sm:$0xff]
  %v6644 = vld [vmem:[%s570 + $0x638] sm:$0xff]
  %v6645 = vld [vmem:[%s570 + $0x640] sm:$0xff]
  %v6646 = vld [vmem:[%s570 + $0x648] sm:$0xff]
  %v6647 = vld [vmem:[%s570 + $0x650] sm:$0xff]
  %v6648 = vld [vmem:[%s570 + $0x658] sm:$0xff]
  %v6649 = vld [vmem:[%s570 + $0x660] sm:$0xf]
  %v6650 = vld [vmem:[%s570 + $0x668] sm:$0xf]
  %v6651 = vld [vmem:[%s570 + $0x670] sm:$0xf]
  %v6652 = vld [vmem:[%s570 + $0x678] sm:$0xf]
  %v6653 = vld [vmem:[%s570 + $0x680] sm:$0xff]
  %v6654 = vld [vmem:[%s570 + $0x688] sm:$0xff]
  %v6655 = vld [vmem:[%s570 + $0x690] sm:$0xff]
  %v6656 = vld [vmem:[%s570 + $0x698] sm:$0xff]
  %v6657 = vld [vmem:[%s570 + $0x6a0] sm:$0xff]
  %v6658 = vld [vmem:[%s570 + $0x6a8] sm:$0xff]
  %v6659 = vld [vmem:[%s570 + $0x6b0] sm:$0xff]
  %v6660 = vld [vmem:[%s570 + $0x6b8] sm:$0xff]
  %v6661 = vld [vmem:[%s570 + $0x6c0] sm:$0xff]
  %v6662 = vld [vmem:[%s570 + $0x6c8] sm:$0xff]
  %v6663 = vld [vmem:[%s570 + $0x6d0] sm:$0xff]
  %v6664 = vld [vmem:[%s570 + $0x6d8] sm:$0xff]
  %v6665 = vld [vmem:[%s570 + $0x6e0] sm:$0xf]
  %v6666 = vld [vmem:[%s570 + $0x6e8] sm:$0xf]
  %v6667 = vld [vmem:[%s570 + $0x6f0] sm:$0xf]
  %v6668 = vld [vmem:[%s570 + $0x6f8] sm:$0xf]
  %s6669 = scalar_lea.vmem %s1, 16
  %v6670 = vld [vmem:[%s6669] ss:$4 sm:$0xf]
  %v6672 = vlaneseq
  %v6673 = vshrl.u32 %v6672, 7
  %v6674 = vsub.s32 0, %v6673
  %v6675 = vrot.slane %v6670, %v6674
  %v6676 = vlaneseq
  %v6677 = vshrl.u32 %v6676, 7
  %v6678 = vsub.s32 1, %v6677
  %v6679 = vrot.slane %v6670, %v6678
  %v6680 = vlaneseq
  %v6681 = vshrl.u32 %v6680, 7
  %v6682 = vsub.s32 2, %v6681
  %v6683 = vrot.slane %v6670, %v6682
  %v6684 = vlaneseq
  %v6685 = vshrl.u32 %v6684, 7
  %v6686 = vsub.s32 3, %v6685
  %v6687 = vrot.slane %v6670, %v6686
  %v6692 = vmul.f32 %v6445, %v6675
  %v6693 = vmul.f32 %v6446, %v6679
  %v6694 = vmul.f32 %v6447, %v6683
  %v6695 = vmul.f32 %v6448, %v6687
  %v6696 = vmul.f32 %v6449, %v6675
  %v6697 = vmul.f32 %v6450, %v6679
  %v6698 = vmul.f32 %v6451, %v6683
  %v6699 = vmul.f32 %v6452, %v6687
  %v6700 = vmul.f32 %v6453, %v6675
  %v6701 = vmul.f32 %v6454, %v6679
  %v6702 = vmul.f32 %v6455, %v6683
  %v6703 = vmul.f32 %v6456, %v6687
  %v6704 = vmul.f32 %v6457, %v6675
  %v6705 = vmul.f32 %v6458, %v6679
  %v6706 = vmul.f32 %v6459, %v6683
  %v6707 = vmul.f32 %v6460, %v6687
  %v6708 = vmul.f32 %v6461, %v6675
  %v6709 = vmul.f32 %v6462, %v6679
  %v6710 = vmul.f32 %v6463, %v6683
  %v6711 = vmul.f32 %v6464, %v6687
  %v6712 = vmul.f32 %v6465, %v6675
  %v6713 = vmul.f32 %v6466, %v6679
  %v6714 = vmul.f32 %v6467, %v6683
  %v6715 = vmul.f32 %v6468, %v6687
  %v6716 = vmul.f32 %v6469, %v6675
  %v6717 = vmul.f32 %v6470, %v6679
  %v6718 = vmul.f32 %v6471, %v6683
  %v6719 = vmul.f32 %v6472, %v6687
  %v6720 = vmul.f32 %v6473, %v6675
  %v6721 = vmul.f32 %v6474, %v6679
  %v6722 = vmul.f32 %v6475, %v6683
  %v6723 = vmul.f32 %v6476, %v6687
  %v6724 = vmul.f32 %v6477, %v6675
  %v6725 = vmul.f32 %v6478, %v6679
  %v6726 = vmul.f32 %v6479, %v6683
  %v6727 = vmul.f32 %v6480, %v6687
  %v6728 = vmul.f32 %v6481, %v6675
  %v6729 = vmul.f32 %v6482, %v6679
  %v6730 = vmul.f32 %v6483, %v6683
  %v6731 = vmul.f32 %v6484, %v6687
  %v6732 = vmul.f32 %v6485, %v6675
  %v6733 = vmul.f32 %v6486, %v6679
  %v6734 = vmul.f32 %v6487, %v6683
  %v6735 = vmul.f32 %v6488, %v6687
  %v6736 = vmul.f32 %v6489, %v6675
  %v6737 = vmul.f32 %v6490, %v6679
  %v6738 = vmul.f32 %v6491, %v6683
  %v6739 = vmul.f32 %v6492, %v6687
  %v6740 = vmul.f32 %v6493, %v6675
  %v6741 = vmul.f32 %v6494, %v6679
  %v6742 = vmul.f32 %v6495, %v6683
  %v6743 = vmul.f32 %v6496, %v6687
  %v6744 = vmul.f32 %v6497, %v6675
  %v6745 = vmul.f32 %v6498, %v6679
  %v6746 = vmul.f32 %v6499, %v6683
  %v6747 = vmul.f32 %v6500, %v6687
  %v6748 = vmul.f32 %v6501, %v6675
  %v6749 = vmul.f32 %v6502, %v6679
  %v6750 = vmul.f32 %v6503, %v6683
  %v6751 = vmul.f32 %v6504, %v6687
  %v6752 = vmul.f32 %v6505, %v6675
  %v6753 = vmul.f32 %v6506, %v6679
  %v6754 = vmul.f32 %v6507, %v6683
  %v6755 = vmul.f32 %v6508, %v6687
  %v6756 = vmul.f32 %v6509, %v6675
  %v6757 = vmul.f32 %v6510, %v6679
  %v6758 = vmul.f32 %v6511, %v6683
  %v6759 = vmul.f32 %v6512, %v6687
  %v6760 = vmul.f32 %v6513, %v6675
  %v6761 = vmul.f32 %v6514, %v6679
  %v6762 = vmul.f32 %v6515, %v6683
  %v6763 = vmul.f32 %v6516, %v6687
  %v6764 = vmul.f32 %v6517, %v6675
  %v6765 = vmul.f32 %v6518, %v6679
  %v6766 = vmul.f32 %v6519, %v6683
  %v6767 = vmul.f32 %v6520, %v6687
  %v6768 = vmul.f32 %v6521, %v6675
  %v6769 = vmul.f32 %v6522, %v6679
  %v6770 = vmul.f32 %v6523, %v6683
  %v6771 = vmul.f32 %v6524, %v6687
  %v6772 = vmul.f32 %v6525, %v6675
  %v6773 = vmul.f32 %v6526, %v6679
  %v6774 = vmul.f32 %v6527, %v6683
  %v6775 = vmul.f32 %v6528, %v6687
  %v6776 = vmul.f32 %v6529, %v6675
  %v6777 = vmul.f32 %v6530, %v6679
  %v6778 = vmul.f32 %v6531, %v6683
  %v6779 = vmul.f32 %v6532, %v6687
  %v6780 = vmul.f32 %v6533, %v6675
  %v6781 = vmul.f32 %v6534, %v6679
  %v6782 = vmul.f32 %v6535, %v6683
  %v6783 = vmul.f32 %v6536, %v6687
  %v6784 = vmul.f32 %v6537, %v6675
  %v6785 = vmul.f32 %v6538, %v6679
  %v6786 = vmul.f32 %v6539, %v6683
  %v6787 = vmul.f32 %v6540, %v6687
  %v6788 = vmul.f32 %v6541, %v6675
  %v6789 = vmul.f32 %v6542, %v6679
  %v6790 = vmul.f32 %v6543, %v6683
  %v6791 = vmul.f32 %v6544, %v6687
  %v6792 = vmul.f32 %v6545, %v6675
  %v6793 = vmul.f32 %v6546, %v6679
  %v6794 = vmul.f32 %v6547, %v6683
  %v6795 = vmul.f32 %v6548, %v6687
  %v6796 = vmul.f32 %v6549, %v6675
  %v6797 = vmul.f32 %v6550, %v6679
  %v6798 = vmul.f32 %v6551, %v6683
  %v6799 = vmul.f32 %v6552, %v6687
  %v6800 = vmul.f32 %v6553, %v6675
  %v6801 = vmul.f32 %v6554, %v6679
  %v6802 = vmul.f32 %v6555, %v6683
  %v6803 = vmul.f32 %v6556, %v6687
  %v6804 = vmul.f32 %v6557, %v6675
  %v6805 = vmul.f32 %v6558, %v6679
  %v6806 = vmul.f32 %v6559, %v6683
  %v6807 = vmul.f32 %v6560, %v6687
  %v6808 = vmul.f32 %v6561, %v6675
  %v6809 = vmul.f32 %v6562, %v6679
  %v6810 = vmul.f32 %v6563, %v6683
  %v6811 = vmul.f32 %v6564, %v6687
  %v6812 = vmul.f32 %v6565, %v6675
  %v6813 = vmul.f32 %v6566, %v6679
  %v6814 = vmul.f32 %v6567, %v6683
  %v6815 = vmul.f32 %v6568, %v6687
  %v6816 = vmul.f32 %v6569, %v6675
  %v6817 = vmul.f32 %v6570, %v6679
  %v6818 = vmul.f32 %v6571, %v6683
  %v6819 = vmul.f32 %v6572, %v6687
  %v6820 = vmul.f32 %v6573, %v6675
  %v6821 = vmul.f32 %v6574, %v6679
  %v6822 = vmul.f32 %v6575, %v6683
  %v6823 = vmul.f32 %v6576, %v6687
  %v6824 = vmul.f32 %v6577, %v6675
  %v6825 = vmul.f32 %v6578, %v6679
  %v6826 = vmul.f32 %v6579, %v6683
  %v6827 = vmul.f32 %v6580, %v6687
  %v6828 = vmul.f32 %v6581, %v6675
  %v6829 = vmul.f32 %v6582, %v6679
  %v6830 = vmul.f32 %v6583, %v6683
  %v6831 = vmul.f32 %v6584, %v6687
  %v6832 = vmul.f32 %v6585, %v6675
  %v6833 = vmul.f32 %v6586, %v6679
  %v6834 = vmul.f32 %v6587, %v6683
  %v6835 = vmul.f32 %v6588, %v6687
  %v6836 = vmul.f32 %v6589, %v6675
  %v6837 = vmul.f32 %v6590, %v6679
  %v6838 = vmul.f32 %v6591, %v6683
  %v6839 = vmul.f32 %v6592, %v6687
  %v6840 = vmul.f32 %v6593, %v6675
  %v6841 = vmul.f32 %v6594, %v6679
  %v6842 = vmul.f32 %v6595, %v6683
  %v6843 = vmul.f32 %v6596, %v6687
  %v6844 = vmul.f32 %v6597, %v6675
  %v6845 = vmul.f32 %v6598, %v6679
  %v6846 = vmul.f32 %v6599, %v6683
  %v6847 = vmul.f32 %v6600, %v6687
  %v6848 = vmul.f32 %v6601, %v6675
  %v6849 = vmul.f32 %v6602, %v6679
  %v6850 = vmul.f32 %v6603, %v6683
  %v6851 = vmul.f32 %v6604, %v6687
  %v6852 = vmul.f32 %v6605, %v6675
  %v6853 = vmul.f32 %v6606, %v6679
  %v6854 = vmul.f32 %v6607, %v6683
  %v6855 = vmul.f32 %v6608, %v6687
  %v6856 = vmul.f32 %v6609, %v6675
  %v6857 = vmul.f32 %v6610, %v6679
  %v6858 = vmul.f32 %v6611, %v6683
  %v6859 = vmul.f32 %v6612, %v6687
  %v6860 = vmul.f32 %v6613, %v6675
  %v6861 = vmul.f32 %v6614, %v6679
  %v6862 = vmul.f32 %v6615, %v6683
  %v6863 = vmul.f32 %v6616, %v6687
  %v6864 = vmul.f32 %v6617, %v6675
  %v6865 = vmul.f32 %v6618, %v6679
  %v6866 = vmul.f32 %v6619, %v6683
  %v6867 = vmul.f32 %v6620, %v6687
  %v6868 = vmul.f32 %v6621, %v6675
  %v6869 = vmul.f32 %v6622, %v6679
  %v6870 = vmul.f32 %v6623, %v6683
  %v6871 = vmul.f32 %v6624, %v6687
  %v6872 = vmul.f32 %v6625, %v6675
  %v6873 = vmul.f32 %v6626, %v6679
  %v6874 = vmul.f32 %v6627, %v6683
  %v6875 = vmul.f32 %v6628, %v6687
  %v6876 = vmul.f32 %v6629, %v6675
  %v6877 = vmul.f32 %v6630, %v6679
  %v6878 = vmul.f32 %v6631, %v6683
  %v6879 = vmul.f32 %v6632, %v6687
  %v6880 = vmul.f32 %v6633, %v6675
  %v6881 = vmul.f32 %v6634, %v6679
  %v6882 = vmul.f32 %v6635, %v6683
  %v6883 = vmul.f32 %v6636, %v6687
  %v6884 = vmul.f32 %v6637, %v6675
  %v6885 = vmul.f32 %v6638, %v6679
  %v6886 = vmul.f32 %v6639, %v6683
  %v6887 = vmul.f32 %v6640, %v6687
  %v6888 = vmul.f32 %v6641, %v6675
  %v6889 = vmul.f32 %v6642, %v6679
  %v6890 = vmul.f32 %v6643, %v6683
  %v6891 = vmul.f32 %v6644, %v6687
  %v6892 = vmul.f32 %v6645, %v6675
  %v6893 = vmul.f32 %v6646, %v6679
  %v6894 = vmul.f32 %v6647, %v6683
  %v6895 = vmul.f32 %v6648, %v6687
  %v6896 = vmul.f32 %v6649, %v6675
  %v6897 = vmul.f32 %v6650, %v6679
  %v6898 = vmul.f32 %v6651, %v6683
  %v6899 = vmul.f32 %v6652, %v6687
  %v6900 = vmul.f32 %v6653, %v6675
  %v6901 = vmul.f32 %v6654, %v6679
  %v6902 = vmul.f32 %v6655, %v6683
  %v6903 = vmul.f32 %v6656, %v6687
  %v6904 = vmul.f32 %v6657, %v6675
  %v6905 = vmul.f32 %v6658, %v6679
  %v6906 = vmul.f32 %v6659, %v6683
  %v6907 = vmul.f32 %v6660, %v6687
  %v6908 = vmul.f32 %v6661, %v6675
  %v6909 = vmul.f32 %v6662, %v6679
  %v6910 = vmul.f32 %v6663, %v6683
  %v6911 = vmul.f32 %v6664, %v6687
  %v6912 = vmul.f32 %v6665, %v6675
  %v6913 = vmul.f32 %v6666, %v6679
  %v6914 = vmul.f32 %v6667, %v6683
  %v6915 = vmul.f32 %v6668, %v6687
  %v6916 = vadd.f32 %v6221, %v6692
  %v6917 = vadd.f32 %v6222, %v6693
  %v6918 = vadd.f32 %v6223, %v6694
  %v6919 = vadd.f32 %v6224, %v6695
  %v6920 = vadd.f32 %v6225, %v6696
  %v6921 = vadd.f32 %v6226, %v6697
  %v6922 = vadd.f32 %v6227, %v6698
  %v6923 = vadd.f32 %v6228, %v6699
  %v6924 = vadd.f32 %v6229, %v6700
  %v6925 = vadd.f32 %v6230, %v6701
  %v6926 = vadd.f32 %v6231, %v6702
  %v6927 = vadd.f32 %v6232, %v6703
  %v6928 = vadd.f32 %v6233, %v6704
  %v6929 = vadd.f32 %v6234, %v6705
  %v6930 = vadd.f32 %v6235, %v6706
  %v6931 = vadd.f32 %v6236, %v6707
  %v6932 = vadd.f32 %v6237, %v6708
  %v6933 = vadd.f32 %v6238, %v6709
  %v6934 = vadd.f32 %v6239, %v6710
  %v6935 = vadd.f32 %v6240, %v6711
  %v6936 = vadd.f32 %v6241, %v6712
  %v6937 = vadd.f32 %v6242, %v6713
  %v6938 = vadd.f32 %v6243, %v6714
  %v6939 = vadd.f32 %v6244, %v6715
  %v6940 = vadd.f32 %v6245, %v6716
  %v6941 = vadd.f32 %v6246, %v6717
  %v6942 = vadd.f32 %v6247, %v6718
  %v6943 = vadd.f32 %v6248, %v6719
  %v6944 = vadd.f32 %v6249, %v6720
  %v6945 = vadd.f32 %v6250, %v6721
  %v6946 = vadd.f32 %v6251, %v6722
  %v6947 = vadd.f32 %v6252, %v6723
  %v6948 = vadd.f32 %v6253, %v6724
  %v6949 = vadd.f32 %v6254, %v6725
  %v6950 = vadd.f32 %v6255, %v6726
  %v6951 = vadd.f32 %v6256, %v6727
  %v6952 = vadd.f32 %v6257, %v6728
  %v6953 = vadd.f32 %v6258, %v6729
  %v6954 = vadd.f32 %v6259, %v6730
  %v6955 = vadd.f32 %v6260, %v6731
  %v6956 = vadd.f32 %v6261, %v6732
  %v6957 = vadd.f32 %v6262, %v6733
  %v6958 = vadd.f32 %v6263, %v6734
  %v6959 = vadd.f32 %v6264, %v6735
  %v6960 = vadd.f32 %v6265, %v6736
  %v6961 = vadd.f32 %v6266, %v6737
  %v6962 = vadd.f32 %v6267, %v6738
  %v6963 = vadd.f32 %v6268, %v6739
  %v6964 = vadd.f32 %v6269, %v6740
  %v6965 = vadd.f32 %v6270, %v6741
  %v6966 = vadd.f32 %v6271, %v6742
  %v6967 = vadd.f32 %v6272, %v6743
  %v6968 = vadd.f32 %v6273, %v6744
  %v6969 = vadd.f32 %v6274, %v6745
  %v6970 = vadd.f32 %v6275, %v6746
  %v6971 = vadd.f32 %v6276, %v6747
  %v6972 = vadd.f32 %v6277, %v6748
  %v6973 = vadd.f32 %v6278, %v6749
  %v6974 = vadd.f32 %v6279, %v6750
  %v6975 = vadd.f32 %v6280, %v6751
  %v6976 = vadd.f32 %v6281, %v6752
  %v6977 = vadd.f32 %v6282, %v6753
  %v6978 = vadd.f32 %v6283, %v6754
  %v6979 = vadd.f32 %v6284, %v6755
  %v6980 = vadd.f32 %v6285, %v6756
  %v6981 = vadd.f32 %v6286, %v6757
  %v6982 = vadd.f32 %v6287, %v6758
  %v6983 = vadd.f32 %v6288, %v6759
  %v6984 = vadd.f32 %v6289, %v6760
  %v6985 = vadd.f32 %v6290, %v6761
  %v6986 = vadd.f32 %v6291, %v6762
  %v6987 = vadd.f32 %v6292, %v6763
  %v6988 = vadd.f32 %v6293, %v6764
  %v6989 = vadd.f32 %v6294, %v6765
  %v6990 = vadd.f32 %v6295, %v6766
  %v6991 = vadd.f32 %v6296, %v6767
  %v6992 = vadd.f32 %v6297, %v6768
  %v6993 = vadd.f32 %v6298, %v6769
  %v6994 = vadd.f32 %v6299, %v6770
  %v6995 = vadd.f32 %v6300, %v6771
  %v6996 = vadd.f32 %v6301, %v6772
  %v6997 = vadd.f32 %v6302, %v6773
  %v6998 = vadd.f32 %v6303, %v6774
  %v6999 = vadd.f32 %v6304, %v6775
  %v7000 = vadd.f32 %v6305, %v6776
  %v7001 = vadd.f32 %v6306, %v6777
  %v7002 = vadd.f32 %v6307, %v6778
  %v7003 = vadd.f32 %v6308, %v6779
  %v7004 = vadd.f32 %v6309, %v6780
  %v7005 = vadd.f32 %v6310, %v6781
  %v7006 = vadd.f32 %v6311, %v6782
  %v7007 = vadd.f32 %v6312, %v6783
  %v7008 = vadd.f32 %v6313, %v6784
  %v7009 = vadd.f32 %v6314, %v6785
  %v7010 = vadd.f32 %v6315, %v6786
  %v7011 = vadd.f32 %v6316, %v6787
  %v7012 = vadd.f32 %v6317, %v6788
  %v7013 = vadd.f32 %v6318, %v6789
  %v7014 = vadd.f32 %v6319, %v6790
  %v7015 = vadd.f32 %v6320, %v6791
  %v7016 = vadd.f32 %v6321, %v6792
  %v7017 = vadd.f32 %v6322, %v6793
  %v7018 = vadd.f32 %v6323, %v6794
  %v7019 = vadd.f32 %v6324, %v6795
  %v7020 = vadd.f32 %v6325, %v6796
  %v7021 = vadd.f32 %v6326, %v6797
  %v7022 = vadd.f32 %v6327, %v6798
  %v7023 = vadd.f32 %v6328, %v6799
  %v7024 = vadd.f32 %v6329, %v6800
  %v7025 = vadd.f32 %v6330, %v6801
  %v7026 = vadd.f32 %v6331, %v6802
  %v7027 = vadd.f32 %v6332, %v6803
  %v7028 = vadd.f32 %v6333, %v6804
  %v7029 = vadd.f32 %v6334, %v6805
  %v7030 = vadd.f32 %v6335, %v6806
  %v7031 = vadd.f32 %v6336, %v6807
  %v7032 = vadd.f32 %v6337, %v6808
  %v7033 = vadd.f32 %v6338, %v6809
  %v7034 = vadd.f32 %v6339, %v6810
  %v7035 = vadd.f32 %v6340, %v6811
  %v7036 = vadd.f32 %v6341, %v6812
  %v7037 = vadd.f32 %v6342, %v6813
  %v7038 = vadd.f32 %v6343, %v6814
  %v7039 = vadd.f32 %v6344, %v6815
  %v7040 = vadd.f32 %v6345, %v6816
  %v7041 = vadd.f32 %v6346, %v6817
  %v7042 = vadd.f32 %v6347, %v6818
  %v7043 = vadd.f32 %v6348, %v6819
  %v7044 = vadd.f32 %v6349, %v6820
  %v7045 = vadd.f32 %v6350, %v6821
  %v7046 = vadd.f32 %v6351, %v6822
  %v7047 = vadd.f32 %v6352, %v6823
  %v7048 = vadd.f32 %v6353, %v6824
  %v7049 = vadd.f32 %v6354, %v6825
  %v7050 = vadd.f32 %v6355, %v6826
  %v7051 = vadd.f32 %v6356, %v6827
  %v7052 = vadd.f32 %v6357, %v6828
  %v7053 = vadd.f32 %v6358, %v6829
  %v7054 = vadd.f32 %v6359, %v6830
  %v7055 = vadd.f32 %v6360, %v6831
  %v7056 = vadd.f32 %v6361, %v6832
  %v7057 = vadd.f32 %v6362, %v6833
  %v7058 = vadd.f32 %v6363, %v6834
  %v7059 = vadd.f32 %v6364, %v6835
  %v7060 = vadd.f32 %v6365, %v6836
  %v7061 = vadd.f32 %v6366, %v6837
  %v7062 = vadd.f32 %v6367, %v6838
  %v7063 = vadd.f32 %v6368, %v6839
  %v7064 = vadd.f32 %v6369, %v6840
  %v7065 = vadd.f32 %v6370, %v6841
  %v7066 = vadd.f32 %v6371, %v6842
  %v7067 = vadd.f32 %v6372, %v6843
  %v7068 = vadd.f32 %v6373, %v6844
  %v7069 = vadd.f32 %v6374, %v6845
  %v7070 = vadd.f32 %v6375, %v6846
  %v7071 = vadd.f32 %v6376, %v6847
  %v7072 = vadd.f32 %v6377, %v6848
  %v7073 = vadd.f32 %v6378, %v6849
  %v7074 = vadd.f32 %v6379, %v6850
  %v7075 = vadd.f32 %v6380, %v6851
  %v7076 = vadd.f32 %v6381, %v6852
  %v7077 = vadd.f32 %v6382, %v6853
  %v7078 = vadd.f32 %v6383, %v6854
  %v7079 = vadd.f32 %v6384, %v6855
  %v7080 = vadd.f32 %v6385, %v6856
  %v7081 = vadd.f32 %v6386, %v6857
  %v7082 = vadd.f32 %v6387, %v6858
  %v7083 = vadd.f32 %v6388, %v6859
  %v7084 = vadd.f32 %v6389, %v6860
  %v7085 = vadd.f32 %v6390, %v6861
  %v7086 = vadd.f32 %v6391, %v6862
  %v7087 = vadd.f32 %v6392, %v6863
  %v7088 = vadd.f32 %v6393, %v6864
  %v7089 = vadd.f32 %v6394, %v6865
  %v7090 = vadd.f32 %v6395, %v6866
  %v7091 = vadd.f32 %v6396, %v6867
  %v7092 = vadd.f32 %v6397, %v6868
  %v7093 = vadd.f32 %v6398, %v6869
  %v7094 = vadd.f32 %v6399, %v6870
  %v7095 = vadd.f32 %v6400, %v6871
  %v7096 = vadd.f32 %v6401, %v6872
  %v7097 = vadd.f32 %v6402, %v6873
  %v7098 = vadd.f32 %v6403, %v6874
  %v7099 = vadd.f32 %v6404, %v6875
  %v7100 = vadd.f32 %v6405, %v6876
  %v7101 = vadd.f32 %v6406, %v6877
  %v7102 = vadd.f32 %v6407, %v6878
  %v7103 = vadd.f32 %v6408, %v6879
  %v7104 = vadd.f32 %v6409, %v6880
  %v7105 = vadd.f32 %v6410, %v6881
  %v7106 = vadd.f32 %v6411, %v6882
  %v7107 = vadd.f32 %v6412, %v6883
  %v7108 = vadd.f32 %v6413, %v6884
  %v7109 = vadd.f32 %v6414, %v6885
  %v7110 = vadd.f32 %v6415, %v6886
  %v7111 = vadd.f32 %v6416, %v6887
  %v7112 = vadd.f32 %v6417, %v6888
  %v7113 = vadd.f32 %v6418, %v6889
  %v7114 = vadd.f32 %v6419, %v6890
  %v7115 = vadd.f32 %v6420, %v6891
  %v7116 = vadd.f32 %v6421, %v6892
  %v7117 = vadd.f32 %v6422, %v6893
  %v7118 = vadd.f32 %v6423, %v6894
  %v7119 = vadd.f32 %v6424, %v6895
  %v7120 = vadd.f32 %v6425, %v6896
  %v7121 = vadd.f32 %v6426, %v6897
  %v7122 = vadd.f32 %v6427, %v6898
  %v7123 = vadd.f32 %v6428, %v6899
  %v7124 = vadd.f32 %v6429, %v6900
  %v7125 = vadd.f32 %v6430, %v6901
  %v7126 = vadd.f32 %v6431, %v6902
  %v7127 = vadd.f32 %v6432, %v6903
  %v7128 = vadd.f32 %v6433, %v6904
  %v7129 = vadd.f32 %v6434, %v6905
  %v7130 = vadd.f32 %v6435, %v6906
  %v7131 = vadd.f32 %v6436, %v6907
  %v7132 = vadd.f32 %v6437, %v6908
  %v7133 = vadd.f32 %v6438, %v6909
  %v7134 = vadd.f32 %v6439, %v6910
  %v7135 = vadd.f32 %v6440, %v6911
  %v7136 = vadd.f32 %v6441, %v6912
  %v7137 = vadd.f32 %v6442, %v6913
  %v7138 = vadd.f32 %v6443, %v6914
  %v7139 = vadd.f32 %v6444, %v6915
  %v7140 = vld [vmem:[%s570] sm:$0xfe]
  %v7141 = vld [vmem:[%s570 + $0x8] sm:$0xfe]
  %v7142 = vld [vmem:[%s570 + $0x10] sm:$0xfe]
  %v7143 = vld [vmem:[%s570 + $0x18] sm:$0xfe]
  %v7144 = vld [vmem:[%s570 + $0x60] sm:$0x1f]
  %v7145 = vld [vmem:[%s570 + $0x68] sm:$0x1f]
  %v7146 = vld [vmem:[%s570 + $0x70] sm:$0x1f]
  %v7147 = vld [vmem:[%s570 + $0x78] sm:$0x1f]
  %v7148 = vld [vmem:[%s570 + $0x80] sm:$0xfe]
  %v7149 = vld [vmem:[%s570 + $0x88] sm:$0xfe]
  %v7150 = vld [vmem:[%s570 + $0x90] sm:$0xfe]
  %v7151 = vld [vmem:[%s570 + $0x98] sm:$0xfe]
  %v7152 = vld [vmem:[%s570 + $0xe0] sm:$0x1f]
  %v7153 = vld [vmem:[%s570 + $0xe8] sm:$0x1f]
  %v7154 = vld [vmem:[%s570 + $0xf0] sm:$0x1f]
  %v7155 = vld [vmem:[%s570 + $0xf8] sm:$0x1f]
  %v7156 = vld [vmem:[%s570 + $0x100] sm:$0xfe]
  %v7157 = vld [vmem:[%s570 + $0x108] sm:$0xfe]
  %v7158 = vld [vmem:[%s570 + $0x110] sm:$0xfe]
  %v7159 = vld [vmem:[%s570 + $0x118] sm:$0xfe]
  %v7160 = vld [vmem:[%s570 + $0x160] sm:$0x1f]
  %v7161 = vld [vmem:[%s570 + $0x168] sm:$0x1f]
  %v7162 = vld [vmem:[%s570 + $0x170] sm:$0x1f]
  %v7163 = vld [vmem:[%s570 + $0x178] sm:$0x1f]
  %v7164 = vld [vmem:[%s570 + $0x180] sm:$0xfe]
  %v7165 = vld [vmem:[%s570 + $0x188] sm:$0xfe]
  %v7166 = vld [vmem:[%s570 + $0x190] sm:$0xfe]
  %v7167 = vld [vmem:[%s570 + $0x198] sm:$0xfe]
  %v7168 = vld [vmem:[%s570 + $0x1e0] sm:$0x1f]
  %v7169 = vld [vmem:[%s570 + $0x1e8] sm:$0x1f]
  %v7170 = vld [vmem:[%s570 + $0x1f0] sm:$0x1f]
  %v7171 = vld [vmem:[%s570 + $0x1f8] sm:$0x1f]
  %v7172 = vld [vmem:[%s570 + $0x200] sm:$0xfe]
  %v7173 = vld [vmem:[%s570 + $0x208] sm:$0xfe]
  %v7174 = vld [vmem:[%s570 + $0x210] sm:$0xfe]
  %v7175 = vld [vmem:[%s570 + $0x218] sm:$0xfe]
  %v7176 = vld [vmem:[%s570 + $0x260] sm:$0x1f]
  %v7177 = vld [vmem:[%s570 + $0x268] sm:$0x1f]
  %v7178 = vld [vmem:[%s570 + $0x270] sm:$0x1f]
  %v7179 = vld [vmem:[%s570 + $0x278] sm:$0x1f]
  %v7180 = vld [vmem:[%s570 + $0x280] sm:$0xfe]
  %v7181 = vld [vmem:[%s570 + $0x288] sm:$0xfe]
  %v7182 = vld [vmem:[%s570 + $0x290] sm:$0xfe]
  %v7183 = vld [vmem:[%s570 + $0x298] sm:$0xfe]
  %v7184 = vld [vmem:[%s570 + $0x2e0] sm:$0x1f]
  %v7185 = vld [vmem:[%s570 + $0x2e8] sm:$0x1f]
  %v7186 = vld [vmem:[%s570 + $0x2f0] sm:$0x1f]
  %v7187 = vld [vmem:[%s570 + $0x2f8] sm:$0x1f]
  %v7188 = vld [vmem:[%s570 + $0x300] sm:$0xfe]
  %v7189 = vld [vmem:[%s570 + $0x308] sm:$0xfe]
  %v7190 = vld [vmem:[%s570 + $0x310] sm:$0xfe]
  %v7191 = vld [vmem:[%s570 + $0x318] sm:$0xfe]
  %v7192 = vld [vmem:[%s570 + $0x360] sm:$0x1f]
  %v7193 = vld [vmem:[%s570 + $0x368] sm:$0x1f]
  %v7194 = vld [vmem:[%s570 + $0x370] sm:$0x1f]
  %v7195 = vld [vmem:[%s570 + $0x378] sm:$0x1f]
  %v7196 = vld [vmem:[%s570 + $0x380] sm:$0xfe]
  %v7197 = vld [vmem:[%s570 + $0x388] sm:$0xfe]
  %v7198 = vld [vmem:[%s570 + $0x390] sm:$0xfe]
  %v7199 = vld [vmem:[%s570 + $0x398] sm:$0xfe]
  %v7200 = vld [vmem:[%s570 + $0x3e0] sm:$0x1f]
  %v7201 = vld [vmem:[%s570 + $0x3e8] sm:$0x1f]
  %v7202 = vld [vmem:[%s570 + $0x3f0] sm:$0x1f]
  %v7203 = vld [vmem:[%s570 + $0x3f8] sm:$0x1f]
  %v7204 = vld [vmem:[%s570 + $0x400] sm:$0xfe]
  %v7205 = vld [vmem:[%s570 + $0x408] sm:$0xfe]
  %v7206 = vld [vmem:[%s570 + $0x410] sm:$0xfe]
  %v7207 = vld [vmem:[%s570 + $0x418] sm:$0xfe]
  %v7208 = vld [vmem:[%s570 + $0x460] sm:$0x1f]
  %v7209 = vld [vmem:[%s570 + $0x468] sm:$0x1f]
  %v7210 = vld [vmem:[%s570 + $0x470] sm:$0x1f]
  %v7211 = vld [vmem:[%s570 + $0x478] sm:$0x1f]
  %v7212 = vld [vmem:[%s570 + $0x480] sm:$0xfe]
  %v7213 = vld [vmem:[%s570 + $0x488] sm:$0xfe]
  %v7214 = vld [vmem:[%s570 + $0x490] sm:$0xfe]
  %v7215 = vld [vmem:[%s570 + $0x498] sm:$0xfe]
  %v7216 = vld [vmem:[%s570 + $0x4e0] sm:$0x1f]
  %v7217 = vld [vmem:[%s570 + $0x4e8] sm:$0x1f]
  %v7218 = vld [vmem:[%s570 + $0x4f0] sm:$0x1f]
  %v7219 = vld [vmem:[%s570 + $0x4f8] sm:$0x1f]
  %v7220 = vld [vmem:[%s570 + $0x500] sm:$0xfe]
  %v7221 = vld [vmem:[%s570 + $0x508] sm:$0xfe]
  %v7222 = vld [vmem:[%s570 + $0x510] sm:$0xfe]
  %v7223 = vld [vmem:[%s570 + $0x518] sm:$0xfe]
  %v7224 = vld [vmem:[%s570 + $0x560] sm:$0x1f]
  %v7225 = vld [vmem:[%s570 + $0x568] sm:$0x1f]
  %v7226 = vld [vmem:[%s570 + $0x570] sm:$0x1f]
  %v7227 = vld [vmem:[%s570 + $0x578] sm:$0x1f]
  %v7228 = vld [vmem:[%s570 + $0x580] sm:$0xfe]
  %v7229 = vld [vmem:[%s570 + $0x588] sm:$0xfe]
  %v7230 = vld [vmem:[%s570 + $0x590] sm:$0xfe]
  %v7231 = vld [vmem:[%s570 + $0x598] sm:$0xfe]
  %v7232 = vld [vmem:[%s570 + $0x5e0] sm:$0x1f]
  %v7233 = vld [vmem:[%s570 + $0x5e8] sm:$0x1f]
  %v7234 = vld [vmem:[%s570 + $0x5f0] sm:$0x1f]
  %v7235 = vld [vmem:[%s570 + $0x5f8] sm:$0x1f]
  %v7236 = vld [vmem:[%s570 + $0x600] sm:$0xfe]
  %v7237 = vld [vmem:[%s570 + $0x608] sm:$0xfe]
  %v7238 = vld [vmem:[%s570 + $0x610] sm:$0xfe]
  %v7239 = vld [vmem:[%s570 + $0x618] sm:$0xfe]
  %v7240 = vld [vmem:[%s570 + $0x660] sm:$0x1f]
  %v7241 = vld [vmem:[%s570 + $0x668] sm:$0x1f]
  %v7242 = vld [vmem:[%s570 + $0x670] sm:$0x1f]
  %v7243 = vld [vmem:[%s570 + $0x678] sm:$0x1f]
  %v7244 = vld [vmem:[%s570 + $0x680] sm:$0xfe]
  %v7245 = vld [vmem:[%s570 + $0x688] sm:$0xfe]
  %v7246 = vld [vmem:[%s570 + $0x690] sm:$0xfe]
  %v7247 = vld [vmem:[%s570 + $0x698] sm:$0xfe]
  %v7248 = vld [vmem:[%s570 + $0x6e0] sm:$0x1f]
  %v7249 = vld [vmem:[%s570 + $0x6e8] sm:$0x1f]
  %v7250 = vld [vmem:[%s570 + $0x6f0] sm:$0x1f]
  %v7251 = vld [vmem:[%s570 + $0x6f8] sm:$0x1f]
  %s7252 = scalar_lea.vmem %s6669, 1
  %v7253 = vld [vmem:[%s7252] ss:$4 sm:$0xf]
  %v7255 = vlaneseq
  %v7256 = vshrl.u32 %v7255, 7
  %v7257 = vsub.s32 0, %v7256
  %v7258 = vrot.slane %v7253, %v7257
  %v7259 = vlaneseq
  %v7260 = vshrl.u32 %v7259, 7
  %v7261 = vsub.s32 1, %v7260
  %v7262 = vrot.slane %v7253, %v7261
  %v7263 = vlaneseq
  %v7264 = vshrl.u32 %v7263, 7
  %v7265 = vsub.s32 2, %v7264
  %v7266 = vrot.slane %v7253, %v7265
  %v7267 = vlaneseq
  %v7268 = vshrl.u32 %v7267, 7
  %v7269 = vsub.s32 3, %v7268
  %v7270 = vrot.slane %v7253, %v7269
  %v7275 = vmul.f32 %v7140, %v7258
  %v7276 = vmul.f32 %v7141, %v7262
  %v7277 = vmul.f32 %v7142, %v7266
  %v7278 = vmul.f32 %v7143, %v7270
  %v7279 = vmul.f32 %v6449, %v7258
  %v7280 = vmul.f32 %v6450, %v7262
  %v7281 = vmul.f32 %v6451, %v7266
  %v7282 = vmul.f32 %v6452, %v7270
  %v7283 = vmul.f32 %v6453, %v7258
  %v7284 = vmul.f32 %v6454, %v7262
  %v7285 = vmul.f32 %v6455, %v7266
  %v7286 = vmul.f32 %v6456, %v7270
  %v7287 = vmul.f32 %v7144, %v7258
  %v7288 = vmul.f32 %v7145, %v7262
  %v7289 = vmul.f32 %v7146, %v7266
  %v7290 = vmul.f32 %v7147, %v7270
  %v7291 = vmul.f32 %v7148, %v7258
  %v7292 = vmul.f32 %v7149, %v7262
  %v7293 = vmul.f32 %v7150, %v7266
  %v7294 = vmul.f32 %v7151, %v7270
  %v7295 = vmul.f32 %v6465, %v7258
  %v7296 = vmul.f32 %v6466, %v7262
  %v7297 = vmul.f32 %v6467, %v7266
  %v7298 = vmul.f32 %v6468, %v7270
  %v7299 = vmul.f32 %v6469, %v7258
  %v7300 = vmul.f32 %v6470, %v7262
  %v7301 = vmul.f32 %v6471, %v7266
  %v7302 = vmul.f32 %v6472, %v7270
  %v7303 = vmul.f32 %v7152, %v7258
  %v7304 = vmul.f32 %v7153, %v7262
  %v7305 = vmul.f32 %v7154, %v7266
  %v7306 = vmul.f32 %v7155, %v7270
  %v7307 = vmul.f32 %v7156, %v7258
  %v7308 = vmul.f32 %v7157, %v7262
  %v7309 = vmul.f32 %v7158, %v7266
  %v7310 = vmul.f32 %v7159, %v7270
  %v7311 = vmul.f32 %v6481, %v7258
  %v7312 = vmul.f32 %v6482, %v7262
  %v7313 = vmul.f32 %v6483, %v7266
  %v7314 = vmul.f32 %v6484, %v7270
  %v7315 = vmul.f32 %v6485, %v7258
  %v7316 = vmul.f32 %v6486, %v7262
  %v7317 = vmul.f32 %v6487, %v7266
  %v7318 = vmul.f32 %v6488, %v7270
  %v7319 = vmul.f32 %v7160, %v7258
  %v7320 = vmul.f32 %v7161, %v7262
  %v7321 = vmul.f32 %v7162, %v7266
  %v7322 = vmul.f32 %v7163, %v7270
  %v7323 = vmul.f32 %v7164, %v7258
  %v7324 = vmul.f32 %v7165, %v7262
  %v7325 = vmul.f32 %v7166, %v7266
  %v7326 = vmul.f32 %v7167, %v7270
  %v7327 = vmul.f32 %v6497, %v7258
  %v7328 = vmul.f32 %v6498, %v7262
  %v7329 = vmul.f32 %v6499, %v7266
  %v7330 = vmul.f32 %v6500, %v7270
  %v7331 = vmul.f32 %v6501, %v7258
  %v7332 = vmul.f32 %v6502, %v7262
  %v7333 = vmul.f32 %v6503, %v7266
  %v7334 = vmul.f32 %v6504, %v7270
  %v7335 = vmul.f32 %v7168, %v7258
  %v7336 = vmul.f32 %v7169, %v7262
  %v7337 = vmul.f32 %v7170, %v7266
  %v7338 = vmul.f32 %v7171, %v7270
  %v7339 = vmul.f32 %v7172, %v7258
  %v7340 = vmul.f32 %v7173, %v7262
  %v7341 = vmul.f32 %v7174, %v7266
  %v7342 = vmul.f32 %v7175, %v7270
  %v7343 = vmul.f32 %v6513, %v7258
  %v7344 = vmul.f32 %v6514, %v7262
  %v7345 = vmul.f32 %v6515, %v7266
  %v7346 = vmul.f32 %v6516, %v7270
  %v7347 = vmul.f32 %v6517, %v7258
  %v7348 = vmul.f32 %v6518, %v7262
  %v7349 = vmul.f32 %v6519, %v7266
  %v7350 = vmul.f32 %v6520, %v7270
  %v7351 = vmul.f32 %v7176, %v7258
  %v7352 = vmul.f32 %v7177, %v7262
  %v7353 = vmul.f32 %v7178, %v7266
  %v7354 = vmul.f32 %v7179, %v7270
  %v7355 = vmul.f32 %v7180, %v7258
  %v7356 = vmul.f32 %v7181, %v7262
  %v7357 = vmul.f32 %v7182, %v7266
  %v7358 = vmul.f32 %v7183, %v7270
  %v7359 = vmul.f32 %v6529, %v7258
  %v7360 = vmul.f32 %v6530, %v7262
  %v7361 = vmul.f32 %v6531, %v7266
  %v7362 = vmul.f32 %v6532, %v7270
  %v7363 = vmul.f32 %v6533, %v7258
  %v7364 = vmul.f32 %v6534, %v7262
  %v7365 = vmul.f32 %v6535, %v7266
  %v7366 = vmul.f32 %v6536, %v7270
  %v7367 = vmul.f32 %v7184, %v7258
  %v7368 = vmul.f32 %v7185, %v7262
  %v7369 = vmul.f32 %v7186, %v7266
  %v7370 = vmul.f32 %v7187, %v7270
  %v7371 = vmul.f32 %v7188, %v7258
  %v7372 = vmul.f32 %v7189, %v7262
  %v7373 = vmul.f32 %v7190, %v7266
  %v7374 = vmul.f32 %v7191, %v7270
  %v7375 = vmul.f32 %v6545, %v7258
  %v7376 = vmul.f32 %v6546, %v7262
  %v7377 = vmul.f32 %v6547, %v7266
  %v7378 = vmul.f32 %v6548, %v7270
  %v7379 = vmul.f32 %v6549, %v7258
  %v7380 = vmul.f32 %v6550, %v7262
  %v7381 = vmul.f32 %v6551, %v7266
  %v7382 = vmul.f32 %v6552, %v7270
  %v7383 = vmul.f32 %v7192, %v7258
  %v7384 = vmul.f32 %v7193, %v7262
  %v7385 = vmul.f32 %v7194, %v7266
  %v7386 = vmul.f32 %v7195, %v7270
  %v7387 = vmul.f32 %v7196, %v7258
  %v7388 = vmul.f32 %v7197, %v7262
  %v7389 = vmul.f32 %v7198, %v7266
  %v7390 = vmul.f32 %v7199, %v7270
  %v7391 = vmul.f32 %v6561, %v7258
  %v7392 = vmul.f32 %v6562, %v7262
  %v7393 = vmul.f32 %v6563, %v7266
  %v7394 = vmul.f32 %v6564, %v7270
  %v7395 = vmul.f32 %v6565, %v7258
  %v7396 = vmul.f32 %v6566, %v7262
  %v7397 = vmul.f32 %v6567, %v7266
  %v7398 = vmul.f32 %v6568, %v7270
  %v7399 = vmul.f32 %v7200, %v7258
  %v7400 = vmul.f32 %v7201, %v7262
  %v7401 = vmul.f32 %v7202, %v7266
  %v7402 = vmul.f32 %v7203, %v7270
  %v7403 = vmul.f32 %v7204, %v7258
  %v7404 = vmul.f32 %v7205, %v7262
  %v7405 = vmul.f32 %v7206, %v7266
  %v7406 = vmul.f32 %v7207, %v7270
  %v7407 = vmul.f32 %v6577, %v7258
  %v7408 = vmul.f32 %v6578, %v7262
  %v7409 = vmul.f32 %v6579, %v7266
  %v7410 = vmul.f32 %v6580, %v7270
  %v7411 = vmul.f32 %v6581, %v7258
  %v7412 = vmul.f32 %v6582, %v7262
  %v7413 = vmul.f32 %v6583, %v7266
  %v7414 = vmul.f32 %v6584, %v7270
  %v7415 = vmul.f32 %v7208, %v7258
  %v7416 = vmul.f32 %v7209, %v7262
  %v7417 = vmul.f32 %v7210, %v7266
  %v7418 = vmul.f32 %v7211, %v7270
  %v7419 = vmul.f32 %v7212, %v7258
  %v7420 = vmul.f32 %v7213, %v7262
  %v7421 = vmul.f32 %v7214, %v7266
  %v7422 = vmul.f32 %v7215, %v7270
  %v7423 = vmul.f32 %v6593, %v7258
  %v7424 = vmul.f32 %v6594, %v7262
  %v7425 = vmul.f32 %v6595, %v7266
  %v7426 = vmul.f32 %v6596, %v7270
  %v7427 = vmul.f32 %v6597, %v7258
  %v7428 = vmul.f32 %v6598, %v7262
  %v7429 = vmul.f32 %v6599, %v7266
  %v7430 = vmul.f32 %v6600, %v7270
  %v7431 = vmul.f32 %v7216, %v7258
  %v7432 = vmul.f32 %v7217, %v7262
  %v7433 = vmul.f32 %v7218, %v7266
  %v7434 = vmul.f32 %v7219, %v7270
  %v7435 = vmul.f32 %v7220, %v7258
  %v7436 = vmul.f32 %v7221, %v7262
  %v7437 = vmul.f32 %v7222, %v7266
  %v7438 = vmul.f32 %v7223, %v7270
  %v7439 = vmul.f32 %v6609, %v7258
  %v7440 = vmul.f32 %v6610, %v7262
  %v7441 = vmul.f32 %v6611, %v7266
  %v7442 = vmul.f32 %v6612, %v7270
  %v7443 = vmul.f32 %v6613, %v7258
  %v7444 = vmul.f32 %v6614, %v7262
  %v7445 = vmul.f32 %v6615, %v7266
  %v7446 = vmul.f32 %v6616, %v7270
  %v7447 = vmul.f32 %v7224, %v7258
  %v7448 = vmul.f32 %v7225, %v7262
  %v7449 = vmul.f32 %v7226, %v7266
  %v7450 = vmul.f32 %v7227, %v7270
  %v7451 = vmul.f32 %v7228, %v7258
  %v7452 = vmul.f32 %v7229, %v7262
  %v7453 = vmul.f32 %v7230, %v7266
  %v7454 = vmul.f32 %v7231, %v7270
  %v7455 = vmul.f32 %v6625, %v7258
  %v7456 = vmul.f32 %v6626, %v7262
  %v7457 = vmul.f32 %v6627, %v7266
  %v7458 = vmul.f32 %v6628, %v7270
  %v7459 = vmul.f32 %v6629, %v7258
  %v7460 = vmul.f32 %v6630, %v7262
  %v7461 = vmul.f32 %v6631, %v7266
  %v7462 = vmul.f32 %v6632, %v7270
  %v7463 = vmul.f32 %v7232, %v7258
  %v7464 = vmul.f32 %v7233, %v7262
  %v7465 = vmul.f32 %v7234, %v7266
  %v7466 = vmul.f32 %v7235, %v7270
  %v7467 = vmul.f32 %v7236, %v7258
  %v7468 = vmul.f32 %v7237, %v7262
  %v7469 = vmul.f32 %v7238, %v7266
  %v7470 = vmul.f32 %v7239, %v7270
  %v7471 = vmul.f32 %v6641, %v7258
  %v7472 = vmul.f32 %v6642, %v7262
  %v7473 = vmul.f32 %v6643, %v7266
  %v7474 = vmul.f32 %v6644, %v7270
  %v7475 = vmul.f32 %v6645, %v7258
  %v7476 = vmul.f32 %v6646, %v7262
  %v7477 = vmul.f32 %v6647, %v7266
  %v7478 = vmul.f32 %v6648, %v7270
  %v7479 = vmul.f32 %v7240, %v7258
  %v7480 = vmul.f32 %v7241, %v7262
  %v7481 = vmul.f32 %v7242, %v7266
  %v7482 = vmul.f32 %v7243, %v7270
  %v7483 = vmul.f32 %v7244, %v7258
  %v7484 = vmul.f32 %v7245, %v7262
  %v7485 = vmul.f32 %v7246, %v7266
  %v7486 = vmul.f32 %v7247, %v7270
  %v7487 = vmul.f32 %v6657, %v7258
  %v7488 = vmul.f32 %v6658, %v7262
  %v7489 = vmul.f32 %v6659, %v7266
  %v7490 = vmul.f32 %v6660, %v7270
  %v7491 = vmul.f32 %v6661, %v7258
  %v7492 = vmul.f32 %v6662, %v7262
  %v7493 = vmul.f32 %v6663, %v7266
  %v7494 = vmul.f32 %v6664, %v7270
  %v7495 = vmul.f32 %v7248, %v7258
  %v7496 = vmul.f32 %v7249, %v7262
  %v7497 = vmul.f32 %v7250, %v7266
  %v7498 = vmul.f32 %v7251, %v7270
  %v7723 = vrot.slane %v7275, 1
  %v7724 = vrot.slane %v7279, 1
  %v7725 = vsel %vm4180, %v7723, %v7724
  %v7726 = vrot.slane %v7276, 1
  %v7727 = vrot.slane %v7280, 1
  %v7728 = vsel %vm4180, %v7726, %v7727
  %v7729 = vrot.slane %v7277, 1
  %v7730 = vrot.slane %v7281, 1
  %v7731 = vsel %vm4180, %v7729, %v7730
  %v7732 = vrot.slane %v7278, 1
  %v7733 = vrot.slane %v7282, 1
  %v7734 = vsel %vm4180, %v7732, %v7733
  %v7735 = vrot.slane %v7283, 1
  %v7736 = vsel %vm4180, %v7724, %v7735
  %v7737 = vrot.slane %v7284, 1
  %v7738 = vsel %vm4180, %v7727, %v7737
  %v7739 = vrot.slane %v7285, 1
  %v7740 = vsel %vm4180, %v7730, %v7739
  %v7741 = vrot.slane %v7286, 1
  %v7742 = vsel %vm4180, %v7733, %v7741
  %v7743 = vrot.slane %v7287, 1
  %v7744 = vsel %vm4180, %v7735, %v7743
  %v7745 = vrot.slane %v7288, 1
  %v7746 = vsel %vm4180, %v7737, %v7745
  %v7747 = vrot.slane %v7289, 1
  %v7748 = vsel %vm4180, %v7739, %v7747
  %v7749 = vrot.slane %v7290, 1
  %v7750 = vsel %vm4180, %v7741, %v7749
  %v7751 = vrot.slane %v7291, 1
  %v7752 = vrot.slane %v7295, 1
  %v7753 = vsel %vm4180, %v7751, %v7752
  %v7754 = vrot.slane %v7292, 1
  %v7755 = vrot.slane %v7296, 1
  %v7756 = vsel %vm4180, %v7754, %v7755
  %v7757 = vrot.slane %v7293, 1
  %v7758 = vrot.slane %v7297, 1
  %v7759 = vsel %vm4180, %v7757, %v7758
  %v7760 = vrot.slane %v7294, 1
  %v7761 = vrot.slane %v7298, 1
  %v7762 = vsel %vm4180, %v7760, %v7761
  %v7763 = vrot.slane %v7299, 1
  %v7764 = vsel %vm4180, %v7752, %v7763
  %v7765 = vrot.slane %v7300, 1
  %v7766 = vsel %vm4180, %v7755, %v7765
  %v7767 = vrot.slane %v7301, 1
  %v7768 = vsel %vm4180, %v7758, %v7767
  %v7769 = vrot.slane %v7302, 1
  %v7770 = vsel %vm4180, %v7761, %v7769
  %v7771 = vrot.slane %v7303, 1
  %v7772 = vsel %vm4180, %v7763, %v7771
  %v7773 = vrot.slane %v7304, 1
  %v7774 = vsel %vm4180, %v7765, %v7773
  %v7775 = vrot.slane %v7305, 1
  %v7776 = vsel %vm4180, %v7767, %v7775
  %v7777 = vrot.slane %v7306, 1
  %v7778 = vsel %vm4180, %v7769, %v7777
  %v7779 = vrot.slane %v7307, 1
  %v7780 = vrot.slane %v7311, 1
  %v7781 = vsel %vm4180, %v7779, %v7780
  %v7782 = vrot.slane %v7308, 1
  %v7783 = vrot.slane %v7312, 1
  %v7784 = vsel %vm4180, %v7782, %v7783
  %v7785 = vrot.slane %v7309, 1
  %v7786 = vrot.slane %v7313, 1
  %v7787 = vsel %vm4180, %v7785, %v7786
  %v7788 = vrot.slane %v7310, 1
  %v7789 = vrot.slane %v7314, 1
  %v7790 = vsel %vm4180, %v7788, %v7789
  %v7791 = vrot.slane %v7315, 1
  %v7792 = vsel %vm4180, %v7780, %v7791
  %v7793 = vrot.slane %v7316, 1
  %v7794 = vsel %vm4180, %v7783, %v7793
  %v7795 = vrot.slane %v7317, 1
  %v7796 = vsel %vm4180, %v7786, %v7795
  %v7797 = vrot.slane %v7318, 1
  %v7798 = vsel %vm4180, %v7789, %v7797
  %v7799 = vrot.slane %v7319, 1
  %v7800 = vsel %vm4180, %v7791, %v7799
  %v7801 = vrot.slane %v7320, 1
  %v7802 = vsel %vm4180, %v7793, %v7801
  %v7803 = vrot.slane %v7321, 1
  %v7804 = vsel %vm4180, %v7795, %v7803
  %v7805 = vrot.slane %v7322, 1
  %v7806 = vsel %vm4180, %v7797, %v7805
  %v7807 = vrot.slane %v7323, 1
  %v7808 = vrot.slane %v7327, 1
  %v7809 = vsel %vm4180, %v7807, %v7808
  %v7810 = vrot.slane %v7324, 1
  %v7811 = vrot.slane %v7328, 1
  %v7812 = vsel %vm4180, %v7810, %v7811
  %v7813 = vrot.slane %v7325, 1
  %v7814 = vrot.slane %v7329, 1
  %v7815 = vsel %vm4180, %v7813, %v7814
  %v7816 = vrot.slane %v7326, 1
  %v7817 = vrot.slane %v7330, 1
  %v7818 = vsel %vm4180, %v7816, %v7817
  %v7819 = vrot.slane %v7331, 1
  %v7820 = vsel %vm4180, %v7808, %v7819
  %v7821 = vrot.slane %v7332, 1
  %v7822 = vsel %vm4180, %v7811, %v7821
  %v7823 = vrot.slane %v7333, 1
  %v7824 = vsel %vm4180, %v7814, %v7823
  %v7825 = vrot.slane %v7334, 1
  %v7826 = vsel %vm4180, %v7817, %v7825
  %v7827 = vrot.slane %v7335, 1
  %v7828 = vsel %vm4180, %v7819, %v7827
  %v7829 = vrot.slane %v7336, 1
  %v7830 = vsel %vm4180, %v7821, %v7829
  %v7831 = vrot.slane %v7337, 1
  %v7832 = vsel %vm4180, %v7823, %v7831
  %v7833 = vrot.slane %v7338, 1
  %v7834 = vsel %vm4180, %v7825, %v7833
  %v7835 = vrot.slane %v7339, 1
  %v7836 = vrot.slane %v7343, 1
  %v7837 = vsel %vm4180, %v7835, %v7836
  %v7838 = vrot.slane %v7340, 1
  %v7839 = vrot.slane %v7344, 1
  %v7840 = vsel %vm4180, %v7838, %v7839
  %v7841 = vrot.slane %v7341, 1
  %v7842 = vrot.slane %v7345, 1
  %v7843 = vsel %vm4180, %v7841, %v7842
  %v7844 = vrot.slane %v7342, 1
  %v7845 = vrot.slane %v7346, 1
  %v7846 = vsel %vm4180, %v7844, %v7845
  %v7847 = vrot.slane %v7347, 1
  %v7848 = vsel %vm4180, %v7836, %v7847
  %v7849 = vrot.slane %v7348, 1
  %v7850 = vsel %vm4180, %v7839, %v7849
  %v7851 = vrot.slane %v7349, 1
  %v7852 = vsel %vm4180, %v7842, %v7851
  %v7853 = vrot.slane %v7350, 1
  %v7854 = vsel %vm4180, %v7845, %v7853
  %v7855 = vrot.slane %v7351, 1
  %v7856 = vsel %vm4180, %v7847, %v7855
  %v7857 = vrot.slane %v7352, 1
  %v7858 = vsel %vm4180, %v7849, %v7857
  %v7859 = vrot.slane %v7353, 1
  %v7860 = vsel %vm4180, %v7851, %v7859
  %v7861 = vrot.slane %v7354, 1
  %v7862 = vsel %vm4180, %v7853, %v7861
  %v7863 = vrot.slane %v7355, 1
  %v7864 = vrot.slane %v7359, 1
  %v7865 = vsel %vm4180, %v7863, %v7864
  %v7866 = vrot.slane %v7356, 1
  %v7867 = vrot.slane %v7360, 1
  %v7868 = vsel %vm4180, %v7866, %v7867
  %v7869 = vrot.slane %v7357, 1
  %v7870 = vrot.slane %v7361, 1
  %v7871 = vsel %vm4180, %v7869, %v7870
  %v7872 = vrot.slane %v7358, 1
  %v7873 = vrot.slane %v7362, 1
  %v7874 = vsel %vm4180, %v7872, %v7873
  %v7875 = vrot.slane %v7363, 1
  %v7876 = vsel %vm4180, %v7864, %v7875
  %v7877 = vrot.slane %v7364, 1
  %v7878 = vsel %vm4180, %v7867, %v7877
  %v7879 = vrot.slane %v7365, 1
  %v7880 = vsel %vm4180, %v7870, %v7879
  %v7881 = vrot.slane %v7366, 1
  %v7882 = vsel %vm4180, %v7873, %v7881
  %v7883 = vrot.slane %v7367, 1
  %v7884 = vsel %vm4180, %v7875, %v7883
  %v7885 = vrot.slane %v7368, 1
  %v7886 = vsel %vm4180, %v7877, %v7885
  %v7887 = vrot.slane %v7369, 1
  %v7888 = vsel %vm4180, %v7879, %v7887
  %v7889 = vrot.slane %v7370, 1
  %v7890 = vsel %vm4180, %v7881, %v7889
  %v7891 = vrot.slane %v7371, 1
  %v7892 = vrot.slane %v7375, 1
  %v7893 = vsel %vm4180, %v7891, %v7892
  %v7894 = vrot.slane %v7372, 1
  %v7895 = vrot.slane %v7376, 1
  %v7896 = vsel %vm4180, %v7894, %v7895
  %v7897 = vrot.slane %v7373, 1
  %v7898 = vrot.slane %v7377, 1
  %v7899 = vsel %vm4180, %v7897, %v7898
  %v7900 = vrot.slane %v7374, 1
  %v7901 = vrot.slane %v7378, 1
  %v7902 = vsel %vm4180, %v7900, %v7901
  %v7903 = vrot.slane %v7379, 1
  %v7904 = vsel %vm4180, %v7892, %v7903
  %v7905 = vrot.slane %v7380, 1
  %v7906 = vsel %vm4180, %v7895, %v7905
  %v7907 = vrot.slane %v7381, 1
  %v7908 = vsel %vm4180, %v7898, %v7907
  %v7909 = vrot.slane %v7382, 1
  %v7910 = vsel %vm4180, %v7901, %v7909
  %v7911 = vrot.slane %v7383, 1
  %v7912 = vsel %vm4180, %v7903, %v7911
  %v7913 = vrot.slane %v7384, 1
  %v7914 = vsel %vm4180, %v7905, %v7913
  %v7915 = vrot.slane %v7385, 1
  %v7916 = vsel %vm4180, %v7907, %v7915
  %v7917 = vrot.slane %v7386, 1
  %v7918 = vsel %vm4180, %v7909, %v7917
  %v7919 = vrot.slane %v7387, 1
  %v7920 = vrot.slane %v7391, 1
  %v7921 = vsel %vm4180, %v7919, %v7920
  %v7922 = vrot.slane %v7388, 1
  %v7923 = vrot.slane %v7392, 1
  %v7924 = vsel %vm4180, %v7922, %v7923
  %v7925 = vrot.slane %v7389, 1
  %v7926 = vrot.slane %v7393, 1
  %v7927 = vsel %vm4180, %v7925, %v7926
  %v7928 = vrot.slane %v7390, 1
  %v7929 = vrot.slane %v7394, 1
  %v7930 = vsel %vm4180, %v7928, %v7929
  %v7931 = vrot.slane %v7395, 1
  %v7932 = vsel %vm4180, %v7920, %v7931
  %v7933 = vrot.slane %v7396, 1
  %v7934 = vsel %vm4180, %v7923, %v7933
  %v7935 = vrot.slane %v7397, 1
  %v7936 = vsel %vm4180, %v7926, %v7935
  %v7937 = vrot.slane %v7398, 1
  %v7938 = vsel %vm4180, %v7929, %v7937
  %v7939 = vrot.slane %v7399, 1
  %v7940 = vsel %vm4180, %v7931, %v7939
  %v7941 = vrot.slane %v7400, 1
  %v7942 = vsel %vm4180, %v7933, %v7941
  %v7943 = vrot.slane %v7401, 1
  %v7944 = vsel %vm4180, %v7935, %v7943
  %v7945 = vrot.slane %v7402, 1
  %v7946 = vsel %vm4180, %v7937, %v7945
  %v7947 = vrot.slane %v7403, 1
  %v7948 = vrot.slane %v7407, 1
  %v7949 = vsel %vm4180, %v7947, %v7948
  %v7950 = vrot.slane %v7404, 1
  %v7951 = vrot.slane %v7408, 1
  %v7952 = vsel %vm4180, %v7950, %v7951
  %v7953 = vrot.slane %v7405, 1
  %v7954 = vrot.slane %v7409, 1
  %v7955 = vsel %vm4180, %v7953, %v7954
  %v7956 = vrot.slane %v7406, 1
  %v7957 = vrot.slane %v7410, 1
  %v7958 = vsel %vm4180, %v7956, %v7957
  %v7959 = vrot.slane %v7411, 1
  %v7960 = vsel %vm4180, %v7948, %v7959
  %v7961 = vrot.slane %v7412, 1
  %v7962 = vsel %vm4180, %v7951, %v7961
  %v7963 = vrot.slane %v7413, 1
  %v7964 = vsel %vm4180, %v7954, %v7963
  %v7965 = vrot.slane %v7414, 1
  %v7966 = vsel %vm4180, %v7957, %v7965
  %v7967 = vrot.slane %v7415, 1
  %v7968 = vsel %vm4180, %v7959, %v7967
  %v7969 = vrot.slane %v7416, 1
  %v7970 = vsel %vm4180, %v7961, %v7969
  %v7971 = vrot.slane %v7417, 1
  %v7972 = vsel %vm4180, %v7963, %v7971
  %v7973 = vrot.slane %v7418, 1
  %v7974 = vsel %vm4180, %v7965, %v7973
  %v7975 = vrot.slane %v7419, 1
  %v7976 = vrot.slane %v7423, 1
  %v7977 = vsel %vm4180, %v7975, %v7976
  %v7978 = vrot.slane %v7420, 1
  %v7979 = vrot.slane %v7424, 1
  %v7980 = vsel %vm4180, %v7978, %v7979
  %v7981 = vrot.slane %v7421, 1
  %v7982 = vrot.slane %v7425, 1
  %v7983 = vsel %vm4180, %v7981, %v7982
  %v7984 = vrot.slane %v7422, 1
  %v7985 = vrot.slane %v7426, 1
  %v7986 = vsel %vm4180, %v7984, %v7985
  %v7987 = vrot.slane %v7427, 1
  %v7988 = vsel %vm4180, %v7976, %v7987
  %v7989 = vrot.slane %v7428, 1
  %v7990 = vsel %vm4180, %v7979, %v7989
  %v7991 = vrot.slane %v7429, 1
  %v7992 = vsel %vm4180, %v7982, %v7991
  %v7993 = vrot.slane %v7430, 1
  %v7994 = vsel %vm4180, %v7985, %v7993
  %v7995 = vrot.slane %v7431, 1
  %v7996 = vsel %vm4180, %v7987, %v7995
  %v7997 = vrot.slane %v7432, 1
  %v7998 = vsel %vm4180, %v7989, %v7997
  %v7999 = vrot.slane %v7433, 1
  %v8000 = vsel %vm4180, %v7991, %v7999
  %v8001 = vrot.slane %v7434, 1
  %v8002 = vsel %vm4180, %v7993, %v8001
  %v8003 = vrot.slane %v7435, 1
  %v8004 = vrot.slane %v7439, 1
  %v8005 = vsel %vm4180, %v8003, %v8004
  %v8006 = vrot.slane %v7436, 1
  %v8007 = vrot.slane %v7440, 1
  %v8008 = vsel %vm4180, %v8006, %v8007
  %v8009 = vrot.slane %v7437, 1
  %v8010 = vrot.slane %v7441, 1
  %v8011 = vsel %vm4180, %v8009, %v8010
  %v8012 = vrot.slane %v7438, 1
  %v8013 = vrot.slane %v7442, 1
  %v8014 = vsel %vm4180, %v8012, %v8013
  %v8015 = vrot.slane %v7443, 1
  %v8016 = vsel %vm4180, %v8004, %v8015
  %v8017 = vrot.slane %v7444, 1
  %v8018 = vsel %vm4180, %v8007, %v8017
  %v8019 = vrot.slane %v7445, 1
  %v8020 = vsel %vm4180, %v8010, %v8019
  %v8021 = vrot.slane %v7446, 1
  %v8022 = vsel %vm4180, %v8013, %v8021
  %v8023 = vrot.slane %v7447, 1
  %v8024 = vsel %vm4180, %v8015, %v8023
  %v8025 = vrot.slane %v7448, 1
  %v8026 = vsel %vm4180, %v8017, %v8025
  %v8027 = vrot.slane %v7449, 1
  %v8028 = vsel %vm4180, %v8019, %v8027
  %v8029 = vrot.slane %v7450, 1
  %v8030 = vsel %vm4180, %v8021, %v8029
  %v8031 = vrot.slane %v7451, 1
  %v8032 = vrot.slane %v7455, 1
  %v8033 = vsel %vm4180, %v8031, %v8032
  %v8034 = vrot.slane %v7452, 1
  %v8035 = vrot.slane %v7456, 1
  %v8036 = vsel %vm4180, %v8034, %v8035
  %v8037 = vrot.slane %v7453, 1
  %v8038 = vrot.slane %v7457, 1
  %v8039 = vsel %vm4180, %v8037, %v8038
  %v8040 = vrot.slane %v7454, 1
  %v8041 = vrot.slane %v7458, 1
  %v8042 = vsel %vm4180, %v8040, %v8041
  %v8043 = vrot.slane %v7459, 1
  %v8044 = vsel %vm4180, %v8032, %v8043
  %v8045 = vrot.slane %v7460, 1
  %v8046 = vsel %vm4180, %v8035, %v8045
  %v8047 = vrot.slane %v7461, 1
  %v8048 = vsel %vm4180, %v8038, %v8047
  %v8049 = vrot.slane %v7462, 1
  %v8050 = vsel %vm4180, %v8041, %v8049
  %v8051 = vrot.slane %v7463, 1
  %v8052 = vsel %vm4180, %v8043, %v8051
  %v8053 = vrot.slane %v7464, 1
  %v8054 = vsel %vm4180, %v8045, %v8053
  %v8055 = vrot.slane %v7465, 1
  %v8056 = vsel %vm4180, %v8047, %v8055
  %v8057 = vrot.slane %v7466, 1
  %v8058 = vsel %vm4180, %v8049, %v8057
  %v8059 = vrot.slane %v7467, 1
  %v8060 = vrot.slane %v7471, 1
  %v8061 = vsel %vm4180, %v8059, %v8060
  %v8062 = vrot.slane %v7468, 1
  %v8063 = vrot.slane %v7472, 1
  %v8064 = vsel %vm4180, %v8062, %v8063
  %v8065 = vrot.slane %v7469, 1
  %v8066 = vrot.slane %v7473, 1
  %v8067 = vsel %vm4180, %v8065, %v8066
  %v8068 = vrot.slane %v7470, 1
  %v8069 = vrot.slane %v7474, 1
  %v8070 = vsel %vm4180, %v8068, %v8069
  %v8071 = vrot.slane %v7475, 1
  %v8072 = vsel %vm4180, %v8060, %v8071
  %v8073 = vrot.slane %v7476, 1
  %v8074 = vsel %vm4180, %v8063, %v8073
  %v8075 = vrot.slane %v7477, 1
  %v8076 = vsel %vm4180, %v8066, %v8075
  %v8077 = vrot.slane %v7478, 1
  %v8078 = vsel %vm4180, %v8069, %v8077
  %v8079 = vrot.slane %v7479, 1
  %v8080 = vsel %vm4180, %v8071, %v8079
  %v8081 = vrot.slane %v7480, 1
  %v8082 = vsel %vm4180, %v8073, %v8081
  %v8083 = vrot.slane %v7481, 1
  %v8084 = vsel %vm4180, %v8075, %v8083
  %v8085 = vrot.slane %v7482, 1
  %v8086 = vsel %vm4180, %v8077, %v8085
  %v8087 = vrot.slane %v7483, 1
  %v8088 = vrot.slane %v7487, 1
  %v8089 = vsel %vm4180, %v8087, %v8088
  %v8090 = vrot.slane %v7484, 1
  %v8091 = vrot.slane %v7488, 1
  %v8092 = vsel %vm4180, %v8090, %v8091
  %v8093 = vrot.slane %v7485, 1
  %v8094 = vrot.slane %v7489, 1
  %v8095 = vsel %vm4180, %v8093, %v8094
  %v8096 = vrot.slane %v7486, 1
  %v8097 = vrot.slane %v7490, 1
  %v8098 = vsel %vm4180, %v8096, %v8097
  %v8099 = vrot.slane %v7491, 1
  %v8100 = vsel %vm4180, %v8088, %v8099
  %v8101 = vrot.slane %v7492, 1
  %v8102 = vsel %vm4180, %v8091, %v8101
  %v8103 = vrot.slane %v7493, 1
  %v8104 = vsel %vm4180, %v8094, %v8103
  %v8105 = vrot.slane %v7494, 1
  %v8106 = vsel %vm4180, %v8097, %v8105
  %v8107 = vrot.slane %v7495, 1
  %v8108 = vsel %vm4180, %v8099, %v8107
  %v8109 = vrot.slane %v7496, 1
  %v8110 = vsel %vm4180, %v8101, %v8109
  %v8111 = vrot.slane %v7497, 1
  %v8112 = vsel %vm4180, %v8103, %v8111
  %v8113 = vrot.slane %v7498, 1
  %v8114 = vsel %vm4180, %v8105, %v8113
  %v8339 = vadd.f32 %v6916, %v7725
  %v8340 = vadd.f32 %v6917, %v7728
  %v8341 = vadd.f32 %v6918, %v7731
  %v8342 = vadd.f32 %v6919, %v7734
  %v8343 = vadd.f32 %v6920, %v7736
  %v8344 = vadd.f32 %v6921, %v7738
  %v8345 = vadd.f32 %v6922, %v7740
  %v8346 = vadd.f32 %v6923, %v7742
  %v8347 = vadd.f32 %v6924, %v7744
  %v8348 = vadd.f32 %v6925, %v7746
  %v8349 = vadd.f32 %v6926, %v7748
  %v8350 = vadd.f32 %v6927, %v7750
  %v8351 = vadd.f32 %v6928, %v7743
  %v8352 = vadd.f32 %v6929, %v7745
  %v8353 = vadd.f32 %v6930, %v7747
  %v8354 = vadd.f32 %v6931, %v7749
  %v8355 = vadd.f32 %v6932, %v7753
  %v8356 = vadd.f32 %v6933, %v7756
  %v8357 = vadd.f32 %v6934, %v7759
  %v8358 = vadd.f32 %v6935, %v7762
  %v8359 = vadd.f32 %v6936, %v7764
  %v8360 = vadd.f32 %v6937, %v7766
  %v8361 = vadd.f32 %v6938, %v7768
  %v8362 = vadd.f32 %v6939, %v7770
  %v8363 = vadd.f32 %v6940, %v7772
  %v8364 = vadd.f32 %v6941, %v7774
  %v8365 = vadd.f32 %v6942, %v7776
  %v8366 = vadd.f32 %v6943, %v7778
  %v8367 = vadd.f32 %v6944, %v7771
  %v8368 = vadd.f32 %v6945, %v7773
  %v8369 = vadd.f32 %v6946, %v7775
  %v8370 = vadd.f32 %v6947, %v7777
  %v8371 = vadd.f32 %v6948, %v7781
  %v8372 = vadd.f32 %v6949, %v7784
  %v8373 = vadd.f32 %v6950, %v7787
  %v8374 = vadd.f32 %v6951, %v7790
  %v8375 = vadd.f32 %v6952, %v7792
  %v8376 = vadd.f32 %v6953, %v7794
  %v8377 = vadd.f32 %v6954, %v7796
  %v8378 = vadd.f32 %v6955, %v7798
  %v8379 = vadd.f32 %v6956, %v7800
  %v8380 = vadd.f32 %v6957, %v7802
  %v8381 = vadd.f32 %v6958, %v7804
  %v8382 = vadd.f32 %v6959, %v7806
  %v8383 = vadd.f32 %v6960, %v7799
  %v8384 = vadd.f32 %v6961, %v7801
  %v8385 = vadd.f32 %v6962, %v7803
  %v8386 = vadd.f32 %v6963, %v7805
  %v8387 = vadd.f32 %v6964, %v7809
  %v8388 = vadd.f32 %v6965, %v7812
  %v8389 = vadd.f32 %v6966, %v7815
  %v8390 = vadd.f32 %v6967, %v7818
  %v8391 = vadd.f32 %v6968, %v7820
  %v8392 = vadd.f32 %v6969, %v7822
  %v8393 = vadd.f32 %v6970, %v7824
  %v8394 = vadd.f32 %v6971, %v7826
  %v8395 = vadd.f32 %v6972, %v7828
  %v8396 = vadd.f32 %v6973, %v7830
  %v8397 = vadd.f32 %v6974, %v7832
  %v8398 = vadd.f32 %v6975, %v7834
  %v8399 = vadd.f32 %v6976, %v7827
  %v8400 = vadd.f32 %v6977, %v7829
  %v8401 = vadd.f32 %v6978, %v7831
  %v8402 = vadd.f32 %v6979, %v7833
  %v8403 = vadd.f32 %v6980, %v7837
  %v8404 = vadd.f32 %v6981, %v7840
  %v8405 = vadd.f32 %v6982, %v7843
  %v8406 = vadd.f32 %v6983, %v7846
  %v8407 = vadd.f32 %v6984, %v7848
  %v8408 = vadd.f32 %v6985, %v7850
  %v8409 = vadd.f32 %v6986, %v7852
  %v8410 = vadd.f32 %v6987, %v7854
  %v8411 = vadd.f32 %v6988, %v7856
  %v8412 = vadd.f32 %v6989, %v7858
  %v8413 = vadd.f32 %v6990, %v7860
  %v8414 = vadd.f32 %v6991, %v7862
  %v8415 = vadd.f32 %v6992, %v7855
  %v8416 = vadd.f32 %v6993, %v7857
  %v8417 = vadd.f32 %v6994, %v7859
  %v8418 = vadd.f32 %v6995, %v7861
  %v8419 = vadd.f32 %v6996, %v7865
  %v8420 = vadd.f32 %v6997, %v7868
  %v8421 = vadd.f32 %v6998, %v7871
  %v8422 = vadd.f32 %v6999, %v7874
  %v8423 = vadd.f32 %v7000, %v7876
  %v8424 = vadd.f32 %v7001, %v7878
  %v8425 = vadd.f32 %v7002, %v7880
  %v8426 = vadd.f32 %v7003, %v7882
  %v8427 = vadd.f32 %v7004, %v7884
  %v8428 = vadd.f32 %v7005, %v7886
  %v8429 = vadd.f32 %v7006, %v7888
  %v8430 = vadd.f32 %v7007, %v7890
  %v8431 = vadd.f32 %v7008, %v7883
  %v8432 = vadd.f32 %v7009, %v7885
  %v8433 = vadd.f32 %v7010, %v7887
  %v8434 = vadd.f32 %v7011, %v7889
  %v8435 = vadd.f32 %v7012, %v7893
  %v8436 = vadd.f32 %v7013, %v7896
  %v8437 = vadd.f32 %v7014, %v7899
  %v8438 = vadd.f32 %v7015, %v7902
  %v8439 = vadd.f32 %v7016, %v7904
  %v8440 = vadd.f32 %v7017, %v7906
  %v8441 = vadd.f32 %v7018, %v7908
  %v8442 = vadd.f32 %v7019, %v7910
  %v8443 = vadd.f32 %v7020, %v7912
  %v8444 = vadd.f32 %v7021, %v7914
  %v8445 = vadd.f32 %v7022, %v7916
  %v8446 = vadd.f32 %v7023, %v7918
  %v8447 = vadd.f32 %v7024, %v7911
  %v8448 = vadd.f32 %v7025, %v7913
  %v8449 = vadd.f32 %v7026, %v7915
  %v8450 = vadd.f32 %v7027, %v7917
  %v8451 = vadd.f32 %v7028, %v7921
  %v8452 = vadd.f32 %v7029, %v7924
  %v8453 = vadd.f32 %v7030, %v7927
  %v8454 = vadd.f32 %v7031, %v7930
  %v8455 = vadd.f32 %v7032, %v7932
  %v8456 = vadd.f32 %v7033, %v7934
  %v8457 = vadd.f32 %v7034, %v7936
  %v8458 = vadd.f32 %v7035, %v7938
  %v8459 = vadd.f32 %v7036, %v7940
  %v8460 = vadd.f32 %v7037, %v7942
  %v8461 = vadd.f32 %v7038, %v7944
  %v8462 = vadd.f32 %v7039, %v7946
  %v8463 = vadd.f32 %v7040, %v7939
  %v8464 = vadd.f32 %v7041, %v7941
  %v8465 = vadd.f32 %v7042, %v7943
  %v8466 = vadd.f32 %v7043, %v7945
  %v8467 = vadd.f32 %v7044, %v7949
  %v8468 = vadd.f32 %v7045, %v7952
  %v8469 = vadd.f32 %v7046, %v7955
  %v8470 = vadd.f32 %v7047, %v7958
  %v8471 = vadd.f32 %v7048, %v7960
  %v8472 = vadd.f32 %v7049, %v7962
  %v8473 = vadd.f32 %v7050, %v7964
  %v8474 = vadd.f32 %v7051, %v7966
  %v8475 = vadd.f32 %v7052, %v7968
  %v8476 = vadd.f32 %v7053, %v7970
  %v8477 = vadd.f32 %v7054, %v7972
  %v8478 = vadd.f32 %v7055, %v7974
  %v8479 = vadd.f32 %v7056, %v7967
  %v8480 = vadd.f32 %v7057, %v7969
  %v8481 = vadd.f32 %v7058, %v7971
  %v8482 = vadd.f32 %v7059, %v7973
  %v8483 = vadd.f32 %v7060, %v7977
  %v8484 = vadd.f32 %v7061, %v7980
  %v8485 = vadd.f32 %v7062, %v7983
  %v8486 = vadd.f32 %v7063, %v7986
  %v8487 = vadd.f32 %v7064, %v7988
  %v8488 = vadd.f32 %v7065, %v7990
  %v8489 = vadd.f32 %v7066, %v7992
  %v8490 = vadd.f32 %v7067, %v7994
  %v8491 = vadd.f32 %v7068, %v7996
  %v8492 = vadd.f32 %v7069, %v7998
  %v8493 = vadd.f32 %v7070, %v8000
  %v8494 = vadd.f32 %v7071, %v8002
  %v8495 = vadd.f32 %v7072, %v7995
  %v8496 = vadd.f32 %v7073, %v7997
  %v8497 = vadd.f32 %v7074, %v7999
  %v8498 = vadd.f32 %v7075, %v8001
  %v8499 = vadd.f32 %v7076, %v8005
  %v8500 = vadd.f32 %v7077, %v8008
  %v8501 = vadd.f32 %v7078, %v8011
  %v8502 = vadd.f32 %v7079, %v8014
  %v8503 = vadd.f32 %v7080, %v8016
  %v8504 = vadd.f32 %v7081, %v8018
  %v8505 = vadd.f32 %v7082, %v8020
  %v8506 = vadd.f32 %v7083, %v8022
  %v8507 = vadd.f32 %v7084, %v8024
  %v8508 = vadd.f32 %v7085, %v8026
  %v8509 = vadd.f32 %v7086, %v8028
  %v8510 = vadd.f32 %v7087, %v8030
  %v8511 = vadd.f32 %v7088, %v8023
  %v8512 = vadd.f32 %v7089, %v8025
  %v8513 = vadd.f32 %v7090, %v8027
  %v8514 = vadd.f32 %v7091, %v8029
  %v8515 = vadd.f32 %v7092, %v8033
  %v8516 = vadd.f32 %v7093, %v8036
  %v8517 = vadd.f32 %v7094, %v8039
  %v8518 = vadd.f32 %v7095, %v8042
  %v8519 = vadd.f32 %v7096, %v8044
  %v8520 = vadd.f32 %v7097, %v8046
  %v8521 = vadd.f32 %v7098, %v8048
  %v8522 = vadd.f32 %v7099, %v8050
  %v8523 = vadd.f32 %v7100, %v8052
  %v8524 = vadd.f32 %v7101, %v8054
  %v8525 = vadd.f32 %v7102, %v8056
  %v8526 = vadd.f32 %v7103, %v8058
  %v8527 = vadd.f32 %v7104, %v8051
  %v8528 = vadd.f32 %v7105, %v8053
  %v8529 = vadd.f32 %v7106, %v8055
  %v8530 = vadd.f32 %v7107, %v8057
  %v8531 = vadd.f32 %v7108, %v8061
  %v8532 = vadd.f32 %v7109, %v8064
  %v8533 = vadd.f32 %v7110, %v8067
  %v8534 = vadd.f32 %v7111, %v8070
  %v8535 = vadd.f32 %v7112, %v8072
  %v8536 = vadd.f32 %v7113, %v8074
  %v8537 = vadd.f32 %v7114, %v8076
  %v8538 = vadd.f32 %v7115, %v8078
  %v8539 = vadd.f32 %v7116, %v8080
  %v8540 = vadd.f32 %v7117, %v8082
  %v8541 = vadd.f32 %v7118, %v8084
  %v8542 = vadd.f32 %v7119, %v8086
  %v8543 = vadd.f32 %v7120, %v8079
  %v8544 = vadd.f32 %v7121, %v8081
  %v8545 = vadd.f32 %v7122, %v8083
  %v8546 = vadd.f32 %v7123, %v8085
  %v8547 = vadd.f32 %v7124, %v8089
  %v8548 = vadd.f32 %v7125, %v8092
  %v8549 = vadd.f32 %v7126, %v8095
  %v8550 = vadd.f32 %v7127, %v8098
  %v8551 = vadd.f32 %v7128, %v8100
  %v8552 = vadd.f32 %v7129, %v8102
  %v8553 = vadd.f32 %v7130, %v8104
  %v8554 = vadd.f32 %v7131, %v8106
  %v8555 = vadd.f32 %v7132, %v8108
  %v8556 = vadd.f32 %v7133, %v8110
  %v8557 = vadd.f32 %v7134, %v8112
  %v8558 = vadd.f32 %v7135, %v8114
  %v8559 = vadd.f32 %v7136, %v8107
  %v8560 = vadd.f32 %v7137, %v8109
  %v8561 = vadd.f32 %v7138, %v8111
  %v8562 = vadd.f32 %v7139, %v8113
  %v8563 = vld [vmem:[%s570] sm:$0xfc]
  %v8564 = vld [vmem:[%s570 + $0x8] sm:$0xfc]
  %v8565 = vld [vmem:[%s570 + $0x10] sm:$0xfc]
  %v8566 = vld [vmem:[%s570 + $0x18] sm:$0xfc]
  %v8567 = vld [vmem:[%s570 + $0x60] sm:$0x3f]
  %v8568 = vld [vmem:[%s570 + $0x68] sm:$0x3f]
  %v8569 = vld [vmem:[%s570 + $0x70] sm:$0x3f]
  %v8570 = vld [vmem:[%s570 + $0x78] sm:$0x3f]
  %v8571 = vld [vmem:[%s570 + $0x80] sm:$0xfc]
  %v8572 = vld [vmem:[%s570 + $0x88] sm:$0xfc]
  %v8573 = vld [vmem:[%s570 + $0x90] sm:$0xfc]
  %v8574 = vld [vmem:[%s570 + $0x98] sm:$0xfc]
  %v8575 = vld [vmem:[%s570 + $0xe0] sm:$0x3f]
  %v8576 = vld [vmem:[%s570 + $0xe8] sm:$0x3f]
  %v8577 = vld [vmem:[%s570 + $0xf0] sm:$0x3f]
  %v8578 = vld [vmem:[%s570 + $0xf8] sm:$0x3f]
  %v8579 = vld [vmem:[%s570 + $0x100] sm:$0xfc]
  %v8580 = vld [vmem:[%s570 + $0x108] sm:$0xfc]
  %v8581 = vld [vmem:[%s570 + $0x110] sm:$0xfc]
  %v8582 = vld [vmem:[%s570 + $0x118] sm:$0xfc]
  %v8583 = vld [vmem:[%s570 + $0x160] sm:$0x3f]
  %v8584 = vld [vmem:[%s570 + $0x168] sm:$0x3f]
  %v8585 = vld [vmem:[%s570 + $0x170] sm:$0x3f]
  %v8586 = vld [vmem:[%s570 + $0x178] sm:$0x3f]
  %v8587 = vld [vmem:[%s570 + $0x180] sm:$0xfc]
  %v8588 = vld [vmem:[%s570 + $0x188] sm:$0xfc]
  %v8589 = vld [vmem:[%s570 + $0x190] sm:$0xfc]
  %v8590 = vld [vmem:[%s570 + $0x198] sm:$0xfc]
  %v8591 = vld [vmem:[%s570 + $0x1e0] sm:$0x3f]
  %v8592 = vld [vmem:[%s570 + $0x1e8] sm:$0x3f]
  %v8593 = vld [vmem:[%s570 + $0x1f0] sm:$0x3f]
  %v8594 = vld [vmem:[%s570 + $0x1f8] sm:$0x3f]
  %v8595 = vld [vmem:[%s570 + $0x200] sm:$0xfc]
  %v8596 = vld [vmem:[%s570 + $0x208] sm:$0xfc]
  %v8597 = vld [vmem:[%s570 + $0x210] sm:$0xfc]
  %v8598 = vld [vmem:[%s570 + $0x218] sm:$0xfc]
  %v8599 = vld [vmem:[%s570 + $0x260] sm:$0x3f]
  %v8600 = vld [vmem:[%s570 + $0x268] sm:$0x3f]
  %v8601 = vld [vmem:[%s570 + $0x270] sm:$0x3f]
  %v8602 = vld [vmem:[%s570 + $0x278] sm:$0x3f]
  %v8603 = vld [vmem:[%s570 + $0x280] sm:$0xfc]
  %v8604 = vld [vmem:[%s570 + $0x288] sm:$0xfc]
  %v8605 = vld [vmem:[%s570 + $0x290] sm:$0xfc]
  %v8606 = vld [vmem:[%s570 + $0x298] sm:$0xfc]
  %v8607 = vld [vmem:[%s570 + $0x2e0] sm:$0x3f]
  %v8608 = vld [vmem:[%s570 + $0x2e8] sm:$0x3f]
  %v8609 = vld [vmem:[%s570 + $0x2f0] sm:$0x3f]
  %v8610 = vld [vmem:[%s570 + $0x2f8] sm:$0x3f]
  %v8611 = vld [vmem:[%s570 + $0x300] sm:$0xfc]
  %v8612 = vld [vmem:[%s570 + $0x308] sm:$0xfc]
  %v8613 = vld [vmem:[%s570 + $0x310] sm:$0xfc]
  %v8614 = vld [vmem:[%s570 + $0x318] sm:$0xfc]
  %v8615 = vld [vmem:[%s570 + $0x360] sm:$0x3f]
  %v8616 = vld [vmem:[%s570 + $0x368] sm:$0x3f]
  %v8617 = vld [vmem:[%s570 + $0x370] sm:$0x3f]
  %v8618 = vld [vmem:[%s570 + $0x378] sm:$0x3f]
  %v8619 = vld [vmem:[%s570 + $0x380] sm:$0xfc]
  %v8620 = vld [vmem:[%s570 + $0x388] sm:$0xfc]
  %v8621 = vld [vmem:[%s570 + $0x390] sm:$0xfc]
  %v8622 = vld [vmem:[%s570 + $0x398] sm:$0xfc]
  %v8623 = vld [vmem:[%s570 + $0x3e0] sm:$0x3f]
  %v8624 = vld [vmem:[%s570 + $0x3e8] sm:$0x3f]
  %v8625 = vld [vmem:[%s570 + $0x3f0] sm:$0x3f]
  %v8626 = vld [vmem:[%s570 + $0x3f8] sm:$0x3f]
  %v8627 = vld [vmem:[%s570 + $0x400] sm:$0xfc]
  %v8628 = vld [vmem:[%s570 + $0x408] sm:$0xfc]
  %v8629 = vld [vmem:[%s570 + $0x410] sm:$0xfc]
  %v8630 = vld [vmem:[%s570 + $0x418] sm:$0xfc]
  %v8631 = vld [vmem:[%s570 + $0x460] sm:$0x3f]
  %v8632 = vld [vmem:[%s570 + $0x468] sm:$0x3f]
  %v8633 = vld [vmem:[%s570 + $0x470] sm:$0x3f]
  %v8634 = vld [vmem:[%s570 + $0x478] sm:$0x3f]
  %v8635 = vld [vmem:[%s570 + $0x480] sm:$0xfc]
  %v8636 = vld [vmem:[%s570 + $0x488] sm:$0xfc]
  %v8637 = vld [vmem:[%s570 + $0x490] sm:$0xfc]
  %v8638 = vld [vmem:[%s570 + $0x498] sm:$0xfc]
  %v8639 = vld [vmem:[%s570 + $0x4e0] sm:$0x3f]
  %v8640 = vld [vmem:[%s570 + $0x4e8] sm:$0x3f]
  %v8641 = vld [vmem:[%s570 + $0x4f0] sm:$0x3f]
  %v8642 = vld [vmem:[%s570 + $0x4f8] sm:$0x3f]
  %v8643 = vld [vmem:[%s570 + $0x500] sm:$0xfc]
  %v8644 = vld [vmem:[%s570 + $0x508] sm:$0xfc]
  %v8645 = vld [vmem:[%s570 + $0x510] sm:$0xfc]
  %v8646 = vld [vmem:[%s570 + $0x518] sm:$0xfc]
  %v8647 = vld [vmem:[%s570 + $0x560] sm:$0x3f]
  %v8648 = vld [vmem:[%s570 + $0x568] sm:$0x3f]
  %v8649 = vld [vmem:[%s570 + $0x570] sm:$0x3f]
  %v8650 = vld [vmem:[%s570 + $0x578] sm:$0x3f]
  %v8651 = vld [vmem:[%s570 + $0x580] sm:$0xfc]
  %v8652 = vld [vmem:[%s570 + $0x588] sm:$0xfc]
  %v8653 = vld [vmem:[%s570 + $0x590] sm:$0xfc]
  %v8654 = vld [vmem:[%s570 + $0x598] sm:$0xfc]
  %v8655 = vld [vmem:[%s570 + $0x5e0] sm:$0x3f]
  %v8656 = vld [vmem:[%s570 + $0x5e8] sm:$0x3f]
  %v8657 = vld [vmem:[%s570 + $0x5f0] sm:$0x3f]
  %v8658 = vld [vmem:[%s570 + $0x5f8] sm:$0x3f]
  %v8659 = vld [vmem:[%s570 + $0x600] sm:$0xfc]
  %v8660 = vld [vmem:[%s570 + $0x608] sm:$0xfc]
  %v8661 = vld [vmem:[%s570 + $0x610] sm:$0xfc]
  %v8662 = vld [vmem:[%s570 + $0x618] sm:$0xfc]
  %v8663 = vld [vmem:[%s570 + $0x660] sm:$0x3f]
  %v8664 = vld [vmem:[%s570 + $0x668] sm:$0x3f]
  %v8665 = vld [vmem:[%s570 + $0x670] sm:$0x3f]
  %v8666 = vld [vmem:[%s570 + $0x678] sm:$0x3f]
  %v8667 = vld [vmem:[%s570 + $0x680] sm:$0xfc]
  %v8668 = vld [vmem:[%s570 + $0x688] sm:$0xfc]
  %v8669 = vld [vmem:[%s570 + $0x690] sm:$0xfc]
  %v8670 = vld [vmem:[%s570 + $0x698] sm:$0xfc]
  %v8671 = vld [vmem:[%s570 + $0x6e0] sm:$0x3f]
  %v8672 = vld [vmem:[%s570 + $0x6e8] sm:$0x3f]
  %v8673 = vld [vmem:[%s570 + $0x6f0] sm:$0x3f]
  %v8674 = vld [vmem:[%s570 + $0x6f8] sm:$0x3f]
  %s8675 = scalar_lea.vmem %s6669, 2
  %v8676 = vld [vmem:[%s8675] ss:$4 sm:$0xf]
  %v8678 = vlaneseq
  %v8679 = vshrl.u32 %v8678, 7
  %v8680 = vsub.s32 0, %v8679
  %v8681 = vrot.slane %v8676, %v8680
  %v8682 = vlaneseq
  %v8683 = vshrl.u32 %v8682, 7
  %v8684 = vsub.s32 1, %v8683
  %v8685 = vrot.slane %v8676, %v8684
  %v8686 = vlaneseq
  %v8687 = vshrl.u32 %v8686, 7
  %v8688 = vsub.s32 2, %v8687
  %v8689 = vrot.slane %v8676, %v8688
  %v8690 = vlaneseq
  %v8691 = vshrl.u32 %v8690, 7
  %v8692 = vsub.s32 3, %v8691
  %v8693 = vrot.slane %v8676, %v8692
  %v8698 = vmul.f32 %v8563, %v8681
  %v8699 = vmul.f32 %v8564, %v8685
  %v8700 = vmul.f32 %v8565, %v8689
  %v8701 = vmul.f32 %v8566, %v8693
  %v8702 = vmul.f32 %v6449, %v8681
  %v8703 = vmul.f32 %v6450, %v8685
  %v8704 = vmul.f32 %v6451, %v8689
  %v8705 = vmul.f32 %v6452, %v8693
  %v8706 = vmul.f32 %v6453, %v8681
  %v8707 = vmul.f32 %v6454, %v8685
  %v8708 = vmul.f32 %v6455, %v8689
  %v8709 = vmul.f32 %v6456, %v8693
  %v8710 = vmul.f32 %v8567, %v8681
  %v8711 = vmul.f32 %v8568, %v8685
  %v8712 = vmul.f32 %v8569, %v8689
  %v8713 = vmul.f32 %v8570, %v8693
  %v8714 = vmul.f32 %v8571, %v8681
  %v8715 = vmul.f32 %v8572, %v8685
  %v8716 = vmul.f32 %v8573, %v8689
  %v8717 = vmul.f32 %v8574, %v8693
  %v8718 = vmul.f32 %v6465, %v8681
  %v8719 = vmul.f32 %v6466, %v8685
  %v8720 = vmul.f32 %v6467, %v8689
  %v8721 = vmul.f32 %v6468, %v8693
  %v8722 = vmul.f32 %v6469, %v8681
  %v8723 = vmul.f32 %v6470, %v8685
  %v8724 = vmul.f32 %v6471, %v8689
  %v8725 = vmul.f32 %v6472, %v8693
  %v8726 = vmul.f32 %v8575, %v8681
  %v8727 = vmul.f32 %v8576, %v8685
  %v8728 = vmul.f32 %v8577, %v8689
  %v8729 = vmul.f32 %v8578, %v8693
  %v8730 = vmul.f32 %v8579, %v8681
  %v8731 = vmul.f32 %v8580, %v8685
  %v8732 = vmul.f32 %v8581, %v8689
  %v8733 = vmul.f32 %v8582, %v8693
  %v8734 = vmul.f32 %v6481, %v8681
  %v8735 = vmul.f32 %v6482, %v8685
  %v8736 = vmul.f32 %v6483, %v8689
  %v8737 = vmul.f32 %v6484, %v8693
  %v8738 = vmul.f32 %v6485, %v8681
  %v8739 = vmul.f32 %v6486, %v8685
  %v8740 = vmul.f32 %v6487, %v8689
  %v8741 = vmul.f32 %v6488, %v8693
  %v8742 = vmul.f32 %v8583, %v8681
  %v8743 = vmul.f32 %v8584, %v8685
  %v8744 = vmul.f32 %v8585, %v8689
  %v8745 = vmul.f32 %v8586, %v8693
  %v8746 = vmul.f32 %v8587, %v8681
  %v8747 = vmul.f32 %v8588, %v8685
  %v8748 = vmul.f32 %v8589, %v8689
  %v8749 = vmul.f32 %v8590, %v8693
  %v8750 = vmul.f32 %v6497, %v8681
  %v8751 = vmul.f32 %v6498, %v8685
  %v8752 = vmul.f32 %v6499, %v8689
  %v8753 = vmul.f32 %v6500, %v8693
  %v8754 = vmul.f32 %v6501, %v8681
  %v8755 = vmul.f32 %v6502, %v8685
  %v8756 = vmul.f32 %v6503, %v8689
  %v8757 = vmul.f32 %v6504, %v8693
  %v8758 = vmul.f32 %v8591, %v8681
  %v8759 = vmul.f32 %v8592, %v8685
  %v8760 = vmul.f32 %v8593, %v8689
  %v8761 = vmul.f32 %v8594, %v8693
  %v8762 = vmul.f32 %v8595, %v8681
  %v8763 = vmul.f32 %v8596, %v8685
  %v8764 = vmul.f32 %v8597, %v8689
  %v8765 = vmul.f32 %v8598, %v8693
  %v8766 = vmul.f32 %v6513, %v8681
  %v8767 = vmul.f32 %v6514, %v8685
  %v8768 = vmul.f32 %v6515, %v8689
  %v8769 = vmul.f32 %v6516, %v8693
  %v8770 = vmul.f32 %v6517, %v8681
  %v8771 = vmul.f32 %v6518, %v8685
  %v8772 = vmul.f32 %v6519, %v8689
  %v8773 = vmul.f32 %v6520, %v8693
  %v8774 = vmul.f32 %v8599, %v8681
  %v8775 = vmul.f32 %v8600, %v8685
  %v8776 = vmul.f32 %v8601, %v8689
  %v8777 = vmul.f32 %v8602, %v8693
  %v8778 = vmul.f32 %v8603, %v8681
  %v8779 = vmul.f32 %v8604, %v8685
  %v8780 = vmul.f32 %v8605, %v8689
  %v8781 = vmul.f32 %v8606, %v8693
  %v8782 = vmul.f32 %v6529, %v8681
  %v8783 = vmul.f32 %v6530, %v8685
  %v8784 = vmul.f32 %v6531, %v8689
  %v8785 = vmul.f32 %v6532, %v8693
  %v8786 = vmul.f32 %v6533, %v8681
  %v8787 = vmul.f32 %v6534, %v8685
  %v8788 = vmul.f32 %v6535, %v8689
  %v8789 = vmul.f32 %v6536, %v8693
  %v8790 = vmul.f32 %v8607, %v8681
  %v8791 = vmul.f32 %v8608, %v8685
  %v8792 = vmul.f32 %v8609, %v8689
  %v8793 = vmul.f32 %v8610, %v8693
  %v8794 = vmul.f32 %v8611, %v8681
  %v8795 = vmul.f32 %v8612, %v8685
  %v8796 = vmul.f32 %v8613, %v8689
  %v8797 = vmul.f32 %v8614, %v8693
  %v8798 = vmul.f32 %v6545, %v8681
  %v8799 = vmul.f32 %v6546, %v8685
  %v8800 = vmul.f32 %v6547, %v8689
  %v8801 = vmul.f32 %v6548, %v8693
  %v8802 = vmul.f32 %v6549, %v8681
  %v8803 = vmul.f32 %v6550, %v8685
  %v8804 = vmul.f32 %v6551, %v8689
  %v8805 = vmul.f32 %v6552, %v8693
  %v8806 = vmul.f32 %v8615, %v8681
  %v8807 = vmul.f32 %v8616, %v8685
  %v8808 = vmul.f32 %v8617, %v8689
  %v8809 = vmul.f32 %v8618, %v8693
  %v8810 = vmul.f32 %v8619, %v8681
  %v8811 = vmul.f32 %v8620, %v8685
  %v8812 = vmul.f32 %v8621, %v8689
  %v8813 = vmul.f32 %v8622, %v8693
  %v8814 = vmul.f32 %v6561, %v8681
  %v8815 = vmul.f32 %v6562, %v8685
  %v8816 = vmul.f32 %v6563, %v8689
  %v8817 = vmul.f32 %v6564, %v8693
  %v8818 = vmul.f32 %v6565, %v8681
  %v8819 = vmul.f32 %v6566, %v8685
  %v8820 = vmul.f32 %v6567, %v8689
  %v8821 = vmul.f32 %v6568, %v8693
  %v8822 = vmul.f32 %v8623, %v8681
  %v8823 = vmul.f32 %v8624, %v8685
  %v8824 = vmul.f32 %v8625, %v8689
  %v8825 = vmul.f32 %v8626, %v8693
  %v8826 = vmul.f32 %v8627, %v8681
  %v8827 = vmul.f32 %v8628, %v8685
  %v8828 = vmul.f32 %v8629, %v8689
  %v8829 = vmul.f32 %v8630, %v8693
  %v8830 = vmul.f32 %v6577, %v8681
  %v8831 = vmul.f32 %v6578, %v8685
  %v8832 = vmul.f32 %v6579, %v8689
  %v8833 = vmul.f32 %v6580, %v8693
  %v8834 = vmul.f32 %v6581, %v8681
  %v8835 = vmul.f32 %v6582, %v8685
  %v8836 = vmul.f32 %v6583, %v8689
  %v8837 = vmul.f32 %v6584, %v8693
  %v8838 = vmul.f32 %v8631, %v8681
  %v8839 = vmul.f32 %v8632, %v8685
  %v8840 = vmul.f32 %v8633, %v8689
  %v8841 = vmul.f32 %v8634, %v8693
  %v8842 = vmul.f32 %v8635, %v8681
  %v8843 = vmul.f32 %v8636, %v8685
  %v8844 = vmul.f32 %v8637, %v8689
  %v8845 = vmul.f32 %v8638, %v8693
  %v8846 = vmul.f32 %v6593, %v8681
  %v8847 = vmul.f32 %v6594, %v8685
  %v8848 = vmul.f32 %v6595, %v8689
  %v8849 = vmul.f32 %v6596, %v8693
  %v8850 = vmul.f32 %v6597, %v8681
  %v8851 = vmul.f32 %v6598, %v8685
  %v8852 = vmul.f32 %v6599, %v8689
  %v8853 = vmul.f32 %v6600, %v8693
  %v8854 = vmul.f32 %v8639, %v8681
  %v8855 = vmul.f32 %v8640, %v8685
  %v8856 = vmul.f32 %v8641, %v8689
  %v8857 = vmul.f32 %v8642, %v8693
  %v8858 = vmul.f32 %v8643, %v8681
  %v8859 = vmul.f32 %v8644, %v8685
  %v8860 = vmul.f32 %v8645, %v8689
  %v8861 = vmul.f32 %v8646, %v8693
  %v8862 = vmul.f32 %v6609, %v8681
  %v8863 = vmul.f32 %v6610, %v8685
  %v8864 = vmul.f32 %v6611, %v8689
  %v8865 = vmul.f32 %v6612, %v8693
  %v8866 = vmul.f32 %v6613, %v8681
  %v8867 = vmul.f32 %v6614, %v8685
  %v8868 = vmul.f32 %v6615, %v8689
  %v8869 = vmul.f32 %v6616, %v8693
  %v8870 = vmul.f32 %v8647, %v8681
  %v8871 = vmul.f32 %v8648, %v8685
  %v8872 = vmul.f32 %v8649, %v8689
  %v8873 = vmul.f32 %v8650, %v8693
  %v8874 = vmul.f32 %v8651, %v8681
  %v8875 = vmul.f32 %v8652, %v8685
  %v8876 = vmul.f32 %v8653, %v8689
  %v8877 = vmul.f32 %v8654, %v8693
  %v8878 = vmul.f32 %v6625, %v8681
  %v8879 = vmul.f32 %v6626, %v8685
  %v8880 = vmul.f32 %v6627, %v8689
  %v8881 = vmul.f32 %v6628, %v8693
  %v8882 = vmul.f32 %v6629, %v8681
  %v8883 = vmul.f32 %v6630, %v8685
  %v8884 = vmul.f32 %v6631, %v8689
  %v8885 = vmul.f32 %v6632, %v8693
  %v8886 = vmul.f32 %v8655, %v8681
  %v8887 = vmul.f32 %v8656, %v8685
  %v8888 = vmul.f32 %v8657, %v8689
  %v8889 = vmul.f32 %v8658, %v8693
  %v8890 = vmul.f32 %v8659, %v8681
  %v8891 = vmul.f32 %v8660, %v8685
  %v8892 = vmul.f32 %v8661, %v8689
  %v8893 = vmul.f32 %v8662, %v8693
  %v8894 = vmul.f32 %v6641, %v8681
  %v8895 = vmul.f32 %v6642, %v8685
  %v8896 = vmul.f32 %v6643, %v8689
  %v8897 = vmul.f32 %v6644, %v8693
  %v8898 = vmul.f32 %v6645, %v8681
  %v8899 = vmul.f32 %v6646, %v8685
  %v8900 = vmul.f32 %v6647, %v8689
  %v8901 = vmul.f32 %v6648, %v8693
  %v8902 = vmul.f32 %v8663, %v8681
  %v8903 = vmul.f32 %v8664, %v8685
  %v8904 = vmul.f32 %v8665, %v8689
  %v8905 = vmul.f32 %v8666, %v8693
  %v8906 = vmul.f32 %v8667, %v8681
  %v8907 = vmul.f32 %v8668, %v8685
  %v8908 = vmul.f32 %v8669, %v8689
  %v8909 = vmul.f32 %v8670, %v8693
  %v8910 = vmul.f32 %v6657, %v8681
  %v8911 = vmul.f32 %v6658, %v8685
  %v8912 = vmul.f32 %v6659, %v8689
  %v8913 = vmul.f32 %v6660, %v8693
  %v8914 = vmul.f32 %v6661, %v8681
  %v8915 = vmul.f32 %v6662, %v8685
  %v8916 = vmul.f32 %v6663, %v8689
  %v8917 = vmul.f32 %v6664, %v8693
  %v8918 = vmul.f32 %v8671, %v8681
  %v8919 = vmul.f32 %v8672, %v8685
  %v8920 = vmul.f32 %v8673, %v8689
  %v8921 = vmul.f32 %v8674, %v8693
  %v9146 = vrot.slane %v8698, 2
  %v9147 = vrot.slane %v8702, 2
  %v9148 = vsel %vm5604, %v9146, %v9147
  %v9149 = vrot.slane %v8699, 2
  %v9150 = vrot.slane %v8703, 2
  %v9151 = vsel %vm5604, %v9149, %v9150
  %v9152 = vrot.slane %v8700, 2
  %v9153 = vrot.slane %v8704, 2
  %v9154 = vsel %vm5604, %v9152, %v9153
  %v9155 = vrot.slane %v8701, 2
  %v9156 = vrot.slane %v8705, 2
  %v9157 = vsel %vm5604, %v9155, %v9156
  %v9158 = vrot.slane %v8706, 2
  %v9159 = vsel %vm5604, %v9147, %v9158
  %v9160 = vrot.slane %v8707, 2
  %v9161 = vsel %vm5604, %v9150, %v9160
  %v9162 = vrot.slane %v8708, 2
  %v9163 = vsel %vm5604, %v9153, %v9162
  %v9164 = vrot.slane %v8709, 2
  %v9165 = vsel %vm5604, %v9156, %v9164
  %v9166 = vrot.slane %v8710, 2
  %v9167 = vsel %vm5604, %v9158, %v9166
  %v9168 = vrot.slane %v8711, 2
  %v9169 = vsel %vm5604, %v9160, %v9168
  %v9170 = vrot.slane %v8712, 2
  %v9171 = vsel %vm5604, %v9162, %v9170
  %v9172 = vrot.slane %v8713, 2
  %v9173 = vsel %vm5604, %v9164, %v9172
  %v9174 = vrot.slane %v8714, 2
  %v9175 = vrot.slane %v8718, 2
  %v9176 = vsel %vm5604, %v9174, %v9175
  %v9177 = vrot.slane %v8715, 2
  %v9178 = vrot.slane %v8719, 2
  %v9179 = vsel %vm5604, %v9177, %v9178
  %v9180 = vrot.slane %v8716, 2
  %v9181 = vrot.slane %v8720, 2
  %v9182 = vsel %vm5604, %v9180, %v9181
  %v9183 = vrot.slane %v8717, 2
  %v9184 = vrot.slane %v8721, 2
  %v9185 = vsel %vm5604, %v9183, %v9184
  %v9186 = vrot.slane %v8722, 2
  %v9187 = vsel %vm5604, %v9175, %v9186
  %v9188 = vrot.slane %v8723, 2
  %v9189 = vsel %vm5604, %v9178, %v9188
  %v9190 = vrot.slane %v8724, 2
  %v9191 = vsel %vm5604, %v9181, %v9190
  %v9192 = vrot.slane %v8725, 2
  %v9193 = vsel %vm5604, %v9184, %v9192
  %v9194 = vrot.slane %v8726, 2
  %v9195 = vsel %vm5604, %v9186, %v9194
  %v9196 = vrot.slane %v8727, 2
  %v9197 = vsel %vm5604, %v9188, %v9196
  %v9198 = vrot.slane %v8728, 2
  %v9199 = vsel %vm5604, %v9190, %v9198
  %v9200 = vrot.slane %v8729, 2
  %v9201 = vsel %vm5604, %v9192, %v9200
  %v9202 = vrot.slane %v8730, 2
  %v9203 = vrot.slane %v8734, 2
  %v9204 = vsel %vm5604, %v9202, %v9203
  %v9205 = vrot.slane %v8731, 2
  %v9206 = vrot.slane %v8735, 2
  %v9207 = vsel %vm5604, %v9205, %v9206
  %v9208 = vrot.slane %v8732, 2
  %v9209 = vrot.slane %v8736, 2
  %v9210 = vsel %vm5604, %v9208, %v9209
  %v9211 = vrot.slane %v8733, 2
  %v9212 = vrot.slane %v8737, 2
  %v9213 = vsel %vm5604, %v9211, %v9212
  %v9214 = vrot.slane %v8738, 2
  %v9215 = vsel %vm5604, %v9203, %v9214
  %v9216 = vrot.slane %v8739, 2
  %v9217 = vsel %vm5604, %v9206, %v9216
  %v9218 = vrot.slane %v8740, 2
  %v9219 = vsel %vm5604, %v9209, %v9218
  %v9220 = vrot.slane %v8741, 2
  %v9221 = vsel %vm5604, %v9212, %v9220
  %v9222 = vrot.slane %v8742, 2
  %v9223 = vsel %vm5604, %v9214, %v9222
  %v9224 = vrot.slane %v8743, 2
  %v9225 = vsel %vm5604, %v9216, %v9224
  %v9226 = vrot.slane %v8744, 2
  %v9227 = vsel %vm5604, %v9218, %v9226
  %v9228 = vrot.slane %v8745, 2
  %v9229 = vsel %vm5604, %v9220, %v9228
  %v9230 = vrot.slane %v8746, 2
  %v9231 = vrot.slane %v8750, 2
  %v9232 = vsel %vm5604, %v9230, %v9231
  %v9233 = vrot.slane %v8747, 2
  %v9234 = vrot.slane %v8751, 2
  %v9235 = vsel %vm5604, %v9233, %v9234
  %v9236 = vrot.slane %v8748, 2
  %v9237 = vrot.slane %v8752, 2
  %v9238 = vsel %vm5604, %v9236, %v9237
  %v9239 = vrot.slane %v8749, 2
  %v9240 = vrot.slane %v8753, 2
  %v9241 = vsel %vm5604, %v9239, %v9240
  %v9242 = vrot.slane %v8754, 2
  %v9243 = vsel %vm5604, %v9231, %v9242
  %v9244 = vrot.slane %v8755, 2
  %v9245 = vsel %vm5604, %v9234, %v9244
  %v9246 = vrot.slane %v8756, 2
  %v9247 = vsel %vm5604, %v9237, %v9246
  %v9248 = vrot.slane %v8757, 2
  %v9249 = vsel %vm5604, %v9240, %v9248
  %v9250 = vrot.slane %v8758, 2
  %v9251 = vsel %vm5604, %v9242, %v9250
  %v9252 = vrot.slane %v8759, 2
  %v9253 = vsel %vm5604, %v9244, %v9252
  %v9254 = vrot.slane %v8760, 2
  %v9255 = vsel %vm5604, %v9246, %v9254
  %v9256 = vrot.slane %v8761, 2
  %v9257 = vsel %vm5604, %v9248, %v9256
  %v9258 = vrot.slane %v8762, 2
  %v9259 = vrot.slane %v8766, 2
  %v9260 = vsel %vm5604, %v9258, %v9259
  %v9261 = vrot.slane %v8763, 2
  %v9262 = vrot.slane %v8767, 2
  %v9263 = vsel %vm5604, %v9261, %v9262
  %v9264 = vrot.slane %v8764, 2
  %v9265 = vrot.slane %v8768, 2
  %v9266 = vsel %vm5604, %v9264, %v9265
  %v9267 = vrot.slane %v8765, 2
  %v9268 = vrot.slane %v8769, 2
  %v9269 = vsel %vm5604, %v9267, %v9268
  %v9270 = vrot.slane %v8770, 2
  %v9271 = vsel %vm5604, %v9259, %v9270
  %v9272 = vrot.slane %v8771, 2
  %v9273 = vsel %vm5604, %v9262, %v9272
  %v9274 = vrot.slane %v8772, 2
  %v9275 = vsel %vm5604, %v9265, %v9274
  %v9276 = vrot.slane %v8773, 2
  %v9277 = vsel %vm5604, %v9268, %v9276
  %v9278 = vrot.slane %v8774, 2
  %v9279 = vsel %vm5604, %v9270, %v9278
  %v9280 = vrot.slane %v8775, 2
  %v9281 = vsel %vm5604, %v9272, %v9280
  %v9282 = vrot.slane %v8776, 2
  %v9283 = vsel %vm5604, %v9274, %v9282
  %v9284 = vrot.slane %v8777, 2
  %v9285 = vsel %vm5604, %v9276, %v9284
  %v9286 = vrot.slane %v8778, 2
  %v9287 = vrot.slane %v8782, 2
  %v9288 = vsel %vm5604, %v9286, %v9287
  %v9289 = vrot.slane %v8779, 2
  %v9290 = vrot.slane %v8783, 2
  %v9291 = vsel %vm5604, %v9289, %v9290
  %v9292 = vrot.slane %v8780, 2
  %v9293 = vrot.slane %v8784, 2
  %v9294 = vsel %vm5604, %v9292, %v9293
  %v9295 = vrot.slane %v8781, 2
  %v9296 = vrot.slane %v8785, 2
  %v9297 = vsel %vm5604, %v9295, %v9296
  %v9298 = vrot.slane %v8786, 2
  %v9299 = vsel %vm5604, %v9287, %v9298
  %v9300 = vrot.slane %v8787, 2
  %v9301 = vsel %vm5604, %v9290, %v9300
  %v9302 = vrot.slane %v8788, 2
  %v9303 = vsel %vm5604, %v9293, %v9302
  %v9304 = vrot.slane %v8789, 2
  %v9305 = vsel %vm5604, %v9296, %v9304
  %v9306 = vrot.slane %v8790, 2
  %v9307 = vsel %vm5604, %v9298, %v9306
  %v9308 = vrot.slane %v8791, 2
  %v9309 = vsel %vm5604, %v9300, %v9308
  %v9310 = vrot.slane %v8792, 2
  %v9311 = vsel %vm5604, %v9302, %v9310
  %v9312 = vrot.slane %v8793, 2
  %v9313 = vsel %vm5604, %v9304, %v9312
  %v9314 = vrot.slane %v8794, 2
  %v9315 = vrot.slane %v8798, 2
  %v9316 = vsel %vm5604, %v9314, %v9315
  %v9317 = vrot.slane %v8795, 2
  %v9318 = vrot.slane %v8799, 2
  %v9319 = vsel %vm5604, %v9317, %v9318
  %v9320 = vrot.slane %v8796, 2
  %v9321 = vrot.slane %v8800, 2
  %v9322 = vsel %vm5604, %v9320, %v9321
  %v9323 = vrot.slane %v8797, 2
  %v9324 = vrot.slane %v8801, 2
  %v9325 = vsel %vm5604, %v9323, %v9324
  %v9326 = vrot.slane %v8802, 2
  %v9327 = vsel %vm5604, %v9315, %v9326
  %v9328 = vrot.slane %v8803, 2
  %v9329 = vsel %vm5604, %v9318, %v9328
  %v9330 = vrot.slane %v8804, 2
  %v9331 = vsel %vm5604, %v9321, %v9330
  %v9332 = vrot.slane %v8805, 2
  %v9333 = vsel %vm5604, %v9324, %v9332
  %v9334 = vrot.slane %v8806, 2
  %v9335 = vsel %vm5604, %v9326, %v9334
  %v9336 = vrot.slane %v8807, 2
  %v9337 = vsel %vm5604, %v9328, %v9336
  %v9338 = vrot.slane %v8808, 2
  %v9339 = vsel %vm5604, %v9330, %v9338
  %v9340 = vrot.slane %v8809, 2
  %v9341 = vsel %vm5604, %v9332, %v9340
  %v9342 = vrot.slane %v8810, 2
  %v9343 = vrot.slane %v8814, 2
  %v9344 = vsel %vm5604, %v9342, %v9343
  %v9345 = vrot.slane %v8811, 2
  %v9346 = vrot.slane %v8815, 2
  %v9347 = vsel %vm5604, %v9345, %v9346
  %v9348 = vrot.slane %v8812, 2
  %v9349 = vrot.slane %v8816, 2
  %v9350 = vsel %vm5604, %v9348, %v9349
  %v9351 = vrot.slane %v8813, 2
  %v9352 = vrot.slane %v8817, 2
  %v9353 = vsel %vm5604, %v9351, %v9352
  %v9354 = vrot.slane %v8818, 2
  %v9355 = vsel %vm5604, %v9343, %v9354
  %v9356 = vrot.slane %v8819, 2
  %v9357 = vsel %vm5604, %v9346, %v9356
  %v9358 = vrot.slane %v8820, 2
  %v9359 = vsel %vm5604, %v9349, %v9358
  %v9360 = vrot.slane %v8821, 2
  %v9361 = vsel %vm5604, %v9352, %v9360
  %v9362 = vrot.slane %v8822, 2
  %v9363 = vsel %vm5604, %v9354, %v9362
  %v9364 = vrot.slane %v8823, 2
  %v9365 = vsel %vm5604, %v9356, %v9364
  %v9366 = vrot.slane %v8824, 2
  %v9367 = vsel %vm5604, %v9358, %v9366
  %v9368 = vrot.slane %v8825, 2
  %v9369 = vsel %vm5604, %v9360, %v9368
  %v9370 = vrot.slane %v8826, 2
  %v9371 = vrot.slane %v8830, 2
  %v9372 = vsel %vm5604, %v9370, %v9371
  %v9373 = vrot.slane %v8827, 2
  %v9374 = vrot.slane %v8831, 2
  %v9375 = vsel %vm5604, %v9373, %v9374
  %v9376 = vrot.slane %v8828, 2
  %v9377 = vrot.slane %v8832, 2
  %v9378 = vsel %vm5604, %v9376, %v9377
  %v9379 = vrot.slane %v8829, 2
  %v9380 = vrot.slane %v8833, 2
  %v9381 = vsel %vm5604, %v9379, %v9380
  %v9382 = vrot.slane %v8834, 2
  %v9383 = vsel %vm5604, %v9371, %v9382
  %v9384 = vrot.slane %v8835, 2
  %v9385 = vsel %vm5604, %v9374, %v9384
  %v9386 = vrot.slane %v8836, 2
  %v9387 = vsel %vm5604, %v9377, %v9386
  %v9388 = vrot.slane %v8837, 2
  %v9389 = vsel %vm5604, %v9380, %v9388
  %v9390 = vrot.slane %v8838, 2
  %v9391 = vsel %vm5604, %v9382, %v9390
  %v9392 = vrot.slane %v8839, 2
  %v9393 = vsel %vm5604, %v9384, %v9392
  %v9394 = vrot.slane %v8840, 2
  %v9395 = vsel %vm5604, %v9386, %v9394
  %v9396 = vrot.slane %v8841, 2
  %v9397 = vsel %vm5604, %v9388, %v9396
  %v9398 = vrot.slane %v8842, 2
  %v9399 = vrot.slane %v8846, 2
  %v9400 = vsel %vm5604, %v9398, %v9399
  %v9401 = vrot.slane %v8843, 2
  %v9402 = vrot.slane %v8847, 2
  %v9403 = vsel %vm5604, %v9401, %v9402
  %v9404 = vrot.slane %v8844, 2
  %v9405 = vrot.slane %v8848, 2
  %v9406 = vsel %vm5604, %v9404, %v9405
  %v9407 = vrot.slane %v8845, 2
  %v9408 = vrot.slane %v8849, 2
  %v9409 = vsel %vm5604, %v9407, %v9408
  %v9410 = vrot.slane %v8850, 2
  %v9411 = vsel %vm5604, %v9399, %v9410
  %v9412 = vrot.slane %v8851, 2
  %v9413 = vsel %vm5604, %v9402, %v9412
  %v9414 = vrot.slane %v8852, 2
  %v9415 = vsel %vm5604, %v9405, %v9414
  %v9416 = vrot.slane %v8853, 2
  %v9417 = vsel %vm5604, %v9408, %v9416
  %v9418 = vrot.slane %v8854, 2
  %v9419 = vsel %vm5604, %v9410, %v9418
  %v9420 = vrot.slane %v8855, 2
  %v9421 = vsel %vm5604, %v9412, %v9420
  %v9422 = vrot.slane %v8856, 2
  %v9423 = vsel %vm5604, %v9414, %v9422
  %v9424 = vrot.slane %v8857, 2
  %v9425 = vsel %vm5604, %v9416, %v9424
  %v9426 = vrot.slane %v8858, 2
  %v9427 = vrot.slane %v8862, 2
  %v9428 = vsel %vm5604, %v9426, %v9427
  %v9429 = vrot.slane %v8859, 2
  %v9430 = vrot.slane %v8863, 2
  %v9431 = vsel %vm5604, %v9429, %v9430
  %v9432 = vrot.slane %v8860, 2
  %v9433 = vrot.slane %v8864, 2
  %v9434 = vsel %vm5604, %v9432, %v9433
  %v9435 = vrot.slane %v8861, 2
  %v9436 = vrot.slane %v8865, 2
  %v9437 = vsel %vm5604, %v9435, %v9436
  %v9438 = vrot.slane %v8866, 2
  %v9439 = vsel %vm5604, %v9427, %v9438
  %v9440 = vrot.slane %v8867, 2
  %v9441 = vsel %vm5604, %v9430, %v9440
  %v9442 = vrot.slane %v8868, 2
  %v9443 = vsel %vm5604, %v9433, %v9442
  %v9444 = vrot.slane %v8869, 2
  %v9445 = vsel %vm5604, %v9436, %v9444
  %v9446 = vrot.slane %v8870, 2
  %v9447 = vsel %vm5604, %v9438, %v9446
  %v9448 = vrot.slane %v8871, 2
  %v9449 = vsel %vm5604, %v9440, %v9448
  %v9450 = vrot.slane %v8872, 2
  %v9451 = vsel %vm5604, %v9442, %v9450
  %v9452 = vrot.slane %v8873, 2
  %v9453 = vsel %vm5604, %v9444, %v9452
  %v9454 = vrot.slane %v8874, 2
  %v9455 = vrot.slane %v8878, 2
  %v9456 = vsel %vm5604, %v9454, %v9455
  %v9457 = vrot.slane %v8875, 2
  %v9458 = vrot.slane %v8879, 2
  %v9459 = vsel %vm5604, %v9457, %v9458
  %v9460 = vrot.slane %v8876, 2
  %v9461 = vrot.slane %v8880, 2
  %v9462 = vsel %vm5604, %v9460, %v9461
  %v9463 = vrot.slane %v8877, 2
  %v9464 = vrot.slane %v8881, 2
  %v9465 = vsel %vm5604, %v9463, %v9464
  %v9466 = vrot.slane %v8882, 2
  %v9467 = vsel %vm5604, %v9455, %v9466
  %v9468 = vrot.slane %v8883, 2
  %v9469 = vsel %vm5604, %v9458, %v9468
  %v9470 = vrot.slane %v8884, 2
  %v9471 = vsel %vm5604, %v9461, %v9470
  %v9472 = vrot.slane %v8885, 2
  %v9473 = vsel %vm5604, %v9464, %v9472
  %v9474 = vrot.slane %v8886, 2
  %v9475 = vsel %vm5604, %v9466, %v9474
  %v9476 = vrot.slane %v8887, 2
  %v9477 = vsel %vm5604, %v9468, %v9476
  %v9478 = vrot.slane %v8888, 2
  %v9479 = vsel %vm5604, %v9470, %v9478
  %v9480 = vrot.slane %v8889, 2
  %v9481 = vsel %vm5604, %v9472, %v9480
  %v9482 = vrot.slane %v8890, 2
  %v9483 = vrot.slane %v8894, 2
  %v9484 = vsel %vm5604, %v9482, %v9483
  %v9485 = vrot.slane %v8891, 2
  %v9486 = vrot.slane %v8895, 2
  %v9487 = vsel %vm5604, %v9485, %v9486
  %v9488 = vrot.slane %v8892, 2
  %v9489 = vrot.slane %v8896, 2
  %v9490 = vsel %vm5604, %v9488, %v9489
  %v9491 = vrot.slane %v8893, 2
  %v9492 = vrot.slane %v8897, 2
  %v9493 = vsel %vm5604, %v9491, %v9492
  %v9494 = vrot.slane %v8898, 2
  %v9495 = vsel %vm5604, %v9483, %v9494
  %v9496 = vrot.slane %v8899, 2
  %v9497 = vsel %vm5604, %v9486, %v9496
  %v9498 = vrot.slane %v8900, 2
  %v9499 = vsel %vm5604, %v9489, %v9498
  %v9500 = vrot.slane %v8901, 2
  %v9501 = vsel %vm5604, %v9492, %v9500
  %v9502 = vrot.slane %v8902, 2
  %v9503 = vsel %vm5604, %v9494, %v9502
  %v9504 = vrot.slane %v8903, 2
  %v9505 = vsel %vm5604, %v9496, %v9504
  %v9506 = vrot.slane %v8904, 2
  %v9507 = vsel %vm5604, %v9498, %v9506
  %v9508 = vrot.slane %v8905, 2
  %v9509 = vsel %vm5604, %v9500, %v9508
  %v9510 = vrot.slane %v8906, 2
  %v9511 = vrot.slane %v8910, 2
  %v9512 = vsel %vm5604, %v9510, %v9511
  %v9513 = vrot.slane %v8907, 2
  %v9514 = vrot.slane %v8911, 2
  %v9515 = vsel %vm5604, %v9513, %v9514
  %v9516 = vrot.slane %v8908, 2
  %v9517 = vrot.slane %v8912, 2
  %v9518 = vsel %vm5604, %v9516, %v9517
  %v9519 = vrot.slane %v8909, 2
  %v9520 = vrot.slane %v8913, 2
  %v9521 = vsel %vm5604, %v9519, %v9520
  %v9522 = vrot.slane %v8914, 2
  %v9523 = vsel %vm5604, %v9511, %v9522
  %v9524 = vrot.slane %v8915, 2
  %v9525 = vsel %vm5604, %v9514, %v9524
  %v9526 = vrot.slane %v8916, 2
  %v9527 = vsel %vm5604, %v9517, %v9526
  %v9528 = vrot.slane %v8917, 2
  %v9529 = vsel %vm5604, %v9520, %v9528
  %v9530 = vrot.slane %v8918, 2
  %v9531 = vsel %vm5604, %v9522, %v9530
  %v9532 = vrot.slane %v8919, 2
  %v9533 = vsel %vm5604, %v9524, %v9532
  %v9534 = vrot.slane %v8920, 2
  %v9535 = vsel %vm5604, %v9526, %v9534
  %v9536 = vrot.slane %v8921, 2
  %v9537 = vsel %vm5604, %v9528, %v9536
  %v9762 = vadd.f32 %v8339, %v9148
  %v9763 = vadd.f32 %v8340, %v9151
  %v9764 = vadd.f32 %v8341, %v9154
  %v9765 = vadd.f32 %v8342, %v9157
  %v9766 = vadd.f32 %v8343, %v9159
  %v9767 = vadd.f32 %v8344, %v9161
  %v9768 = vadd.f32 %v8345, %v9163
  %v9769 = vadd.f32 %v8346, %v9165
  %v9770 = vadd.f32 %v8347, %v9167
  %v9771 = vadd.f32 %v8348, %v9169
  %v9772 = vadd.f32 %v8349, %v9171
  %v9773 = vadd.f32 %v8350, %v9173
  %v9774 = vadd.f32 %v8351, %v9166
  %v9775 = vadd.f32 %v8352, %v9168
  %v9776 = vadd.f32 %v8353, %v9170
  %v9777 = vadd.f32 %v8354, %v9172
  %v9778 = vadd.f32 %v8355, %v9176
  %v9779 = vadd.f32 %v8356, %v9179
  %v9780 = vadd.f32 %v8357, %v9182
  %v9781 = vadd.f32 %v8358, %v9185
  %v9782 = vadd.f32 %v8359, %v9187
  %v9783 = vadd.f32 %v8360, %v9189
  %v9784 = vadd.f32 %v8361, %v9191
  %v9785 = vadd.f32 %v8362, %v9193
  %v9786 = vadd.f32 %v8363, %v9195
  %v9787 = vadd.f32 %v8364, %v9197
  %v9788 = vadd.f32 %v8365, %v9199
  %v9789 = vadd.f32 %v8366, %v9201
  %v9790 = vadd.f32 %v8367, %v9194
  %v9791 = vadd.f32 %v8368, %v9196
  %v9792 = vadd.f32 %v8369, %v9198
  %v9793 = vadd.f32 %v8370, %v9200
  %v9794 = vadd.f32 %v8371, %v9204
  %v9795 = vadd.f32 %v8372, %v9207
  %v9796 = vadd.f32 %v8373, %v9210
  %v9797 = vadd.f32 %v8374, %v9213
  %v9798 = vadd.f32 %v8375, %v9215
  %v9799 = vadd.f32 %v8376, %v9217
  %v9800 = vadd.f32 %v8377, %v9219
  %v9801 = vadd.f32 %v8378, %v9221
  %v9802 = vadd.f32 %v8379, %v9223
  %v9803 = vadd.f32 %v8380, %v9225
  %v9804 = vadd.f32 %v8381, %v9227
  %v9805 = vadd.f32 %v8382, %v9229
  %v9806 = vadd.f32 %v8383, %v9222
  %v9807 = vadd.f32 %v8384, %v9224
  %v9808 = vadd.f32 %v8385, %v9226
  %v9809 = vadd.f32 %v8386, %v9228
  %v9810 = vadd.f32 %v8387, %v9232
  %v9811 = vadd.f32 %v8388, %v9235
  %v9812 = vadd.f32 %v8389, %v9238
  %v9813 = vadd.f32 %v8390, %v9241
  %v9814 = vadd.f32 %v8391, %v9243
  %v9815 = vadd.f32 %v8392, %v9245
  %v9816 = vadd.f32 %v8393, %v9247
  %v9817 = vadd.f32 %v8394, %v9249
  %v9818 = vadd.f32 %v8395, %v9251
  %v9819 = vadd.f32 %v8396, %v9253
  %v9820 = vadd.f32 %v8397, %v9255
  %v9821 = vadd.f32 %v8398, %v9257
  %v9822 = vadd.f32 %v8399, %v9250
  %v9823 = vadd.f32 %v8400, %v9252
  %v9824 = vadd.f32 %v8401, %v9254
  %v9825 = vadd.f32 %v8402, %v9256
  %v9826 = vadd.f32 %v8403, %v9260
  %v9827 = vadd.f32 %v8404, %v9263
  %v9828 = vadd.f32 %v8405, %v9266
  %v9829 = vadd.f32 %v8406, %v9269
  %v9830 = vadd.f32 %v8407, %v9271
  %v9831 = vadd.f32 %v8408, %v9273
  %v9832 = vadd.f32 %v8409, %v9275
  %v9833 = vadd.f32 %v8410, %v9277
  %v9834 = vadd.f32 %v8411, %v9279
  %v9835 = vadd.f32 %v8412, %v9281
  %v9836 = vadd.f32 %v8413, %v9283
  %v9837 = vadd.f32 %v8414, %v9285
  %v9838 = vadd.f32 %v8415, %v9278
  %v9839 = vadd.f32 %v8416, %v9280
  %v9840 = vadd.f32 %v8417, %v9282
  %v9841 = vadd.f32 %v8418, %v9284
  %v9842 = vadd.f32 %v8419, %v9288
  %v9843 = vadd.f32 %v8420, %v9291
  %v9844 = vadd.f32 %v8421, %v9294
  %v9845 = vadd.f32 %v8422, %v9297
  %v9846 = vadd.f32 %v8423, %v9299
  %v9847 = vadd.f32 %v8424, %v9301
  %v9848 = vadd.f32 %v8425, %v9303
  %v9849 = vadd.f32 %v8426, %v9305
  %v9850 = vadd.f32 %v8427, %v9307
  %v9851 = vadd.f32 %v8428, %v9309
  %v9852 = vadd.f32 %v8429, %v9311
  %v9853 = vadd.f32 %v8430, %v9313
  %v9854 = vadd.f32 %v8431, %v9306
  %v9855 = vadd.f32 %v8432, %v9308
  %v9856 = vadd.f32 %v8433, %v9310
  %v9857 = vadd.f32 %v8434, %v9312
  %v9858 = vadd.f32 %v8435, %v9316
  %v9859 = vadd.f32 %v8436, %v9319
  %v9860 = vadd.f32 %v8437, %v9322
  %v9861 = vadd.f32 %v8438, %v9325
  %v9862 = vadd.f32 %v8439, %v9327
  %v9863 = vadd.f32 %v8440, %v9329
  %v9864 = vadd.f32 %v8441, %v9331
  %v9865 = vadd.f32 %v8442, %v9333
  %v9866 = vadd.f32 %v8443, %v9335
  %v9867 = vadd.f32 %v8444, %v9337
  %v9868 = vadd.f32 %v8445, %v9339
  %v9869 = vadd.f32 %v8446, %v9341
  %v9870 = vadd.f32 %v8447, %v9334
  %v9871 = vadd.f32 %v8448, %v9336
  %v9872 = vadd.f32 %v8449, %v9338
  %v9873 = vadd.f32 %v8450, %v9340
  %v9874 = vadd.f32 %v8451, %v9344
  %v9875 = vadd.f32 %v8452, %v9347
  %v9876 = vadd.f32 %v8453, %v9350
  %v9877 = vadd.f32 %v8454, %v9353
  %v9878 = vadd.f32 %v8455, %v9355
  %v9879 = vadd.f32 %v8456, %v9357
  %v9880 = vadd.f32 %v8457, %v9359
  %v9881 = vadd.f32 %v8458, %v9361
  %v9882 = vadd.f32 %v8459, %v9363
  %v9883 = vadd.f32 %v8460, %v9365
  %v9884 = vadd.f32 %v8461, %v9367
  %v9885 = vadd.f32 %v8462, %v9369
  %v9886 = vadd.f32 %v8463, %v9362
  %v9887 = vadd.f32 %v8464, %v9364
  %v9888 = vadd.f32 %v8465, %v9366
  %v9889 = vadd.f32 %v8466, %v9368
  %v9890 = vadd.f32 %v8467, %v9372
  %v9891 = vadd.f32 %v8468, %v9375
  %v9892 = vadd.f32 %v8469, %v9378
  %v9893 = vadd.f32 %v8470, %v9381
  %v9894 = vadd.f32 %v8471, %v9383
  %v9895 = vadd.f32 %v8472, %v9385
  %v9896 = vadd.f32 %v8473, %v9387
  %v9897 = vadd.f32 %v8474, %v9389
  %v9898 = vadd.f32 %v8475, %v9391
  %v9899 = vadd.f32 %v8476, %v9393
  %v9900 = vadd.f32 %v8477, %v9395
  %v9901 = vadd.f32 %v8478, %v9397
  %v9902 = vadd.f32 %v8479, %v9390
  %v9903 = vadd.f32 %v8480, %v9392
  %v9904 = vadd.f32 %v8481, %v9394
  %v9905 = vadd.f32 %v8482, %v9396
  %v9906 = vadd.f32 %v8483, %v9400
  %v9907 = vadd.f32 %v8484, %v9403
  %v9908 = vadd.f32 %v8485, %v9406
  %v9909 = vadd.f32 %v8486, %v9409
  %v9910 = vadd.f32 %v8487, %v9411
  %v9911 = vadd.f32 %v8488, %v9413
  %v9912 = vadd.f32 %v8489, %v9415
  %v9913 = vadd.f32 %v8490, %v9417
  %v9914 = vadd.f32 %v8491, %v9419
  %v9915 = vadd.f32 %v8492, %v9421
  %v9916 = vadd.f32 %v8493, %v9423
  %v9917 = vadd.f32 %v8494, %v9425
  %v9918 = vadd.f32 %v8495, %v9418
  %v9919 = vadd.f32 %v8496, %v9420
  %v9920 = vadd.f32 %v8497, %v9422
  %v9921 = vadd.f32 %v8498, %v9424
  %v9922 = vadd.f32 %v8499, %v9428
  %v9923 = vadd.f32 %v8500, %v9431
  %v9924 = vadd.f32 %v8501, %v9434
  %v9925 = vadd.f32 %v8502, %v9437
  %v9926 = vadd.f32 %v8503, %v9439
  %v9927 = vadd.f32 %v8504, %v9441
  %v9928 = vadd.f32 %v8505, %v9443
  %v9929 = vadd.f32 %v8506, %v9445
  %v9930 = vadd.f32 %v8507, %v9447
  %v9931 = vadd.f32 %v8508, %v9449
  %v9932 = vadd.f32 %v8509, %v9451
  %v9933 = vadd.f32 %v8510, %v9453
  %v9934 = vadd.f32 %v8511, %v9446
  %v9935 = vadd.f32 %v8512, %v9448
  %v9936 = vadd.f32 %v8513, %v9450
  %v9937 = vadd.f32 %v8514, %v9452
  %v9938 = vadd.f32 %v8515, %v9456
  %v9939 = vadd.f32 %v8516, %v9459
  %v9940 = vadd.f32 %v8517, %v9462
  %v9941 = vadd.f32 %v8518, %v9465
  %v9942 = vadd.f32 %v8519, %v9467
  %v9943 = vadd.f32 %v8520, %v9469
  %v9944 = vadd.f32 %v8521, %v9471
  %v9945 = vadd.f32 %v8522, %v9473
  %v9946 = vadd.f32 %v8523, %v9475
  %v9947 = vadd.f32 %v8524, %v9477
  %v9948 = vadd.f32 %v8525, %v9479
  %v9949 = vadd.f32 %v8526, %v9481
  %v9950 = vadd.f32 %v8527, %v9474
  %v9951 = vadd.f32 %v8528, %v9476
  %v9952 = vadd.f32 %v8529, %v9478
  %v9953 = vadd.f32 %v8530, %v9480
  %v9954 = vadd.f32 %v8531, %v9484
  %v9955 = vadd.f32 %v8532, %v9487
  %v9956 = vadd.f32 %v8533, %v9490
  %v9957 = vadd.f32 %v8534, %v9493
  %v9958 = vadd.f32 %v8535, %v9495
  %v9959 = vadd.f32 %v8536, %v9497
  %v9960 = vadd.f32 %v8537, %v9499
  %v9961 = vadd.f32 %v8538, %v9501
  %v9962 = vadd.f32 %v8539, %v9503
  %v9963 = vadd.f32 %v8540, %v9505
  %v9964 = vadd.f32 %v8541, %v9507
  %v9965 = vadd.f32 %v8542, %v9509
  %v9966 = vadd.f32 %v8543, %v9502
  %v9967 = vadd.f32 %v8544, %v9504
  %v9968 = vadd.f32 %v8545, %v9506
  %v9969 = vadd.f32 %v8546, %v9508
  %v9970 = vadd.f32 %v8547, %v9512
  %v9971 = vadd.f32 %v8548, %v9515
  %v9972 = vadd.f32 %v8549, %v9518
  %v9973 = vadd.f32 %v8550, %v9521
  %v9974 = vadd.f32 %v8551, %v9523
  %v9975 = vadd.f32 %v8552, %v9525
  %v9976 = vadd.f32 %v8553, %v9527
  %v9977 = vadd.f32 %v8554, %v9529
  %v9978 = vadd.f32 %v8555, %v9531
  %v9979 = vadd.f32 %v8556, %v9533
  %v9980 = vadd.f32 %v8557, %v9535
  %v9981 = vadd.f32 %v8558, %v9537
  %v9982 = vadd.f32 %v8559, %v9530
  %v9983 = vadd.f32 %v8560, %v9532
  %v9984 = vadd.f32 %v8561, %v9534
  %v9985 = vadd.f32 %v8562, %v9536
  %v9986 = vld [vmem:[%s666] sm:$0xff]
  %v9987 = vld [vmem:[%s666 + $0x8] sm:$0xff]
  %v9988 = vld [vmem:[%s666 + $0x10] sm:$0xff]
  %v9989 = vld [vmem:[%s666 + $0x18] sm:$0xff]
  %v9990 = vld [vmem:[%s666 + $0x20] sm:$0xff]
  %v9991 = vld [vmem:[%s666 + $0x28] sm:$0xff]
  %v9992 = vld [vmem:[%s666 + $0x30] sm:$0xff]
  %v9993 = vld [vmem:[%s666 + $0x38] sm:$0xff]
  %v9994 = vld [vmem:[%s666 + $0x40] sm:$0xff]
  %v9995 = vld [vmem:[%s666 + $0x48] sm:$0xff]
  %v9996 = vld [vmem:[%s666 + $0x50] sm:$0xff]
  %v9997 = vld [vmem:[%s666 + $0x58] sm:$0xff]
  %v9998 = vld [vmem:[%s666 + $0x60] sm:$0xf]
  %v9999 = vld [vmem:[%s666 + $0x68] sm:$0xf]
  %v10000 = vld [vmem:[%s666 + $0x70] sm:$0xf]
  %v10001 = vld [vmem:[%s666 + $0x78] sm:$0xf]
  %v10002 = vld [vmem:[%s666 + $0x80] sm:$0xff]
  %v10003 = vld [vmem:[%s666 + $0x88] sm:$0xff]
  %v10004 = vld [vmem:[%s666 + $0x90] sm:$0xff]
  %v10005 = vld [vmem:[%s666 + $0x98] sm:$0xff]
  %v10006 = vld [vmem:[%s666 + $0xa0] sm:$0xff]
  %v10007 = vld [vmem:[%s666 + $0xa8] sm:$0xff]
  %v10008 = vld [vmem:[%s666 + $0xb0] sm:$0xff]
  %v10009 = vld [vmem:[%s666 + $0xb8] sm:$0xff]
  %v10010 = vld [vmem:[%s666 + $0xc0] sm:$0xff]
  %v10011 = vld [vmem:[%s666 + $0xc8] sm:$0xff]
  %v10012 = vld [vmem:[%s666 + $0xd0] sm:$0xff]
  %v10013 = vld [vmem:[%s666 + $0xd8] sm:$0xff]
  %v10014 = vld [vmem:[%s666 + $0xe0] sm:$0xf]
  %v10015 = vld [vmem:[%s666 + $0xe8] sm:$0xf]
  %v10016 = vld [vmem:[%s666 + $0xf0] sm:$0xf]
  %v10017 = vld [vmem:[%s666 + $0xf8] sm:$0xf]
  %v10018 = vld [vmem:[%s666 + $0x100] sm:$0xff]
  %v10019 = vld [vmem:[%s666 + $0x108] sm:$0xff]
  %v10020 = vld [vmem:[%s666 + $0x110] sm:$0xff]
  %v10021 = vld [vmem:[%s666 + $0x118] sm:$0xff]
  %v10022 = vld [vmem:[%s666 + $0x120] sm:$0xff]
  %v10023 = vld [vmem:[%s666 + $0x128] sm:$0xff]
  %v10024 = vld [vmem:[%s666 + $0x130] sm:$0xff]
  %v10025 = vld [vmem:[%s666 + $0x138] sm:$0xff]
  %v10026 = vld [vmem:[%s666 + $0x140] sm:$0xff]
  %v10027 = vld [vmem:[%s666 + $0x148] sm:$0xff]
  %v10028 = vld [vmem:[%s666 + $0x150] sm:$0xff]
  %v10029 = vld [vmem:[%s666 + $0x158] sm:$0xff]
  %v10030 = vld [vmem:[%s666 + $0x160] sm:$0xf]
  %v10031 = vld [vmem:[%s666 + $0x168] sm:$0xf]
  %v10032 = vld [vmem:[%s666 + $0x170] sm:$0xf]
  %v10033 = vld [vmem:[%s666 + $0x178] sm:$0xf]
  %v10034 = vld [vmem:[%s666 + $0x180] sm:$0xff]
  %v10035 = vld [vmem:[%s666 + $0x188] sm:$0xff]
  %v10036 = vld [vmem:[%s666 + $0x190] sm:$0xff]
  %v10037 = vld [vmem:[%s666 + $0x198] sm:$0xff]
  %v10038 = vld [vmem:[%s666 + $0x1a0] sm:$0xff]
  %v10039 = vld [vmem:[%s666 + $0x1a8] sm:$0xff]
  %v10040 = vld [vmem:[%s666 + $0x1b0] sm:$0xff]
  %v10041 = vld [vmem:[%s666 + $0x1b8] sm:$0xff]
  %v10042 = vld [vmem:[%s666 + $0x1c0] sm:$0xff]
  %v10043 = vld [vmem:[%s666 + $0x1c8] sm:$0xff]
  %v10044 = vld [vmem:[%s666 + $0x1d0] sm:$0xff]
  %v10045 = vld [vmem:[%s666 + $0x1d8] sm:$0xff]
  %v10046 = vld [vmem:[%s666 + $0x1e0] sm:$0xf]
  %v10047 = vld [vmem:[%s666 + $0x1e8] sm:$0xf]
  %v10048 = vld [vmem:[%s666 + $0x1f0] sm:$0xf]
  %v10049 = vld [vmem:[%s666 + $0x1f8] sm:$0xf]
  %v10050 = vld [vmem:[%s666 + $0x200] sm:$0xff]
  %v10051 = vld [vmem:[%s666 + $0x208] sm:$0xff]
  %v10052 = vld [vmem:[%s666 + $0x210] sm:$0xff]
  %v10053 = vld [vmem:[%s666 + $0x218] sm:$0xff]
  %v10054 = vld [vmem:[%s666 + $0x220] sm:$0xff]
  %v10055 = vld [vmem:[%s666 + $0x228] sm:$0xff]
  %v10056 = vld [vmem:[%s666 + $0x230] sm:$0xff]
  %v10057 = vld [vmem:[%s666 + $0x238] sm:$0xff]
  %v10058 = vld [vmem:[%s666 + $0x240] sm:$0xff]
  %v10059 = vld [vmem:[%s666 + $0x248] sm:$0xff]
  %v10060 = vld [vmem:[%s666 + $0x250] sm:$0xff]
  %v10061 = vld [vmem:[%s666 + $0x258] sm:$0xff]
  %v10062 = vld [vmem:[%s666 + $0x260] sm:$0xf]
  %v10063 = vld [vmem:[%s666 + $0x268] sm:$0xf]
  %v10064 = vld [vmem:[%s666 + $0x270] sm:$0xf]
  %v10065 = vld [vmem:[%s666 + $0x278] sm:$0xf]
  %v10066 = vld [vmem:[%s666 + $0x280] sm:$0xff]
  %v10067 = vld [vmem:[%s666 + $0x288] sm:$0xff]
  %v10068 = vld [vmem:[%s666 + $0x290] sm:$0xff]
  %v10069 = vld [vmem:[%s666 + $0x298] sm:$0xff]
  %v10070 = vld [vmem:[%s666 + $0x2a0] sm:$0xff]
  %v10071 = vld [vmem:[%s666 + $0x2a8] sm:$0xff]
  %v10072 = vld [vmem:[%s666 + $0x2b0] sm:$0xff]
  %v10073 = vld [vmem:[%s666 + $0x2b8] sm:$0xff]
  %v10074 = vld [vmem:[%s666 + $0x2c0] sm:$0xff]
  %v10075 = vld [vmem:[%s666 + $0x2c8] sm:$0xff]
  %v10076 = vld [vmem:[%s666 + $0x2d0] sm:$0xff]
  %v10077 = vld [vmem:[%s666 + $0x2d8] sm:$0xff]
  %v10078 = vld [vmem:[%s666 + $0x2e0] sm:$0xf]
  %v10079 = vld [vmem:[%s666 + $0x2e8] sm:$0xf]
  %v10080 = vld [vmem:[%s666 + $0x2f0] sm:$0xf]
  %v10081 = vld [vmem:[%s666 + $0x2f8] sm:$0xf]
  %v10082 = vld [vmem:[%s666 + $0x300] sm:$0xff]
  %v10083 = vld [vmem:[%s666 + $0x308] sm:$0xff]
  %v10084 = vld [vmem:[%s666 + $0x310] sm:$0xff]
  %v10085 = vld [vmem:[%s666 + $0x318] sm:$0xff]
  %v10086 = vld [vmem:[%s666 + $0x320] sm:$0xff]
  %v10087 = vld [vmem:[%s666 + $0x328] sm:$0xff]
  %v10088 = vld [vmem:[%s666 + $0x330] sm:$0xff]
  %v10089 = vld [vmem:[%s666 + $0x338] sm:$0xff]
  %v10090 = vld [vmem:[%s666 + $0x340] sm:$0xff]
  %v10091 = vld [vmem:[%s666 + $0x348] sm:$0xff]
  %v10092 = vld [vmem:[%s666 + $0x350] sm:$0xff]
  %v10093 = vld [vmem:[%s666 + $0x358] sm:$0xff]
  %v10094 = vld [vmem:[%s666 + $0x360] sm:$0xf]
  %v10095 = vld [vmem:[%s666 + $0x368] sm:$0xf]
  %v10096 = vld [vmem:[%s666 + $0x370] sm:$0xf]
  %v10097 = vld [vmem:[%s666 + $0x378] sm:$0xf]
  %v10098 = vld [vmem:[%s666 + $0x380] sm:$0xff]
  %v10099 = vld [vmem:[%s666 + $0x388] sm:$0xff]
  %v10100 = vld [vmem:[%s666 + $0x390] sm:$0xff]
  %v10101 = vld [vmem:[%s666 + $0x398] sm:$0xff]
  %v10102 = vld [vmem:[%s666 + $0x3a0] sm:$0xff]
  %v10103 = vld [vmem:[%s666 + $0x3a8] sm:$0xff]
  %v10104 = vld [vmem:[%s666 + $0x3b0] sm:$0xff]
  %v10105 = vld [vmem:[%s666 + $0x3b8] sm:$0xff]
  %v10106 = vld [vmem:[%s666 + $0x3c0] sm:$0xff]
  %v10107 = vld [vmem:[%s666 + $0x3c8] sm:$0xff]
  %v10108 = vld [vmem:[%s666 + $0x3d0] sm:$0xff]
  %v10109 = vld [vmem:[%s666 + $0x3d8] sm:$0xff]
  %v10110 = vld [vmem:[%s666 + $0x3e0] sm:$0xf]
  %v10111 = vld [vmem:[%s666 + $0x3e8] sm:$0xf]
  %v10112 = vld [vmem:[%s666 + $0x3f0] sm:$0xf]
  %v10113 = vld [vmem:[%s666 + $0x3f8] sm:$0xf]
  %v10114 = vld [vmem:[%s666 + $0x400] sm:$0xff]
  %v10115 = vld [vmem:[%s666 + $0x408] sm:$0xff]
  %v10116 = vld [vmem:[%s666 + $0x410] sm:$0xff]
  %v10117 = vld [vmem:[%s666 + $0x418] sm:$0xff]
  %v10118 = vld [vmem:[%s666 + $0x420] sm:$0xff]
  %v10119 = vld [vmem:[%s666 + $0x428] sm:$0xff]
  %v10120 = vld [vmem:[%s666 + $0x430] sm:$0xff]
  %v10121 = vld [vmem:[%s666 + $0x438] sm:$0xff]
  %v10122 = vld [vmem:[%s666 + $0x440] sm:$0xff]
  %v10123 = vld [vmem:[%s666 + $0x448] sm:$0xff]
  %v10124 = vld [vmem:[%s666 + $0x450] sm:$0xff]
  %v10125 = vld [vmem:[%s666 + $0x458] sm:$0xff]
  %v10126 = vld [vmem:[%s666 + $0x460] sm:$0xf]
  %v10127 = vld [vmem:[%s666 + $0x468] sm:$0xf]
  %v10128 = vld [vmem:[%s666 + $0x470] sm:$0xf]
  %v10129 = vld [vmem:[%s666 + $0x478] sm:$0xf]
  %v10130 = vld [vmem:[%s666 + $0x480] sm:$0xff]
  %v10131 = vld [vmem:[%s666 + $0x488] sm:$0xff]
  %v10132 = vld [vmem:[%s666 + $0x490] sm:$0xff]
  %v10133 = vld [vmem:[%s666 + $0x498] sm:$0xff]
  %v10134 = vld [vmem:[%s666 + $0x4a0] sm:$0xff]
  %v10135 = vld [vmem:[%s666 + $0x4a8] sm:$0xff]
  %v10136 = vld [vmem:[%s666 + $0x4b0] sm:$0xff]
  %v10137 = vld [vmem:[%s666 + $0x4b8] sm:$0xff]
  %v10138 = vld [vmem:[%s666 + $0x4c0] sm:$0xff]
  %v10139 = vld [vmem:[%s666 + $0x4c8] sm:$0xff]
  %v10140 = vld [vmem:[%s666 + $0x4d0] sm:$0xff]
  %v10141 = vld [vmem:[%s666 + $0x4d8] sm:$0xff]
  %v10142 = vld [vmem:[%s666 + $0x4e0] sm:$0xf]
  %v10143 = vld [vmem:[%s666 + $0x4e8] sm:$0xf]
  %v10144 = vld [vmem:[%s666 + $0x4f0] sm:$0xf]
  %v10145 = vld [vmem:[%s666 + $0x4f8] sm:$0xf]
  %v10146 = vld [vmem:[%s666 + $0x500] sm:$0xff]
  %v10147 = vld [vmem:[%s666 + $0x508] sm:$0xff]
  %v10148 = vld [vmem:[%s666 + $0x510] sm:$0xff]
  %v10149 = vld [vmem:[%s666 + $0x518] sm:$0xff]
  %v10150 = vld [vmem:[%s666 + $0x520] sm:$0xff]
  %v10151 = vld [vmem:[%s666 + $0x528] sm:$0xff]
  %v10152 = vld [vmem:[%s666 + $0x530] sm:$0xff]
  %v10153 = vld [vmem:[%s666 + $0x538] sm:$0xff]
  %v10154 = vld [vmem:[%s666 + $0x540] sm:$0xff]
  %v10155 = vld [vmem:[%s666 + $0x548] sm:$0xff]
  %v10156 = vld [vmem:[%s666 + $0x550] sm:$0xff]
  %v10157 = vld [vmem:[%s666 + $0x558] sm:$0xff]
  %v10158 = vld [vmem:[%s666 + $0x560] sm:$0xf]
  %v10159 = vld [vmem:[%s666 + $0x568] sm:$0xf]
  %v10160 = vld [vmem:[%s666 + $0x570] sm:$0xf]
  %v10161 = vld [vmem:[%s666 + $0x578] sm:$0xf]
  %v10162 = vld [vmem:[%s666 + $0x580] sm:$0xff]
  %v10163 = vld [vmem:[%s666 + $0x588] sm:$0xff]
  %v10164 = vld [vmem:[%s666 + $0x590] sm:$0xff]
  %v10165 = vld [vmem:[%s666 + $0x598] sm:$0xff]
  %v10166 = vld [vmem:[%s666 + $0x5a0] sm:$0xff]
  %v10167 = vld [vmem:[%s666 + $0x5a8] sm:$0xff]
  %v10168 = vld [vmem:[%s666 + $0x5b0] sm:$0xff]
  %v10169 = vld [vmem:[%s666 + $0x5b8] sm:$0xff]
  %v10170 = vld [vmem:[%s666 + $0x5c0] sm:$0xff]
  %v10171 = vld [vmem:[%s666 + $0x5c8] sm:$0xff]
  %v10172 = vld [vmem:[%s666 + $0x5d0] sm:$0xff]
  %v10173 = vld [vmem:[%s666 + $0x5d8] sm:$0xff]
  %v10174 = vld [vmem:[%s666 + $0x5e0] sm:$0xf]
  %v10175 = vld [vmem:[%s666 + $0x5e8] sm:$0xf]
  %v10176 = vld [vmem:[%s666 + $0x5f0] sm:$0xf]
  %v10177 = vld [vmem:[%s666 + $0x5f8] sm:$0xf]
  %v10178 = vld [vmem:[%s666 + $0x600] sm:$0xff]
  %v10179 = vld [vmem:[%s666 + $0x608] sm:$0xff]
  %v10180 = vld [vmem:[%s666 + $0x610] sm:$0xff]
  %v10181 = vld [vmem:[%s666 + $0x618] sm:$0xff]
  %v10182 = vld [vmem:[%s666 + $0x620] sm:$0xff]
  %v10183 = vld [vmem:[%s666 + $0x628] sm:$0xff]
  %v10184 = vld [vmem:[%s666 + $0x630] sm:$0xff]
  %v10185 = vld [vmem:[%s666 + $0x638] sm:$0xff]
  %v10186 = vld [vmem:[%s666 + $0x640] sm:$0xff]
  %v10187 = vld [vmem:[%s666 + $0x648] sm:$0xff]
  %v10188 = vld [vmem:[%s666 + $0x650] sm:$0xff]
  %v10189 = vld [vmem:[%s666 + $0x658] sm:$0xff]
  %v10190 = vld [vmem:[%s666 + $0x660] sm:$0xf]
  %v10191 = vld [vmem:[%s666 + $0x668] sm:$0xf]
  %v10192 = vld [vmem:[%s666 + $0x670] sm:$0xf]
  %v10193 = vld [vmem:[%s666 + $0x678] sm:$0xf]
  %v10194 = vld [vmem:[%s666 + $0x680] sm:$0xff]
  %v10195 = vld [vmem:[%s666 + $0x688] sm:$0xff]
  %v10196 = vld [vmem:[%s666 + $0x690] sm:$0xff]
  %v10197 = vld [vmem:[%s666 + $0x698] sm:$0xff]
  %v10198 = vld [vmem:[%s666 + $0x6a0] sm:$0xff]
  %v10199 = vld [vmem:[%s666 + $0x6a8] sm:$0xff]
  %v10200 = vld [vmem:[%s666 + $0x6b0] sm:$0xff]
  %v10201 = vld [vmem:[%s666 + $0x6b8] sm:$0xff]
  %v10202 = vld [vmem:[%s666 + $0x6c0] sm:$0xff]
  %v10203 = vld [vmem:[%s666 + $0x6c8] sm:$0xff]
  %v10204 = vld [vmem:[%s666 + $0x6d0] sm:$0xff]
  %v10205 = vld [vmem:[%s666 + $0x6d8] sm:$0xff]
  %v10206 = vld [vmem:[%s666 + $0x6e0] sm:$0xf]
  %v10207 = vld [vmem:[%s666 + $0x6e8] sm:$0xf]
  %v10208 = vld [vmem:[%s666 + $0x6f0] sm:$0xf]
  %v10209 = vld [vmem:[%s666 + $0x6f8] sm:$0xf]
  %s10210 = scalar_lea.vmem %s1, 32
  %v10211 = vld [vmem:[%s10210] ss:$4 sm:$0xf]
  %v10213 = vlaneseq
  %v10214 = vshrl.u32 %v10213, 7
  %v10215 = vsub.s32 0, %v10214
  %v10216 = vrot.slane %v10211, %v10215
  %v10217 = vlaneseq
  %v10218 = vshrl.u32 %v10217, 7
  %v10219 = vsub.s32 1, %v10218
  %v10220 = vrot.slane %v10211, %v10219
  %v10221 = vlaneseq
  %v10222 = vshrl.u32 %v10221, 7
  %v10223 = vsub.s32 2, %v10222
  %v10224 = vrot.slane %v10211, %v10223
  %v10225 = vlaneseq
  %v10226 = vshrl.u32 %v10225, 7
  %v10227 = vsub.s32 3, %v10226
  %v10228 = vrot.slane %v10211, %v10227
  %v10233 = vmul.f32 %v9986, %v10216
  %v10234 = vmul.f32 %v9987, %v10220
  %v10235 = vmul.f32 %v9988, %v10224
  %v10236 = vmul.f32 %v9989, %v10228
  %v10237 = vmul.f32 %v9990, %v10216
  %v10238 = vmul.f32 %v9991, %v10220
  %v10239 = vmul.f32 %v9992, %v10224
  %v10240 = vmul.f32 %v9993, %v10228
  %v10241 = vmul.f32 %v9994, %v10216
  %v10242 = vmul.f32 %v9995, %v10220
  %v10243 = vmul.f32 %v9996, %v10224
  %v10244 = vmul.f32 %v9997, %v10228
  %v10245 = vmul.f32 %v9998, %v10216
  %v10246 = vmul.f32 %v9999, %v10220
  %v10247 = vmul.f32 %v10000, %v10224
  %v10248 = vmul.f32 %v10001, %v10228
  %v10249 = vmul.f32 %v10002, %v10216
  %v10250 = vmul.f32 %v10003, %v10220
  %v10251 = vmul.f32 %v10004, %v10224
  %v10252 = vmul.f32 %v10005, %v10228
  %v10253 = vmul.f32 %v10006, %v10216
  %v10254 = vmul.f32 %v10007, %v10220
  %v10255 = vmul.f32 %v10008, %v10224
  %v10256 = vmul.f32 %v10009, %v10228
  %v10257 = vmul.f32 %v10010, %v10216
  %v10258 = vmul.f32 %v10011, %v10220
  %v10259 = vmul.f32 %v10012, %v10224
  %v10260 = vmul.f32 %v10013, %v10228
  %v10261 = vmul.f32 %v10014, %v10216
  %v10262 = vmul.f32 %v10015, %v10220
  %v10263 = vmul.f32 %v10016, %v10224
  %v10264 = vmul.f32 %v10017, %v10228
  %v10265 = vmul.f32 %v10018, %v10216
  %v10266 = vmul.f32 %v10019, %v10220
  %v10267 = vmul.f32 %v10020, %v10224
  %v10268 = vmul.f32 %v10021, %v10228
  %v10269 = vmul.f32 %v10022, %v10216
  %v10270 = vmul.f32 %v10023, %v10220
  %v10271 = vmul.f32 %v10024, %v10224
  %v10272 = vmul.f32 %v10025, %v10228
  %v10273 = vmul.f32 %v10026, %v10216
  %v10274 = vmul.f32 %v10027, %v10220
  %v10275 = vmul.f32 %v10028, %v10224
  %v10276 = vmul.f32 %v10029, %v10228
  %v10277 = vmul.f32 %v10030, %v10216
  %v10278 = vmul.f32 %v10031, %v10220
  %v10279 = vmul.f32 %v10032, %v10224
  %v10280 = vmul.f32 %v10033, %v10228
  %v10281 = vmul.f32 %v10034, %v10216
  %v10282 = vmul.f32 %v10035, %v10220
  %v10283 = vmul.f32 %v10036, %v10224
  %v10284 = vmul.f32 %v10037, %v10228
  %v10285 = vmul.f32 %v10038, %v10216
  %v10286 = vmul.f32 %v10039, %v10220
  %v10287 = vmul.f32 %v10040, %v10224
  %v10288 = vmul.f32 %v10041, %v10228
  %v10289 = vmul.f32 %v10042, %v10216
  %v10290 = vmul.f32 %v10043, %v10220
  %v10291 = vmul.f32 %v10044, %v10224
  %v10292 = vmul.f32 %v10045, %v10228
  %v10293 = vmul.f32 %v10046, %v10216
  %v10294 = vmul.f32 %v10047, %v10220
  %v10295 = vmul.f32 %v10048, %v10224
  %v10296 = vmul.f32 %v10049, %v10228
  %v10297 = vmul.f32 %v10050, %v10216
  %v10298 = vmul.f32 %v10051, %v10220
  %v10299 = vmul.f32 %v10052, %v10224
  %v10300 = vmul.f32 %v10053, %v10228
  %v10301 = vmul.f32 %v10054, %v10216
  %v10302 = vmul.f32 %v10055, %v10220
  %v10303 = vmul.f32 %v10056, %v10224
  %v10304 = vmul.f32 %v10057, %v10228
  %v10305 = vmul.f32 %v10058, %v10216
  %v10306 = vmul.f32 %v10059, %v10220
  %v10307 = vmul.f32 %v10060, %v10224
  %v10308 = vmul.f32 %v10061, %v10228
  %v10309 = vmul.f32 %v10062, %v10216
  %v10310 = vmul.f32 %v10063, %v10220
  %v10311 = vmul.f32 %v10064, %v10224
  %v10312 = vmul.f32 %v10065, %v10228
  %v10313 = vmul.f32 %v10066, %v10216
  %v10314 = vmul.f32 %v10067, %v10220
  %v10315 = vmul.f32 %v10068, %v10224
  %v10316 = vmul.f32 %v10069, %v10228
  %v10317 = vmul.f32 %v10070, %v10216
  %v10318 = vmul.f32 %v10071, %v10220
  %v10319 = vmul.f32 %v10072, %v10224
  %v10320 = vmul.f32 %v10073, %v10228
  %v10321 = vmul.f32 %v10074, %v10216
  %v10322 = vmul.f32 %v10075, %v10220
  %v10323 = vmul.f32 %v10076, %v10224
  %v10324 = vmul.f32 %v10077, %v10228
  %v10325 = vmul.f32 %v10078, %v10216
  %v10326 = vmul.f32 %v10079, %v10220
  %v10327 = vmul.f32 %v10080, %v10224
  %v10328 = vmul.f32 %v10081, %v10228
  %v10329 = vmul.f32 %v10082, %v10216
  %v10330 = vmul.f32 %v10083, %v10220
  %v10331 = vmul.f32 %v10084, %v10224
  %v10332 = vmul.f32 %v10085, %v10228
  %v10333 = vmul.f32 %v10086, %v10216
  %v10334 = vmul.f32 %v10087, %v10220
  %v10335 = vmul.f32 %v10088, %v10224
  %v10336 = vmul.f32 %v10089, %v10228
  %v10337 = vmul.f32 %v10090, %v10216
  %v10338 = vmul.f32 %v10091, %v10220
  %v10339 = vmul.f32 %v10092, %v10224
  %v10340 = vmul.f32 %v10093, %v10228
  %v10341 = vmul.f32 %v10094, %v10216
  %v10342 = vmul.f32 %v10095, %v10220
  %v10343 = vmul.f32 %v10096, %v10224
  %v10344 = vmul.f32 %v10097, %v10228
  %v10345 = vmul.f32 %v10098, %v10216
  %v10346 = vmul.f32 %v10099, %v10220
  %v10347 = vmul.f32 %v10100, %v10224
  %v10348 = vmul.f32 %v10101, %v10228
  %v10349 = vmul.f32 %v10102, %v10216
  %v10350 = vmul.f32 %v10103, %v10220
  %v10351 = vmul.f32 %v10104, %v10224
  %v10352 = vmul.f32 %v10105, %v10228
  %v10353 = vmul.f32 %v10106, %v10216
  %v10354 = vmul.f32 %v10107, %v10220
  %v10355 = vmul.f32 %v10108, %v10224
  %v10356 = vmul.f32 %v10109, %v10228
  %v10357 = vmul.f32 %v10110, %v10216
  %v10358 = vmul.f32 %v10111, %v10220
  %v10359 = vmul.f32 %v10112, %v10224
  %v10360 = vmul.f32 %v10113, %v10228
  %v10361 = vmul.f32 %v10114, %v10216
  %v10362 = vmul.f32 %v10115, %v10220
  %v10363 = vmul.f32 %v10116, %v10224
  %v10364 = vmul.f32 %v10117, %v10228
  %v10365 = vmul.f32 %v10118, %v10216
  %v10366 = vmul.f32 %v10119, %v10220
  %v10367 = vmul.f32 %v10120, %v10224
  %v10368 = vmul.f32 %v10121, %v10228
  %v10369 = vmul.f32 %v10122, %v10216
  %v10370 = vmul.f32 %v10123, %v10220
  %v10371 = vmul.f32 %v10124, %v10224
  %v10372 = vmul.f32 %v10125, %v10228
  %v10373 = vmul.f32 %v10126, %v10216
  %v10374 = vmul.f32 %v10127, %v10220
  %v10375 = vmul.f32 %v10128, %v10224
  %v10376 = vmul.f32 %v10129, %v10228
  %v10377 = vmul.f32 %v10130, %v10216
  %v10378 = vmul.f32 %v10131, %v10220
  %v10379 = vmul.f32 %v10132, %v10224
  %v10380 = vmul.f32 %v10133, %v10228
  %v10381 = vmul.f32 %v10134, %v10216
  %v10382 = vmul.f32 %v10135, %v10220
  %v10383 = vmul.f32 %v10136, %v10224
  %v10384 = vmul.f32 %v10137, %v10228
  %v10385 = vmul.f32 %v10138, %v10216
  %v10386 = vmul.f32 %v10139, %v10220
  %v10387 = vmul.f32 %v10140, %v10224
  %v10388 = vmul.f32 %v10141, %v10228
  %v10389 = vmul.f32 %v10142, %v10216
  %v10390 = vmul.f32 %v10143, %v10220
  %v10391 = vmul.f32 %v10144, %v10224
  %v10392 = vmul.f32 %v10145, %v10228
  %v10393 = vmul.f32 %v10146, %v10216
  %v10394 = vmul.f32 %v10147, %v10220
  %v10395 = vmul.f32 %v10148, %v10224
  %v10396 = vmul.f32 %v10149, %v10228
  %v10397 = vmul.f32 %v10150, %v10216
  %v10398 = vmul.f32 %v10151, %v10220
  %v10399 = vmul.f32 %v10152, %v10224
  %v10400 = vmul.f32 %v10153, %v10228
  %v10401 = vmul.f32 %v10154, %v10216
  %v10402 = vmul.f32 %v10155, %v10220
  %v10403 = vmul.f32 %v10156, %v10224
  %v10404 = vmul.f32 %v10157, %v10228
  %v10405 = vmul.f32 %v10158, %v10216
  %v10406 = vmul.f32 %v10159, %v10220
  %v10407 = vmul.f32 %v10160, %v10224
  %v10408 = vmul.f32 %v10161, %v10228
  %v10409 = vmul.f32 %v10162, %v10216
  %v10410 = vmul.f32 %v10163, %v10220
  %v10411 = vmul.f32 %v10164, %v10224
  %v10412 = vmul.f32 %v10165, %v10228
  %v10413 = vmul.f32 %v10166, %v10216
  %v10414 = vmul.f32 %v10167, %v10220
  %v10415 = vmul.f32 %v10168, %v10224
  %v10416 = vmul.f32 %v10169, %v10228
  %v10417 = vmul.f32 %v10170, %v10216
  %v10418 = vmul.f32 %v10171, %v10220
  %v10419 = vmul.f32 %v10172, %v10224
  %v10420 = vmul.f32 %v10173, %v10228
  %v10421 = vmul.f32 %v10174, %v10216
  %v10422 = vmul.f32 %v10175, %v10220
  %v10423 = vmul.f32 %v10176, %v10224
  %v10424 = vmul.f32 %v10177, %v10228
  %v10425 = vmul.f32 %v10178, %v10216
  %v10426 = vmul.f32 %v10179, %v10220
  %v10427 = vmul.f32 %v10180, %v10224
  %v10428 = vmul.f32 %v10181, %v10228
  %v10429 = vmul.f32 %v10182, %v10216
  %v10430 = vmul.f32 %v10183, %v10220
  %v10431 = vmul.f32 %v10184, %v10224
  %v10432 = vmul.f32 %v10185, %v10228
  %v10433 = vmul.f32 %v10186, %v10216
  %v10434 = vmul.f32 %v10187, %v10220
  %v10435 = vmul.f32 %v10188, %v10224
  %v10436 = vmul.f32 %v10189, %v10228
  %v10437 = vmul.f32 %v10190, %v10216
  %v10438 = vmul.f32 %v10191, %v10220
  %v10439 = vmul.f32 %v10192, %v10224
  %v10440 = vmul.f32 %v10193, %v10228
  %v10441 = vmul.f32 %v10194, %v10216
  %v10442 = vmul.f32 %v10195, %v10220
  %v10443 = vmul.f32 %v10196, %v10224
  %v10444 = vmul.f32 %v10197, %v10228
  %v10445 = vmul.f32 %v10198, %v10216
  %v10446 = vmul.f32 %v10199, %v10220
  %v10447 = vmul.f32 %v10200, %v10224
  %v10448 = vmul.f32 %v10201, %v10228
  %v10449 = vmul.f32 %v10202, %v10216
  %v10450 = vmul.f32 %v10203, %v10220
  %v10451 = vmul.f32 %v10204, %v10224
  %v10452 = vmul.f32 %v10205, %v10228
  %v10453 = vmul.f32 %v10206, %v10216
  %v10454 = vmul.f32 %v10207, %v10220
  %v10455 = vmul.f32 %v10208, %v10224
  %v10456 = vmul.f32 %v10209, %v10228
  %v10457 = vadd.f32 %v9762, %v10233
  %v10458 = vadd.f32 %v9763, %v10234
  %v10459 = vadd.f32 %v9764, %v10235
  %v10460 = vadd.f32 %v9765, %v10236
  %v10461 = vadd.f32 %v9766, %v10237
  %v10462 = vadd.f32 %v9767, %v10238
  %v10463 = vadd.f32 %v9768, %v10239
  %v10464 = vadd.f32 %v9769, %v10240
  %v10465 = vadd.f32 %v9770, %v10241
  %v10466 = vadd.f32 %v9771, %v10242
  %v10467 = vadd.f32 %v9772, %v10243
  %v10468 = vadd.f32 %v9773, %v10244
  %v10469 = vadd.f32 %v9774, %v10245
  %v10470 = vadd.f32 %v9775, %v10246
  %v10471 = vadd.f32 %v9776, %v10247
  %v10472 = vadd.f32 %v9777, %v10248
  %v10473 = vadd.f32 %v9778, %v10249
  %v10474 = vadd.f32 %v9779, %v10250
  %v10475 = vadd.f32 %v9780, %v10251
  %v10476 = vadd.f32 %v9781, %v10252
  %v10477 = vadd.f32 %v9782, %v10253
  %v10478 = vadd.f32 %v9783, %v10254
  %v10479 = vadd.f32 %v9784, %v10255
  %v10480 = vadd.f32 %v9785, %v10256
  %v10481 = vadd.f32 %v9786, %v10257
  %v10482 = vadd.f32 %v9787, %v10258
  %v10483 = vadd.f32 %v9788, %v10259
  %v10484 = vadd.f32 %v9789, %v10260
  %v10485 = vadd.f32 %v9790, %v10261
  %v10486 = vadd.f32 %v9791, %v10262
  %v10487 = vadd.f32 %v9792, %v10263
  %v10488 = vadd.f32 %v9793, %v10264
  %v10489 = vadd.f32 %v9794, %v10265
  %v10490 = vadd.f32 %v9795, %v10266
  %v10491 = vadd.f32 %v9796, %v10267
  %v10492 = vadd.f32 %v9797, %v10268
  %v10493 = vadd.f32 %v9798, %v10269
  %v10494 = vadd.f32 %v9799, %v10270
  %v10495 = vadd.f32 %v9800, %v10271
  %v10496 = vadd.f32 %v9801, %v10272
  %v10497 = vadd.f32 %v9802, %v10273
  %v10498 = vadd.f32 %v9803, %v10274
  %v10499 = vadd.f32 %v9804, %v10275
  %v10500 = vadd.f32 %v9805, %v10276
  %v10501 = vadd.f32 %v9806, %v10277
  %v10502 = vadd.f32 %v9807, %v10278
  %v10503 = vadd.f32 %v9808, %v10279
  %v10504 = vadd.f32 %v9809, %v10280
  %v10505 = vadd.f32 %v9810, %v10281
  %v10506 = vadd.f32 %v9811, %v10282
  %v10507 = vadd.f32 %v9812, %v10283
  %v10508 = vadd.f32 %v9813, %v10284
  %v10509 = vadd.f32 %v9814, %v10285
  %v10510 = vadd.f32 %v9815, %v10286
  %v10511 = vadd.f32 %v9816, %v10287
  %v10512 = vadd.f32 %v9817, %v10288
  %v10513 = vadd.f32 %v9818, %v10289
  %v10514 = vadd.f32 %v9819, %v10290
  %v10515 = vadd.f32 %v9820, %v10291
  %v10516 = vadd.f32 %v9821, %v10292
  %v10517 = vadd.f32 %v9822, %v10293
  %v10518 = vadd.f32 %v9823, %v10294
  %v10519 = vadd.f32 %v9824, %v10295
  %v10520 = vadd.f32 %v9825, %v10296
  %v10521 = vadd.f32 %v9826, %v10297
  %v10522 = vadd.f32 %v9827, %v10298
  %v10523 = vadd.f32 %v9828, %v10299
  %v10524 = vadd.f32 %v9829, %v10300
  %v10525 = vadd.f32 %v9830, %v10301
  %v10526 = vadd.f32 %v9831, %v10302
  %v10527 = vadd.f32 %v9832, %v10303
  %v10528 = vadd.f32 %v9833, %v10304
  %v10529 = vadd.f32 %v9834, %v10305
  %v10530 = vadd.f32 %v9835, %v10306
  %v10531 = vadd.f32 %v9836, %v10307
  %v10532 = vadd.f32 %v9837, %v10308
  %v10533 = vadd.f32 %v9838, %v10309
  %v10534 = vadd.f32 %v9839, %v10310
  %v10535 = vadd.f32 %v9840, %v10311
  %v10536 = vadd.f32 %v9841, %v10312
  %v10537 = vadd.f32 %v9842, %v10313
  %v10538 = vadd.f32 %v9843, %v10314
  %v10539 = vadd.f32 %v9844, %v10315
  %v10540 = vadd.f32 %v9845, %v10316
  %v10541 = vadd.f32 %v9846, %v10317
  %v10542 = vadd.f32 %v9847, %v10318
  %v10543 = vadd.f32 %v9848, %v10319
  %v10544 = vadd.f32 %v9849, %v10320
  %v10545 = vadd.f32 %v9850, %v10321
  %v10546 = vadd.f32 %v9851, %v10322
  %v10547 = vadd.f32 %v9852, %v10323
  %v10548 = vadd.f32 %v9853, %v10324
  %v10549 = vadd.f32 %v9854, %v10325
  %v10550 = vadd.f32 %v9855, %v10326
  %v10551 = vadd.f32 %v9856, %v10327
  %v10552 = vadd.f32 %v9857, %v10328
  %v10553 = vadd.f32 %v9858, %v10329
  %v10554 = vadd.f32 %v9859, %v10330
  %v10555 = vadd.f32 %v9860, %v10331
  %v10556 = vadd.f32 %v9861, %v10332
  %v10557 = vadd.f32 %v9862, %v10333
  %v10558 = vadd.f32 %v9863, %v10334
  %v10559 = vadd.f32 %v9864, %v10335
  %v10560 = vadd.f32 %v9865, %v10336
  %v10561 = vadd.f32 %v9866, %v10337
  %v10562 = vadd.f32 %v9867, %v10338
  %v10563 = vadd.f32 %v9868, %v10339
  %v10564 = vadd.f32 %v9869, %v10340
  %v10565 = vadd.f32 %v9870, %v10341
  %v10566 = vadd.f32 %v9871, %v10342
  %v10567 = vadd.f32 %v9872, %v10343
  %v10568 = vadd.f32 %v9873, %v10344
  %v10569 = vadd.f32 %v9874, %v10345
  %v10570 = vadd.f32 %v9875, %v10346
  %v10571 = vadd.f32 %v9876, %v10347
  %v10572 = vadd.f32 %v9877, %v10348
  %v10573 = vadd.f32 %v9878, %v10349
  %v10574 = vadd.f32 %v9879, %v10350
  %v10575 = vadd.f32 %v9880, %v10351
  %v10576 = vadd.f32 %v9881, %v10352
  %v10577 = vadd.f32 %v9882, %v10353
  %v10578 = vadd.f32 %v9883, %v10354
  %v10579 = vadd.f32 %v9884, %v10355
  %v10580 = vadd.f32 %v9885, %v10356
  %v10581 = vadd.f32 %v9886, %v10357
  %v10582 = vadd.f32 %v9887, %v10358
  %v10583 = vadd.f32 %v9888, %v10359
  %v10584 = vadd.f32 %v9889, %v10360
  %v10585 = vadd.f32 %v9890, %v10361
  %v10586 = vadd.f32 %v9891, %v10362
  %v10587 = vadd.f32 %v9892, %v10363
  %v10588 = vadd.f32 %v9893, %v10364
  %v10589 = vadd.f32 %v9894, %v10365
  %v10590 = vadd.f32 %v9895, %v10366
  %v10591 = vadd.f32 %v9896, %v10367
  %v10592 = vadd.f32 %v9897, %v10368
  %v10593 = vadd.f32 %v9898, %v10369
  %v10594 = vadd.f32 %v9899, %v10370
  %v10595 = vadd.f32 %v9900, %v10371
  %v10596 = vadd.f32 %v9901, %v10372
  %v10597 = vadd.f32 %v9902, %v10373
  %v10598 = vadd.f32 %v9903, %v10374
  %v10599 = vadd.f32 %v9904, %v10375
  %v10600 = vadd.f32 %v9905, %v10376
  %v10601 = vadd.f32 %v9906, %v10377
  %v10602 = vadd.f32 %v9907, %v10378
  %v10603 = vadd.f32 %v9908, %v10379
  %v10604 = vadd.f32 %v9909, %v10380
  %v10605 = vadd.f32 %v9910, %v10381
  %v10606 = vadd.f32 %v9911, %v10382
  %v10607 = vadd.f32 %v9912, %v10383
  %v10608 = vadd.f32 %v9913, %v10384
  %v10609 = vadd.f32 %v9914, %v10385
  %v10610 = vadd.f32 %v9915, %v10386
  %v10611 = vadd.f32 %v9916, %v10387
  %v10612 = vadd.f32 %v9917, %v10388
  %v10613 = vadd.f32 %v9918, %v10389
  %v10614 = vadd.f32 %v9919, %v10390
  %v10615 = vadd.f32 %v9920, %v10391
  %v10616 = vadd.f32 %v9921, %v10392
  %v10617 = vadd.f32 %v9922, %v10393
  %v10618 = vadd.f32 %v9923, %v10394
  %v10619 = vadd.f32 %v9924, %v10395
  %v10620 = vadd.f32 %v9925, %v10396
  %v10621 = vadd.f32 %v9926, %v10397
  %v10622 = vadd.f32 %v9927, %v10398
  %v10623 = vadd.f32 %v9928, %v10399
  %v10624 = vadd.f32 %v9929, %v10400
  %v10625 = vadd.f32 %v9930, %v10401
  %v10626 = vadd.f32 %v9931, %v10402
  %v10627 = vadd.f32 %v9932, %v10403
  %v10628 = vadd.f32 %v9933, %v10404
  %v10629 = vadd.f32 %v9934, %v10405
  %v10630 = vadd.f32 %v9935, %v10406
  %v10631 = vadd.f32 %v9936, %v10407
  %v10632 = vadd.f32 %v9937, %v10408
  %v10633 = vadd.f32 %v9938, %v10409
  %v10634 = vadd.f32 %v9939, %v10410
  %v10635 = vadd.f32 %v9940, %v10411
  %v10636 = vadd.f32 %v9941, %v10412
  %v10637 = vadd.f32 %v9942, %v10413
  %v10638 = vadd.f32 %v9943, %v10414
  %v10639 = vadd.f32 %v9944, %v10415
  %v10640 = vadd.f32 %v9945, %v10416
  %v10641 = vadd.f32 %v9946, %v10417
  %v10642 = vadd.f32 %v9947, %v10418
  %v10643 = vadd.f32 %v9948, %v10419
  %v10644 = vadd.f32 %v9949, %v10420
  %v10645 = vadd.f32 %v9950, %v10421
  %v10646 = vadd.f32 %v9951, %v10422
  %v10647 = vadd.f32 %v9952, %v10423
  %v10648 = vadd.f32 %v9953, %v10424
  %v10649 = vadd.f32 %v9954, %v10425
  %v10650 = vadd.f32 %v9955, %v10426
  %v10651 = vadd.f32 %v9956, %v10427
  %v10652 = vadd.f32 %v9957, %v10428
  %v10653 = vadd.f32 %v9958, %v10429
  %v10654 = vadd.f32 %v9959, %v10430
  %v10655 = vadd.f32 %v9960, %v10431
  %v10656 = vadd.f32 %v9961, %v10432
  %v10657 = vadd.f32 %v9962, %v10433
  %v10658 = vadd.f32 %v9963, %v10434
  %v10659 = vadd.f32 %v9964, %v10435
  %v10660 = vadd.f32 %v9965, %v10436
  %v10661 = vadd.f32 %v9966, %v10437
  %v10662 = vadd.f32 %v9967, %v10438
  %v10663 = vadd.f32 %v9968, %v10439
  %v10664 = vadd.f32 %v9969, %v10440
  %v10665 = vadd.f32 %v9970, %v10441
  %v10666 = vadd.f32 %v9971, %v10442
  %v10667 = vadd.f32 %v9972, %v10443
  %v10668 = vadd.f32 %v9973, %v10444
  %v10669 = vadd.f32 %v9974, %v10445
  %v10670 = vadd.f32 %v9975, %v10446
  %v10671 = vadd.f32 %v9976, %v10447
  %v10672 = vadd.f32 %v9977, %v10448
  %v10673 = vadd.f32 %v9978, %v10449
  %v10674 = vadd.f32 %v9979, %v10450
  %v10675 = vadd.f32 %v9980, %v10451
  %v10676 = vadd.f32 %v9981, %v10452
  %v10677 = vadd.f32 %v9982, %v10453
  %v10678 = vadd.f32 %v9983, %v10454
  %v10679 = vadd.f32 %v9984, %v10455
  %v10680 = vadd.f32 %v9985, %v10456
  %v10681 = vld [vmem:[%s666] sm:$0xfe]
  %v10682 = vld [vmem:[%s666 + $0x8] sm:$0xfe]
  %v10683 = vld [vmem:[%s666 + $0x10] sm:$0xfe]
  %v10684 = vld [vmem:[%s666 + $0x18] sm:$0xfe]
  %v10685 = vld [vmem:[%s666 + $0x60] sm:$0x1f]
  %v10686 = vld [vmem:[%s666 + $0x68] sm:$0x1f]
  %v10687 = vld [vmem:[%s666 + $0x70] sm:$0x1f]
  %v10688 = vld [vmem:[%s666 + $0x78] sm:$0x1f]
  %v10689 = vld [vmem:[%s666 + $0x80] sm:$0xfe]
  %v10690 = vld [vmem:[%s666 + $0x88] sm:$0xfe]
  %v10691 = vld [vmem:[%s666 + $0x90] sm:$0xfe]
  %v10692 = vld [vmem:[%s666 + $0x98] sm:$0xfe]
  %v10693 = vld [vmem:[%s666 + $0xe0] sm:$0x1f]
  %v10694 = vld [vmem:[%s666 + $0xe8] sm:$0x1f]
  %v10695 = vld [vmem:[%s666 + $0xf0] sm:$0x1f]
  %v10696 = vld [vmem:[%s666 + $0xf8] sm:$0x1f]
  %v10697 = vld [vmem:[%s666 + $0x100] sm:$0xfe]
  %v10698 = vld [vmem:[%s666 + $0x108] sm:$0xfe]
  %v10699 = vld [vmem:[%s666 + $0x110] sm:$0xfe]
  %v10700 = vld [vmem:[%s666 + $0x118] sm:$0xfe]
  %v10701 = vld [vmem:[%s666 + $0x160] sm:$0x1f]
  %v10702 = vld [vmem:[%s666 + $0x168] sm:$0x1f]
  %v10703 = vld [vmem:[%s666 + $0x170] sm:$0x1f]
  %v10704 = vld [vmem:[%s666 + $0x178] sm:$0x1f]
  %v10705 = vld [vmem:[%s666 + $0x180] sm:$0xfe]
  %v10706 = vld [vmem:[%s666 + $0x188] sm:$0xfe]
  %v10707 = vld [vmem:[%s666 + $0x190] sm:$0xfe]
  %v10708 = vld [vmem:[%s666 + $0x198] sm:$0xfe]
  %v10709 = vld [vmem:[%s666 + $0x1e0] sm:$0x1f]
  %v10710 = vld [vmem:[%s666 + $0x1e8] sm:$0x1f]
  %v10711 = vld [vmem:[%s666 + $0x1f0] sm:$0x1f]
  %v10712 = vld [vmem:[%s666 + $0x1f8] sm:$0x1f]
  %v10713 = vld [vmem:[%s666 + $0x200] sm:$0xfe]
  %v10714 = vld [vmem:[%s666 + $0x208] sm:$0xfe]
  %v10715 = vld [vmem:[%s666 + $0x210] sm:$0xfe]
  %v10716 = vld [vmem:[%s666 + $0x218] sm:$0xfe]
  %v10717 = vld [vmem:[%s666 + $0x260] sm:$0x1f]
  %v10718 = vld [vmem:[%s666 + $0x268] sm:$0x1f]
  %v10719 = vld [vmem:[%s666 + $0x270] sm:$0x1f]
  %v10720 = vld [vmem:[%s666 + $0x278] sm:$0x1f]
  %v10721 = vld [vmem:[%s666 + $0x280] sm:$0xfe]
  %v10722 = vld [vmem:[%s666 + $0x288] sm:$0xfe]
  %v10723 = vld [vmem:[%s666 + $0x290] sm:$0xfe]
  %v10724 = vld [vmem:[%s666 + $0x298] sm:$0xfe]
  %v10725 = vld [vmem:[%s666 + $0x2e0] sm:$0x1f]
  %v10726 = vld [vmem:[%s666 + $0x2e8] sm:$0x1f]
  %v10727 = vld [vmem:[%s666 + $0x2f0] sm:$0x1f]
  %v10728 = vld [vmem:[%s666 + $0x2f8] sm:$0x1f]
  %v10729 = vld [vmem:[%s666 + $0x300] sm:$0xfe]
  %v10730 = vld [vmem:[%s666 + $0x308] sm:$0xfe]
  %v10731 = vld [vmem:[%s666 + $0x310] sm:$0xfe]
  %v10732 = vld [vmem:[%s666 + $0x318] sm:$0xfe]
  %v10733 = vld [vmem:[%s666 + $0x360] sm:$0x1f]
  %v10734 = vld [vmem:[%s666 + $0x368] sm:$0x1f]
  %v10735 = vld [vmem:[%s666 + $0x370] sm:$0x1f]
  %v10736 = vld [vmem:[%s666 + $0x378] sm:$0x1f]
  %v10737 = vld [vmem:[%s666 + $0x380] sm:$0xfe]
  %v10738 = vld [vmem:[%s666 + $0x388] sm:$0xfe]
  %v10739 = vld [vmem:[%s666 + $0x390] sm:$0xfe]
  %v10740 = vld [vmem:[%s666 + $0x398] sm:$0xfe]
  %v10741 = vld [vmem:[%s666 + $0x3e0] sm:$0x1f]
  %v10742 = vld [vmem:[%s666 + $0x3e8] sm:$0x1f]
  %v10743 = vld [vmem:[%s666 + $0x3f0] sm:$0x1f]
  %v10744 = vld [vmem:[%s666 + $0x3f8] sm:$0x1f]
  %v10745 = vld [vmem:[%s666 + $0x400] sm:$0xfe]
  %v10746 = vld [vmem:[%s666 + $0x408] sm:$0xfe]
  %v10747 = vld [vmem:[%s666 + $0x410] sm:$0xfe]
  %v10748 = vld [vmem:[%s666 + $0x418] sm:$0xfe]
  %v10749 = vld [vmem:[%s666 + $0x460] sm:$0x1f]
  %v10750 = vld [vmem:[%s666 + $0x468] sm:$0x1f]
  %v10751 = vld [vmem:[%s666 + $0x470] sm:$0x1f]
  %v10752 = vld [vmem:[%s666 + $0x478] sm:$0x1f]
  %v10753 = vld [vmem:[%s666 + $0x480] sm:$0xfe]
  %v10754 = vld [vmem:[%s666 + $0x488] sm:$0xfe]
  %v10755 = vld [vmem:[%s666 + $0x490] sm:$0xfe]
  %v10756 = vld [vmem:[%s666 + $0x498] sm:$0xfe]
  %v10757 = vld [vmem:[%s666 + $0x4e0] sm:$0x1f]
  %v10758 = vld [vmem:[%s666 + $0x4e8] sm:$0x1f]
  %v10759 = vld [vmem:[%s666 + $0x4f0] sm:$0x1f]
  %v10760 = vld [vmem:[%s666 + $0x4f8] sm:$0x1f]
  %v10761 = vld [vmem:[%s666 + $0x500] sm:$0xfe]
  %v10762 = vld [vmem:[%s666 + $0x508] sm:$0xfe]
  %v10763 = vld [vmem:[%s666 + $0x510] sm:$0xfe]
  %v10764 = vld [vmem:[%s666 + $0x518] sm:$0xfe]
  %v10765 = vld [vmem:[%s666 + $0x560] sm:$0x1f]
  %v10766 = vld [vmem:[%s666 + $0x568] sm:$0x1f]
  %v10767 = vld [vmem:[%s666 + $0x570] sm:$0x1f]
  %v10768 = vld [vmem:[%s666 + $0x578] sm:$0x1f]
  %v10769 = vld [vmem:[%s666 + $0x580] sm:$0xfe]
  %v10770 = vld [vmem:[%s666 + $0x588] sm:$0xfe]
  %v10771 = vld [vmem:[%s666 + $0x590] sm:$0xfe]
  %v10772 = vld [vmem:[%s666 + $0x598] sm:$0xfe]
  %v10773 = vld [vmem:[%s666 + $0x5e0] sm:$0x1f]
  %v10774 = vld [vmem:[%s666 + $0x5e8] sm:$0x1f]
  %v10775 = vld [vmem:[%s666 + $0x5f0] sm:$0x1f]
  %v10776 = vld [vmem:[%s666 + $0x5f8] sm:$0x1f]
  %v10777 = vld [vmem:[%s666 + $0x600] sm:$0xfe]
  %v10778 = vld [vmem:[%s666 + $0x608] sm:$0xfe]
  %v10779 = vld [vmem:[%s666 + $0x610] sm:$0xfe]
  %v10780 = vld [vmem:[%s666 + $0x618] sm:$0xfe]
  %v10781 = vld [vmem:[%s666 + $0x660] sm:$0x1f]
  %v10782 = vld [vmem:[%s666 + $0x668] sm:$0x1f]
  %v10783 = vld [vmem:[%s666 + $0x670] sm:$0x1f]
  %v10784 = vld [vmem:[%s666 + $0x678] sm:$0x1f]
  %v10785 = vld [vmem:[%s666 + $0x680] sm:$0xfe]
  %v10786 = vld [vmem:[%s666 + $0x688] sm:$0xfe]
  %v10787 = vld [vmem:[%s666 + $0x690] sm:$0xfe]
  %v10788 = vld [vmem:[%s666 + $0x698] sm:$0xfe]
  %v10789 = vld [vmem:[%s666 + $0x6e0] sm:$0x1f]
  %v10790 = vld [vmem:[%s666 + $0x6e8] sm:$0x1f]
  %v10791 = vld [vmem:[%s666 + $0x6f0] sm:$0x1f]
  %v10792 = vld [vmem:[%s666 + $0x6f8] sm:$0x1f]
  %s10793 = scalar_lea.vmem %s10210, 1
  %v10794 = vld [vmem:[%s10793] ss:$4 sm:$0xf]
  %v10796 = vlaneseq
  %v10797 = vshrl.u32 %v10796, 7
  %v10798 = vsub.s32 0, %v10797
  %v10799 = vrot.slane %v10794, %v10798
  %v10800 = vlaneseq
  %v10801 = vshrl.u32 %v10800, 7
  %v10802 = vsub.s32 1, %v10801
  %v10803 = vrot.slane %v10794, %v10802
  %v10804 = vlaneseq
  %v10805 = vshrl.u32 %v10804, 7
  %v10806 = vsub.s32 2, %v10805
  %v10807 = vrot.slane %v10794, %v10806
  %v10808 = vlaneseq
  %v10809 = vshrl.u32 %v10808, 7
  %v10810 = vsub.s32 3, %v10809
  %v10811 = vrot.slane %v10794, %v10810
  %v10816 = vmul.f32 %v10681, %v10799
  %v10817 = vmul.f32 %v10682, %v10803
  %v10818 = vmul.f32 %v10683, %v10807
  %v10819 = vmul.f32 %v10684, %v10811
  %v10820 = vmul.f32 %v9990, %v10799
  %v10821 = vmul.f32 %v9991, %v10803
  %v10822 = vmul.f32 %v9992, %v10807
  %v10823 = vmul.f32 %v9993, %v10811
  %v10824 = vmul.f32 %v9994, %v10799
  %v10825 = vmul.f32 %v9995, %v10803
  %v10826 = vmul.f32 %v9996, %v10807
  %v10827 = vmul.f32 %v9997, %v10811
  %v10828 = vmul.f32 %v10685, %v10799
  %v10829 = vmul.f32 %v10686, %v10803
  %v10830 = vmul.f32 %v10687, %v10807
  %v10831 = vmul.f32 %v10688, %v10811
  %v10832 = vmul.f32 %v10689, %v10799
  %v10833 = vmul.f32 %v10690, %v10803
  %v10834 = vmul.f32 %v10691, %v10807
  %v10835 = vmul.f32 %v10692, %v10811
  %v10836 = vmul.f32 %v10006, %v10799
  %v10837 = vmul.f32 %v10007, %v10803
  %v10838 = vmul.f32 %v10008, %v10807
  %v10839 = vmul.f32 %v10009, %v10811
  %v10840 = vmul.f32 %v10010, %v10799
  %v10841 = vmul.f32 %v10011, %v10803
  %v10842 = vmul.f32 %v10012, %v10807
  %v10843 = vmul.f32 %v10013, %v10811
  %v10844 = vmul.f32 %v10693, %v10799
  %v10845 = vmul.f32 %v10694, %v10803
  %v10846 = vmul.f32 %v10695, %v10807
  %v10847 = vmul.f32 %v10696, %v10811
  %v10848 = vmul.f32 %v10697, %v10799
  %v10849 = vmul.f32 %v10698, %v10803
  %v10850 = vmul.f32 %v10699, %v10807
  %v10851 = vmul.f32 %v10700, %v10811
  %v10852 = vmul.f32 %v10022, %v10799
  %v10853 = vmul.f32 %v10023, %v10803
  %v10854 = vmul.f32 %v10024, %v10807
  %v10855 = vmul.f32 %v10025, %v10811
  %v10856 = vmul.f32 %v10026, %v10799
  %v10857 = vmul.f32 %v10027, %v10803
  %v10858 = vmul.f32 %v10028, %v10807
  %v10859 = vmul.f32 %v10029, %v10811
  %v10860 = vmul.f32 %v10701, %v10799
  %v10861 = vmul.f32 %v10702, %v10803
  %v10862 = vmul.f32 %v10703, %v10807
  %v10863 = vmul.f32 %v10704, %v10811
  %v10864 = vmul.f32 %v10705, %v10799
  %v10865 = vmul.f32 %v10706, %v10803
  %v10866 = vmul.f32 %v10707, %v10807
  %v10867 = vmul.f32 %v10708, %v10811
  %v10868 = vmul.f32 %v10038, %v10799
  %v10869 = vmul.f32 %v10039, %v10803
  %v10870 = vmul.f32 %v10040, %v10807
  %v10871 = vmul.f32 %v10041, %v10811
  %v10872 = vmul.f32 %v10042, %v10799
  %v10873 = vmul.f32 %v10043, %v10803
  %v10874 = vmul.f32 %v10044, %v10807
  %v10875 = vmul.f32 %v10045, %v10811
  %v10876 = vmul.f32 %v10709, %v10799
  %v10877 = vmul.f32 %v10710, %v10803
  %v10878 = vmul.f32 %v10711, %v10807
  %v10879 = vmul.f32 %v10712, %v10811
  %v10880 = vmul.f32 %v10713, %v10799
  %v10881 = vmul.f32 %v10714, %v10803
  %v10882 = vmul.f32 %v10715, %v10807
  %v10883 = vmul.f32 %v10716, %v10811
  %v10884 = vmul.f32 %v10054, %v10799
  %v10885 = vmul.f32 %v10055, %v10803
  %v10886 = vmul.f32 %v10056, %v10807
  %v10887 = vmul.f32 %v10057, %v10811
  %v10888 = vmul.f32 %v10058, %v10799
  %v10889 = vmul.f32 %v10059, %v10803
  %v10890 = vmul.f32 %v10060, %v10807
  %v10891 = vmul.f32 %v10061, %v10811
  %v10892 = vmul.f32 %v10717, %v10799
  %v10893 = vmul.f32 %v10718, %v10803
  %v10894 = vmul.f32 %v10719, %v10807
  %v10895 = vmul.f32 %v10720, %v10811
  %v10896 = vmul.f32 %v10721, %v10799
  %v10897 = vmul.f32 %v10722, %v10803
  %v10898 = vmul.f32 %v10723, %v10807
  %v10899 = vmul.f32 %v10724, %v10811
  %v10900 = vmul.f32 %v10070, %v10799
  %v10901 = vmul.f32 %v10071, %v10803
  %v10902 = vmul.f32 %v10072, %v10807
  %v10903 = vmul.f32 %v10073, %v10811
  %v10904 = vmul.f32 %v10074, %v10799
  %v10905 = vmul.f32 %v10075, %v10803
  %v10906 = vmul.f32 %v10076, %v10807
  %v10907 = vmul.f32 %v10077, %v10811
  %v10908 = vmul.f32 %v10725, %v10799
  %v10909 = vmul.f32 %v10726, %v10803
  %v10910 = vmul.f32 %v10727, %v10807
  %v10911 = vmul.f32 %v10728, %v10811
  %v10912 = vmul.f32 %v10729, %v10799
  %v10913 = vmul.f32 %v10730, %v10803
  %v10914 = vmul.f32 %v10731, %v10807
  %v10915 = vmul.f32 %v10732, %v10811
  %v10916 = vmul.f32 %v10086, %v10799
  %v10917 = vmul.f32 %v10087, %v10803
  %v10918 = vmul.f32 %v10088, %v10807
  %v10919 = vmul.f32 %v10089, %v10811
  %v10920 = vmul.f32 %v10090, %v10799
  %v10921 = vmul.f32 %v10091, %v10803
  %v10922 = vmul.f32 %v10092, %v10807
  %v10923 = vmul.f32 %v10093, %v10811
  %v10924 = vmul.f32 %v10733, %v10799
  %v10925 = vmul.f32 %v10734, %v10803
  %v10926 = vmul.f32 %v10735, %v10807
  %v10927 = vmul.f32 %v10736, %v10811
  %v10928 = vmul.f32 %v10737, %v10799
  %v10929 = vmul.f32 %v10738, %v10803
  %v10930 = vmul.f32 %v10739, %v10807
  %v10931 = vmul.f32 %v10740, %v10811
  %v10932 = vmul.f32 %v10102, %v10799
  %v10933 = vmul.f32 %v10103, %v10803
  %v10934 = vmul.f32 %v10104, %v10807
  %v10935 = vmul.f32 %v10105, %v10811
  %v10936 = vmul.f32 %v10106, %v10799
  %v10937 = vmul.f32 %v10107, %v10803
  %v10938 = vmul.f32 %v10108, %v10807
  %v10939 = vmul.f32 %v10109, %v10811
  %v10940 = vmul.f32 %v10741, %v10799
  %v10941 = vmul.f32 %v10742, %v10803
  %v10942 = vmul.f32 %v10743, %v10807
  %v10943 = vmul.f32 %v10744, %v10811
  %v10944 = vmul.f32 %v10745, %v10799
  %v10945 = vmul.f32 %v10746, %v10803
  %v10946 = vmul.f32 %v10747, %v10807
  %v10947 = vmul.f32 %v10748, %v10811
  %v10948 = vmul.f32 %v10118, %v10799
  %v10949 = vmul.f32 %v10119, %v10803
  %v10950 = vmul.f32 %v10120, %v10807
  %v10951 = vmul.f32 %v10121, %v10811
  %v10952 = vmul.f32 %v10122, %v10799
  %v10953 = vmul.f32 %v10123, %v10803
  %v10954 = vmul.f32 %v10124, %v10807
  %v10955 = vmul.f32 %v10125, %v10811
  %v10956 = vmul.f32 %v10749, %v10799
  %v10957 = vmul.f32 %v10750, %v10803
  %v10958 = vmul.f32 %v10751, %v10807
  %v10959 = vmul.f32 %v10752, %v10811
  %v10960 = vmul.f32 %v10753, %v10799
  %v10961 = vmul.f32 %v10754, %v10803
  %v10962 = vmul.f32 %v10755, %v10807
  %v10963 = vmul.f32 %v10756, %v10811
  %v10964 = vmul.f32 %v10134, %v10799
  %v10965 = vmul.f32 %v10135, %v10803
  %v10966 = vmul.f32 %v10136, %v10807
  %v10967 = vmul.f32 %v10137, %v10811
  %v10968 = vmul.f32 %v10138, %v10799
  %v10969 = vmul.f32 %v10139, %v10803
  %v10970 = vmul.f32 %v10140, %v10807
  %v10971 = vmul.f32 %v10141, %v10811
  %v10972 = vmul.f32 %v10757, %v10799
  %v10973 = vmul.f32 %v10758, %v10803
  %v10974 = vmul.f32 %v10759, %v10807
  %v10975 = vmul.f32 %v10760, %v10811
  %v10976 = vmul.f32 %v10761, %v10799
  %v10977 = vmul.f32 %v10762, %v10803
  %v10978 = vmul.f32 %v10763, %v10807
  %v10979 = vmul.f32 %v10764, %v10811
  %v10980 = vmul.f32 %v10150, %v10799
  %v10981 = vmul.f32 %v10151, %v10803
  %v10982 = vmul.f32 %v10152, %v10807
  %v10983 = vmul.f32 %v10153, %v10811
  %v10984 = vmul.f32 %v10154, %v10799
  %v10985 = vmul.f32 %v10155, %v10803
  %v10986 = vmul.f32 %v10156, %v10807
  %v10987 = vmul.f32 %v10157, %v10811
  %v10988 = vmul.f32 %v10765, %v10799
  %v10989 = vmul.f32 %v10766, %v10803
  %v10990 = vmul.f32 %v10767, %v10807
  %v10991 = vmul.f32 %v10768, %v10811
  %v10992 = vmul.f32 %v10769, %v10799
  %v10993 = vmul.f32 %v10770, %v10803
  %v10994 = vmul.f32 %v10771, %v10807
  %v10995 = vmul.f32 %v10772, %v10811
  %v10996 = vmul.f32 %v10166, %v10799
  %v10997 = vmul.f32 %v10167, %v10803
  %v10998 = vmul.f32 %v10168, %v10807
  %v10999 = vmul.f32 %v10169, %v10811
  %v11000 = vmul.f32 %v10170, %v10799
  %v11001 = vmul.f32 %v10171, %v10803
  %v11002 = vmul.f32 %v10172, %v10807
  %v11003 = vmul.f32 %v10173, %v10811
  %v11004 = vmul.f32 %v10773, %v10799
  %v11005 = vmul.f32 %v10774, %v10803
  %v11006 = vmul.f32 %v10775, %v10807
  %v11007 = vmul.f32 %v10776, %v10811
  %v11008 = vmul.f32 %v10777, %v10799
  %v11009 = vmul.f32 %v10778, %v10803
  %v11010 = vmul.f32 %v10779, %v10807
  %v11011 = vmul.f32 %v10780, %v10811
  %v11012 = vmul.f32 %v10182, %v10799
  %v11013 = vmul.f32 %v10183, %v10803
  %v11014 = vmul.f32 %v10184, %v10807
  %v11015 = vmul.f32 %v10185, %v10811
  %v11016 = vmul.f32 %v10186, %v10799
  %v11017 = vmul.f32 %v10187, %v10803
  %v11018 = vmul.f32 %v10188, %v10807
  %v11019 = vmul.f32 %v10189, %v10811
  %v11020 = vmul.f32 %v10781, %v10799
  %v11021 = vmul.f32 %v10782, %v10803
  %v11022 = vmul.f32 %v10783, %v10807
  %v11023 = vmul.f32 %v10784, %v10811
  %v11024 = vmul.f32 %v10785, %v10799
  %v11025 = vmul.f32 %v10786, %v10803
  %v11026 = vmul.f32 %v10787, %v10807
  %v11027 = vmul.f32 %v10788, %v10811
  %v11028 = vmul.f32 %v10198, %v10799
  %v11029 = vmul.f32 %v10199, %v10803
  %v11030 = vmul.f32 %v10200, %v10807
  %v11031 = vmul.f32 %v10201, %v10811
  %v11032 = vmul.f32 %v10202, %v10799
  %v11033 = vmul.f32 %v10203, %v10803
  %v11034 = vmul.f32 %v10204, %v10807
  %v11035 = vmul.f32 %v10205, %v10811
  %v11036 = vmul.f32 %v10789, %v10799
  %v11037 = vmul.f32 %v10790, %v10803
  %v11038 = vmul.f32 %v10791, %v10807
  %v11039 = vmul.f32 %v10792, %v10811
  %v11264 = vrot.slane %v10816, 1
  %v11265 = vrot.slane %v10820, 1
  %v11266 = vsel %vm4180, %v11264, %v11265
  %v11267 = vrot.slane %v10817, 1
  %v11268 = vrot.slane %v10821, 1
  %v11269 = vsel %vm4180, %v11267, %v11268
  %v11270 = vrot.slane %v10818, 1
  %v11271 = vrot.slane %v10822, 1
  %v11272 = vsel %vm4180, %v11270, %v11271
  %v11273 = vrot.slane %v10819, 1
  %v11274 = vrot.slane %v10823, 1
  %v11275 = vsel %vm4180, %v11273, %v11274
  %v11276 = vrot.slane %v10824, 1
  %v11277 = vsel %vm4180, %v11265, %v11276
  %v11278 = vrot.slane %v10825, 1
  %v11279 = vsel %vm4180, %v11268, %v11278
  %v11280 = vrot.slane %v10826, 1
  %v11281 = vsel %vm4180, %v11271, %v11280
  %v11282 = vrot.slane %v10827, 1
  %v11283 = vsel %vm4180, %v11274, %v11282
  %v11284 = vrot.slane %v10828, 1
  %v11285 = vsel %vm4180, %v11276, %v11284
  %v11286 = vrot.slane %v10829, 1
  %v11287 = vsel %vm4180, %v11278, %v11286
  %v11288 = vrot.slane %v10830, 1
  %v11289 = vsel %vm4180, %v11280, %v11288
  %v11290 = vrot.slane %v10831, 1
  %v11291 = vsel %vm4180, %v11282, %v11290
  %v11292 = vrot.slane %v10832, 1
  %v11293 = vrot.slane %v10836, 1
  %v11294 = vsel %vm4180, %v11292, %v11293
  %v11295 = vrot.slane %v10833, 1
  %v11296 = vrot.slane %v10837, 1
  %v11297 = vsel %vm4180, %v11295, %v11296
  %v11298 = vrot.slane %v10834, 1
  %v11299 = vrot.slane %v10838, 1
  %v11300 = vsel %vm4180, %v11298, %v11299
  %v11301 = vrot.slane %v10835, 1
  %v11302 = vrot.slane %v10839, 1
  %v11303 = vsel %vm4180, %v11301, %v11302
  %v11304 = vrot.slane %v10840, 1
  %v11305 = vsel %vm4180, %v11293, %v11304
  %v11306 = vrot.slane %v10841, 1
  %v11307 = vsel %vm4180, %v11296, %v11306
  %v11308 = vrot.slane %v10842, 1
  %v11309 = vsel %vm4180, %v11299, %v11308
  %v11310 = vrot.slane %v10843, 1
  %v11311 = vsel %vm4180, %v11302, %v11310
  %v11312 = vrot.slane %v10844, 1
  %v11313 = vsel %vm4180, %v11304, %v11312
  %v11314 = vrot.slane %v10845, 1
  %v11315 = vsel %vm4180, %v11306, %v11314
  %v11316 = vrot.slane %v10846, 1
  %v11317 = vsel %vm4180, %v11308, %v11316
  %v11318 = vrot.slane %v10847, 1
  %v11319 = vsel %vm4180, %v11310, %v11318
  %v11320 = vrot.slane %v10848, 1
  %v11321 = vrot.slane %v10852, 1
  %v11322 = vsel %vm4180, %v11320, %v11321
  %v11323 = vrot.slane %v10849, 1
  %v11324 = vrot.slane %v10853, 1
  %v11325 = vsel %vm4180, %v11323, %v11324
  %v11326 = vrot.slane %v10850, 1
  %v11327 = vrot.slane %v10854, 1
  %v11328 = vsel %vm4180, %v11326, %v11327
  %v11329 = vrot.slane %v10851, 1
  %v11330 = vrot.slane %v10855, 1
  %v11331 = vsel %vm4180, %v11329, %v11330
  %v11332 = vrot.slane %v10856, 1
  %v11333 = vsel %vm4180, %v11321, %v11332
  %v11334 = vrot.slane %v10857, 1
  %v11335 = vsel %vm4180, %v11324, %v11334
  %v11336 = vrot.slane %v10858, 1
  %v11337 = vsel %vm4180, %v11327, %v11336
  %v11338 = vrot.slane %v10859, 1
  %v11339 = vsel %vm4180, %v11330, %v11338
  %v11340 = vrot.slane %v10860, 1
  %v11341 = vsel %vm4180, %v11332, %v11340
  %v11342 = vrot.slane %v10861, 1
  %v11343 = vsel %vm4180, %v11334, %v11342
  %v11344 = vrot.slane %v10862, 1
  %v11345 = vsel %vm4180, %v11336, %v11344
  %v11346 = vrot.slane %v10863, 1
  %v11347 = vsel %vm4180, %v11338, %v11346
  %v11348 = vrot.slane %v10864, 1
  %v11349 = vrot.slane %v10868, 1
  %v11350 = vsel %vm4180, %v11348, %v11349
  %v11351 = vrot.slane %v10865, 1
  %v11352 = vrot.slane %v10869, 1
  %v11353 = vsel %vm4180, %v11351, %v11352
  %v11354 = vrot.slane %v10866, 1
  %v11355 = vrot.slane %v10870, 1
  %v11356 = vsel %vm4180, %v11354, %v11355
  %v11357 = vrot.slane %v10867, 1
  %v11358 = vrot.slane %v10871, 1
  %v11359 = vsel %vm4180, %v11357, %v11358
  %v11360 = vrot.slane %v10872, 1
  %v11361 = vsel %vm4180, %v11349, %v11360
  %v11362 = vrot.slane %v10873, 1
  %v11363 = vsel %vm4180, %v11352, %v11362
  %v11364 = vrot.slane %v10874, 1
  %v11365 = vsel %vm4180, %v11355, %v11364
  %v11366 = vrot.slane %v10875, 1
  %v11367 = vsel %vm4180, %v11358, %v11366
  %v11368 = vrot.slane %v10876, 1
  %v11369 = vsel %vm4180, %v11360, %v11368
  %v11370 = vrot.slane %v10877, 1
  %v11371 = vsel %vm4180, %v11362, %v11370
  %v11372 = vrot.slane %v10878, 1
  %v11373 = vsel %vm4180, %v11364, %v11372
  %v11374 = vrot.slane %v10879, 1
  %v11375 = vsel %vm4180, %v11366, %v11374
  %v11376 = vrot.slane %v10880, 1
  %v11377 = vrot.slane %v10884, 1
  %v11378 = vsel %vm4180, %v11376, %v11377
  %v11379 = vrot.slane %v10881, 1
  %v11380 = vrot.slane %v10885, 1
  %v11381 = vsel %vm4180, %v11379, %v11380
  %v11382 = vrot.slane %v10882, 1
  %v11383 = vrot.slane %v10886, 1
  %v11384 = vsel %vm4180, %v11382, %v11383
  %v11385 = vrot.slane %v10883, 1
  %v11386 = vrot.slane %v10887, 1
  %v11387 = vsel %vm4180, %v11385, %v11386
  %v11388 = vrot.slane %v10888, 1
  %v11389 = vsel %vm4180, %v11377, %v11388
  %v11390 = vrot.slane %v10889, 1
  %v11391 = vsel %vm4180, %v11380, %v11390
  %v11392 = vrot.slane %v10890, 1
  %v11393 = vsel %vm4180, %v11383, %v11392
  %v11394 = vrot.slane %v10891, 1
  %v11395 = vsel %vm4180, %v11386, %v11394
  %v11396 = vrot.slane %v10892, 1
  %v11397 = vsel %vm4180, %v11388, %v11396
  %v11398 = vrot.slane %v10893, 1
  %v11399 = vsel %vm4180, %v11390, %v11398
  %v11400 = vrot.slane %v10894, 1
  %v11401 = vsel %vm4180, %v11392, %v11400
  %v11402 = vrot.slane %v10895, 1
  %v11403 = vsel %vm4180, %v11394, %v11402
  %v11404 = vrot.slane %v10896, 1
  %v11405 = vrot.slane %v10900, 1
  %v11406 = vsel %vm4180, %v11404, %v11405
  %v11407 = vrot.slane %v10897, 1
  %v11408 = vrot.slane %v10901, 1
  %v11409 = vsel %vm4180, %v11407, %v11408
  %v11410 = vrot.slane %v10898, 1
  %v11411 = vrot.slane %v10902, 1
  %v11412 = vsel %vm4180, %v11410, %v11411
  %v11413 = vrot.slane %v10899, 1
  %v11414 = vrot.slane %v10903, 1
  %v11415 = vsel %vm4180, %v11413, %v11414
  %v11416 = vrot.slane %v10904, 1
  %v11417 = vsel %vm4180, %v11405, %v11416
  %v11418 = vrot.slane %v10905, 1
  %v11419 = vsel %vm4180, %v11408, %v11418
  %v11420 = vrot.slane %v10906, 1
  %v11421 = vsel %vm4180, %v11411, %v11420
  %v11422 = vrot.slane %v10907, 1
  %v11423 = vsel %vm4180, %v11414, %v11422
  %v11424 = vrot.slane %v10908, 1
  %v11425 = vsel %vm4180, %v11416, %v11424
  %v11426 = vrot.slane %v10909, 1
  %v11427 = vsel %vm4180, %v11418, %v11426
  %v11428 = vrot.slane %v10910, 1
  %v11429 = vsel %vm4180, %v11420, %v11428
  %v11430 = vrot.slane %v10911, 1
  %v11431 = vsel %vm4180, %v11422, %v11430
  %v11432 = vrot.slane %v10912, 1
  %v11433 = vrot.slane %v10916, 1
  %v11434 = vsel %vm4180, %v11432, %v11433
  %v11435 = vrot.slane %v10913, 1
  %v11436 = vrot.slane %v10917, 1
  %v11437 = vsel %vm4180, %v11435, %v11436
  %v11438 = vrot.slane %v10914, 1
  %v11439 = vrot.slane %v10918, 1
  %v11440 = vsel %vm4180, %v11438, %v11439
  %v11441 = vrot.slane %v10915, 1
  %v11442 = vrot.slane %v10919, 1
  %v11443 = vsel %vm4180, %v11441, %v11442
  %v11444 = vrot.slane %v10920, 1
  %v11445 = vsel %vm4180, %v11433, %v11444
  %v11446 = vrot.slane %v10921, 1
  %v11447 = vsel %vm4180, %v11436, %v11446
  %v11448 = vrot.slane %v10922, 1
  %v11449 = vsel %vm4180, %v11439, %v11448
  %v11450 = vrot.slane %v10923, 1
  %v11451 = vsel %vm4180, %v11442, %v11450
  %v11452 = vrot.slane %v10924, 1
  %v11453 = vsel %vm4180, %v11444, %v11452
  %v11454 = vrot.slane %v10925, 1
  %v11455 = vsel %vm4180, %v11446, %v11454
  %v11456 = vrot.slane %v10926, 1
  %v11457 = vsel %vm4180, %v11448, %v11456
  %v11458 = vrot.slane %v10927, 1
  %v11459 = vsel %vm4180, %v11450, %v11458
  %v11460 = vrot.slane %v10928, 1
  %v11461 = vrot.slane %v10932, 1
  %v11462 = vsel %vm4180, %v11460, %v11461
  %v11463 = vrot.slane %v10929, 1
  %v11464 = vrot.slane %v10933, 1
  %v11465 = vsel %vm4180, %v11463, %v11464
  %v11466 = vrot.slane %v10930, 1
  %v11467 = vrot.slane %v10934, 1
  %v11468 = vsel %vm4180, %v11466, %v11467
  %v11469 = vrot.slane %v10931, 1
  %v11470 = vrot.slane %v10935, 1
  %v11471 = vsel %vm4180, %v11469, %v11470
  %v11472 = vrot.slane %v10936, 1
  %v11473 = vsel %vm4180, %v11461, %v11472
  %v11474 = vrot.slane %v10937, 1
  %v11475 = vsel %vm4180, %v11464, %v11474
  %v11476 = vrot.slane %v10938, 1
  %v11477 = vsel %vm4180, %v11467, %v11476
  %v11478 = vrot.slane %v10939, 1
  %v11479 = vsel %vm4180, %v11470, %v11478
  %v11480 = vrot.slane %v10940, 1
  %v11481 = vsel %vm4180, %v11472, %v11480
  %v11482 = vrot.slane %v10941, 1
  %v11483 = vsel %vm4180, %v11474, %v11482
  %v11484 = vrot.slane %v10942, 1
  %v11485 = vsel %vm4180, %v11476, %v11484
  %v11486 = vrot.slane %v10943, 1
  %v11487 = vsel %vm4180, %v11478, %v11486
  %v11488 = vrot.slane %v10944, 1
  %v11489 = vrot.slane %v10948, 1
  %v11490 = vsel %vm4180, %v11488, %v11489
  %v11491 = vrot.slane %v10945, 1
  %v11492 = vrot.slane %v10949, 1
  %v11493 = vsel %vm4180, %v11491, %v11492
  %v11494 = vrot.slane %v10946, 1
  %v11495 = vrot.slane %v10950, 1
  %v11496 = vsel %vm4180, %v11494, %v11495
  %v11497 = vrot.slane %v10947, 1
  %v11498 = vrot.slane %v10951, 1
  %v11499 = vsel %vm4180, %v11497, %v11498
  %v11500 = vrot.slane %v10952, 1
  %v11501 = vsel %vm4180, %v11489, %v11500
  %v11502 = vrot.slane %v10953, 1
  %v11503 = vsel %vm4180, %v11492, %v11502
  %v11504 = vrot.slane %v10954, 1
  %v11505 = vsel %vm4180, %v11495, %v11504
  %v11506 = vrot.slane %v10955, 1
  %v11507 = vsel %vm4180, %v11498, %v11506
  %v11508 = vrot.slane %v10956, 1
  %v11509 = vsel %vm4180, %v11500, %v11508
  %v11510 = vrot.slane %v10957, 1
  %v11511 = vsel %vm4180, %v11502, %v11510
  %v11512 = vrot.slane %v10958, 1
  %v11513 = vsel %vm4180, %v11504, %v11512
  %v11514 = vrot.slane %v10959, 1
  %v11515 = vsel %vm4180, %v11506, %v11514
  %v11516 = vrot.slane %v10960, 1
  %v11517 = vrot.slane %v10964, 1
  %v11518 = vsel %vm4180, %v11516, %v11517
  %v11519 = vrot.slane %v10961, 1
  %v11520 = vrot.slane %v10965, 1
  %v11521 = vsel %vm4180, %v11519, %v11520
  %v11522 = vrot.slane %v10962, 1
  %v11523 = vrot.slane %v10966, 1
  %v11524 = vsel %vm4180, %v11522, %v11523
  %v11525 = vrot.slane %v10963, 1
  %v11526 = vrot.slane %v10967, 1
  %v11527 = vsel %vm4180, %v11525, %v11526
  %v11528 = vrot.slane %v10968, 1
  %v11529 = vsel %vm4180, %v11517, %v11528
  %v11530 = vrot.slane %v10969, 1
  %v11531 = vsel %vm4180, %v11520, %v11530
  %v11532 = vrot.slane %v10970, 1
  %v11533 = vsel %vm4180, %v11523, %v11532
  %v11534 = vrot.slane %v10971, 1
  %v11535 = vsel %vm4180, %v11526, %v11534
  %v11536 = vrot.slane %v10972, 1
  %v11537 = vsel %vm4180, %v11528, %v11536
  %v11538 = vrot.slane %v10973, 1
  %v11539 = vsel %vm4180, %v11530, %v11538
  %v11540 = vrot.slane %v10974, 1
  %v11541 = vsel %vm4180, %v11532, %v11540
  %v11542 = vrot.slane %v10975, 1
  %v11543 = vsel %vm4180, %v11534, %v11542
  %v11544 = vrot.slane %v10976, 1
  %v11545 = vrot.slane %v10980, 1
  %v11546 = vsel %vm4180, %v11544, %v11545
  %v11547 = vrot.slane %v10977, 1
  %v11548 = vrot.slane %v10981, 1
  %v11549 = vsel %vm4180, %v11547, %v11548
  %v11550 = vrot.slane %v10978, 1
  %v11551 = vrot.slane %v10982, 1
  %v11552 = vsel %vm4180, %v11550, %v11551
  %v11553 = vrot.slane %v10979, 1
  %v11554 = vrot.slane %v10983, 1
  %v11555 = vsel %vm4180, %v11553, %v11554
  %v11556 = vrot.slane %v10984, 1
  %v11557 = vsel %vm4180, %v11545, %v11556
  %v11558 = vrot.slane %v10985, 1
  %v11559 = vsel %vm4180, %v11548, %v11558
  %v11560 = vrot.slane %v10986, 1
  %v11561 = vsel %vm4180, %v11551, %v11560
  %v11562 = vrot.slane %v10987, 1
  %v11563 = vsel %vm4180, %v11554, %v11562
  %v11564 = vrot.slane %v10988, 1
  %v11565 = vsel %vm4180, %v11556, %v11564
  %v11566 = vrot.slane %v10989, 1
  %v11567 = vsel %vm4180, %v11558, %v11566
  %v11568 = vrot.slane %v10990, 1
  %v11569 = vsel %vm4180, %v11560, %v11568
  %v11570 = vrot.slane %v10991, 1
  %v11571 = vsel %vm4180, %v11562, %v11570
  %v11572 = vrot.slane %v10992, 1
  %v11573 = vrot.slane %v10996, 1
  %v11574 = vsel %vm4180, %v11572, %v11573
  %v11575 = vrot.slane %v10993, 1
  %v11576 = vrot.slane %v10997, 1
  %v11577 = vsel %vm4180, %v11575, %v11576
  %v11578 = vrot.slane %v10994, 1
  %v11579 = vrot.slane %v10998, 1
  %v11580 = vsel %vm4180, %v11578, %v11579
  %v11581 = vrot.slane %v10995, 1
  %v11582 = vrot.slane %v10999, 1
  %v11583 = vsel %vm4180, %v11581, %v11582
  %v11584 = vrot.slane %v11000, 1
  %v11585 = vsel %vm4180, %v11573, %v11584
  %v11586 = vrot.slane %v11001, 1
  %v11587 = vsel %vm4180, %v11576, %v11586
  %v11588 = vrot.slane %v11002, 1
  %v11589 = vsel %vm4180, %v11579, %v11588
  %v11590 = vrot.slane %v11003, 1
  %v11591 = vsel %vm4180, %v11582, %v11590
  %v11592 = vrot.slane %v11004, 1
  %v11593 = vsel %vm4180, %v11584, %v11592
  %v11594 = vrot.slane %v11005, 1
  %v11595 = vsel %vm4180, %v11586, %v11594
  %v11596 = vrot.slane %v11006, 1
  %v11597 = vsel %vm4180, %v11588, %v11596
  %v11598 = vrot.slane %v11007, 1
  %v11599 = vsel %vm4180, %v11590, %v11598
  %v11600 = vrot.slane %v11008, 1
  %v11601 = vrot.slane %v11012, 1
  %v11602 = vsel %vm4180, %v11600, %v11601
  %v11603 = vrot.slane %v11009, 1
  %v11604 = vrot.slane %v11013, 1
  %v11605 = vsel %vm4180, %v11603, %v11604
  %v11606 = vrot.slane %v11010, 1
  %v11607 = vrot.slane %v11014, 1
  %v11608 = vsel %vm4180, %v11606, %v11607
  %v11609 = vrot.slane %v11011, 1
  %v11610 = vrot.slane %v11015, 1
  %v11611 = vsel %vm4180, %v11609, %v11610
  %v11612 = vrot.slane %v11016, 1
  %v11613 = vsel %vm4180, %v11601, %v11612
  %v11614 = vrot.slane %v11017, 1
  %v11615 = vsel %vm4180, %v11604, %v11614
  %v11616 = vrot.slane %v11018, 1
  %v11617 = vsel %vm4180, %v11607, %v11616
  %v11618 = vrot.slane %v11019, 1
  %v11619 = vsel %vm4180, %v11610, %v11618
  %v11620 = vrot.slane %v11020, 1
  %v11621 = vsel %vm4180, %v11612, %v11620
  %v11622 = vrot.slane %v11021, 1
  %v11623 = vsel %vm4180, %v11614, %v11622
  %v11624 = vrot.slane %v11022, 1
  %v11625 = vsel %vm4180, %v11616, %v11624
  %v11626 = vrot.slane %v11023, 1
  %v11627 = vsel %vm4180, %v11618, %v11626
  %v11628 = vrot.slane %v11024, 1
  %v11629 = vrot.slane %v11028, 1
  %v11630 = vsel %vm4180, %v11628, %v11629
  %v11631 = vrot.slane %v11025, 1
  %v11632 = vrot.slane %v11029, 1
  %v11633 = vsel %vm4180, %v11631, %v11632
  %v11634 = vrot.slane %v11026, 1
  %v11635 = vrot.slane %v11030, 1
  %v11636 = vsel %vm4180, %v11634, %v11635
  %v11637 = vrot.slane %v11027, 1
  %v11638 = vrot.slane %v11031, 1
  %v11639 = vsel %vm4180, %v11637, %v11638
  %v11640 = vrot.slane %v11032, 1
  %v11641 = vsel %vm4180, %v11629, %v11640
  %v11642 = vrot.slane %v11033, 1
  %v11643 = vsel %vm4180, %v11632, %v11642
  %v11644 = vrot.slane %v11034, 1
  %v11645 = vsel %vm4180, %v11635, %v11644
  %v11646 = vrot.slane %v11035, 1
  %v11647 = vsel %vm4180, %v11638, %v11646
  %v11648 = vrot.slane %v11036, 1
  %v11649 = vsel %vm4180, %v11640, %v11648
  %v11650 = vrot.slane %v11037, 1
  %v11651 = vsel %vm4180, %v11642, %v11650
  %v11652 = vrot.slane %v11038, 1
  %v11653 = vsel %vm4180, %v11644, %v11652
  %v11654 = vrot.slane %v11039, 1
  %v11655 = vsel %vm4180, %v11646, %v11654
  %v11880 = vadd.f32 %v10457, %v11266
  %v11881 = vadd.f32 %v10458, %v11269
  %v11882 = vadd.f32 %v10459, %v11272
  %v11883 = vadd.f32 %v10460, %v11275
  %v11884 = vadd.f32 %v10461, %v11277
  %v11885 = vadd.f32 %v10462, %v11279
  %v11886 = vadd.f32 %v10463, %v11281
  %v11887 = vadd.f32 %v10464, %v11283
  %v11888 = vadd.f32 %v10465, %v11285
  %v11889 = vadd.f32 %v10466, %v11287
  %v11890 = vadd.f32 %v10467, %v11289
  %v11891 = vadd.f32 %v10468, %v11291
  %v11892 = vadd.f32 %v10469, %v11284
  %v11893 = vadd.f32 %v10470, %v11286
  %v11894 = vadd.f32 %v10471, %v11288
  %v11895 = vadd.f32 %v10472, %v11290
  %v11896 = vadd.f32 %v10473, %v11294
  %v11897 = vadd.f32 %v10474, %v11297
  %v11898 = vadd.f32 %v10475, %v11300
  %v11899 = vadd.f32 %v10476, %v11303
  %v11900 = vadd.f32 %v10477, %v11305
  %v11901 = vadd.f32 %v10478, %v11307
  %v11902 = vadd.f32 %v10479, %v11309
  %v11903 = vadd.f32 %v10480, %v11311
  %v11904 = vadd.f32 %v10481, %v11313
  %v11905 = vadd.f32 %v10482, %v11315
  %v11906 = vadd.f32 %v10483, %v11317
  %v11907 = vadd.f32 %v10484, %v11319
  %v11908 = vadd.f32 %v10485, %v11312
  %v11909 = vadd.f32 %v10486, %v11314
  %v11910 = vadd.f32 %v10487, %v11316
  %v11911 = vadd.f32 %v10488, %v11318
  %v11912 = vadd.f32 %v10489, %v11322
  %v11913 = vadd.f32 %v10490, %v11325
  %v11914 = vadd.f32 %v10491, %v11328
  %v11915 = vadd.f32 %v10492, %v11331
  %v11916 = vadd.f32 %v10493, %v11333
  %v11917 = vadd.f32 %v10494, %v11335
  %v11918 = vadd.f32 %v10495, %v11337
  %v11919 = vadd.f32 %v10496, %v11339
  %v11920 = vadd.f32 %v10497, %v11341
  %v11921 = vadd.f32 %v10498, %v11343
  %v11922 = vadd.f32 %v10499, %v11345
  %v11923 = vadd.f32 %v10500, %v11347
  %v11924 = vadd.f32 %v10501, %v11340
  %v11925 = vadd.f32 %v10502, %v11342
  %v11926 = vadd.f32 %v10503, %v11344
  %v11927 = vadd.f32 %v10504, %v11346
  %v11928 = vadd.f32 %v10505, %v11350
  %v11929 = vadd.f32 %v10506, %v11353
  %v11930 = vadd.f32 %v10507, %v11356
  %v11931 = vadd.f32 %v10508, %v11359
  %v11932 = vadd.f32 %v10509, %v11361
  %v11933 = vadd.f32 %v10510, %v11363
  %v11934 = vadd.f32 %v10511, %v11365
  %v11935 = vadd.f32 %v10512, %v11367
  %v11936 = vadd.f32 %v10513, %v11369
  %v11937 = vadd.f32 %v10514, %v11371
  %v11938 = vadd.f32 %v10515, %v11373
  %v11939 = vadd.f32 %v10516, %v11375
  %v11940 = vadd.f32 %v10517, %v11368
  %v11941 = vadd.f32 %v10518, %v11370
  %v11942 = vadd.f32 %v10519, %v11372
  %v11943 = vadd.f32 %v10520, %v11374
  %v11944 = vadd.f32 %v10521, %v11378
  %v11945 = vadd.f32 %v10522, %v11381
  %v11946 = vadd.f32 %v10523, %v11384
  %v11947 = vadd.f32 %v10524, %v11387
  %v11948 = vadd.f32 %v10525, %v11389
  %v11949 = vadd.f32 %v10526, %v11391
  %v11950 = vadd.f32 %v10527, %v11393
  %v11951 = vadd.f32 %v10528, %v11395
  %v11952 = vadd.f32 %v10529, %v11397
  %v11953 = vadd.f32 %v10530, %v11399
  %v11954 = vadd.f32 %v10531, %v11401
  %v11955 = vadd.f32 %v10532, %v11403
  %v11956 = vadd.f32 %v10533, %v11396
  %v11957 = vadd.f32 %v10534, %v11398
  %v11958 = vadd.f32 %v10535, %v11400
  %v11959 = vadd.f32 %v10536, %v11402
  %v11960 = vadd.f32 %v10537, %v11406
  %v11961 = vadd.f32 %v10538, %v11409
  %v11962 = vadd.f32 %v10539, %v11412
  %v11963 = vadd.f32 %v10540, %v11415
  %v11964 = vadd.f32 %v10541, %v11417
  %v11965 = vadd.f32 %v10542, %v11419
  %v11966 = vadd.f32 %v10543, %v11421
  %v11967 = vadd.f32 %v10544, %v11423
  %v11968 = vadd.f32 %v10545, %v11425
  %v11969 = vadd.f32 %v10546, %v11427
  %v11970 = vadd.f32 %v10547, %v11429
  %v11971 = vadd.f32 %v10548, %v11431
  %v11972 = vadd.f32 %v10549, %v11424
  %v11973 = vadd.f32 %v10550, %v11426
  %v11974 = vadd.f32 %v10551, %v11428
  %v11975 = vadd.f32 %v10552, %v11430
  %v11976 = vadd.f32 %v10553, %v11434
  %v11977 = vadd.f32 %v10554, %v11437
  %v11978 = vadd.f32 %v10555, %v11440
  %v11979 = vadd.f32 %v10556, %v11443
  %v11980 = vadd.f32 %v10557, %v11445
  %v11981 = vadd.f32 %v10558, %v11447
  %v11982 = vadd.f32 %v10559, %v11449
  %v11983 = vadd.f32 %v10560, %v11451
  %v11984 = vadd.f32 %v10561, %v11453
  %v11985 = vadd.f32 %v10562, %v11455
  %v11986 = vadd.f32 %v10563, %v11457
  %v11987 = vadd.f32 %v10564, %v11459
  %v11988 = vadd.f32 %v10565, %v11452
  %v11989 = vadd.f32 %v10566, %v11454
  %v11990 = vadd.f32 %v10567, %v11456
  %v11991 = vadd.f32 %v10568, %v11458
  %v11992 = vadd.f32 %v10569, %v11462
  %v11993 = vadd.f32 %v10570, %v11465
  %v11994 = vadd.f32 %v10571, %v11468
  %v11995 = vadd.f32 %v10572, %v11471
  %v11996 = vadd.f32 %v10573, %v11473
  %v11997 = vadd.f32 %v10574, %v11475
  %v11998 = vadd.f32 %v10575, %v11477
  %v11999 = vadd.f32 %v10576, %v11479
  %v12000 = vadd.f32 %v10577, %v11481
  %v12001 = vadd.f32 %v10578, %v11483
  %v12002 = vadd.f32 %v10579, %v11485
  %v12003 = vadd.f32 %v10580, %v11487
  %v12004 = vadd.f32 %v10581, %v11480
  %v12005 = vadd.f32 %v10582, %v11482
  %v12006 = vadd.f32 %v10583, %v11484
  %v12007 = vadd.f32 %v10584, %v11486
  %v12008 = vadd.f32 %v10585, %v11490
  %v12009 = vadd.f32 %v10586, %v11493
  %v12010 = vadd.f32 %v10587, %v11496
  %v12011 = vadd.f32 %v10588, %v11499
  %v12012 = vadd.f32 %v10589, %v11501
  %v12013 = vadd.f32 %v10590, %v11503
  %v12014 = vadd.f32 %v10591, %v11505
  %v12015 = vadd.f32 %v10592, %v11507
  %v12016 = vadd.f32 %v10593, %v11509
  %v12017 = vadd.f32 %v10594, %v11511
  %v12018 = vadd.f32 %v10595, %v11513
  %v12019 = vadd.f32 %v10596, %v11515
  %v12020 = vadd.f32 %v10597, %v11508
  %v12021 = vadd.f32 %v10598, %v11510
  %v12022 = vadd.f32 %v10599, %v11512
  %v12023 = vadd.f32 %v10600, %v11514
  %v12024 = vadd.f32 %v10601, %v11518
  %v12025 = vadd.f32 %v10602, %v11521
  %v12026 = vadd.f32 %v10603, %v11524
  %v12027 = vadd.f32 %v10604, %v11527
  %v12028 = vadd.f32 %v10605, %v11529
  %v12029 = vadd.f32 %v10606, %v11531
  %v12030 = vadd.f32 %v10607, %v11533
  %v12031 = vadd.f32 %v10608, %v11535
  %v12032 = vadd.f32 %v10609, %v11537
  %v12033 = vadd.f32 %v10610, %v11539
  %v12034 = vadd.f32 %v10611, %v11541
  %v12035 = vadd.f32 %v10612, %v11543
  %v12036 = vadd.f32 %v10613, %v11536
  %v12037 = vadd.f32 %v10614, %v11538
  %v12038 = vadd.f32 %v10615, %v11540
  %v12039 = vadd.f32 %v10616, %v11542
  %v12040 = vadd.f32 %v10617, %v11546
  %v12041 = vadd.f32 %v10618, %v11549
  %v12042 = vadd.f32 %v10619, %v11552
  %v12043 = vadd.f32 %v10620, %v11555
  %v12044 = vadd.f32 %v10621, %v11557
  %v12045 = vadd.f32 %v10622, %v11559
  %v12046 = vadd.f32 %v10623, %v11561
  %v12047 = vadd.f32 %v10624, %v11563
  %v12048 = vadd.f32 %v10625, %v11565
  %v12049 = vadd.f32 %v10626, %v11567
  %v12050 = vadd.f32 %v10627, %v11569
  %v12051 = vadd.f32 %v10628, %v11571
  %v12052 = vadd.f32 %v10629, %v11564
  %v12053 = vadd.f32 %v10630, %v11566
  %v12054 = vadd.f32 %v10631, %v11568
  %v12055 = vadd.f32 %v10632, %v11570
  %v12056 = vadd.f32 %v10633, %v11574
  %v12057 = vadd.f32 %v10634, %v11577
  %v12058 = vadd.f32 %v10635, %v11580
  %v12059 = vadd.f32 %v10636, %v11583
  %v12060 = vadd.f32 %v10637, %v11585
  %v12061 = vadd.f32 %v10638, %v11587
  %v12062 = vadd.f32 %v10639, %v11589
  %v12063 = vadd.f32 %v10640, %v11591
  %v12064 = vadd.f32 %v10641, %v11593
  %v12065 = vadd.f32 %v10642, %v11595
  %v12066 = vadd.f32 %v10643, %v11597
  %v12067 = vadd.f32 %v10644, %v11599
  %v12068 = vadd.f32 %v10645, %v11592
  %v12069 = vadd.f32 %v10646, %v11594
  %v12070 = vadd.f32 %v10647, %v11596
  %v12071 = vadd.f32 %v10648, %v11598
  %v12072 = vadd.f32 %v10649, %v11602
  %v12073 = vadd.f32 %v10650, %v11605
  %v12074 = vadd.f32 %v10651, %v11608
  %v12075 = vadd.f32 %v10652, %v11611
  %v12076 = vadd.f32 %v10653, %v11613
  %v12077 = vadd.f32 %v10654, %v11615
  %v12078 = vadd.f32 %v10655, %v11617
  %v12079 = vadd.f32 %v10656, %v11619
  %v12080 = vadd.f32 %v10657, %v11621
  %v12081 = vadd.f32 %v10658, %v11623
  %v12082 = vadd.f32 %v10659, %v11625
  %v12083 = vadd.f32 %v10660, %v11627
  %v12084 = vadd.f32 %v10661, %v11620
  %v12085 = vadd.f32 %v10662, %v11622
  %v12086 = vadd.f32 %v10663, %v11624
  %v12087 = vadd.f32 %v10664, %v11626
  %v12088 = vadd.f32 %v10665, %v11630
  %v12089 = vadd.f32 %v10666, %v11633
  %v12090 = vadd.f32 %v10667, %v11636
  %v12091 = vadd.f32 %v10668, %v11639
  %v12092 = vadd.f32 %v10669, %v11641
  %v12093 = vadd.f32 %v10670, %v11643
  %v12094 = vadd.f32 %v10671, %v11645
  %v12095 = vadd.f32 %v10672, %v11647
  %v12096 = vadd.f32 %v10673, %v11649
  %v12097 = vadd.f32 %v10674, %v11651
  %v12098 = vadd.f32 %v10675, %v11653
  %v12099 = vadd.f32 %v10676, %v11655
  %v12100 = vadd.f32 %v10677, %v11648
  %v12101 = vadd.f32 %v10678, %v11650
  %v12102 = vadd.f32 %v10679, %v11652
  %v12103 = vadd.f32 %v10680, %v11654
  %v12104 = vld [vmem:[%s666] sm:$0xfc]
  %v12105 = vld [vmem:[%s666 + $0x8] sm:$0xfc]
  %v12106 = vld [vmem:[%s666 + $0x10] sm:$0xfc]
  %v12107 = vld [vmem:[%s666 + $0x18] sm:$0xfc]
  %v12108 = vld [vmem:[%s666 + $0x60] sm:$0x3f]
  %v12109 = vld [vmem:[%s666 + $0x68] sm:$0x3f]
  %v12110 = vld [vmem:[%s666 + $0x70] sm:$0x3f]
  %v12111 = vld [vmem:[%s666 + $0x78] sm:$0x3f]
  %v12112 = vld [vmem:[%s666 + $0x80] sm:$0xfc]
  %v12113 = vld [vmem:[%s666 + $0x88] sm:$0xfc]
  %v12114 = vld [vmem:[%s666 + $0x90] sm:$0xfc]
  %v12115 = vld [vmem:[%s666 + $0x98] sm:$0xfc]
  %v12116 = vld [vmem:[%s666 + $0xe0] sm:$0x3f]
  %v12117 = vld [vmem:[%s666 + $0xe8] sm:$0x3f]
  %v12118 = vld [vmem:[%s666 + $0xf0] sm:$0x3f]
  %v12119 = vld [vmem:[%s666 + $0xf8] sm:$0x3f]
  %v12120 = vld [vmem:[%s666 + $0x100] sm:$0xfc]
  %v12121 = vld [vmem:[%s666 + $0x108] sm:$0xfc]
  %v12122 = vld [vmem:[%s666 + $0x110] sm:$0xfc]
  %v12123 = vld [vmem:[%s666 + $0x118] sm:$0xfc]
  %v12124 = vld [vmem:[%s666 + $0x160] sm:$0x3f]
  %v12125 = vld [vmem:[%s666 + $0x168] sm:$0x3f]
  %v12126 = vld [vmem:[%s666 + $0x170] sm:$0x3f]
  %v12127 = vld [vmem:[%s666 + $0x178] sm:$0x3f]
  %v12128 = vld [vmem:[%s666 + $0x180] sm:$0xfc]
  %v12129 = vld [vmem:[%s666 + $0x188] sm:$0xfc]
  %v12130 = vld [vmem:[%s666 + $0x190] sm:$0xfc]
  %v12131 = vld [vmem:[%s666 + $0x198] sm:$0xfc]
  %v12132 = vld [vmem:[%s666 + $0x1e0] sm:$0x3f]
  %v12133 = vld [vmem:[%s666 + $0x1e8] sm:$0x3f]
  %v12134 = vld [vmem:[%s666 + $0x1f0] sm:$0x3f]
  %v12135 = vld [vmem:[%s666 + $0x1f8] sm:$0x3f]
  %v12136 = vld [vmem:[%s666 + $0x200] sm:$0xfc]
  %v12137 = vld [vmem:[%s666 + $0x208] sm:$0xfc]
  %v12138 = vld [vmem:[%s666 + $0x210] sm:$0xfc]
  %v12139 = vld [vmem:[%s666 + $0x218] sm:$0xfc]
  %v12140 = vld [vmem:[%s666 + $0x260] sm:$0x3f]
  %v12141 = vld [vmem:[%s666 + $0x268] sm:$0x3f]
  %v12142 = vld [vmem:[%s666 + $0x270] sm:$0x3f]
  %v12143 = vld [vmem:[%s666 + $0x278] sm:$0x3f]
  %v12144 = vld [vmem:[%s666 + $0x280] sm:$0xfc]
  %v12145 = vld [vmem:[%s666 + $0x288] sm:$0xfc]
  %v12146 = vld [vmem:[%s666 + $0x290] sm:$0xfc]
  %v12147 = vld [vmem:[%s666 + $0x298] sm:$0xfc]
  %v12148 = vld [vmem:[%s666 + $0x2e0] sm:$0x3f]
  %v12149 = vld [vmem:[%s666 + $0x2e8] sm:$0x3f]
  %v12150 = vld [vmem:[%s666 + $0x2f0] sm:$0x3f]
  %v12151 = vld [vmem:[%s666 + $0x2f8] sm:$0x3f]
  %v12152 = vld [vmem:[%s666 + $0x300] sm:$0xfc]
  %v12153 = vld [vmem:[%s666 + $0x308] sm:$0xfc]
  %v12154 = vld [vmem:[%s666 + $0x310] sm:$0xfc]
  %v12155 = vld [vmem:[%s666 + $0x318] sm:$0xfc]
  %v12156 = vld [vmem:[%s666 + $0x360] sm:$0x3f]
  %v12157 = vld [vmem:[%s666 + $0x368] sm:$0x3f]
  %v12158 = vld [vmem:[%s666 + $0x370] sm:$0x3f]
  %v12159 = vld [vmem:[%s666 + $0x378] sm:$0x3f]
  %v12160 = vld [vmem:[%s666 + $0x380] sm:$0xfc]
  %v12161 = vld [vmem:[%s666 + $0x388] sm:$0xfc]
  %v12162 = vld [vmem:[%s666 + $0x390] sm:$0xfc]
  %v12163 = vld [vmem:[%s666 + $0x398] sm:$0xfc]
  %v12164 = vld [vmem:[%s666 + $0x3e0] sm:$0x3f]
  %v12165 = vld [vmem:[%s666 + $0x3e8] sm:$0x3f]
  %v12166 = vld [vmem:[%s666 + $0x3f0] sm:$0x3f]
  %v12167 = vld [vmem:[%s666 + $0x3f8] sm:$0x3f]
  %v12168 = vld [vmem:[%s666 + $0x400] sm:$0xfc]
  %v12169 = vld [vmem:[%s666 + $0x408] sm:$0xfc]
  %v12170 = vld [vmem:[%s666 + $0x410] sm:$0xfc]
  %v12171 = vld [vmem:[%s666 + $0x418] sm:$0xfc]
  %v12172 = vld [vmem:[%s666 + $0x460] sm:$0x3f]
  %v12173 = vld [vmem:[%s666 + $0x468] sm:$0x3f]
  %v12174 = vld [vmem:[%s666 + $0x470] sm:$0x3f]
  %v12175 = vld [vmem:[%s666 + $0x478] sm:$0x3f]
  %v12176 = vld [vmem:[%s666 + $0x480] sm:$0xfc]
  %v12177 = vld [vmem:[%s666 + $0x488] sm:$0xfc]
  %v12178 = vld [vmem:[%s666 + $0x490] sm:$0xfc]
  %v12179 = vld [vmem:[%s666 + $0x498] sm:$0xfc]
  %v12180 = vld [vmem:[%s666 + $0x4e0] sm:$0x3f]
  %v12181 = vld [vmem:[%s666 + $0x4e8] sm:$0x3f]
  %v12182 = vld [vmem:[%s666 + $0x4f0] sm:$0x3f]
  %v12183 = vld [vmem:[%s666 + $0x4f8] sm:$0x3f]
  %v12184 = vld [vmem:[%s666 + $0x500] sm:$0xfc]
  %v12185 = vld [vmem:[%s666 + $0x508] sm:$0xfc]
  %v12186 = vld [vmem:[%s666 + $0x510] sm:$0xfc]
  %v12187 = vld [vmem:[%s666 + $0x518] sm:$0xfc]
  %v12188 = vld [vmem:[%s666 + $0x560] sm:$0x3f]
  %v12189 = vld [vmem:[%s666 + $0x568] sm:$0x3f]
  %v12190 = vld [vmem:[%s666 + $0x570] sm:$0x3f]
  %v12191 = vld [vmem:[%s666 + $0x578] sm:$0x3f]
  %v12192 = vld [vmem:[%s666 + $0x580] sm:$0xfc]
  %v12193 = vld [vmem:[%s666 + $0x588] sm:$0xfc]
  %v12194 = vld [vmem:[%s666 + $0x590] sm:$0xfc]
  %v12195 = vld [vmem:[%s666 + $0x598] sm:$0xfc]
  %v12196 = vld [vmem:[%s666 + $0x5e0] sm:$0x3f]
  %v12197 = vld [vmem:[%s666 + $0x5e8] sm:$0x3f]
  %v12198 = vld [vmem:[%s666 + $0x5f0] sm:$0x3f]
  %v12199 = vld [vmem:[%s666 + $0x5f8] sm:$0x3f]
  %v12200 = vld [vmem:[%s666 + $0x600] sm:$0xfc]
  %v12201 = vld [vmem:[%s666 + $0x608] sm:$0xfc]
  %v12202 = vld [vmem:[%s666 + $0x610] sm:$0xfc]
  %v12203 = vld [vmem:[%s666 + $0x618] sm:$0xfc]
  %v12204 = vld [vmem:[%s666 + $0x660] sm:$0x3f]
  %v12205 = vld [vmem:[%s666 + $0x668] sm:$0x3f]
  %v12206 = vld [vmem:[%s666 + $0x670] sm:$0x3f]
  %v12207 = vld [vmem:[%s666 + $0x678] sm:$0x3f]
  %v12208 = vld [vmem:[%s666 + $0x680] sm:$0xfc]
  %v12209 = vld [vmem:[%s666 + $0x688] sm:$0xfc]
  %v12210 = vld [vmem:[%s666 + $0x690] sm:$0xfc]
  %v12211 = vld [vmem:[%s666 + $0x698] sm:$0xfc]
  %v12212 = vld [vmem:[%s666 + $0x6e0] sm:$0x3f]
  %v12213 = vld [vmem:[%s666 + $0x6e8] sm:$0x3f]
  %v12214 = vld [vmem:[%s666 + $0x6f0] sm:$0x3f]
  %v12215 = vld [vmem:[%s666 + $0x6f8] sm:$0x3f]
  %s12216 = scalar_lea.vmem %s10210, 2
  %v12217 = vld [vmem:[%s12216] ss:$4 sm:$0xf]
  %v12219 = vlaneseq
  %v12220 = vshrl.u32 %v12219, 7
  %v12221 = vsub.s32 0, %v12220
  %v12222 = vrot.slane %v12217, %v12221
  %v12223 = vlaneseq
  %v12224 = vshrl.u32 %v12223, 7
  %v12225 = vsub.s32 1, %v12224
  %v12226 = vrot.slane %v12217, %v12225
  %v12227 = vlaneseq
  %v12228 = vshrl.u32 %v12227, 7
  %v12229 = vsub.s32 2, %v12228
  %v12230 = vrot.slane %v12217, %v12229
  %v12231 = vlaneseq
  %v12232 = vshrl.u32 %v12231, 7
  %v12233 = vsub.s32 3, %v12232
  %v12234 = vrot.slane %v12217, %v12233
  %v12239 = vmul.f32 %v12104, %v12222
  %v12240 = vmul.f32 %v12105, %v12226
  %v12241 = vmul.f32 %v12106, %v12230
  %v12242 = vmul.f32 %v12107, %v12234
  %v12243 = vmul.f32 %v9990, %v12222
  %v12244 = vmul.f32 %v9991, %v12226
  %v12245 = vmul.f32 %v9992, %v12230
  %v12246 = vmul.f32 %v9993, %v12234
  %v12247 = vmul.f32 %v9994, %v12222
  %v12248 = vmul.f32 %v9995, %v12226
  %v12249 = vmul.f32 %v9996, %v12230
  %v12250 = vmul.f32 %v9997, %v12234
  %v12251 = vmul.f32 %v12108, %v12222
  %v12252 = vmul.f32 %v12109, %v12226
  %v12253 = vmul.f32 %v12110, %v12230
  %v12254 = vmul.f32 %v12111, %v12234
  %v12255 = vmul.f32 %v12112, %v12222
  %v12256 = vmul.f32 %v12113, %v12226
  %v12257 = vmul.f32 %v12114, %v12230
  %v12258 = vmul.f32 %v12115, %v12234
  %v12259 = vmul.f32 %v10006, %v12222
  %v12260 = vmul.f32 %v10007, %v12226
  %v12261 = vmul.f32 %v10008, %v12230
  %v12262 = vmul.f32 %v10009, %v12234
  %v12263 = vmul.f32 %v10010, %v12222
  %v12264 = vmul.f32 %v10011, %v12226
  %v12265 = vmul.f32 %v10012, %v12230
  %v12266 = vmul.f32 %v10013, %v12234
  %v12267 = vmul.f32 %v12116, %v12222
  %v12268 = vmul.f32 %v12117, %v12226
  %v12269 = vmul.f32 %v12118, %v12230
  %v12270 = vmul.f32 %v12119, %v12234
  %v12271 = vmul.f32 %v12120, %v12222
  %v12272 = vmul.f32 %v12121, %v12226
  %v12273 = vmul.f32 %v12122, %v12230
  %v12274 = vmul.f32 %v12123, %v12234
  %v12275 = vmul.f32 %v10022, %v12222
  %v12276 = vmul.f32 %v10023, %v12226
  %v12277 = vmul.f32 %v10024, %v12230
  %v12278 = vmul.f32 %v10025, %v12234
  %v12279 = vmul.f32 %v10026, %v12222
  %v12280 = vmul.f32 %v10027, %v12226
  %v12281 = vmul.f32 %v10028, %v12230
  %v12282 = vmul.f32 %v10029, %v12234
  %v12283 = vmul.f32 %v12124, %v12222
  %v12284 = vmul.f32 %v12125, %v12226
  %v12285 = vmul.f32 %v12126, %v12230
  %v12286 = vmul.f32 %v12127, %v12234
  %v12287 = vmul.f32 %v12128, %v12222
  %v12288 = vmul.f32 %v12129, %v12226
  %v12289 = vmul.f32 %v12130, %v12230
  %v12290 = vmul.f32 %v12131, %v12234
  %v12291 = vmul.f32 %v10038, %v12222
  %v12292 = vmul.f32 %v10039, %v12226
  %v12293 = vmul.f32 %v10040, %v12230
  %v12294 = vmul.f32 %v10041, %v12234
  %v12295 = vmul.f32 %v10042, %v12222
  %v12296 = vmul.f32 %v10043, %v12226
  %v12297 = vmul.f32 %v10044, %v12230
  %v12298 = vmul.f32 %v10045, %v12234
  %v12299 = vmul.f32 %v12132, %v12222
  %v12300 = vmul.f32 %v12133, %v12226
  %v12301 = vmul.f32 %v12134, %v12230
  %v12302 = vmul.f32 %v12135, %v12234
  %v12303 = vmul.f32 %v12136, %v12222
  %v12304 = vmul.f32 %v12137, %v12226
  %v12305 = vmul.f32 %v12138, %v12230
  %v12306 = vmul.f32 %v12139, %v12234
  %v12307 = vmul.f32 %v10054, %v12222
  %v12308 = vmul.f32 %v10055, %v12226
  %v12309 = vmul.f32 %v10056, %v12230
  %v12310 = vmul.f32 %v10057, %v12234
  %v12311 = vmul.f32 %v10058, %v12222
  %v12312 = vmul.f32 %v10059, %v12226
  %v12313 = vmul.f32 %v10060, %v12230
  %v12314 = vmul.f32 %v10061, %v12234
  %v12315 = vmul.f32 %v12140, %v12222
  %v12316 = vmul.f32 %v12141, %v12226
  %v12317 = vmul.f32 %v12142, %v12230
  %v12318 = vmul.f32 %v12143, %v12234
  %v12319 = vmul.f32 %v12144, %v12222
  %v12320 = vmul.f32 %v12145, %v12226
  %v12321 = vmul.f32 %v12146, %v12230
  %v12322 = vmul.f32 %v12147, %v12234
  %v12323 = vmul.f32 %v10070, %v12222
  %v12324 = vmul.f32 %v10071, %v12226
  %v12325 = vmul.f32 %v10072, %v12230
  %v12326 = vmul.f32 %v10073, %v12234
  %v12327 = vmul.f32 %v10074, %v12222
  %v12328 = vmul.f32 %v10075, %v12226
  %v12329 = vmul.f32 %v10076, %v12230
  %v12330 = vmul.f32 %v10077, %v12234
  %v12331 = vmul.f32 %v12148, %v12222
  %v12332 = vmul.f32 %v12149, %v12226
  %v12333 = vmul.f32 %v12150, %v12230
  %v12334 = vmul.f32 %v12151, %v12234
  %v12335 = vmul.f32 %v12152, %v12222
  %v12336 = vmul.f32 %v12153, %v12226
  %v12337 = vmul.f32 %v12154, %v12230
  %v12338 = vmul.f32 %v12155, %v12234
  %v12339 = vmul.f32 %v10086, %v12222
  %v12340 = vmul.f32 %v10087, %v12226
  %v12341 = vmul.f32 %v10088, %v12230
  %v12342 = vmul.f32 %v10089, %v12234
  %v12343 = vmul.f32 %v10090, %v12222
  %v12344 = vmul.f32 %v10091, %v12226
  %v12345 = vmul.f32 %v10092, %v12230
  %v12346 = vmul.f32 %v10093, %v12234
  %v12347 = vmul.f32 %v12156, %v12222
  %v12348 = vmul.f32 %v12157, %v12226
  %v12349 = vmul.f32 %v12158, %v12230
  %v12350 = vmul.f32 %v12159, %v12234
  %v12351 = vmul.f32 %v12160, %v12222
  %v12352 = vmul.f32 %v12161, %v12226
  %v12353 = vmul.f32 %v12162, %v12230
  %v12354 = vmul.f32 %v12163, %v12234
  %v12355 = vmul.f32 %v10102, %v12222
  %v12356 = vmul.f32 %v10103, %v12226
  %v12357 = vmul.f32 %v10104, %v12230
  %v12358 = vmul.f32 %v10105, %v12234
  %v12359 = vmul.f32 %v10106, %v12222
  %v12360 = vmul.f32 %v10107, %v12226
  %v12361 = vmul.f32 %v10108, %v12230
  %v12362 = vmul.f32 %v10109, %v12234
  %v12363 = vmul.f32 %v12164, %v12222
  %v12364 = vmul.f32 %v12165, %v12226
  %v12365 = vmul.f32 %v12166, %v12230
  %v12366 = vmul.f32 %v12167, %v12234
  %v12367 = vmul.f32 %v12168, %v12222
  %v12368 = vmul.f32 %v12169, %v12226
  %v12369 = vmul.f32 %v12170, %v12230
  %v12370 = vmul.f32 %v12171, %v12234
  %v12371 = vmul.f32 %v10118, %v12222
  %v12372 = vmul.f32 %v10119, %v12226
  %v12373 = vmul.f32 %v10120, %v12230
  %v12374 = vmul.f32 %v10121, %v12234
  %v12375 = vmul.f32 %v10122, %v12222
  %v12376 = vmul.f32 %v10123, %v12226
  %v12377 = vmul.f32 %v10124, %v12230
  %v12378 = vmul.f32 %v10125, %v12234
  %v12379 = vmul.f32 %v12172, %v12222
  %v12380 = vmul.f32 %v12173, %v12226
  %v12381 = vmul.f32 %v12174, %v12230
  %v12382 = vmul.f32 %v12175, %v12234
  %v12383 = vmul.f32 %v12176, %v12222
  %v12384 = vmul.f32 %v12177, %v12226
  %v12385 = vmul.f32 %v12178, %v12230
  %v12386 = vmul.f32 %v12179, %v12234
  %v12387 = vmul.f32 %v10134, %v12222
  %v12388 = vmul.f32 %v10135, %v12226
  %v12389 = vmul.f32 %v10136, %v12230
  %v12390 = vmul.f32 %v10137, %v12234
  %v12391 = vmul.f32 %v10138, %v12222
  %v12392 = vmul.f32 %v10139, %v12226
  %v12393 = vmul.f32 %v10140, %v12230
  %v12394 = vmul.f32 %v10141, %v12234
  %v12395 = vmul.f32 %v12180, %v12222
  %v12396 = vmul.f32 %v12181, %v12226
  %v12397 = vmul.f32 %v12182, %v12230
  %v12398 = vmul.f32 %v12183, %v12234
  %v12399 = vmul.f32 %v12184, %v12222
  %v12400 = vmul.f32 %v12185, %v12226
  %v12401 = vmul.f32 %v12186, %v12230
  %v12402 = vmul.f32 %v12187, %v12234
  %v12403 = vmul.f32 %v10150, %v12222
  %v12404 = vmul.f32 %v10151, %v12226
  %v12405 = vmul.f32 %v10152, %v12230
  %v12406 = vmul.f32 %v10153, %v12234
  %v12407 = vmul.f32 %v10154, %v12222
  %v12408 = vmul.f32 %v10155, %v12226
  %v12409 = vmul.f32 %v10156, %v12230
  %v12410 = vmul.f32 %v10157, %v12234
  %v12411 = vmul.f32 %v12188, %v12222
  %v12412 = vmul.f32 %v12189, %v12226
  %v12413 = vmul.f32 %v12190, %v12230
  %v12414 = vmul.f32 %v12191, %v12234
  %v12415 = vmul.f32 %v12192, %v12222
  %v12416 = vmul.f32 %v12193, %v12226
  %v12417 = vmul.f32 %v12194, %v12230
  %v12418 = vmul.f32 %v12195, %v12234
  %v12419 = vmul.f32 %v10166, %v12222
  %v12420 = vmul.f32 %v10167, %v12226
  %v12421 = vmul.f32 %v10168, %v12230
  %v12422 = vmul.f32 %v10169, %v12234
  %v12423 = vmul.f32 %v10170, %v12222
  %v12424 = vmul.f32 %v10171, %v12226
  %v12425 = vmul.f32 %v10172, %v12230
  %v12426 = vmul.f32 %v10173, %v12234
  %v12427 = vmul.f32 %v12196, %v12222
  %v12428 = vmul.f32 %v12197, %v12226
  %v12429 = vmul.f32 %v12198, %v12230
  %v12430 = vmul.f32 %v12199, %v12234
  %v12431 = vmul.f32 %v12200, %v12222
  %v12432 = vmul.f32 %v12201, %v12226
  %v12433 = vmul.f32 %v12202, %v12230
  %v12434 = vmul.f32 %v12203, %v12234
  %v12435 = vmul.f32 %v10182, %v12222
  %v12436 = vmul.f32 %v10183, %v12226
  %v12437 = vmul.f32 %v10184, %v12230
  %v12438 = vmul.f32 %v10185, %v12234
  %v12439 = vmul.f32 %v10186, %v12222
  %v12440 = vmul.f32 %v10187, %v12226
  %v12441 = vmul.f32 %v10188, %v12230
  %v12442 = vmul.f32 %v10189, %v12234
  %v12443 = vmul.f32 %v12204, %v12222
  %v12444 = vmul.f32 %v12205, %v12226
  %v12445 = vmul.f32 %v12206, %v12230
  %v12446 = vmul.f32 %v12207, %v12234
  %v12447 = vmul.f32 %v12208, %v12222
  %v12448 = vmul.f32 %v12209, %v12226
  %v12449 = vmul.f32 %v12210, %v12230
  %v12450 = vmul.f32 %v12211, %v12234
  %v12451 = vmul.f32 %v10198, %v12222
  %v12452 = vmul.f32 %v10199, %v12226
  %v12453 = vmul.f32 %v10200, %v12230
  %v12454 = vmul.f32 %v10201, %v12234
  %v12455 = vmul.f32 %v10202, %v12222
  %v12456 = vmul.f32 %v10203, %v12226
  %v12457 = vmul.f32 %v10204, %v12230
  %v12458 = vmul.f32 %v10205, %v12234
  %v12459 = vmul.f32 %v12212, %v12222
  %v12460 = vmul.f32 %v12213, %v12226
  %v12461 = vmul.f32 %v12214, %v12230
  %v12462 = vmul.f32 %v12215, %v12234
  %v12687 = vrot.slane %v12239, 2
  %v12688 = vrot.slane %v12243, 2
  %v12689 = vsel %vm5604, %v12687, %v12688
  %v12690 = vrot.slane %v12240, 2
  %v12691 = vrot.slane %v12244, 2
  %v12692 = vsel %vm5604, %v12690, %v12691
  %v12693 = vrot.slane %v12241, 2
  %v12694 = vrot.slane %v12245, 2
  %v12695 = vsel %vm5604, %v12693, %v12694
  %v12696 = vrot.slane %v12242, 2
  %v12697 = vrot.slane %v12246, 2
  %v12698 = vsel %vm5604, %v12696, %v12697
  %v12699 = vrot.slane %v12247, 2
  %v12700 = vsel %vm5604, %v12688, %v12699
  %v12701 = vrot.slane %v12248, 2
  %v12702 = vsel %vm5604, %v12691, %v12701
  %v12703 = vrot.slane %v12249, 2
  %v12704 = vsel %vm5604, %v12694, %v12703
  %v12705 = vrot.slane %v12250, 2
  %v12706 = vsel %vm5604, %v12697, %v12705
  %v12707 = vrot.slane %v12251, 2
  %v12708 = vsel %vm5604, %v12699, %v12707
  %v12709 = vrot.slane %v12252, 2
  %v12710 = vsel %vm5604, %v12701, %v12709
  %v12711 = vrot.slane %v12253, 2
  %v12712 = vsel %vm5604, %v12703, %v12711
  %v12713 = vrot.slane %v12254, 2
  %v12714 = vsel %vm5604, %v12705, %v12713
  %v12715 = vrot.slane %v12255, 2
  %v12716 = vrot.slane %v12259, 2
  %v12717 = vsel %vm5604, %v12715, %v12716
  %v12718 = vrot.slane %v12256, 2
  %v12719 = vrot.slane %v12260, 2
  %v12720 = vsel %vm5604, %v12718, %v12719
  %v12721 = vrot.slane %v12257, 2
  %v12722 = vrot.slane %v12261, 2
  %v12723 = vsel %vm5604, %v12721, %v12722
  %v12724 = vrot.slane %v12258, 2
  %v12725 = vrot.slane %v12262, 2
  %v12726 = vsel %vm5604, %v12724, %v12725
  %v12727 = vrot.slane %v12263, 2
  %v12728 = vsel %vm5604, %v12716, %v12727
  %v12729 = vrot.slane %v12264, 2
  %v12730 = vsel %vm5604, %v12719, %v12729
  %v12731 = vrot.slane %v12265, 2
  %v12732 = vsel %vm5604, %v12722, %v12731
  %v12733 = vrot.slane %v12266, 2
  %v12734 = vsel %vm5604, %v12725, %v12733
  %v12735 = vrot.slane %v12267, 2
  %v12736 = vsel %vm5604, %v12727, %v12735
  %v12737 = vrot.slane %v12268, 2
  %v12738 = vsel %vm5604, %v12729, %v12737
  %v12739 = vrot.slane %v12269, 2
  %v12740 = vsel %vm5604, %v12731, %v12739
  %v12741 = vrot.slane %v12270, 2
  %v12742 = vsel %vm5604, %v12733, %v12741
  %v12743 = vrot.slane %v12271, 2
  %v12744 = vrot.slane %v12275, 2
  %v12745 = vsel %vm5604, %v12743, %v12744
  %v12746 = vrot.slane %v12272, 2
  %v12747 = vrot.slane %v12276, 2
  %v12748 = vsel %vm5604, %v12746, %v12747
  %v12749 = vrot.slane %v12273, 2
  %v12750 = vrot.slane %v12277, 2
  %v12751 = vsel %vm5604, %v12749, %v12750
  %v12752 = vrot.slane %v12274, 2
  %v12753 = vrot.slane %v12278, 2
  %v12754 = vsel %vm5604, %v12752, %v12753
  %v12755 = vrot.slane %v12279, 2
  %v12756 = vsel %vm5604, %v12744, %v12755
  %v12757 = vrot.slane %v12280, 2
  %v12758 = vsel %vm5604, %v12747, %v12757
  %v12759 = vrot.slane %v12281, 2
  %v12760 = vsel %vm5604, %v12750, %v12759
  %v12761 = vrot.slane %v12282, 2
  %v12762 = vsel %vm5604, %v12753, %v12761
  %v12763 = vrot.slane %v12283, 2
  %v12764 = vsel %vm5604, %v12755, %v12763
  %v12765 = vrot.slane %v12284, 2
  %v12766 = vsel %vm5604, %v12757, %v12765
  %v12767 = vrot.slane %v12285, 2
  %v12768 = vsel %vm5604, %v12759, %v12767
  %v12769 = vrot.slane %v12286, 2
  %v12770 = vsel %vm5604, %v12761, %v12769
  %v12771 = vrot.slane %v12287, 2
  %v12772 = vrot.slane %v12291, 2
  %v12773 = vsel %vm5604, %v12771, %v12772
  %v12774 = vrot.slane %v12288, 2
  %v12775 = vrot.slane %v12292, 2
  %v12776 = vsel %vm5604, %v12774, %v12775
  %v12777 = vrot.slane %v12289, 2
  %v12778 = vrot.slane %v12293, 2
  %v12779 = vsel %vm5604, %v12777, %v12778
  %v12780 = vrot.slane %v12290, 2
  %v12781 = vrot.slane %v12294, 2
  %v12782 = vsel %vm5604, %v12780, %v12781
  %v12783 = vrot.slane %v12295, 2
  %v12784 = vsel %vm5604, %v12772, %v12783
  %v12785 = vrot.slane %v12296, 2
  %v12786 = vsel %vm5604, %v12775, %v12785
  %v12787 = vrot.slane %v12297, 2
  %v12788 = vsel %vm5604, %v12778, %v12787
  %v12789 = vrot.slane %v12298, 2
  %v12790 = vsel %vm5604, %v12781, %v12789
  %v12791 = vrot.slane %v12299, 2
  %v12792 = vsel %vm5604, %v12783, %v12791
  %v12793 = vrot.slane %v12300, 2
  %v12794 = vsel %vm5604, %v12785, %v12793
  %v12795 = vrot.slane %v12301, 2
  %v12796 = vsel %vm5604, %v12787, %v12795
  %v12797 = vrot.slane %v12302, 2
  %v12798 = vsel %vm5604, %v12789, %v12797
  %v12799 = vrot.slane %v12303, 2
  %v12800 = vrot.slane %v12307, 2
  %v12801 = vsel %vm5604, %v12799, %v12800
  %v12802 = vrot.slane %v12304, 2
  %v12803 = vrot.slane %v12308, 2
  %v12804 = vsel %vm5604, %v12802, %v12803
  %v12805 = vrot.slane %v12305, 2
  %v12806 = vrot.slane %v12309, 2
  %v12807 = vsel %vm5604, %v12805, %v12806
  %v12808 = vrot.slane %v12306, 2
  %v12809 = vrot.slane %v12310, 2
  %v12810 = vsel %vm5604, %v12808, %v12809
  %v12811 = vrot.slane %v12311, 2
  %v12812 = vsel %vm5604, %v12800, %v12811
  %v12813 = vrot.slane %v12312, 2
  %v12814 = vsel %vm5604, %v12803, %v12813
  %v12815 = vrot.slane %v12313, 2
  %v12816 = vsel %vm5604, %v12806, %v12815
  %v12817 = vrot.slane %v12314, 2
  %v12818 = vsel %vm5604, %v12809, %v12817
  %v12819 = vrot.slane %v12315, 2
  %v12820 = vsel %vm5604, %v12811, %v12819
  %v12821 = vrot.slane %v12316, 2
  %v12822 = vsel %vm5604, %v12813, %v12821
  %v12823 = vrot.slane %v12317, 2
  %v12824 = vsel %vm5604, %v12815, %v12823
  %v12825 = vrot.slane %v12318, 2
  %v12826 = vsel %vm5604, %v12817, %v12825
  %v12827 = vrot.slane %v12319, 2
  %v12828 = vrot.slane %v12323, 2
  %v12829 = vsel %vm5604, %v12827, %v12828
  %v12830 = vrot.slane %v12320, 2
  %v12831 = vrot.slane %v12324, 2
  %v12832 = vsel %vm5604, %v12830, %v12831
  %v12833 = vrot.slane %v12321, 2
  %v12834 = vrot.slane %v12325, 2
  %v12835 = vsel %vm5604, %v12833, %v12834
  %v12836 = vrot.slane %v12322, 2
  %v12837 = vrot.slane %v12326, 2
  %v12838 = vsel %vm5604, %v12836, %v12837
  %v12839 = vrot.slane %v12327, 2
  %v12840 = vsel %vm5604, %v12828, %v12839
  %v12841 = vrot.slane %v12328, 2
  %v12842 = vsel %vm5604, %v12831, %v12841
  %v12843 = vrot.slane %v12329, 2
  %v12844 = vsel %vm5604, %v12834, %v12843
  %v12845 = vrot.slane %v12330, 2
  %v12846 = vsel %vm5604, %v12837, %v12845
  %v12847 = vrot.slane %v12331, 2
  %v12848 = vsel %vm5604, %v12839, %v12847
  %v12849 = vrot.slane %v12332, 2
  %v12850 = vsel %vm5604, %v12841, %v12849
  %v12851 = vrot.slane %v12333, 2
  %v12852 = vsel %vm5604, %v12843, %v12851
  %v12853 = vrot.slane %v12334, 2
  %v12854 = vsel %vm5604, %v12845, %v12853
  %v12855 = vrot.slane %v12335, 2
  %v12856 = vrot.slane %v12339, 2
  %v12857 = vsel %vm5604, %v12855, %v12856
  %v12858 = vrot.slane %v12336, 2
  %v12859 = vrot.slane %v12340, 2
  %v12860 = vsel %vm5604, %v12858, %v12859
  %v12861 = vrot.slane %v12337, 2
  %v12862 = vrot.slane %v12341, 2
  %v12863 = vsel %vm5604, %v12861, %v12862
  %v12864 = vrot.slane %v12338, 2
  %v12865 = vrot.slane %v12342, 2
  %v12866 = vsel %vm5604, %v12864, %v12865
  %v12867 = vrot.slane %v12343, 2
  %v12868 = vsel %vm5604, %v12856, %v12867
  %v12869 = vrot.slane %v12344, 2
  %v12870 = vsel %vm5604, %v12859, %v12869
  %v12871 = vrot.slane %v12345, 2
  %v12872 = vsel %vm5604, %v12862, %v12871
  %v12873 = vrot.slane %v12346, 2
  %v12874 = vsel %vm5604, %v12865, %v12873
  %v12875 = vrot.slane %v12347, 2
  %v12876 = vsel %vm5604, %v12867, %v12875
  %v12877 = vrot.slane %v12348, 2
  %v12878 = vsel %vm5604, %v12869, %v12877
  %v12879 = vrot.slane %v12349, 2
  %v12880 = vsel %vm5604, %v12871, %v12879
  %v12881 = vrot.slane %v12350, 2
  %v12882 = vsel %vm5604, %v12873, %v12881
  %v12883 = vrot.slane %v12351, 2
  %v12884 = vrot.slane %v12355, 2
  %v12885 = vsel %vm5604, %v12883, %v12884
  %v12886 = vrot.slane %v12352, 2
  %v12887 = vrot.slane %v12356, 2
  %v12888 = vsel %vm5604, %v12886, %v12887
  %v12889 = vrot.slane %v12353, 2
  %v12890 = vrot.slane %v12357, 2
  %v12891 = vsel %vm5604, %v12889, %v12890
  %v12892 = vrot.slane %v12354, 2
  %v12893 = vrot.slane %v12358, 2
  %v12894 = vsel %vm5604, %v12892, %v12893
  %v12895 = vrot.slane %v12359, 2
  %v12896 = vsel %vm5604, %v12884, %v12895
  %v12897 = vrot.slane %v12360, 2
  %v12898 = vsel %vm5604, %v12887, %v12897
  %v12899 = vrot.slane %v12361, 2
  %v12900 = vsel %vm5604, %v12890, %v12899
  %v12901 = vrot.slane %v12362, 2
  %v12902 = vsel %vm5604, %v12893, %v12901
  %v12903 = vrot.slane %v12363, 2
  %v12904 = vsel %vm5604, %v12895, %v12903
  %v12905 = vrot.slane %v12364, 2
  %v12906 = vsel %vm5604, %v12897, %v12905
  %v12907 = vrot.slane %v12365, 2
  %v12908 = vsel %vm5604, %v12899, %v12907
  %v12909 = vrot.slane %v12366, 2
  %v12910 = vsel %vm5604, %v12901, %v12909
  %v12911 = vrot.slane %v12367, 2
  %v12912 = vrot.slane %v12371, 2
  %v12913 = vsel %vm5604, %v12911, %v12912
  %v12914 = vrot.slane %v12368, 2
  %v12915 = vrot.slane %v12372, 2
  %v12916 = vsel %vm5604, %v12914, %v12915
  %v12917 = vrot.slane %v12369, 2
  %v12918 = vrot.slane %v12373, 2
  %v12919 = vsel %vm5604, %v12917, %v12918
  %v12920 = vrot.slane %v12370, 2
  %v12921 = vrot.slane %v12374, 2
  %v12922 = vsel %vm5604, %v12920, %v12921
  %v12923 = vrot.slane %v12375, 2
  %v12924 = vsel %vm5604, %v12912, %v12923
  %v12925 = vrot.slane %v12376, 2
  %v12926 = vsel %vm5604, %v12915, %v12925
  %v12927 = vrot.slane %v12377, 2
  %v12928 = vsel %vm5604, %v12918, %v12927
  %v12929 = vrot.slane %v12378, 2
  %v12930 = vsel %vm5604, %v12921, %v12929
  %v12931 = vrot.slane %v12379, 2
  %v12932 = vsel %vm5604, %v12923, %v12931
  %v12933 = vrot.slane %v12380, 2
  %v12934 = vsel %vm5604, %v12925, %v12933
  %v12935 = vrot.slane %v12381, 2
  %v12936 = vsel %vm5604, %v12927, %v12935
  %v12937 = vrot.slane %v12382, 2
  %v12938 = vsel %vm5604, %v12929, %v12937
  %v12939 = vrot.slane %v12383, 2
  %v12940 = vrot.slane %v12387, 2
  %v12941 = vsel %vm5604, %v12939, %v12940
  %v12942 = vrot.slane %v12384, 2
  %v12943 = vrot.slane %v12388, 2
  %v12944 = vsel %vm5604, %v12942, %v12943
  %v12945 = vrot.slane %v12385, 2
  %v12946 = vrot.slane %v12389, 2
  %v12947 = vsel %vm5604, %v12945, %v12946
  %v12948 = vrot.slane %v12386, 2
  %v12949 = vrot.slane %v12390, 2
  %v12950 = vsel %vm5604, %v12948, %v12949
  %v12951 = vrot.slane %v12391, 2
  %v12952 = vsel %vm5604, %v12940, %v12951
  %v12953 = vrot.slane %v12392, 2
  %v12954 = vsel %vm5604, %v12943, %v12953
  %v12955 = vrot.slane %v12393, 2
  %v12956 = vsel %vm5604, %v12946, %v12955
  %v12957 = vrot.slane %v12394, 2
  %v12958 = vsel %vm5604, %v12949, %v12957
  %v12959 = vrot.slane %v12395, 2
  %v12960 = vsel %vm5604, %v12951, %v12959
  %v12961 = vrot.slane %v12396, 2
  %v12962 = vsel %vm5604, %v12953, %v12961
  %v12963 = vrot.slane %v12397, 2
  %v12964 = vsel %vm5604, %v12955, %v12963
  %v12965 = vrot.slane %v12398, 2
  %v12966 = vsel %vm5604, %v12957, %v12965
  %v12967 = vrot.slane %v12399, 2
  %v12968 = vrot.slane %v12403, 2
  %v12969 = vsel %vm5604, %v12967, %v12968
  %v12970 = vrot.slane %v12400, 2
  %v12971 = vrot.slane %v12404, 2
  %v12972 = vsel %vm5604, %v12970, %v12971
  %v12973 = vrot.slane %v12401, 2
  %v12974 = vrot.slane %v12405, 2
  %v12975 = vsel %vm5604, %v12973, %v12974
  %v12976 = vrot.slane %v12402, 2
  %v12977 = vrot.slane %v12406, 2
  %v12978 = vsel %vm5604, %v12976, %v12977
  %v12979 = vrot.slane %v12407, 2
  %v12980 = vsel %vm5604, %v12968, %v12979
  %v12981 = vrot.slane %v12408, 2
  %v12982 = vsel %vm5604, %v12971, %v12981
  %v12983 = vrot.slane %v12409, 2
  %v12984 = vsel %vm5604, %v12974, %v12983
  %v12985 = vrot.slane %v12410, 2
  %v12986 = vsel %vm5604, %v12977, %v12985
  %v12987 = vrot.slane %v12411, 2
  %v12988 = vsel %vm5604, %v12979, %v12987
  %v12989 = vrot.slane %v12412, 2
  %v12990 = vsel %vm5604, %v12981, %v12989
  %v12991 = vrot.slane %v12413, 2
  %v12992 = vsel %vm5604, %v12983, %v12991
  %v12993 = vrot.slane %v12414, 2
  %v12994 = vsel %vm5604, %v12985, %v12993
  %v12995 = vrot.slane %v12415, 2
  %v12996 = vrot.slane %v12419, 2
  %v12997 = vsel %vm5604, %v12995, %v12996
  %v12998 = vrot.slane %v12416, 2
  %v12999 = vrot.slane %v12420, 2
  %v13000 = vsel %vm5604, %v12998, %v12999
  %v13001 = vrot.slane %v12417, 2
  %v13002 = vrot.slane %v12421, 2
  %v13003 = vsel %vm5604, %v13001, %v13002
  %v13004 = vrot.slane %v12418, 2
  %v13005 = vrot.slane %v12422, 2
  %v13006 = vsel %vm5604, %v13004, %v13005
  %v13007 = vrot.slane %v12423, 2
  %v13008 = vsel %vm5604, %v12996, %v13007
  %v13009 = vrot.slane %v12424, 2
  %v13010 = vsel %vm5604, %v12999, %v13009
  %v13011 = vrot.slane %v12425, 2
  %v13012 = vsel %vm5604, %v13002, %v13011
  %v13013 = vrot.slane %v12426, 2
  %v13014 = vsel %vm5604, %v13005, %v13013
  %v13015 = vrot.slane %v12427, 2
  %v13016 = vsel %vm5604, %v13007, %v13015
  %v13017 = vrot.slane %v12428, 2
  %v13018 = vsel %vm5604, %v13009, %v13017
  %v13019 = vrot.slane %v12429, 2
  %v13020 = vsel %vm5604, %v13011, %v13019
  %v13021 = vrot.slane %v12430, 2
  %v13022 = vsel %vm5604, %v13013, %v13021
  %v13023 = vrot.slane %v12431, 2
  %v13024 = vrot.slane %v12435, 2
  %v13025 = vsel %vm5604, %v13023, %v13024
  %v13026 = vrot.slane %v12432, 2
  %v13027 = vrot.slane %v12436, 2
  %v13028 = vsel %vm5604, %v13026, %v13027
  %v13029 = vrot.slane %v12433, 2
  %v13030 = vrot.slane %v12437, 2
  %v13031 = vsel %vm5604, %v13029, %v13030
  %v13032 = vrot.slane %v12434, 2
  %v13033 = vrot.slane %v12438, 2
  %v13034 = vsel %vm5604, %v13032, %v13033
  %v13035 = vrot.slane %v12439, 2
  %v13036 = vsel %vm5604, %v13024, %v13035
  %v13037 = vrot.slane %v12440, 2
  %v13038 = vsel %vm5604, %v13027, %v13037
  %v13039 = vrot.slane %v12441, 2
  %v13040 = vsel %vm5604, %v13030, %v13039
  %v13041 = vrot.slane %v12442, 2
  %v13042 = vsel %vm5604, %v13033, %v13041
  %v13043 = vrot.slane %v12443, 2
  %v13044 = vsel %vm5604, %v13035, %v13043
  %v13045 = vrot.slane %v12444, 2
  %v13046 = vsel %vm5604, %v13037, %v13045
  %v13047 = vrot.slane %v12445, 2
  %v13048 = vsel %vm5604, %v13039, %v13047
  %v13049 = vrot.slane %v12446, 2
  %v13050 = vsel %vm5604, %v13041, %v13049
  %v13051 = vrot.slane %v12447, 2
  %v13052 = vrot.slane %v12451, 2
  %v13053 = vsel %vm5604, %v13051, %v13052
  %v13054 = vrot.slane %v12448, 2
  %v13055 = vrot.slane %v12452, 2
  %v13056 = vsel %vm5604, %v13054, %v13055
  %v13057 = vrot.slane %v12449, 2
  %v13058 = vrot.slane %v12453, 2
  %v13059 = vsel %vm5604, %v13057, %v13058
  %v13060 = vrot.slane %v12450, 2
  %v13061 = vrot.slane %v12454, 2
  %v13062 = vsel %vm5604, %v13060, %v13061
  %v13063 = vrot.slane %v12455, 2
  %v13064 = vsel %vm5604, %v13052, %v13063
  %v13065 = vrot.slane %v12456, 2
  %v13066 = vsel %vm5604, %v13055, %v13065
  %v13067 = vrot.slane %v12457, 2
  %v13068 = vsel %vm5604, %v13058, %v13067
  %v13069 = vrot.slane %v12458, 2
  %v13070 = vsel %vm5604, %v13061, %v13069
  %v13071 = vrot.slane %v12459, 2
  %v13072 = vsel %vm5604, %v13063, %v13071
  %v13073 = vrot.slane %v12460, 2
  %v13074 = vsel %vm5604, %v13065, %v13073
  %v13075 = vrot.slane %v12461, 2
  %v13076 = vsel %vm5604, %v13067, %v13075
  %v13077 = vrot.slane %v12462, 2
  %v13078 = vsel %vm5604, %v13069, %v13077
  %v13303 = vadd.f32 %v11880, %v12689
  %v13304 = vadd.f32 %v11881, %v12692
  %v13305 = vadd.f32 %v11882, %v12695
  %v13306 = vadd.f32 %v11883, %v12698
  %v13307 = vadd.f32 %v11884, %v12700
  %v13308 = vadd.f32 %v11885, %v12702
  %v13309 = vadd.f32 %v11886, %v12704
  %v13310 = vadd.f32 %v11887, %v12706
  %v13311 = vadd.f32 %v11888, %v12708
  %v13312 = vadd.f32 %v11889, %v12710
  %v13313 = vadd.f32 %v11890, %v12712
  %v13314 = vadd.f32 %v11891, %v12714
  %v13315 = vadd.f32 %v11892, %v12707
  %v13316 = vadd.f32 %v11893, %v12709
  %v13317 = vadd.f32 %v11894, %v12711
  %v13318 = vadd.f32 %v11895, %v12713
  %v13319 = vadd.f32 %v11896, %v12717
  %v13320 = vadd.f32 %v11897, %v12720
  %v13321 = vadd.f32 %v11898, %v12723
  %v13322 = vadd.f32 %v11899, %v12726
  %v13323 = vadd.f32 %v11900, %v12728
  %v13324 = vadd.f32 %v11901, %v12730
  %v13325 = vadd.f32 %v11902, %v12732
  %v13326 = vadd.f32 %v11903, %v12734
  %v13327 = vadd.f32 %v11904, %v12736
  %v13328 = vadd.f32 %v11905, %v12738
  %v13329 = vadd.f32 %v11906, %v12740
  %v13330 = vadd.f32 %v11907, %v12742
  %v13331 = vadd.f32 %v11908, %v12735
  %v13332 = vadd.f32 %v11909, %v12737
  %v13333 = vadd.f32 %v11910, %v12739
  %v13334 = vadd.f32 %v11911, %v12741
  %v13335 = vadd.f32 %v11912, %v12745
  %v13336 = vadd.f32 %v11913, %v12748
  %v13337 = vadd.f32 %v11914, %v12751
  %v13338 = vadd.f32 %v11915, %v12754
  %v13339 = vadd.f32 %v11916, %v12756
  %v13340 = vadd.f32 %v11917, %v12758
  %v13341 = vadd.f32 %v11918, %v12760
  %v13342 = vadd.f32 %v11919, %v12762
  %v13343 = vadd.f32 %v11920, %v12764
  %v13344 = vadd.f32 %v11921, %v12766
  %v13345 = vadd.f32 %v11922, %v12768
  %v13346 = vadd.f32 %v11923, %v12770
  %v13347 = vadd.f32 %v11924, %v12763
  %v13348 = vadd.f32 %v11925, %v12765
  %v13349 = vadd.f32 %v11926, %v12767
  %v13350 = vadd.f32 %v11927, %v12769
  %v13351 = vadd.f32 %v11928, %v12773
  %v13352 = vadd.f32 %v11929, %v12776
  %v13353 = vadd.f32 %v11930, %v12779
  %v13354 = vadd.f32 %v11931, %v12782
  %v13355 = vadd.f32 %v11932, %v12784
  %v13356 = vadd.f32 %v11933, %v12786
  %v13357 = vadd.f32 %v11934, %v12788
  %v13358 = vadd.f32 %v11935, %v12790
  %v13359 = vadd.f32 %v11936, %v12792
  %v13360 = vadd.f32 %v11937, %v12794
  %v13361 = vadd.f32 %v11938, %v12796
  %v13362 = vadd.f32 %v11939, %v12798
  %v13363 = vadd.f32 %v11940, %v12791
  %v13364 = vadd.f32 %v11941, %v12793
  %v13365 = vadd.f32 %v11942, %v12795
  %v13366 = vadd.f32 %v11943, %v12797
  %v13367 = vadd.f32 %v11944, %v12801
  %v13368 = vadd.f32 %v11945, %v12804
  %v13369 = vadd.f32 %v11946, %v12807
  %v13370 = vadd.f32 %v11947, %v12810
  %v13371 = vadd.f32 %v11948, %v12812
  %v13372 = vadd.f32 %v11949, %v12814
  %v13373 = vadd.f32 %v11950, %v12816
  %v13374 = vadd.f32 %v11951, %v12818
  %v13375 = vadd.f32 %v11952, %v12820
  %v13376 = vadd.f32 %v11953, %v12822
  %v13377 = vadd.f32 %v11954, %v12824
  %v13378 = vadd.f32 %v11955, %v12826
  %v13379 = vadd.f32 %v11956, %v12819
  %v13380 = vadd.f32 %v11957, %v12821
  %v13381 = vadd.f32 %v11958, %v12823
  %v13382 = vadd.f32 %v11959, %v12825
  %v13383 = vadd.f32 %v11960, %v12829
  %v13384 = vadd.f32 %v11961, %v12832
  %v13385 = vadd.f32 %v11962, %v12835
  %v13386 = vadd.f32 %v11963, %v12838
  %v13387 = vadd.f32 %v11964, %v12840
  %v13388 = vadd.f32 %v11965, %v12842
  %v13389 = vadd.f32 %v11966, %v12844
  %v13390 = vadd.f32 %v11967, %v12846
  %v13391 = vadd.f32 %v11968, %v12848
  %v13392 = vadd.f32 %v11969, %v12850
  %v13393 = vadd.f32 %v11970, %v12852
  %v13394 = vadd.f32 %v11971, %v12854
  %v13395 = vadd.f32 %v11972, %v12847
  %v13396 = vadd.f32 %v11973, %v12849
  %v13397 = vadd.f32 %v11974, %v12851
  %v13398 = vadd.f32 %v11975, %v12853
  %v13399 = vadd.f32 %v11976, %v12857
  %v13400 = vadd.f32 %v11977, %v12860
  %v13401 = vadd.f32 %v11978, %v12863
  %v13402 = vadd.f32 %v11979, %v12866
  %v13403 = vadd.f32 %v11980, %v12868
  %v13404 = vadd.f32 %v11981, %v12870
  %v13405 = vadd.f32 %v11982, %v12872
  %v13406 = vadd.f32 %v11983, %v12874
  %v13407 = vadd.f32 %v11984, %v12876
  %v13408 = vadd.f32 %v11985, %v12878
  %v13409 = vadd.f32 %v11986, %v12880
  %v13410 = vadd.f32 %v11987, %v12882
  %v13411 = vadd.f32 %v11988, %v12875
  %v13412 = vadd.f32 %v11989, %v12877
  %v13413 = vadd.f32 %v11990, %v12879
  %v13414 = vadd.f32 %v11991, %v12881
  %v13415 = vadd.f32 %v11992, %v12885
  %v13416 = vadd.f32 %v11993, %v12888
  %v13417 = vadd.f32 %v11994, %v12891
  %v13418 = vadd.f32 %v11995, %v12894
  %v13419 = vadd.f32 %v11996, %v12896
  %v13420 = vadd.f32 %v11997, %v12898
  %v13421 = vadd.f32 %v11998, %v12900
  %v13422 = vadd.f32 %v11999, %v12902
  %v13423 = vadd.f32 %v12000, %v12904
  %v13424 = vadd.f32 %v12001, %v12906
  %v13425 = vadd.f32 %v12002, %v12908
  %v13426 = vadd.f32 %v12003, %v12910
  %v13427 = vadd.f32 %v12004, %v12903
  %v13428 = vadd.f32 %v12005, %v12905
  %v13429 = vadd.f32 %v12006, %v12907
  %v13430 = vadd.f32 %v12007, %v12909
  %v13431 = vadd.f32 %v12008, %v12913
  %v13432 = vadd.f32 %v12009, %v12916
  %v13433 = vadd.f32 %v12010, %v12919
  %v13434 = vadd.f32 %v12011, %v12922
  %v13435 = vadd.f32 %v12012, %v12924
  %v13436 = vadd.f32 %v12013, %v12926
  %v13437 = vadd.f32 %v12014, %v12928
  %v13438 = vadd.f32 %v12015, %v12930
  %v13439 = vadd.f32 %v12016, %v12932
  %v13440 = vadd.f32 %v12017, %v12934
  %v13441 = vadd.f32 %v12018, %v12936
  %v13442 = vadd.f32 %v12019, %v12938
  %v13443 = vadd.f32 %v12020, %v12931
  %v13444 = vadd.f32 %v12021, %v12933
  %v13445 = vadd.f32 %v12022, %v12935
  %v13446 = vadd.f32 %v12023, %v12937
  %v13447 = vadd.f32 %v12024, %v12941
  %v13448 = vadd.f32 %v12025, %v12944
  %v13449 = vadd.f32 %v12026, %v12947
  %v13450 = vadd.f32 %v12027, %v12950
  %v13451 = vadd.f32 %v12028, %v12952
  %v13452 = vadd.f32 %v12029, %v12954
  %v13453 = vadd.f32 %v12030, %v12956
  %v13454 = vadd.f32 %v12031, %v12958
  %v13455 = vadd.f32 %v12032, %v12960
  %v13456 = vadd.f32 %v12033, %v12962
  %v13457 = vadd.f32 %v12034, %v12964
  %v13458 = vadd.f32 %v12035, %v12966
  %v13459 = vadd.f32 %v12036, %v12959
  %v13460 = vadd.f32 %v12037, %v12961
  %v13461 = vadd.f32 %v12038, %v12963
  %v13462 = vadd.f32 %v12039, %v12965
  %v13463 = vadd.f32 %v12040, %v12969
  %v13464 = vadd.f32 %v12041, %v12972
  %v13465 = vadd.f32 %v12042, %v12975
  %v13466 = vadd.f32 %v12043, %v12978
  %v13467 = vadd.f32 %v12044, %v12980
  %v13468 = vadd.f32 %v12045, %v12982
  %v13469 = vadd.f32 %v12046, %v12984
  %v13470 = vadd.f32 %v12047, %v12986
  %v13471 = vadd.f32 %v12048, %v12988
  %v13472 = vadd.f32 %v12049, %v12990
  %v13473 = vadd.f32 %v12050, %v12992
  %v13474 = vadd.f32 %v12051, %v12994
  %v13475 = vadd.f32 %v12052, %v12987
  %v13476 = vadd.f32 %v12053, %v12989
  %v13477 = vadd.f32 %v12054, %v12991
  %v13478 = vadd.f32 %v12055, %v12993
  %v13479 = vadd.f32 %v12056, %v12997
  %v13480 = vadd.f32 %v12057, %v13000
  %v13481 = vadd.f32 %v12058, %v13003
  %v13482 = vadd.f32 %v12059, %v13006
  %v13483 = vadd.f32 %v12060, %v13008
  %v13484 = vadd.f32 %v12061, %v13010
  %v13485 = vadd.f32 %v12062, %v13012
  %v13486 = vadd.f32 %v12063, %v13014
  %v13487 = vadd.f32 %v12064, %v13016
  %v13488 = vadd.f32 %v12065, %v13018
  %v13489 = vadd.f32 %v12066, %v13020
  %v13490 = vadd.f32 %v12067, %v13022
  %v13491 = vadd.f32 %v12068, %v13015
  %v13492 = vadd.f32 %v12069, %v13017
  %v13493 = vadd.f32 %v12070, %v13019
  %v13494 = vadd.f32 %v12071, %v13021
  %v13495 = vadd.f32 %v12072, %v13025
  %v13496 = vadd.f32 %v12073, %v13028
  %v13497 = vadd.f32 %v12074, %v13031
  %v13498 = vadd.f32 %v12075, %v13034
  %v13499 = vadd.f32 %v12076, %v13036
  %v13500 = vadd.f32 %v12077, %v13038
  %v13501 = vadd.f32 %v12078, %v13040
  %v13502 = vadd.f32 %v12079, %v13042
  %v13503 = vadd.f32 %v12080, %v13044
  %v13504 = vadd.f32 %v12081, %v13046
  %v13505 = vadd.f32 %v12082, %v13048
  %v13506 = vadd.f32 %v12083, %v13050
  %v13507 = vadd.f32 %v12084, %v13043
  %v13508 = vadd.f32 %v12085, %v13045
  %v13509 = vadd.f32 %v12086, %v13047
  %v13510 = vadd.f32 %v12087, %v13049
  %v13511 = vadd.f32 %v12088, %v13053
  %v13512 = vadd.f32 %v12089, %v13056
  %v13513 = vadd.f32 %v12090, %v13059
  %v13514 = vadd.f32 %v12091, %v13062
  %v13515 = vadd.f32 %v12092, %v13064
  %v13516 = vadd.f32 %v12093, %v13066
  %v13517 = vadd.f32 %v12094, %v13068
  %v13518 = vadd.f32 %v12095, %v13070
  %v13519 = vadd.f32 %v12096, %v13072
  %v13520 = vadd.f32 %v12097, %v13074
  %v13521 = vadd.f32 %v12098, %v13076
  %v13522 = vadd.f32 %v12099, %v13078
  %v13523 = vadd.f32 %v12100, %v13071
  %v13524 = vadd.f32 %v12101, %v13073
  %v13525 = vadd.f32 %v12102, %v13075
  %v13526 = vadd.f32 %v12103, %v13077
  %13527 = vst [vmem:[%s2] sm:$0xff] %v13303
  %13528 = vst [vmem:[%s2 + $0x8] sm:$0xff] %v13304
  %13529 = vst [vmem:[%s2 + $0x10] sm:$0xff] %v13305
  %13530 = vst.msk [vmem:[%s2 + $0x18] sm:$0xff] %vm14, %v13306
  %13531 = vst [vmem:[%s2 + $0x20] sm:$0xff] %v13307
  %13532 = vst [vmem:[%s2 + $0x28] sm:$0xff] %v13308
  %13533 = vst [vmem:[%s2 + $0x30] sm:$0xff] %v13309
  %13534 = vst.msk [vmem:[%s2 + $0x38] sm:$0xff] %vm14, %v13310
  %13535 = vst [vmem:[%s2 + $0x40] sm:$0xff] %v13311
  %13536 = vst [vmem:[%s2 + $0x48] sm:$0xff] %v13312
  %13537 = vst [vmem:[%s2 + $0x50] sm:$0xff] %v13313
  %13538 = vst.msk [vmem:[%s2 + $0x58] sm:$0xff] %vm14, %v13314
  %13539 = vst [vmem:[%s2 + $0x60] sm:$0xf] %v13315
  %13540 = vst [vmem:[%s2 + $0x68] sm:$0xf] %v13316
  %13541 = vst [vmem:[%s2 + $0x70] sm:$0xf] %v13317
  %vm13542 = vcmask 388096
  %13543 = vst.msk [vmem:[%s2 + $0x78] sm:$0xf] %vm13542, %v13318
  %13544 = vst [vmem:[%s2 + $0x80] sm:$0xff] %v13319
  %13545 = vst [vmem:[%s2 + $0x88] sm:$0xff] %v13320
  %13546 = vst [vmem:[%s2 + $0x90] sm:$0xff] %v13321
  %13547 = vst.msk [vmem:[%s2 + $0x98] sm:$0xff] %vm14, %v13322
  %13548 = vst [vmem:[%s2 + $0xa0] sm:$0xff] %v13323
  %13549 = vst [vmem:[%s2 + $0xa8] sm:$0xff] %v13324
  %13550 = vst [vmem:[%s2 + $0xb0] sm:$0xff] %v13325
  %13551 = vst.msk [vmem:[%s2 + $0xb8] sm:$0xff] %vm14, %v13326
  %13552 = vst [vmem:[%s2 + $0xc0] sm:$0xff] %v13327
  %13553 = vst [vmem:[%s2 + $0xc8] sm:$0xff] %v13328
  %13554 = vst [vmem:[%s2 + $0xd0] sm:$0xff] %v13329
  %13555 = vst.msk [vmem:[%s2 + $0xd8] sm:$0xff] %vm14, %v13330
  %13556 = vst [vmem:[%s2 + $0xe0] sm:$0xf] %v13331
  %13557 = vst [vmem:[%s2 + $0xe8] sm:$0xf] %v13332
  %13558 = vst [vmem:[%s2 + $0xf0] sm:$0xf] %v13333
  %13559 = vst.msk [vmem:[%s2 + $0xf8] sm:$0xf] %vm13542, %v13334
  %13560 = vst [vmem:[%s2 + $0x100] sm:$0xff] %v13335
  %13561 = vst [vmem:[%s2 + $0x108] sm:$0xff] %v13336
  %13562 = vst [vmem:[%s2 + $0x110] sm:$0xff] %v13337
  %13563 = vst.msk [vmem:[%s2 + $0x118] sm:$0xff] %vm14, %v13338
  %13564 = vst [vmem:[%s2 + $0x120] sm:$0xff] %v13339
  %13565 = vst [vmem:[%s2 + $0x128] sm:$0xff] %v13340
  %13566 = vst [vmem:[%s2 + $0x130] sm:$0xff] %v13341
  %13567 = vst.msk [vmem:[%s2 + $0x138] sm:$0xff] %vm14, %v13342
  %13568 = vst [vmem:[%s2 + $0x140] sm:$0xff] %v13343
  %13569 = vst [vmem:[%s2 + $0x148] sm:$0xff] %v13344
  %13570 = vst [vmem:[%s2 + $0x150] sm:$0xff] %v13345
  %13571 = vst.msk [vmem:[%s2 + $0x158] sm:$0xff] %vm14, %v13346
  %13572 = vst [vmem:[%s2 + $0x160] sm:$0xf] %v13347
  %13573 = vst [vmem:[%s2 + $0x168] sm:$0xf] %v13348
  %13574 = vst [vmem:[%s2 + $0x170] sm:$0xf] %v13349
  %13575 = vst.msk [vmem:[%s2 + $0x178] sm:$0xf] %vm13542, %v13350
  %13576 = vst [vmem:[%s2 + $0x180] sm:$0xff] %v13351
  %13577 = vst [vmem:[%s2 + $0x188] sm:$0xff] %v13352
  %13578 = vst [vmem:[%s2 + $0x190] sm:$0xff] %v13353
  %13579 = vst.msk [vmem:[%s2 + $0x198] sm:$0xff] %vm14, %v13354
  %13580 = vst [vmem:[%s2 + $0x1a0] sm:$0xff] %v13355
  %13581 = vst [vmem:[%s2 + $0x1a8] sm:$0xff] %v13356
  %13582 = vst [vmem:[%s2 + $0x1b0] sm:$0xff] %v13357
  %13583 = vst.msk [vmem:[%s2 + $0x1b8] sm:$0xff] %vm14, %v13358
  %13584 = vst [vmem:[%s2 + $0x1c0] sm:$0xff] %v13359
  %13585 = vst [vmem:[%s2 + $0x1c8] sm:$0xff] %v13360
  %13586 = vst [vmem:[%s2 + $0x1d0] sm:$0xff] %v13361
  %13587 = vst.msk [vmem:[%s2 + $0x1d8] sm:$0xff] %vm14, %v13362
  %13588 = vst [vmem:[%s2 + $0x1e0] sm:$0xf] %v13363
  %13589 = vst [vmem:[%s2 + $0x1e8] sm:$0xf] %v13364
  %13590 = vst [vmem:[%s2 + $0x1f0] sm:$0xf] %v13365
  %13591 = vst.msk [vmem:[%s2 + $0x1f8] sm:$0xf] %vm13542, %v13366
  %13592 = vst [vmem:[%s2 + $0x200] sm:$0xff] %v13367
  %13593 = vst [vmem:[%s2 + $0x208] sm:$0xff] %v13368
  %13594 = vst [vmem:[%s2 + $0x210] sm:$0xff] %v13369
  %13595 = vst.msk [vmem:[%s2 + $0x218] sm:$0xff] %vm14, %v13370
  %13596 = vst [vmem:[%s2 + $0x220] sm:$0xff] %v13371
  %13597 = vst [vmem:[%s2 + $0x228] sm:$0xff] %v13372
  %13598 = vst [vmem:[%s2 + $0x230] sm:$0xff] %v13373
  %13599 = vst.msk [vmem:[%s2 + $0x238] sm:$0xff] %vm14, %v13374
  %13600 = vst [vmem:[%s2 + $0x240] sm:$0xff] %v13375
  %13601 = vst [vmem:[%s2 + $0x248] sm:$0xff] %v13376
  %13602 = vst [vmem:[%s2 + $0x250] sm:$0xff] %v13377
  %13603 = vst.msk [vmem:[%s2 + $0x258] sm:$0xff] %vm14, %v13378
  %13604 = vst [vmem:[%s2 + $0x260] sm:$0xf] %v13379
  %13605 = vst [vmem:[%s2 + $0x268] sm:$0xf] %v13380
  %13606 = vst [vmem:[%s2 + $0x270] sm:$0xf] %v13381
  %13607 = vst.msk [vmem:[%s2 + $0x278] sm:$0xf] %vm13542, %v13382
  %13608 = vst [vmem:[%s2 + $0x280] sm:$0xff] %v13383
  %13609 = vst [vmem:[%s2 + $0x288] sm:$0xff] %v13384
  %13610 = vst [vmem:[%s2 + $0x290] sm:$0xff] %v13385
  %13611 = vst.msk [vmem:[%s2 + $0x298] sm:$0xff] %vm14, %v13386
  %13612 = vst [vmem:[%s2 + $0x2a0] sm:$0xff] %v13387
  %13613 = vst [vmem:[%s2 + $0x2a8] sm:$0xff] %v13388
  %13614 = vst [vmem:[%s2 + $0x2b0] sm:$0xff] %v13389
  %13615 = vst.msk [vmem:[%s2 + $0x2b8] sm:$0xff] %vm14, %v13390
  %13616 = vst [vmem:[%s2 + $0x2c0] sm:$0xff] %v13391
  %13617 = vst [vmem:[%s2 + $0x2c8] sm:$0xff] %v13392
  %13618 = vst [vmem:[%s2 + $0x2d0] sm:$0xff] %v13393
  %13619 = vst.msk [vmem:[%s2 + $0x2d8] sm:$0xff] %vm14, %v13394
  %13620 = vst [vmem:[%s2 + $0x2e0] sm:$0xf] %v13395
  %13621 = vst [vmem:[%s2 + $0x2e8] sm:$0xf] %v13396
  %13622 = vst [vmem:[%s2 + $0x2f0] sm:$0xf] %v13397
  %13623 = vst.msk [vmem:[%s2 + $0x2f8] sm:$0xf] %vm13542, %v13398
  %13624 = vst [vmem:[%s2 + $0x300] sm:$0xff] %v13399
  %13625 = vst [vmem:[%s2 + $0x308] sm:$0xff] %v13400
  %13626 = vst [vmem:[%s2 + $0x310] sm:$0xff] %v13401
  %13627 = vst.msk [vmem:[%s2 + $0x318] sm:$0xff] %vm14, %v13402
  %13628 = vst [vmem:[%s2 + $0x320] sm:$0xff] %v13403
  %13629 = vst [vmem:[%s2 + $0x328] sm:$0xff] %v13404
  %13630 = vst [vmem:[%s2 + $0x330] sm:$0xff] %v13405
  %13631 = vst.msk [vmem:[%s2 + $0x338] sm:$0xff] %vm14, %v13406
  %13632 = vst [vmem:[%s2 + $0x340] sm:$0xff] %v13407
  %13633 = vst [vmem:[%s2 + $0x348] sm:$0xff] %v13408
  %13634 = vst [vmem:[%s2 + $0x350] sm:$0xff] %v13409
  %13635 = vst.msk [vmem:[%s2 + $0x358] sm:$0xff] %vm14, %v13410
  %13636 = vst [vmem:[%s2 + $0x360] sm:$0xf] %v13411
  %13637 = vst [vmem:[%s2 + $0x368] sm:$0xf] %v13412
  %13638 = vst [vmem:[%s2 + $0x370] sm:$0xf] %v13413
  %13639 = vst.msk [vmem:[%s2 + $0x378] sm:$0xf] %vm13542, %v13414
  %13640 = vst [vmem:[%s2 + $0x380] sm:$0xff] %v13415
  %13641 = vst [vmem:[%s2 + $0x388] sm:$0xff] %v13416
  %13642 = vst [vmem:[%s2 + $0x390] sm:$0xff] %v13417
  %13643 = vst.msk [vmem:[%s2 + $0x398] sm:$0xff] %vm14, %v13418
  %13644 = vst [vmem:[%s2 + $0x3a0] sm:$0xff] %v13419
  %13645 = vst [vmem:[%s2 + $0x3a8] sm:$0xff] %v13420
  %13646 = vst [vmem:[%s2 + $0x3b0] sm:$0xff] %v13421
  %13647 = vst.msk [vmem:[%s2 + $0x3b8] sm:$0xff] %vm14, %v13422
  %13648 = vst [vmem:[%s2 + $0x3c0] sm:$0xff] %v13423
  %13649 = vst [vmem:[%s2 + $0x3c8] sm:$0xff] %v13424
  %13650 = vst [vmem:[%s2 + $0x3d0] sm:$0xff] %v13425
  %13651 = vst.msk [vmem:[%s2 + $0x3d8] sm:$0xff] %vm14, %v13426
  %13652 = vst [vmem:[%s2 + $0x3e0] sm:$0xf] %v13427
  %13653 = vst [vmem:[%s2 + $0x3e8] sm:$0xf] %v13428
  %13654 = vst [vmem:[%s2 + $0x3f0] sm:$0xf] %v13429
  %13655 = vst.msk [vmem:[%s2 + $0x3f8] sm:$0xf] %vm13542, %v13430
  %13656 = vst [vmem:[%s2 + $0x400] sm:$0xff] %v13431
  %13657 = vst [vmem:[%s2 + $0x408] sm:$0xff] %v13432
  %13658 = vst [vmem:[%s2 + $0x410] sm:$0xff] %v13433
  %13659 = vst.msk [vmem:[%s2 + $0x418] sm:$0xff] %vm14, %v13434
  %13660 = vst [vmem:[%s2 + $0x420] sm:$0xff] %v13435
  %13661 = vst [vmem:[%s2 + $0x428] sm:$0xff] %v13436
  %13662 = vst [vmem:[%s2 + $0x430] sm:$0xff] %v13437
  %13663 = vst.msk [vmem:[%s2 + $0x438] sm:$0xff] %vm14, %v13438
  %13664 = vst [vmem:[%s2 + $0x440] sm:$0xff] %v13439
  %13665 = vst [vmem:[%s2 + $0x448] sm:$0xff] %v13440
  %13666 = vst [vmem:[%s2 + $0x450] sm:$0xff] %v13441
  %13667 = vst.msk [vmem:[%s2 + $0x458] sm:$0xff] %vm14, %v13442
  %13668 = vst [vmem:[%s2 + $0x460] sm:$0xf] %v13443
  %13669 = vst [vmem:[%s2 + $0x468] sm:$0xf] %v13444
  %13670 = vst [vmem:[%s2 + $0x470] sm:$0xf] %v13445
  %13671 = vst.msk [vmem:[%s2 + $0x478] sm:$0xf] %vm13542, %v13446
  %13672 = vst [vmem:[%s2 + $0x480] sm:$0xff] %v13447
  %13673 = vst [vmem:[%s2 + $0x488] sm:$0xff] %v13448
  %13674 = vst [vmem:[%s2 + $0x490] sm:$0xff] %v13449
  %13675 = vst.msk [vmem:[%s2 + $0x498] sm:$0xff] %vm14, %v13450
  %13676 = vst [vmem:[%s2 + $0x4a0] sm:$0xff] %v13451
  %13677 = vst [vmem:[%s2 + $0x4a8] sm:$0xff] %v13452
  %13678 = vst [vmem:[%s2 + $0x4b0] sm:$0xff] %v13453
  %13679 = vst.msk [vmem:[%s2 + $0x4b8] sm:$0xff] %vm14, %v13454
  %13680 = vst [vmem:[%s2 + $0x4c0] sm:$0xff] %v13455
  %13681 = vst [vmem:[%s2 + $0x4c8] sm:$0xff] %v13456
  %13682 = vst [vmem:[%s2 + $0x4d0] sm:$0xff] %v13457
  %13683 = vst.msk [vmem:[%s2 + $0x4d8] sm:$0xff] %vm14, %v13458
  %13684 = vst [vmem:[%s2 + $0x4e0] sm:$0xf] %v13459
  %13685 = vst [vmem:[%s2 + $0x4e8] sm:$0xf] %v13460
  %13686 = vst [vmem:[%s2 + $0x4f0] sm:$0xf] %v13461
  %13687 = vst.msk [vmem:[%s2 + $0x4f8] sm:$0xf] %vm13542, %v13462
  %13688 = vst [vmem:[%s2 + $0x500] sm:$0xff] %v13463
  %13689 = vst [vmem:[%s2 + $0x508] sm:$0xff] %v13464
  %13690 = vst [vmem:[%s2 + $0x510] sm:$0xff] %v13465
  %13691 = vst.msk [vmem:[%s2 + $0x518] sm:$0xff] %vm14, %v13466
  %13692 = vst [vmem:[%s2 + $0x520] sm:$0xff] %v13467
  %13693 = vst [vmem:[%s2 + $0x528] sm:$0xff] %v13468
  %13694 = vst [vmem:[%s2 + $0x530] sm:$0xff] %v13469
  %13695 = vst.msk [vmem:[%s2 + $0x538] sm:$0xff] %vm14, %v13470
  %13696 = vst [vmem:[%s2 + $0x540] sm:$0xff] %v13471
  %13697 = vst [vmem:[%s2 + $0x548] sm:$0xff] %v13472
  %13698 = vst [vmem:[%s2 + $0x550] sm:$0xff] %v13473
  %13699 = vst.msk [vmem:[%s2 + $0x558] sm:$0xff] %vm14, %v13474
  %13700 = vst [vmem:[%s2 + $0x560] sm:$0xf] %v13475
  %13701 = vst [vmem:[%s2 + $0x568] sm:$0xf] %v13476
  %13702 = vst [vmem:[%s2 + $0x570] sm:$0xf] %v13477
  %13703 = vst.msk [vmem:[%s2 + $0x578] sm:$0xf] %vm13542, %v13478
  %13704 = vst [vmem:[%s2 + $0x580] sm:$0xff] %v13479
  %13705 = vst [vmem:[%s2 + $0x588] sm:$0xff] %v13480
  %13706 = vst [vmem:[%s2 + $0x590] sm:$0xff] %v13481
  %13707 = vst.msk [vmem:[%s2 + $0x598] sm:$0xff] %vm14, %v13482
  %13708 = vst [vmem:[%s2 + $0x5a0] sm:$0xff] %v13483
  %13709 = vst [vmem:[%s2 + $0x5a8] sm:$0xff] %v13484
  %13710 = vst [vmem:[%s2 + $0x5b0] sm:$0xff] %v13485
  %13711 = vst.msk [vmem:[%s2 + $0x5b8] sm:$0xff] %vm14, %v13486
  %13712 = vst [vmem:[%s2 + $0x5c0] sm:$0xff] %v13487
  %13713 = vst [vmem:[%s2 + $0x5c8] sm:$0xff] %v13488
  %13714 = vst [vmem:[%s2 + $0x5d0] sm:$0xff] %v13489
  %13715 = vst.msk [vmem:[%s2 + $0x5d8] sm:$0xff] %vm14, %v13490
  %13716 = vst [vmem:[%s2 + $0x5e0] sm:$0xf] %v13491
  %13717 = vst [vmem:[%s2 + $0x5e8] sm:$0xf] %v13492
  %13718 = vst [vmem:[%s2 + $0x5f0] sm:$0xf] %v13493
  %13719 = vst.msk [vmem:[%s2 + $0x5f8] sm:$0xf] %vm13542, %v13494
  %13720 = vst [vmem:[%s2 + $0x600] sm:$0xff] %v13495
  %13721 = vst [vmem:[%s2 + $0x608] sm:$0xff] %v13496
  %13722 = vst [vmem:[%s2 + $0x610] sm:$0xff] %v13497
  %13723 = vst.msk [vmem:[%s2 + $0x618] sm:$0xff] %vm14, %v13498
  %13724 = vst [vmem:[%s2 + $0x620] sm:$0xff] %v13499
  %13725 = vst [vmem:[%s2 + $0x628] sm:$0xff] %v13500
  %13726 = vst [vmem:[%s2 + $0x630] sm:$0xff] %v13501
  %13727 = vst.msk [vmem:[%s2 + $0x638] sm:$0xff] %vm14, %v13502
  %13728 = vst [vmem:[%s2 + $0x640] sm:$0xff] %v13503
  %13729 = vst [vmem:[%s2 + $0x648] sm:$0xff] %v13504
  %13730 = vst [vmem:[%s2 + $0x650] sm:$0xff] %v13505
  %13731 = vst.msk [vmem:[%s2 + $0x658] sm:$0xff] %vm14, %v13506
  %13732 = vst [vmem:[%s2 + $0x660] sm:$0xf] %v13507
  %13733 = vst [vmem:[%s2 + $0x668] sm:$0xf] %v13508
  %13734 = vst [vmem:[%s2 + $0x670] sm:$0xf] %v13509
  %13735 = vst.msk [vmem:[%s2 + $0x678] sm:$0xf] %vm13542, %v13510
  %13736 = vst [vmem:[%s2 + $0x680] sm:$0xff] %v13511
  %13737 = vst [vmem:[%s2 + $0x688] sm:$0xff] %v13512
  %13738 = vst [vmem:[%s2 + $0x690] sm:$0xff] %v13513
  %13739 = vst.msk [vmem:[%s2 + $0x698] sm:$0xff] %vm14, %v13514
  %13740 = vst [vmem:[%s2 + $0x6a0] sm:$0xff] %v13515
  %13741 = vst [vmem:[%s2 + $0x6a8] sm:$0xff] %v13516
  %13742 = vst [vmem:[%s2 + $0x6b0] sm:$0xff] %v13517
  %13743 = vst.msk [vmem:[%s2 + $0x6b8] sm:$0xff] %vm14, %v13518
  %13744 = vst [vmem:[%s2 + $0x6c0] sm:$0xff] %v13519
  %13745 = vst [vmem:[%s2 + $0x6c8] sm:$0xff] %v13520
  %13746 = vst [vmem:[%s2 + $0x6d0] sm:$0xff] %v13521
  %13747 = vst.msk [vmem:[%s2 + $0x6d8] sm:$0xff] %vm14, %v13522
  %13748 = vst [vmem:[%s2 + $0x6e0] sm:$0xf] %v13523
  %13749 = vst [vmem:[%s2 + $0x6e8] sm:$0xf] %v13524
  %13750 = vst [vmem:[%s2 + $0x6f0] sm:$0xf] %v13525
  %13751 = vst.msk [vmem:[%s2 + $0x6f8] sm:$0xf] %vm13542, %v13526
  // Predicated region
  $region10: #{depthwise_conv2d_s2.1} parent=0 // pred_check
    _
  $region11: #{depthwise_conv2d_s2.1} parent=0 // pred_check_branch
    %13753 = sbr.rel (0) target = $region13
  $region12: #{depthwise_conv2d_s2.1} parent=0 // pred_region
    _
  $region13: #{depthwise_conv2d_s2.1} parent=0 // pred_fallthru
    _
  // Predicated region
  $region14: #{depthwise_conv2d_s2.1} parent=0 // pred_check
    _
  $region15: #{depthwise_conv2d_s2.1} parent=0 // pred_check_branch
    %13755 = sbr.rel (0) target = $region17
  $region16: #{depthwise_conv2d_s2.1} parent=0 // pred_region
    _
  $region17: #{depthwise_conv2d_s2.1} parent=0 // pred_fallthru
    _

</llo_original>
